<compile_context>
chip_gen: v7x
topology: tpu7x:2x2x1
jax: 0.10.0
libtpu: 0.0.40
codegen_flags: <defaults>
</compile_context>

<pallas_src>
import functools
import numpy as np
import jax
import jax.numpy as jnp
from jax import lax
from jax.experimental import pallas as pl
from jax.experimental.pallas import tpu as pltpu

TKEYS = ('ln1g', 'ln1b', 'wqkv', 'bqkv', 'wo', 'bo', 'ln2g', 'ln2b', 'w1', 'b1', 'w2', 'b2')


# ----------------------------------------------------------------------------
# The single fused kernel (grid = (batch,), everything VMEM-resident)
# ----------------------------------------------------------------------------

def _fused_mae_kernel(*refs, nblocks, enc_layers, dec_layers, heads_enc, heads_dec,
                      eps, slope):
    it = iter(refs)
    x_ref = next(it)              # (1, f, 2J)  f32, one batch item per grid step
    m_ref = next(it)              # (4, f, 2J)  f32 expanded masks
    t_ref = next(it)              # (4, 1, 2J)  f32 tiled mask tokens
    w1_ref = next(it); b1_ref = next(it)          # (4, 2J, lin) bf16 / (4, 1, lin) f32
    wa_ref = next(it); ba_ref = next(it)          # (4, nblk, lin, lin) / (4, nblk, 1, lin)
    wb_ref = next(it); bb_ref = next(it)
    w2_ref = next(it); b2_ref = next(it)          # (4, lin, C) / (4, 1, C)
    posv_enc_ref = next(it)       # (nvis, C)
    selvis_ref = next(it)         # (nvis, f)  0/1 selection matrix
    T_enc = tuple(next(it) for _ in range(12))
    lnG_ref = next(it); lnB_ref = next(it)        # (1, C)
    e2d_ref = next(it)            # (C, Cd) bf16
    posv_dec_ref = next(it)       # (nvis, Cd)
    posm_dec_ref = next(it)       # (nmsk, Cd)
    mtok_ref = next(it)           # (1, Cd)
    seltop_ref = next(it)         # (f, nvis)
    selbot_ref = next(it)         # (f, nmsk)
    T_dec = tuple(next(it) for _ in range(12))
    hw_ref = next(it)             # (Cd, 128) bf16, zero-padded beyond 5*J_out
    hb_ref = next(it)             # (1, 128)  f32
    out_ref = next(it)            # (1, f, 128)

    bf16 = jnp.bfloat16

    def mxu(a, w):
        # bf16 x bf16 MXU matmul with f32 accumulation
        return jnp.dot(a.astype(bf16), w, preferred_element_type=jnp.float32)

    def leaky(v):
        return jnp.where(v >= 0.0, v, slope * v)

    def layer_norm(v, g, b):
        c = v.shape[-1]
        mu = jnp.mean(v, axis=-1, keepdims=True)
        d = v - mu
        std = jnp.sqrt(jnp.sum(d * d, axis=-1, keepdims=True) / float(c - 1))  # torch.std (unbiased)
        return g * d / (std + eps) + b

    # ---------------- quad FCBlock encoder + elementwise product ----------------
    xb = x_ref[0]                                               # (f, 2J) f32
    prod = None
    for e in range(4):
        me = m_ref[e]                                           # (f, 2J)
        te = t_ref[e]                                           # (1, 2J)
        xe = xb * (1.0 - me) + te * me                          # masked-token blend
        h = leaky(mxu(xe, w1_ref[e]) + b1_ref[e])
        for kblk in range(nblocks):
            y = leaky(mxu(h, wa_ref[e, kblk]) + ba_ref[e, kblk])
            y = leaky(mxu(y, wb_ref[e, kblk]) + bb_ref[e, kblk])
            h = h + y                                           # residual
        oe = mxu(h, w2_ref[e]) + b2_ref[e]                      # (f, C)
        prod = oe if prod is None else prod * oe

    # ---------------- shared pre-LN transformer stack ----------------
    def run_stack(h, params, nlayers, nheads):
        ln1g, ln1b, wqkv, bqkv, wo, bo, ln2g, ln2b, fw1, fb1, fw2, fb2 = params
        dim = h.shape[-1]
        dh = dim // nheads
        scale = 1.0 / float(np.sqrt(dh))
        for l in range(nlayers):
            xn = layer_norm(h, ln1g[l], ln1b[l])
            qkv = mxu(xn, wqkv[l]) + bqkv[l]                    # (N, 3*dim) fused QKV
            per_head = []
            for hd in range(nheads):
                q = qkv[:, hd * dh:(hd + 1) * dh]
                k = qkv[:, dim + hd * dh: dim + (hd + 1) * dh]
                v = qkv[:, 2 * dim + hd * dh: 2 * dim + (hd + 1) * dh]
                s = lax.dot_general(q.astype(bf16), k.astype(bf16),
                                    (((1,), (1,)), ((), ())),
                                    preferred_element_type=jnp.float32) * scale
                s = s - jnp.max(s, axis=-1, keepdims=True)      # softmax in f32
                pe = jnp.exp(s)
                pe = pe / jnp.sum(pe, axis=-1, keepdims=True)
                per_head.append(jnp.dot(pe.astype(bf16), v.astype(bf16),
                                        preferred_element_type=jnp.float32))
            attn = jnp.concatenate(per_head, axis=-1)           # (N, dim)
            h = h + mxu(attn, wo[l]) + bo[l]                    # single output projection + residual
            xn2 = layer_norm(h, ln2g[l], ln2b[l])
            y = jnp.maximum(mxu(xn2, fw1[l]) + fb1[l], 0.0)
            h = h + mxu(y, fw2[l]) + fb2[l]
        return h

    # ---------------- encoder transformer over visible frames ----------------
    xv = jnp.dot(selvis_ref[...], prod,
                 preferred_element_type=jnp.float32) + posv_enc_ref[...]     # (nvis, C)
    henc = run_stack(xv, T_enc, enc_layers, heads_enc)

    # ---------------- encoder_LN + encoder_to_decoder ----------------
    feas = mxu(layer_norm(henc, lnG_ref[...], lnB_ref[...]), e2d_ref[...])   # (nvis, Cd)

    # ---------------- decoder sequence: [visible feats | mask tokens] ----------------
    top = feas + posv_dec_ref[...]                              # (nvis, Cd)
    bot = mtok_ref[...] + posm_dec_ref[...]                     # (nmsk, Cd)
    x_full = (jnp.dot(seltop_ref[...], top, preferred_element_type=jnp.float32)
              + jnp.dot(selbot_ref[...], bot, preferred_element_type=jnp.float32))  # (f, Cd)

    # ---------------- decoder transformer + lane-dense dual head ----------------
    hdec = run_stack(x_full, T_dec, dec_layers, heads_dec)
    out = mxu(hdec, hw_ref[...]) + hb_ref[...]                  # (f, 128) lane-dense
    out_ref[0] = out


# ----------------------------------------------------------------------------
# Cost estimate (advisory, lets XLA schedule glue ops around the kernel)
# ----------------------------------------------------------------------------

def _cost(args, out_shape, cfg, nvis, b):
    ba = sum(int(np.prod(a.shape)) * jnp.dtype(a.dtype).itemsize for a in args)
    ba += int(np.prod(out_shape.shape)) * 4
    f, jn, C = cfg['frames'], cfg['n_joints'], cfg['channel']
    lin, Cd, dh = 2 * C, C // 2, cfg['d_hid']
    enc_fc = 4 * (f * 2 * jn * lin + cfg['sem_layers'] * 2 * f * lin * lin + f * lin * C)
    enc_tr = cfg['layers'] * (nvis * C * 3 * C + 2 * nvis * nvis * C + nvis * C * C + 2 * nvis * C * dh)
    dec_tr = (cfg['layers'] - 1) * (f * Cd * 3 * Cd + 2 * f * f * Cd + f * Cd * Cd + 2 * f * Cd * (dh // 2))
    other = nvis * C * Cd + f * Cd * 128
    flops = 2 * b * (enc_fc + enc_tr + dec_tr + other)
    transc = b * (cfg['layers'] * cfg['heads_enc'] * nvis * nvis
                  + (cfg['layers'] - 1) * cfg['heads_dec'] * f * f)
    return int(flops), int(transc), int(ba)


# ----------------------------------------------------------------------------
# Full Model_MAE forward (ONE pallas_call)
# ----------------------------------------------------------------------------

def model_mae_forward(prep, static, x_in, spatial_mask, bone_mask, limb_mask1, limb_mask2, cfg):
    b = x_in.shape[0]
    f, j = cfg['frames'], cfg['n_joints']
    J_out = cfg['out_joints']

    # x_in[:, :, :, :, 0].permute(0, 2, 3, 1) -> (b, f, j, 2) -> (b, f, 2j)
    x = jnp.transpose(x_in[:, :, :, :, 0], (0, 2, 3, 1)).reshape(b, f, 2 * j)
    # expand (f, j) joint masks to the interleaved (f, 2j) lane layout [j0x, j0y, j1x, ...]
    M = jnp.repeat(jnp.stack([spatial_mask, bone_mask, limb_mask1, limb_mask2]).astype(jnp.float32),
                   2, axis=-1)

    E = prep['enc']
    args = [x, M, prep['tokens'],
            E['W1'], E['B1'], E['WA'], E['BA'], E['WB'], E['BB'], E['W2'], E['B2'],
            prep['pos_vis_enc'], static['sel_vis'],
            *[prep['T_enc'][k] for k in TKEYS],
            prep['encoder_LN_g'], prep['encoder_LN_b'], prep['enc2dec_w'],
            prep['pos_vis_dec'], prep['pos_msk_dec'], prep['mask_tok'],
            static['sel_top'], static['sel_bot'],
            *[prep['T_dec'][k] for k in TKEYS],
            prep['head_W'], prep['head_b']]

    def batched_spec(a):
        nd = a.ndim
        return pl.BlockSpec((1,) + a.shape[1:], lambda i, _nd=nd: (i,) + (0,) * (_nd - 1))

    def const_spec(a):
        nd = a.ndim
        return pl.BlockSpec(a.shape, lambda i, _nd=nd: (0,) * _nd)

    in_specs = [batched_spec(x)] + [const_spec(a) for a in args[1:]]
    out_shape = jax.ShapeDtypeStruct((b, f, 128), jnp.float32)
    out_specs = pl.BlockSpec((1, f, 128), lambda i: (i, 0, 0))

    kern = functools.partial(
        _fused_mae_kernel,
        nblocks=cfg['sem_layers'], enc_layers=cfg['layers'], dec_layers=cfg['layers'] - 1,
        heads_enc=cfg['heads_enc'], heads_dec=cfg['heads_dec'], eps=1e-6, slope=0.2)

    flops, transc, ba = _cost(args, out_shape, cfg, static['nvis'], b)

    out = pl.pallas_call(
        kern,
        out_shape=out_shape,
        grid=(b,),
        in_specs=in_specs,
        out_specs=out_specs,
        compiler_params=pltpu.CompilerParams(dimension_semantics=("parallel",)),
        cost_estimate=pl.CostEstimate(flops=flops, transcendentals=transc, bytes_accessed=ba),
    )(*args)

    # slice the lane-padded dual-head output, then the (tiny) torch-equivalent reshapes in XLA
    # TODO(synk): the final permute/unsqueeze chain stays in XLA (irregular 5-D output shapes).
    y2 = out[:, :, :2 * J_out]                  # (b, f, 2J)
    y3 = out[:, :, 2 * J_out:5 * J_out]         # (b, f, 3J)
    y3 = y3.transpose(0, 2, 1).reshape(b, J_out, 3, f).transpose(0, 2, 3, 1)[..., None]
    y2 = y2.transpose(0, 2, 1).reshape(b, J_out, 2, f).transpose(0, 2, 3, 1)[..., None]
    return y2, y3


# ----------------------------------------------------------------------------
# Parameters (deterministic synthetic init, mirrors the PyTorch module structure)
# ----------------------------------------------------------------------------

def init_params(key, cfg):
    keys = iter(jax.random.split(key, 256))

    def nk(shape):
        return jax.random.normal(next(keys), shape, jnp.float32)

    def make_bn(C):
        gamma = 1.0 + 0.1 * nk((C,))
        beta = 0.1 * nk((C,))
        mean = 0.1 * nk((C,))
        var = 1.0 + 0.1 * jnp.abs(nk((C,)))
        scale = gamma / jnp.sqrt(var + 1e-5)
        shift = beta - mean * scale
        return scale, shift

    def make_fcblock(c_in, c_out, lin, nblocks):
        P = {'fc1_w': 0.1 * nk((c_in, lin)), 'fc1_b': 0.1 * nk((lin,))}
        P['bn1_s'], P['bn1_t'] = make_bn(lin)
        blocks = []
        for _ in range(nblocks):
            blk = {'w1': 0.1 * nk((lin, lin)), 'b1': 0.1 * nk((lin,)),
                   'w2': 0.1 * nk((lin, lin)), 'b2': 0.1 * nk((lin,))}
            blk['bn1_s'], blk['bn1_t'] = make_bn(lin)
            blk['bn2_s'], blk['bn2_t'] = make_bn(lin)
            blocks.append(blk)
        P['blocks'] = blocks
        P['fc2_w'] = 0.1 * nk((lin, c_out))
        P['fc2_b'] = 0.1 * nk((c_out,))
        return P

    def make_tlayer(dim, hid):
        return {
            'ln1_g': jnp.ones((dim,), jnp.float32), 'ln1_b': jnp.zeros((dim,), jnp.float32),
            'wqkv': 0.1 * nk((dim, 3 * dim)), 'bqkv': jnp.zeros((3 * dim,), jnp.float32),
            'wo': 0.1 * nk((dim, dim)), 'bo': jnp.zeros((dim,), jnp.float32),
            'ln2_g': jnp.ones((dim,), jnp.float32), 'ln2_b': jnp.zeros((dim,), jnp.float32),
            'w1': 0.1 * nk((dim, hid)), 'b1': jnp.zeros((hid,), jnp.float32),
            'w2': 0.1 * nk((hid, dim)), 'b2': jnp.zeros((dim,), jnp.float32),
        }

    channel, d_hid, f = cfg['channel'], cfg['d_hid'], cfg['frames']
    J_in, J_out = cfg['n_joints'], cfg['out_joints']
    Cd = channel // 2

    P = {
        'spatial_mask_token': nk((1, 1, 2)),
        'bone_mask_token': nk((1, 1, 2)),
        'limb_mask1_token': nk((1, 1, 2)),
        'limb_mask2_token': nk((1, 1, 2)),
    }
    for name in ('encoder1', 'encoder2', 'encoder3', 'encoder4'):
        P[name] = make_fcblock(2 * J_in, channel, 2 * channel, cfg['sem_layers'])

    P['Transformer'] = {
        'pos': 0.1 * nk((1, f, channel)),
        'layers': [make_tlayer(channel, d_hid) for _ in range(cfg['layers'])],
    }
    P['Transformer_dec'] = {
        'layers': [make_tlayer(Cd, d_hid // 2) for _ in range(cfg['layers'] - 1)],
    }
    P['encoder_LN_g'] = jnp.ones((channel,), jnp.float32)
    P['encoder_LN_b'] = jnp.zeros((channel,), jnp.float32)
    P['enc2dec_w'] = 0.1 * nk((channel, Cd))
    P['dec_pos_embedding'] = nk((1, f, Cd))
    P['mask_token'] = nk((1, 1, Cd))
    P['fcn2d_bn_s'], P['fcn2d_bn_t'] = make_bn(Cd)
    P['fcn2d_w'] = 0.1 * nk((Cd, 2 * J_out))
    P['fcn2d_b'] = 0.1 * nk((2 * J_out,))
    P['fcn3d_bn_s'], P['fcn3d_bn_t'] = make_bn(Cd)
    P['fcn3d_w'] = 0.1 * nk((Cd, 3 * J_out))
    P['fcn3d_b'] = 0.1 * nk((3 * J_out,))
    return P


def prepare_params(P, cfg, mask_np):
    """Fold eval-mode BatchNorms into the adjacent matmul weights, stack per-encoder /
    per-layer weights along leading axes, cast matmul weights to bf16, pre-gather
    positional-embedding rows (static temporal mask), pad the dual head to 128 lanes."""
    channel = cfg['channel']; Cd = channel // 2
    j = cfg['n_joints']
    vis_idx = np.nonzero(~mask_np)[0]
    msk_idx = np.nonzero(mask_np)[0]
    bf16 = jnp.bfloat16

    def fold_after(w, bias, s, t):     # BN applied AFTER the matmul
        return w * s[None, :], bias * s + t

    def fold_before(w, bias, s, t):    # BN applied BEFORE the matmul
        return s[:, None] * w, t @ w + bias

    W1, B1, WA, BA, WB, BB, W2, B2 = ([] for _ in range(8))
    for E in (P['encoder1'], P['encoder2'], P['encoder3'], P['encoder4']):
        w1, b1 = fold_after(E['fc1_w'], E['fc1_b'], E['bn1_s'], E['bn1_t'])
        W1.append(w1.astype(bf16)); B1.append(b1.reshape(1, -1))
        wa, ba, wb, bb = [], [], [], []
        for blk in E['blocks']:
            w_a, b_a = fold_after(blk['w1'], blk['b1'], blk['bn1_s'], blk['bn1_t'])
            w_b, b_b = fold_after(blk['w2'], blk['b2'], blk['bn2_s'], blk['bn2_t'])
            wa.append(w_a.astype(bf16)); ba.append(b_a.reshape(1, -1))
            wb.append(w_b.astype(bf16)); bb.append(b_b.reshape(1, -1))
        WA.append(jnp.stack(wa)); BA.append(jnp.stack(ba))
        WB.append(jnp.stack(wb)); BB.append(jnp.stack(bb))
        W2.append(E['fc2_w'].astype(bf16)); B2.append(E['fc2_b'].reshape(1, -1))
    enc = dict(W1=jnp.stack(W1), B1=jnp.stack(B1), WA=jnp.stack(WA), BA=jnp.stack(BA),
               WB=jnp.stack(WB), BB=jnp.stack(BB), W2=jnp.stack(W2), B2=jnp.stack(B2))

    def stack_tlayers(layers, dim):
        acc = {k: [] for k in TKEYS}
        for L in layers:
            acc['ln1g'].append(L['ln1_g'].reshape(1, dim))
            acc['ln1b'].append(L['ln1_b'].reshape(1, dim))
            acc['wqkv'].append(L['wqkv'].astype(bf16))
            acc['bqkv'].append(L['bqkv'].reshape(1, 3 * dim))
            acc['wo'].append(L['wo'].astype(bf16))
            acc['bo'].append(L['bo'].reshape(1, dim))
            acc['ln2g'].append(L['ln2_g'].reshape(1, dim))
            acc['ln2b'].append(L['ln2_b'].reshape(1, dim))
            acc['w1'].append(L['w1'].astype(bf16)); acc['b1'].append(L['b1'].reshape(1, -1))
            acc['w2'].append(L['w2'].astype(bf16)); acc['b2'].append(L['b2'].reshape(1, dim))
        return {k: jnp.stack(v) for k, v in acc.items()}

    def tile_tok(tok):   # (1,1,2) -> (1, 2j) interleaved [x, y, x, y, ...]
        return jnp.tile(tok.reshape(1, 2), (1, j))
    tokens = jnp.stack([tile_tok(P['spatial_mask_token']), tile_tok(P['bone_mask_token']),
                        tile_tok(P['limb_mask1_token']), tile_tok(P['limb_mask2_token'])])

    # dual decoder head: [fcn_dec (2J) | fcn_dec_3d (3J)], BN folded, zero-padded to 128 lanes
    w2d, b2d = fold_before(P['fcn2d_w'], P['fcn2d_b'], P['fcn2d_bn_s'], P['fcn2d_bn_t'])
    w3d, b3d = fold_before(P['fcn3d_w'], P['fcn3d_b'], P['fcn3d_bn_s'], P['fcn3d_bn_t'])
    head_W = jnp.concatenate([w2d, w3d], axis=1)
    head_b = jnp.concatenate([b2d, b3d]).reshape(1, -1)
    pad = 128 - head_W.shape[1]
    head_W = jnp.pad(head_W, ((0, 0), (0, pad))).astype(bf16)
    head_b = jnp.pad(head_b, ((0, 0), (0, pad)))

    return dict(
        tokens=tokens,
        enc=enc,
        T_enc=stack_tlayers(P['Transformer']['layers'], channel),
        T_dec=stack_tlayers(P['Transformer_dec']['layers'], Cd),
        pos_vis_enc=P['Transformer']['pos'][0, vis_idx],
        encoder_LN_g=P['encoder_LN_g'].reshape(1, channel),
        encoder_LN_b=P['encoder_LN_b'].reshape(1, channel),
        enc2dec_w=P['enc2dec_w'].astype(bf16),
        pos_vis_dec=P['dec_pos_embedding'][0, vis_idx],
        pos_msk_dec=P['dec_pos_embedding'][0, msk_idx],
        mask_tok=P['mask_token'].reshape(1, Cd),
        head_W=head_W,
        head_b=head_b,
    )


def build_static(mask_np, f):
    """Static 0/1 selection matrices for visible-frame gather and decoder-sequence assembly."""
    vis_idx = np.nonzero(~mask_np)[0]
    msk_idx = np.nonzero(mask_np)[0]
    nvis, nmsk = len(vis_idx), len(msk_idx)
    sel_vis = np.zeros((nvis, f), np.float32)
    sel_vis[np.arange(nvis), vis_idx] = 1.0
    sel_top = np.zeros((f, nvis), np.float32)
    sel_top[np.arange(nvis), np.arange(nvis)] = 1.0
    sel_bot = np.zeros((f, nmsk), np.float32)
    sel_bot[nvis + np.arange(nmsk), np.arange(nmsk)] = 1.0
    return dict(nvis=nvis, nmsk=nmsk,
                sel_vis=jnp.asarray(sel_vis),
                sel_top=jnp.asarray(sel_top),
                sel_bot=jnp.asarray(sel_bot))


# ----------------------------------------------------------------------------
# Main
# ----------------------------------------------------------------------------

if __name__ == "__main__":
    cfg = dict(layers=2, channel=32, d_hid=64, frames=8, sem_layers=1,
               n_joints=8, out_joints=8, heads_enc=4, heads_dec=2,
               spatial_mask_num=2, limb_mask_num=1, hbody_mask_num=1)

    params = init_params(jax.random.PRNGKey(0), cfg)

    f, j = cfg['frames'], cfg['n_joints']
    mask_np = np.zeros((f,), dtype=bool)
    mask_np[[2, 5, 6]] = True                                   # temporal MAE mask (static)

    prep = prepare_params(params, cfg, mask_np)
    static = build_static(mask_np, f)

    b = 2
    x_in = jax.random.normal(jax.random.PRNGKey(1), (b, 2, f, j, 1), jnp.float32)

    # deterministic per-frame joint masks
    spatial_mask = np.zeros((f, j), dtype=bool)
    bone_mask = np.zeros((f, j), dtype=bool)
    limb_mask1 = np.zeros((f, j), dtype=bool)
    limb_mask2 = np.zeros((f, j), dtype=bool)
    for i in range(f):
        spatial_mask[i, [i % j, (i + 3) % j]] = True            # 2 joints / frame
        bone_mask[i, (i + 1) % j] = True                        # 1 bone / frame
        limb_mask1[i, [i % j, (i + 2) % j, (i + 5) % j]] = True          # 3 / frame
        limb_mask2[i, [(i + k) % j for k in range(6)]] = True            # 6 / frame

    fwd = jax.jit(lambda prep_, x_, sm, bm, lm1, lm2:
                  model_mae_forward(prep_, static, x_, sm, bm, lm1, lm2, cfg))

    y2d, y3d = fwd(prep, x_in,
                   jnp.asarray(spatial_mask), jnp.asarray(bone_mask),
                   jnp.asarray(limb_mask1), jnp.asarray(limb_mask2))

    jax.block_until_ready((y2d, y3d))
    assert y2d.shape == (b, 2, f, cfg['out_joints'], 1), y2d.shape
    assert y3d.shape == (b, 3, f, cfg['out_joints'], 1), y3d.shape
    assert bool(jnp.all(jnp.isfinite(y2d))) and bool(jnp.all(jnp.isfinite(y3d)))
    print("KERNEL_OK")
</pallas_src>

<mosaic_0001>
module attributes {stable_mosaic.version = 11 : i64} {
  func.func @_fused_mae_kernel(%arg0: i32, %arg1: memref<1x8x16xf32, #tpu.memory_space<vmem>>, %arg2: memref<4x8x16xf32, #tpu.memory_space<vmem>>, %arg3: memref<4x1x16xf32, #tpu.memory_space<vmem>>, %arg4: memref<4x16x64xbf16, #tpu.memory_space<vmem>>, %arg5: memref<4x1x64xf32, #tpu.memory_space<vmem>>, %arg6: memref<4x1x64x64xbf16, #tpu.memory_space<vmem>>, %arg7: memref<4x1x1x64xf32, #tpu.memory_space<vmem>>, %arg8: memref<4x1x64x64xbf16, #tpu.memory_space<vmem>>, %arg9: memref<4x1x1x64xf32, #tpu.memory_space<vmem>>, %arg10: memref<4x64x32xbf16, #tpu.memory_space<vmem>>, %arg11: memref<4x1x32xf32, #tpu.memory_space<vmem>>, %arg12: memref<5x32xf32, #tpu.memory_space<vmem>>, %arg13: memref<5x8xf32, #tpu.memory_space<vmem>>, %arg14: memref<2x1x32xf32, #tpu.memory_space<vmem>>, %arg15: memref<2x1x32xf32, #tpu.memory_space<vmem>>, %arg16: memref<2x32x96xbf16, #tpu.memory_space<vmem>>, %arg17: memref<2x1x96xf32, #tpu.memory_space<vmem>>, %arg18: memref<2x32x32xbf16, #tpu.memory_space<vmem>>, %arg19: memref<2x1x32xf32, #tpu.memory_space<vmem>>, %arg20: memref<2x1x32xf32, #tpu.memory_space<vmem>>, %arg21: memref<2x1x32xf32, #tpu.memory_space<vmem>>, %arg22: memref<2x32x64xbf16, #tpu.memory_space<vmem>>, %arg23: memref<2x1x64xf32, #tpu.memory_space<vmem>>, %arg24: memref<2x64x32xbf16, #tpu.memory_space<vmem>>, %arg25: memref<2x1x32xf32, #tpu.memory_space<vmem>>, %arg26: memref<1x32xf32, #tpu.memory_space<vmem>>, %arg27: memref<1x32xf32, #tpu.memory_space<vmem>>, %arg28: memref<32x16xbf16, #tpu.memory_space<vmem>>, %arg29: memref<5x16xf32, #tpu.memory_space<vmem>>, %arg30: memref<3x16xf32, #tpu.memory_space<vmem>>, %arg31: memref<1x16xf32, #tpu.memory_space<vmem>>, %arg32: memref<8x5xf32, #tpu.memory_space<vmem>>, %arg33: memref<8x3xf32, #tpu.memory_space<vmem>>, %arg34: memref<1x1x16xf32, #tpu.memory_space<vmem>>, %arg35: memref<1x1x16xf32, #tpu.memory_space<vmem>>, %arg36: memref<1x16x48xbf16, #tpu.memory_space<vmem>>, %arg37: memref<1x1x48xf32, #tpu.memory_space<vmem>>, %arg38: memref<1x16x16xbf16, #tpu.memory_space<vmem>>, %arg39: memref<1x1x16xf32, #tpu.memory_space<vmem>>, %arg40: memref<1x1x16xf32, #tpu.memory_space<vmem>>, %arg41: memref<1x1x16xf32, #tpu.memory_space<vmem>>, %arg42: memref<1x16x32xbf16, #tpu.memory_space<vmem>>, %arg43: memref<1x1x32xf32, #tpu.memory_space<vmem>>, %arg44: memref<1x32x16xbf16, #tpu.memory_space<vmem>>, %arg45: memref<1x1x16xf32, #tpu.memory_space<vmem>>, %arg46: memref<16x128xbf16, #tpu.memory_space<vmem>>, %arg47: memref<1x128xf32, #tpu.memory_space<vmem>>, %arg48: memref<1x8x128xf32, #tpu.memory_space<vmem>>) attributes {dimension_semantics = [#tpu.dimension_semantics<parallel>], iteration_bounds = array<i64: 2>, scalar_prefetch = 0 : i64, scratch_operands = 0 : i64, tpu.core_type = #tpu.core_type<tc>, window_params = [{transform_indices = @transform_0, window_bounds = array<i64: 1, 8, 16>}, {pipeline_mode = #tpu.pipeline_mode<synchronous>, transform_indices = @transform_1, window_bounds = array<i64: 4, 8, 16>}, {pipeline_mode = #tpu.pipeline_mode<synchronous>, transform_indices = @transform_2, window_bounds = array<i64: 4, 1, 16>}, {pipeline_mode = #tpu.pipeline_mode<synchronous>, transform_indices = @transform_3, window_bounds = array<i64: 4, 16, 64>}, {pipeline_mode = #tpu.pipeline_mode<synchronous>, transform_indices = @transform_4, window_bounds = array<i64: 4, 1, 64>}, {pipeline_mode = #tpu.pipeline_mode<synchronous>, transform_indices = @transform_5, window_bounds = array<i64: 4, 1, 64, 64>}, {pipeline_mode = #tpu.pipeline_mode<synchronous>, transform_indices = @transform_6, window_bounds = array<i64: 4, 1, 1, 64>}, {pipeline_mode = #tpu.pipeline_mode<synchronous>, transform_indices = @transform_7, window_bounds = array<i64: 4, 1, 64, 64>}, {pipeline_mode = #tpu.pipeline_mode<synchronous>, transform_indices = @transform_8, window_bounds = array<i64: 4, 1, 1, 64>}, {pipeline_mode = #tpu.pipeline_mode<synchronous>, transform_indices = @transform_9, window_bounds = array<i64: 4, 64, 32>}, {pipeline_mode = #tpu.pipeline_mode<synchronous>, transform_indices = @transform_10, window_bounds = array<i64: 4, 1, 32>}, {pipeline_mode = #tpu.pipeline_mode<synchronous>, transform_indices = @transform_11, window_bounds = array<i64: 5, 32>}, {pipeline_mode = #tpu.pipeline_mode<synchronous>, transform_indices = @transform_12, window_bounds = array<i64: 5, 8>}, {pipeline_mode = #tpu.pipeline_mode<synchronous>, transform_indices = @transform_13, window_bounds = array<i64: 2, 1, 32>}, {pipeline_mode = #tpu.pipeline_mode<synchronous>, transform_indices = @transform_14, window_bounds = array<i64: 2, 1, 32>}, {pipeline_mode = #tpu.pipeline_mode<synchronous>, transform_indices = @transform_15, window_bounds = array<i64: 2, 32, 96>}, {pipeline_mode = #tpu.pipeline_mode<synchronous>, transform_indices = @transform_16, window_bounds = array<i64: 2, 1, 96>}, {pipeline_mode = #tpu.pipeline_mode<synchronous>, transform_indices = @transform_17, window_bounds = array<i64: 2, 32, 32>}, {pipeline_mode = #tpu.pipeline_mode<synchronous>, transform_indices = @transform_18, window_bounds = array<i64: 2, 1, 32>}, {pipeline_mode = #tpu.pipeline_mode<synchronous>, transform_indices = @transform_19, window_bounds = array<i64: 2, 1, 32>}, {pipeline_mode = #tpu.pipeline_mode<synchronous>, transform_indices = @transform_20, window_bounds = array<i64: 2, 1, 32>}, {pipeline_mode = #tpu.pipeline_mode<synchronous>, transform_indices = @transform_21, window_bounds = array<i64: 2, 32, 64>}, {pipeline_mode = #tpu.pipeline_mode<synchronous>, transform_indices = @transform_22, window_bounds = array<i64: 2, 1, 64>}, {pipeline_mode = #tpu.pipeline_mode<synchronous>, transform_indices = @transform_23, window_bounds = array<i64: 2, 64, 32>}, {pipeline_mode = #tpu.pipeline_mode<synchronous>, transform_indices = @transform_24, window_bounds = array<i64: 2, 1, 32>}, {pipeline_mode = #tpu.pipeline_mode<synchronous>, transform_indices = @transform_25, window_bounds = array<i64: 1, 32>}, {pipeline_mode = #tpu.pipeline_mode<synchronous>, transform_indices = @transform_26, window_bounds = array<i64: 1, 32>}, {pipeline_mode = #tpu.pipeline_mode<synchronous>, transform_indices = @transform_27, window_bounds = array<i64: 32, 16>}, {pipeline_mode = #tpu.pipeline_mode<synchronous>, transform_indices = @transform_28, window_bounds = array<i64: 5, 16>}, {pipeline_mode = #tpu.pipeline_mode<synchronous>, transform_indices = @transform_29, window_bounds = array<i64: 3, 16>}, {pipeline_mode = #tpu.pipeline_mode<synchronous>, transform_indices = @transform_30, window_bounds = array<i64: 1, 16>}, {pipeline_mode = #tpu.pipeline_mode<synchronous>, transform_indices = @transform_31, window_bounds = array<i64: 8, 5>}, {pipeline_mode = #tpu.pipeline_mode<synchronous>, transform_indices = @transform_32, window_bounds = array<i64: 8, 3>}, {pipeline_mode = #tpu.pipeline_mode<synchronous>, transform_indices = @transform_33, window_bounds = array<i64: 1, 1, 16>}, {pipeline_mode = #tpu.pipeline_mode<synchronous>, transform_indices = @transform_34, window_bounds = array<i64: 1, 1, 16>}, {pipeline_mode = #tpu.pipeline_mode<synchronous>, transform_indices = @transform_35, window_bounds = array<i64: 1, 16, 48>}, {pipeline_mode = #tpu.pipeline_mode<synchronous>, transform_indices = @transform_36, window_bounds = array<i64: 1, 1, 48>}, {pipeline_mode = #tpu.pipeline_mode<synchronous>, transform_indices = @transform_37, window_bounds = array<i64: 1, 16, 16>}, {pipeline_mode = #tpu.pipeline_mode<synchronous>, transform_indices = @transform_38, window_bounds = array<i64: 1, 1, 16>}, {pipeline_mode = #tpu.pipeline_mode<synchronous>, transform_indices = @transform_39, window_bounds = array<i64: 1, 1, 16>}, {pipeline_mode = #tpu.pipeline_mode<synchronous>, transform_indices = @transform_40, window_bounds = array<i64: 1, 1, 16>}, {pipeline_mode = #tpu.pipeline_mode<synchronous>, transform_indices = @transform_41, window_bounds = array<i64: 1, 16, 32>}, {pipeline_mode = #tpu.pipeline_mode<synchronous>, transform_indices = @transform_42, window_bounds = array<i64: 1, 1, 32>}, {pipeline_mode = #tpu.pipeline_mode<synchronous>, transform_indices = @transform_43, window_bounds = array<i64: 1, 32, 16>}, {pipeline_mode = #tpu.pipeline_mode<synchronous>, transform_indices = @transform_44, window_bounds = array<i64: 1, 1, 16>}, {pipeline_mode = #tpu.pipeline_mode<synchronous>, transform_indices = @transform_45, window_bounds = array<i64: 16, 128>}, {pipeline_mode = #tpu.pipeline_mode<synchronous>, transform_indices = @transform_46, window_bounds = array<i64: 1, 128>}, {transform_indices = @transform_47, window_bounds = array<i64: 1, 8, 128>}]} {
    %c0 = arith.constant 0 : index
    %c0_0 = arith.constant 0 : index
    %c0_1 = arith.constant 0 : index
    %0 = vector.load %arg1[%c0, %c0_0, %c0_1] : memref<1x8x16xf32, #tpu.memory_space<vmem>>, vector<1x8x16xf32>
    %1 = vector.shape_cast %0 : vector<1x8x16xf32> to vector<8x16xf32>
    %c0_2 = arith.constant 0 : index
    %c0_3 = arith.constant 0 : index
    %c0_4 = arith.constant 0 : index
    %2 = vector.load %arg2[%c0_2, %c0_3, %c0_4] : memref<4x8x16xf32, #tpu.memory_space<vmem>>, vector<1x8x16xf32>
    %3 = vector.shape_cast %2 : vector<1x8x16xf32> to vector<8x16xf32>
    %c0_5 = arith.constant 0 : index
    %c0_6 = arith.constant 0 : index
    %c0_7 = arith.constant 0 : index
    %4 = vector.load %arg3[%c0_5, %c0_6, %c0_7] : memref<4x1x16xf32, #tpu.memory_space<vmem>>, vector<1x1x16xf32>
    %5 = vector.shape_cast %4 : vector<1x1x16xf32> to vector<1x16xf32>
    %cst = arith.constant 1.000000e+00 : f32
    %6 = vector.broadcast %cst : f32 to vector<8x16xf32>
    %7 = arith.subf %6, %3 : vector<8x16xf32>
    %8 = arith.mulf %1, %7 : vector<8x16xf32>
    %9 = vector.broadcast %5 : vector<1x16xf32> to vector<8x16xf32>
    %10 = arith.mulf %9, %3 : vector<8x16xf32>
    %11 = arith.addf %8, %10 : vector<8x16xf32>
    %c0_8 = arith.constant 0 : index
    %c0_9 = arith.constant 0 : index
    %c0_10 = arith.constant 0 : index
    %12 = vector.load %arg4[%c0_8, %c0_9, %c0_10] : memref<4x16x64xbf16, #tpu.memory_space<vmem>>, vector<1x16x64xbf16>
    %13 = vector.shape_cast %12 : vector<1x16x64xbf16> to vector<16x64xbf16>
    %14 = arith.truncf %11 : vector<8x16xf32> to vector<8x16xbf16>
    %cst_11 = arith.constant dense<0.000000e+00> : vector<8x64xf32>
    %15 = tpu.matmul %14, %13, %cst_11 {dimension_numbers = #tpu.dot_dimension_numbers<[1], [0], [0], [1], [0, 0, 1, 1], [], []>} : vector<8x16xbf16>, vector<16x64xbf16>, vector<8x64xf32> -> vector<8x64xf32>
    %c0_12 = arith.constant 0 : index
    %c0_13 = arith.constant 0 : index
    %c0_14 = arith.constant 0 : index
    %16 = vector.load %arg5[%c0_12, %c0_13, %c0_14] : memref<4x1x64xf32, #tpu.memory_space<vmem>>, vector<1x1x64xf32>
    %17 = vector.shape_cast %16 : vector<1x1x64xf32> to vector<1x64xf32>
    %18 = vector.broadcast %17 : vector<1x64xf32> to vector<8x64xf32>
    %19 = arith.addf %15, %18 : vector<8x64xf32>
    %cst_15 = arith.constant 0.000000e+00 : f32
    %20 = vector.broadcast %cst_15 : f32 to vector<8x64xf32>
    %21 = arith.cmpf oge, %19, %20 : vector<8x64xf32>
    %cst_16 = arith.constant 2.000000e-01 : f32
    %22 = vector.broadcast %cst_16 : f32 to vector<8x64xf32>
    %23 = arith.mulf %22, %19 : vector<8x64xf32>
    %24 = arith.select %21, %19, %23 : vector<8x64xi1>, vector<8x64xf32>
    %c0_17 = arith.constant 0 : index
    %c0_18 = arith.constant 0 : index
    %c0_19 = arith.constant 0 : index
    %c0_20 = arith.constant 0 : index
    %25 = vector.load %arg6[%c0_17, %c0_18, %c0_19, %c0_20] : memref<4x1x64x64xbf16, #tpu.memory_space<vmem>>, vector<1x1x64x64xbf16>
    %26 = vector.shape_cast %25 : vector<1x1x64x64xbf16> to vector<64x64xbf16>
    %27 = arith.truncf %24 : vector<8x64xf32> to vector<8x64xbf16>
    %cst_21 = arith.constant dense<0.000000e+00> : vector<8x64xf32>
    %28 = tpu.matmul %27, %26, %cst_21 {dimension_numbers = #tpu.dot_dimension_numbers<[1], [0], [0], [1], [0, 0, 1, 1], [], []>} : vector<8x64xbf16>, vector<64x64xbf16>, vector<8x64xf32> -> vector<8x64xf32>
    %c0_22 = arith.constant 0 : index
    %c0_23 = arith.constant 0 : index
    %c0_24 = arith.constant 0 : index
    %c0_25 = arith.constant 0 : index
    %29 = vector.load %arg7[%c0_22, %c0_23, %c0_24, %c0_25] : memref<4x1x1x64xf32, #tpu.memory_space<vmem>>, vector<1x1x1x64xf32>
    %30 = vector.shape_cast %29 : vector<1x1x1x64xf32> to vector<1x64xf32>
    %31 = vector.broadcast %30 : vector<1x64xf32> to vector<8x64xf32>
    %32 = arith.addf %28, %31 : vector<8x64xf32>
    %cst_26 = arith.constant 0.000000e+00 : f32
    %33 = vector.broadcast %cst_26 : f32 to vector<8x64xf32>
    %34 = arith.cmpf oge, %32, %33 : vector<8x64xf32>
    %cst_27 = arith.constant 2.000000e-01 : f32
    %35 = vector.broadcast %cst_27 : f32 to vector<8x64xf32>
    %36 = arith.mulf %35, %32 : vector<8x64xf32>
    %37 = arith.select %34, %32, %36 : vector<8x64xi1>, vector<8x64xf32>
    %c0_28 = arith.constant 0 : index
    %c0_29 = arith.constant 0 : index
    %c0_30 = arith.constant 0 : index
    %c0_31 = arith.constant 0 : index
    %38 = vector.load %arg8[%c0_28, %c0_29, %c0_30, %c0_31] : memref<4x1x64x64xbf16, #tpu.memory_space<vmem>>, vector<1x1x64x64xbf16>
    %39 = vector.shape_cast %38 : vector<1x1x64x64xbf16> to vector<64x64xbf16>
    %40 = arith.truncf %37 : vector<8x64xf32> to vector<8x64xbf16>
    %cst_32 = arith.constant dense<0.000000e+00> : vector<8x64xf32>
    %41 = tpu.matmul %40, %39, %cst_32 {dimension_numbers = #tpu.dot_dimension_numbers<[1], [0], [0], [1], [0, 0, 1, 1], [], []>} : vector<8x64xbf16>, vector<64x64xbf16>, vector<8x64xf32> -> vector<8x64xf32>
    %c0_33 = arith.constant 0 : index
    %c0_34 = arith.constant 0 : index
    %c0_35 = arith.constant 0 : index
    %c0_36 = arith.constant 0 : index
    %42 = vector.load %arg9[%c0_33, %c0_34, %c0_35, %c0_36] : memref<4x1x1x64xf32, #tpu.memory_space<vmem>>, vector<1x1x1x64xf32>
    %43 = vector.shape_cast %42 : vector<1x1x1x64xf32> to vector<1x64xf32>
    %44 = vector.broadcast %43 : vector<1x64xf32> to vector<8x64xf32>
    %45 = arith.addf %41, %44 : vector<8x64xf32>
    %cst_37 = arith.constant 0.000000e+00 : f32
    %46 = vector.broadcast %cst_37 : f32 to vector<8x64xf32>
    %47 = arith.cmpf oge, %45, %46 : vector<8x64xf32>
    %cst_38 = arith.constant 2.000000e-01 : f32
    %48 = vector.broadcast %cst_38 : f32 to vector<8x64xf32>
    %49 = arith.mulf %48, %45 : vector<8x64xf32>
    %50 = arith.select %47, %45, %49 : vector<8x64xi1>, vector<8x64xf32>
    %51 = arith.addf %24, %50 : vector<8x64xf32>
    %c0_39 = arith.constant 0 : index
    %c0_40 = arith.constant 0 : index
    %c0_41 = arith.constant 0 : index
    %52 = vector.load %arg10[%c0_39, %c0_40, %c0_41] : memref<4x64x32xbf16, #tpu.memory_space<vmem>>, vector<1x64x32xbf16>
    %53 = vector.shape_cast %52 : vector<1x64x32xbf16> to vector<64x32xbf16>
    %54 = arith.truncf %51 : vector<8x64xf32> to vector<8x64xbf16>
    %cst_42 = arith.constant dense<0.000000e+00> : vector<8x32xf32>
    %55 = tpu.matmul %54, %53, %cst_42 {dimension_numbers = #tpu.dot_dimension_numbers<[1], [0], [0], [1], [0, 0, 1, 1], [], []>} : vector<8x64xbf16>, vector<64x32xbf16>, vector<8x32xf32> -> vector<8x32xf32>
    %c0_43 = arith.constant 0 : index
    %c0_44 = arith.constant 0 : index
    %c0_45 = arith.constant 0 : index
    %56 = vector.load %arg11[%c0_43, %c0_44, %c0_45] : memref<4x1x32xf32, #tpu.memory_space<vmem>>, vector<1x1x32xf32>
    %57 = vector.shape_cast %56 : vector<1x1x32xf32> to vector<1x32xf32>
    %58 = vector.broadcast %57 : vector<1x32xf32> to vector<8x32xf32>
    %59 = arith.addf %55, %58 : vector<8x32xf32>
    %c1 = arith.constant 1 : index
    %c0_46 = arith.constant 0 : index
    %c0_47 = arith.constant 0 : index
    %60 = vector.load %arg2[%c1, %c0_46, %c0_47] : memref<4x8x16xf32, #tpu.memory_space<vmem>>, vector<1x8x16xf32>
    %61 = vector.shape_cast %60 : vector<1x8x16xf32> to vector<8x16xf32>
    %c1_48 = arith.constant 1 : index
    %c0_49 = arith.constant 0 : index
    %c0_50 = arith.constant 0 : index
    %62 = vector.load %arg3[%c1_48, %c0_49, %c0_50] : memref<4x1x16xf32, #tpu.memory_space<vmem>>, vector<1x1x16xf32>
    %63 = vector.shape_cast %62 : vector<1x1x16xf32> to vector<1x16xf32>
    %cst_51 = arith.constant 1.000000e+00 : f32
    %64 = vector.broadcast %cst_51 : f32 to vector<8x16xf32>
    %65 = arith.subf %64, %61 : vector<8x16xf32>
    %66 = arith.mulf %1, %65 : vector<8x16xf32>
    %67 = vector.broadcast %63 : vector<1x16xf32> to vector<8x16xf32>
    %68 = arith.mulf %67, %61 : vector<8x16xf32>
    %69 = arith.addf %66, %68 : vector<8x16xf32>
    %c1_52 = arith.constant 1 : index
    %c0_53 = arith.constant 0 : index
    %c0_54 = arith.constant 0 : index
    %70 = vector.load %arg4[%c1_52, %c0_53, %c0_54] : memref<4x16x64xbf16, #tpu.memory_space<vmem>>, vector<1x16x64xbf16>
    %71 = vector.shape_cast %70 : vector<1x16x64xbf16> to vector<16x64xbf16>
    %72 = arith.truncf %69 : vector<8x16xf32> to vector<8x16xbf16>
    %cst_55 = arith.constant dense<0.000000e+00> : vector<8x64xf32>
    %73 = tpu.matmul %72, %71, %cst_55 {dimension_numbers = #tpu.dot_dimension_numbers<[1], [0], [0], [1], [0, 0, 1, 1], [], []>} : vector<8x16xbf16>, vector<16x64xbf16>, vector<8x64xf32> -> vector<8x64xf32>
    %c1_56 = arith.constant 1 : index
    %c0_57 = arith.constant 0 : index
    %c0_58 = arith.constant 0 : index
    %74 = vector.load %arg5[%c1_56, %c0_57, %c0_58] : memref<4x1x64xf32, #tpu.memory_space<vmem>>, vector<1x1x64xf32>
    %75 = vector.shape_cast %74 : vector<1x1x64xf32> to vector<1x64xf32>
    %76 = vector.broadcast %75 : vector<1x64xf32> to vector<8x64xf32>
    %77 = arith.addf %73, %76 : vector<8x64xf32>
    %cst_59 = arith.constant 0.000000e+00 : f32
    %78 = vector.broadcast %cst_59 : f32 to vector<8x64xf32>
    %79 = arith.cmpf oge, %77, %78 : vector<8x64xf32>
    %cst_60 = arith.constant 2.000000e-01 : f32
    %80 = vector.broadcast %cst_60 : f32 to vector<8x64xf32>
    %81 = arith.mulf %80, %77 : vector<8x64xf32>
    %82 = arith.select %79, %77, %81 : vector<8x64xi1>, vector<8x64xf32>
    %c1_61 = arith.constant 1 : index
    %c0_62 = arith.constant 0 : index
    %c0_63 = arith.constant 0 : index
    %c0_64 = arith.constant 0 : index
    %83 = vector.load %arg6[%c1_61, %c0_62, %c0_63, %c0_64] : memref<4x1x64x64xbf16, #tpu.memory_space<vmem>>, vector<1x1x64x64xbf16>
    %84 = vector.shape_cast %83 : vector<1x1x64x64xbf16> to vector<64x64xbf16>
    %85 = arith.truncf %82 : vector<8x64xf32> to vector<8x64xbf16>
    %cst_65 = arith.constant dense<0.000000e+00> : vector<8x64xf32>
    %86 = tpu.matmul %85, %84, %cst_65 {dimension_numbers = #tpu.dot_dimension_numbers<[1], [0], [0], [1], [0, 0, 1, 1], [], []>} : vector<8x64xbf16>, vector<64x64xbf16>, vector<8x64xf32> -> vector<8x64xf32>
    %c1_66 = arith.constant 1 : index
    %c0_67 = arith.constant 0 : index
    %c0_68 = arith.constant 0 : index
    %c0_69 = arith.constant 0 : index
    %87 = vector.load %arg7[%c1_66, %c0_67, %c0_68, %c0_69] : memref<4x1x1x64xf32, #tpu.memory_space<vmem>>, vector<1x1x1x64xf32>
    %88 = vector.shape_cast %87 : vector<1x1x1x64xf32> to vector<1x64xf32>
    %89 = vector.broadcast %88 : vector<1x64xf32> to vector<8x64xf32>
    %90 = arith.addf %86, %89 : vector<8x64xf32>
    %cst_70 = arith.constant 0.000000e+00 : f32
    %91 = vector.broadcast %cst_70 : f32 to vector<8x64xf32>
    %92 = arith.cmpf oge, %90, %91 : vector<8x64xf32>
    %cst_71 = arith.constant 2.000000e-01 : f32
    %93 = vector.broadcast %cst_71 : f32 to vector<8x64xf32>
    %94 = arith.mulf %93, %90 : vector<8x64xf32>
    %95 = arith.select %92, %90, %94 : vector<8x64xi1>, vector<8x64xf32>
    %c1_72 = arith.constant 1 : index
    %c0_73 = arith.constant 0 : index
    %c0_74 = arith.constant 0 : index
    %c0_75 = arith.constant 0 : index
    %96 = vector.load %arg8[%c1_72, %c0_73, %c0_74, %c0_75] : memref<4x1x64x64xbf16, #tpu.memory_space<vmem>>, vector<1x1x64x64xbf16>
    %97 = vector.shape_cast %96 : vector<1x1x64x64xbf16> to vector<64x64xbf16>
    %98 = arith.truncf %95 : vector<8x64xf32> to vector<8x64xbf16>
    %cst_76 = arith.constant dense<0.000000e+00> : vector<8x64xf32>
    %99 = tpu.matmul %98, %97, %cst_76 {dimension_numbers = #tpu.dot_dimension_numbers<[1], [0], [0], [1], [0, 0, 1, 1], [], []>} : vector<8x64xbf16>, vector<64x64xbf16>, vector<8x64xf32> -> vector<8x64xf32>
    %c1_77 = arith.constant 1 : index
    %c0_78 = arith.constant 0 : index
    %c0_79 = arith.constant 0 : index
    %c0_80 = arith.constant 0 : index
    %100 = vector.load %arg9[%c1_77, %c0_78, %c0_79, %c0_80] : memref<4x1x1x64xf32, #tpu.memory_space<vmem>>, vector<1x1x1x64xf32>
    %101 = vector.shape_cast %100 : vector<1x1x1x64xf32> to vector<1x64xf32>
    %102 = vector.broadcast %101 : vector<1x64xf32> to vector<8x64xf32>
    %103 = arith.addf %99, %102 : vector<8x64xf32>
    %cst_81 = arith.constant 0.000000e+00 : f32
    %104 = vector.broadcast %cst_81 : f32 to vector<8x64xf32>
    %105 = arith.cmpf oge, %103, %104 : vector<8x64xf32>
    %cst_82 = arith.constant 2.000000e-01 : f32
    %106 = vector.broadcast %cst_82 : f32 to vector<8x64xf32>
    %107 = arith.mulf %106, %103 : vector<8x64xf32>
    %108 = arith.select %105, %103, %107 : vector<8x64xi1>, vector<8x64xf32>
    %109 = arith.addf %82, %108 : vector<8x64xf32>
    %c1_83 = arith.constant 1 : index
    %c0_84 = arith.constant 0 : index
    %c0_85 = arith.constant 0 : index
    %110 = vector.load %arg10[%c1_83, %c0_84, %c0_85] : memref<4x64x32xbf16, #tpu.memory_space<vmem>>, vector<1x64x32xbf16>
    %111 = vector.shape_cast %110 : vector<1x64x32xbf16> to vector<64x32xbf16>
    %112 = arith.truncf %109 : vector<8x64xf32> to vector<8x64xbf16>
    %cst_86 = arith.constant dense<0.000000e+00> : vector<8x32xf32>
    %113 = tpu.matmul %112, %111, %cst_86 {dimension_numbers = #tpu.dot_dimension_numbers<[1], [0], [0], [1], [0, 0, 1, 1], [], []>} : vector<8x64xbf16>, vector<64x32xbf16>, vector<8x32xf32> -> vector<8x32xf32>
    %c1_87 = arith.constant 1 : index
    %c0_88 = arith.constant 0 : index
    %c0_89 = arith.constant 0 : index
    %114 = vector.load %arg11[%c1_87, %c0_88, %c0_89] : memref<4x1x32xf32, #tpu.memory_space<vmem>>, vector<1x1x32xf32>
    %115 = vector.shape_cast %114 : vector<1x1x32xf32> to vector<1x32xf32>
    %116 = vector.broadcast %115 : vector<1x32xf32> to vector<8x32xf32>
    %117 = arith.addf %113, %116 : vector<8x32xf32>
    %118 = arith.mulf %59, %117 : vector<8x32xf32>
    %c2 = arith.constant 2 : index
    %c0_90 = arith.constant 0 : index
    %c0_91 = arith.constant 0 : index
    %119 = vector.load %arg2[%c2, %c0_90, %c0_91] : memref<4x8x16xf32, #tpu.memory_space<vmem>>, vector<1x8x16xf32>
    %120 = vector.shape_cast %119 : vector<1x8x16xf32> to vector<8x16xf32>
    %c2_92 = arith.constant 2 : index
    %c0_93 = arith.constant 0 : index
    %c0_94 = arith.constant 0 : index
    %121 = vector.load %arg3[%c2_92, %c0_93, %c0_94] : memref<4x1x16xf32, #tpu.memory_space<vmem>>, vector<1x1x16xf32>
    %122 = vector.shape_cast %121 : vector<1x1x16xf32> to vector<1x16xf32>
    %cst_95 = arith.constant 1.000000e+00 : f32
    %123 = vector.broadcast %cst_95 : f32 to vector<8x16xf32>
    %124 = arith.subf %123, %120 : vector<8x16xf32>
    %125 = arith.mulf %1, %124 : vector<8x16xf32>
    %126 = vector.broadcast %122 : vector<1x16xf32> to vector<8x16xf32>
    %127 = arith.mulf %126, %120 : vector<8x16xf32>
    %128 = arith.addf %125, %127 : vector<8x16xf32>
    %c2_96 = arith.constant 2 : index
    %c0_97 = arith.constant 0 : index
    %c0_98 = arith.constant 0 : index
    %129 = vector.load %arg4[%c2_96, %c0_97, %c0_98] : memref<4x16x64xbf16, #tpu.memory_space<vmem>>, vector<1x16x64xbf16>
    %130 = vector.shape_cast %129 : vector<1x16x64xbf16> to vector<16x64xbf16>
    %131 = arith.truncf %128 : vector<8x16xf32> to vector<8x16xbf16>
    %cst_99 = arith.constant dense<0.000000e+00> : vector<8x64xf32>
    %132 = tpu.matmul %131, %130, %cst_99 {dimension_numbers = #tpu.dot_dimension_numbers<[1], [0], [0], [1], [0, 0, 1, 1], [], []>} : vector<8x16xbf16>, vector<16x64xbf16>, vector<8x64xf32> -> vector<8x64xf32>
    %c2_100 = arith.constant 2 : index
    %c0_101 = arith.constant 0 : index
    %c0_102 = arith.constant 0 : index
    %133 = vector.load %arg5[%c2_100, %c0_101, %c0_102] : memref<4x1x64xf32, #tpu.memory_space<vmem>>, vector<1x1x64xf32>
    %134 = vector.shape_cast %133 : vector<1x1x64xf32> to vector<1x64xf32>
    %135 = vector.broadcast %134 : vector<1x64xf32> to vector<8x64xf32>
    %136 = arith.addf %132, %135 : vector<8x64xf32>
    %cst_103 = arith.constant 0.000000e+00 : f32
    %137 = vector.broadcast %cst_103 : f32 to vector<8x64xf32>
    %138 = arith.cmpf oge, %136, %137 : vector<8x64xf32>
    %cst_104 = arith.constant 2.000000e-01 : f32
    %139 = vector.broadcast %cst_104 : f32 to vector<8x64xf32>
    %140 = arith.mulf %139, %136 : vector<8x64xf32>
    %141 = arith.select %138, %136, %140 : vector<8x64xi1>, vector<8x64xf32>
    %c2_105 = arith.constant 2 : index
    %c0_106 = arith.constant 0 : index
    %c0_107 = arith.constant 0 : index
    %c0_108 = arith.constant 0 : index
    %142 = vector.load %arg6[%c2_105, %c0_106, %c0_107, %c0_108] : memref<4x1x64x64xbf16, #tpu.memory_space<vmem>>, vector<1x1x64x64xbf16>
    %143 = vector.shape_cast %142 : vector<1x1x64x64xbf16> to vector<64x64xbf16>
    %144 = arith.truncf %141 : vector<8x64xf32> to vector<8x64xbf16>
    %cst_109 = arith.constant dense<0.000000e+00> : vector<8x64xf32>
    %145 = tpu.matmul %144, %143, %cst_109 {dimension_numbers = #tpu.dot_dimension_numbers<[1], [0], [0], [1], [0, 0, 1, 1], [], []>} : vector<8x64xbf16>, vector<64x64xbf16>, vector<8x64xf32> -> vector<8x64xf32>
    %c2_110 = arith.constant 2 : index
    %c0_111 = arith.constant 0 : index
    %c0_112 = arith.constant 0 : index
    %c0_113 = arith.constant 0 : index
    %146 = vector.load %arg7[%c2_110, %c0_111, %c0_112, %c0_113] : memref<4x1x1x64xf32, #tpu.memory_space<vmem>>, vector<1x1x1x64xf32>
    %147 = vector.shape_cast %146 : vector<1x1x1x64xf32> to vector<1x64xf32>
    %148 = vector.broadcast %147 : vector<1x64xf32> to vector<8x64xf32>
    %149 = arith.addf %145, %148 : vector<8x64xf32>
    %cst_114 = arith.constant 0.000000e+00 : f32
    %150 = vector.broadcast %cst_114 : f32 to vector<8x64xf32>
    %151 = arith.cmpf oge, %149, %150 : vector<8x64xf32>
    %cst_115 = arith.constant 2.000000e-01 : f32
    %152 = vector.broadcast %cst_115 : f32 to vector<8x64xf32>
    %153 = arith.mulf %152, %149 : vector<8x64xf32>
    %154 = arith.select %151, %149, %153 : vector<8x64xi1>, vector<8x64xf32>
    %c2_116 = arith.constant 2 : index
    %c0_117 = arith.constant 0 : index
    %c0_118 = arith.constant 0 : index
    %c0_119 = arith.constant 0 : index
    %155 = vector.load %arg8[%c2_116, %c0_117, %c0_118, %c0_119] : memref<4x1x64x64xbf16, #tpu.memory_space<vmem>>, vector<1x1x64x64xbf16>
    %156 = vector.shape_cast %155 : vector<1x1x64x64xbf16> to vector<64x64xbf16>
    %157 = arith.truncf %154 : vector<8x64xf32> to vector<8x64xbf16>
    %cst_120 = arith.constant dense<0.000000e+00> : vector<8x64xf32>
    %158 = tpu.matmul %157, %156, %cst_120 {dimension_numbers = #tpu.dot_dimension_numbers<[1], [0], [0], [1], [0, 0, 1, 1], [], []>} : vector<8x64xbf16>, vector<64x64xbf16>, vector<8x64xf32> -> vector<8x64xf32>
    %c2_121 = arith.constant 2 : index
    %c0_122 = arith.constant 0 : index
    %c0_123 = arith.constant 0 : index
    %c0_124 = arith.constant 0 : index
    %159 = vector.load %arg9[%c2_121, %c0_122, %c0_123, %c0_124] : memref<4x1x1x64xf32, #tpu.memory_space<vmem>>, vector<1x1x1x64xf32>
    %160 = vector.shape_cast %159 : vector<1x1x1x64xf32> to vector<1x64xf32>
    %161 = vector.broadcast %160 : vector<1x64xf32> to vector<8x64xf32>
    %162 = arith.addf %158, %161 : vector<8x64xf32>
    %cst_125 = arith.constant 0.000000e+00 : f32
    %163 = vector.broadcast %cst_125 : f32 to vector<8x64xf32>
    %164 = arith.cmpf oge, %162, %163 : vector<8x64xf32>
    %cst_126 = arith.constant 2.000000e-01 : f32
    %165 = vector.broadcast %cst_126 : f32 to vector<8x64xf32>
    %166 = arith.mulf %165, %162 : vector<8x64xf32>
    %167 = arith.select %164, %162, %166 : vector<8x64xi1>, vector<8x64xf32>
    %168 = arith.addf %141, %167 : vector<8x64xf32>
    %c2_127 = arith.constant 2 : index
    %c0_128 = arith.constant 0 : index
    %c0_129 = arith.constant 0 : index
    %169 = vector.load %arg10[%c2_127, %c0_128, %c0_129] : memref<4x64x32xbf16, #tpu.memory_space<vmem>>, vector<1x64x32xbf16>
    %170 = vector.shape_cast %169 : vector<1x64x32xbf16> to vector<64x32xbf16>
    %171 = arith.truncf %168 : vector<8x64xf32> to vector<8x64xbf16>
    %cst_130 = arith.constant dense<0.000000e+00> : vector<8x32xf32>
    %172 = tpu.matmul %171, %170, %cst_130 {dimension_numbers = #tpu.dot_dimension_numbers<[1], [0], [0], [1], [0, 0, 1, 1], [], []>} : vector<8x64xbf16>, vector<64x32xbf16>, vector<8x32xf32> -> vector<8x32xf32>
    %c2_131 = arith.constant 2 : index
    %c0_132 = arith.constant 0 : index
    %c0_133 = arith.constant 0 : index
    %173 = vector.load %arg11[%c2_131, %c0_132, %c0_133] : memref<4x1x32xf32, #tpu.memory_space<vmem>>, vector<1x1x32xf32>
    %174 = vector.shape_cast %173 : vector<1x1x32xf32> to vector<1x32xf32>
    %175 = vector.broadcast %174 : vector<1x32xf32> to vector<8x32xf32>
    %176 = arith.addf %172, %175 : vector<8x32xf32>
    %177 = arith.mulf %118, %176 : vector<8x32xf32>
    %c3 = arith.constant 3 : index
    %c0_134 = arith.constant 0 : index
    %c0_135 = arith.constant 0 : index
    %178 = vector.load %arg2[%c3, %c0_134, %c0_135] : memref<4x8x16xf32, #tpu.memory_space<vmem>>, vector<1x8x16xf32>
    %179 = vector.shape_cast %178 : vector<1x8x16xf32> to vector<8x16xf32>
    %c3_136 = arith.constant 3 : index
    %c0_137 = arith.constant 0 : index
    %c0_138 = arith.constant 0 : index
    %180 = vector.load %arg3[%c3_136, %c0_137, %c0_138] : memref<4x1x16xf32, #tpu.memory_space<vmem>>, vector<1x1x16xf32>
    %181 = vector.shape_cast %180 : vector<1x1x16xf32> to vector<1x16xf32>
    %cst_139 = arith.constant 1.000000e+00 : f32
    %182 = vector.broadcast %cst_139 : f32 to vector<8x16xf32>
    %183 = arith.subf %182, %179 : vector<8x16xf32>
    %184 = arith.mulf %1, %183 : vector<8x16xf32>
    %185 = vector.broadcast %181 : vector<1x16xf32> to vector<8x16xf32>
    %186 = arith.mulf %185, %179 : vector<8x16xf32>
    %187 = arith.addf %184, %186 : vector<8x16xf32>
    %c3_140 = arith.constant 3 : index
    %c0_141 = arith.constant 0 : index
    %c0_142 = arith.constant 0 : index
    %188 = vector.load %arg4[%c3_140, %c0_141, %c0_142] : memref<4x16x64xbf16, #tpu.memory_space<vmem>>, vector<1x16x64xbf16>
    %189 = vector.shape_cast %188 : vector<1x16x64xbf16> to vector<16x64xbf16>
    %190 = arith.truncf %187 : vector<8x16xf32> to vector<8x16xbf16>
    %cst_143 = arith.constant dense<0.000000e+00> : vector<8x64xf32>
    %191 = tpu.matmul %190, %189, %cst_143 {dimension_numbers = #tpu.dot_dimension_numbers<[1], [0], [0], [1], [0, 0, 1, 1], [], []>} : vector<8x16xbf16>, vector<16x64xbf16>, vector<8x64xf32> -> vector<8x64xf32>
    %c3_144 = arith.constant 3 : index
    %c0_145 = arith.constant 0 : index
    %c0_146 = arith.constant 0 : index
    %192 = vector.load %arg5[%c3_144, %c0_145, %c0_146] : memref<4x1x64xf32, #tpu.memory_space<vmem>>, vector<1x1x64xf32>
    %193 = vector.shape_cast %192 : vector<1x1x64xf32> to vector<1x64xf32>
    %194 = vector.broadcast %193 : vector<1x64xf32> to vector<8x64xf32>
    %195 = arith.addf %191, %194 : vector<8x64xf32>
    %cst_147 = arith.constant 0.000000e+00 : f32
    %196 = vector.broadcast %cst_147 : f32 to vector<8x64xf32>
    %197 = arith.cmpf oge, %195, %196 : vector<8x64xf32>
    %cst_148 = arith.constant 2.000000e-01 : f32
    %198 = vector.broadcast %cst_148 : f32 to vector<8x64xf32>
    %199 = arith.mulf %198, %195 : vector<8x64xf32>
    %200 = arith.select %197, %195, %199 : vector<8x64xi1>, vector<8x64xf32>
    %c3_149 = arith.constant 3 : index
    %c0_150 = arith.constant 0 : index
    %c0_151 = arith.constant 0 : index
    %c0_152 = arith.constant 0 : index
    %201 = vector.load %arg6[%c3_149, %c0_150, %c0_151, %c0_152] : memref<4x1x64x64xbf16, #tpu.memory_space<vmem>>, vector<1x1x64x64xbf16>
    %202 = vector.shape_cast %201 : vector<1x1x64x64xbf16> to vector<64x64xbf16>
    %203 = arith.truncf %200 : vector<8x64xf32> to vector<8x64xbf16>
    %cst_153 = arith.constant dense<0.000000e+00> : vector<8x64xf32>
    %204 = tpu.matmul %203, %202, %cst_153 {dimension_numbers = #tpu.dot_dimension_numbers<[1], [0], [0], [1], [0, 0, 1, 1], [], []>} : vector<8x64xbf16>, vector<64x64xbf16>, vector<8x64xf32> -> vector<8x64xf32>
    %c3_154 = arith.constant 3 : index
    %c0_155 = arith.constant 0 : index
    %c0_156 = arith.constant 0 : index
    %c0_157 = arith.constant 0 : index
    %205 = vector.load %arg7[%c3_154, %c0_155, %c0_156, %c0_157] : memref<4x1x1x64xf32, #tpu.memory_space<vmem>>, vector<1x1x1x64xf32>
    %206 = vector.shape_cast %205 : vector<1x1x1x64xf32> to vector<1x64xf32>
    %207 = vector.broadcast %206 : vector<1x64xf32> to vector<8x64xf32>
    %208 = arith.addf %204, %207 : vector<8x64xf32>
    %cst_158 = arith.constant 0.000000e+00 : f32
    %209 = vector.broadcast %cst_158 : f32 to vector<8x64xf32>
    %210 = arith.cmpf oge, %208, %209 : vector<8x64xf32>
    %cst_159 = arith.constant 2.000000e-01 : f32
    %211 = vector.broadcast %cst_159 : f32 to vector<8x64xf32>
    %212 = arith.mulf %211, %208 : vector<8x64xf32>
    %213 = arith.select %210, %208, %212 : vector<8x64xi1>, vector<8x64xf32>
    %c3_160 = arith.constant 3 : index
    %c0_161 = arith.constant 0 : index
    %c0_162 = arith.constant 0 : index
    %c0_163 = arith.constant 0 : index
    %214 = vector.load %arg8[%c3_160, %c0_161, %c0_162, %c0_163] : memref<4x1x64x64xbf16, #tpu.memory_space<vmem>>, vector<1x1x64x64xbf16>
    %215 = vector.shape_cast %214 : vector<1x1x64x64xbf16> to vector<64x64xbf16>
    %216 = arith.truncf %213 : vector<8x64xf32> to vector<8x64xbf16>
    %cst_164 = arith.constant dense<0.000000e+00> : vector<8x64xf32>
    %217 = tpu.matmul %216, %215, %cst_164 {dimension_numbers = #tpu.dot_dimension_numbers<[1], [0], [0], [1], [0, 0, 1, 1], [], []>} : vector<8x64xbf16>, vector<64x64xbf16>, vector<8x64xf32> -> vector<8x64xf32>
    %c3_165 = arith.constant 3 : index
    %c0_166 = arith.constant 0 : index
    %c0_167 = arith.constant 0 : index
    %c0_168 = arith.constant 0 : index
    %218 = vector.load %arg9[%c3_165, %c0_166, %c0_167, %c0_168] : memref<4x1x1x64xf32, #tpu.memory_space<vmem>>, vector<1x1x1x64xf32>
    %219 = vector.shape_cast %218 : vector<1x1x1x64xf32> to vector<1x64xf32>
    %220 = vector.broadcast %219 : vector<1x64xf32> to vector<8x64xf32>
    %221 = arith.addf %217, %220 : vector<8x64xf32>
    %cst_169 = arith.constant 0.000000e+00 : f32
    %222 = vector.broadcast %cst_169 : f32 to vector<8x64xf32>
    %223 = arith.cmpf oge, %221, %222 : vector<8x64xf32>
    %cst_170 = arith.constant 2.000000e-01 : f32
    %224 = vector.broadcast %cst_170 : f32 to vector<8x64xf32>
    %225 = arith.mulf %224, %221 : vector<8x64xf32>
    %226 = arith.select %223, %221, %225 : vector<8x64xi1>, vector<8x64xf32>
    %227 = arith.addf %200, %226 : vector<8x64xf32>
    %c3_171 = arith.constant 3 : index
    %c0_172 = arith.constant 0 : index
    %c0_173 = arith.constant 0 : index
    %228 = vector.load %arg10[%c3_171, %c0_172, %c0_173] : memref<4x64x32xbf16, #tpu.memory_space<vmem>>, vector<1x64x32xbf16>
    %229 = vector.shape_cast %228 : vector<1x64x32xbf16> to vector<64x32xbf16>
    %230 = arith.truncf %227 : vector<8x64xf32> to vector<8x64xbf16>
    %cst_174 = arith.constant dense<0.000000e+00> : vector<8x32xf32>
    %231 = tpu.matmul %230, %229, %cst_174 {dimension_numbers = #tpu.dot_dimension_numbers<[1], [0], [0], [1], [0, 0, 1, 1], [], []>} : vector<8x64xbf16>, vector<64x32xbf16>, vector<8x32xf32> -> vector<8x32xf32>
    %c3_175 = arith.constant 3 : index
    %c0_176 = arith.constant 0 : index
    %c0_177 = arith.constant 0 : index
    %232 = vector.load %arg11[%c3_175, %c0_176, %c0_177] : memref<4x1x32xf32, #tpu.memory_space<vmem>>, vector<1x1x32xf32>
    %233 = vector.shape_cast %232 : vector<1x1x32xf32> to vector<1x32xf32>
    %234 = vector.broadcast %233 : vector<1x32xf32> to vector<8x32xf32>
    %235 = arith.addf %231, %234 : vector<8x32xf32>
    %236 = arith.mulf %177, %235 : vector<8x32xf32>
    %c0_178 = arith.constant 0 : index
    %c0_179 = arith.constant 0 : index
    %237 = vector.load %arg13[%c0_178, %c0_179] : memref<5x8xf32, #tpu.memory_space<vmem>>, vector<5x8xf32>
    %cst_180 = arith.constant dense<0.000000e+00> : vector<5x32xf32>
    %238 = tpu.matmul %237, %236, %cst_180 {dimension_numbers = #tpu.dot_dimension_numbers<[1], [0], [0], [1], [0, 0, 1, 1], [], []>} : vector<5x8xf32>, vector<8x32xf32>, vector<5x32xf32> -> vector<5x32xf32>
    %c0_181 = arith.constant 0 : index
    %c0_182 = arith.constant 0 : index
    %239 = vector.load %arg12[%c0_181, %c0_182] : memref<5x32xf32, #tpu.memory_space<vmem>>, vector<5x32xf32>
    %240 = arith.addf %238, %239 : vector<5x32xf32>
    %c0_183 = arith.constant 0 : index
    %c0_184 = arith.constant 0 : index
    %c0_185 = arith.constant 0 : index
    %241 = vector.load %arg14[%c0_183, %c0_184, %c0_185] : memref<2x1x32xf32, #tpu.memory_space<vmem>>, vector<1x1x32xf32>
    %242 = vector.shape_cast %241 : vector<1x1x32xf32> to vector<1x32xf32>
    %c0_186 = arith.constant 0 : index
    %c0_187 = arith.constant 0 : index
    %c0_188 = arith.constant 0 : index
    %243 = vector.load %arg15[%c0_186, %c0_187, %c0_188] : memref<2x1x32xf32, #tpu.memory_space<vmem>>, vector<1x1x32xf32>
    %244 = vector.shape_cast %243 : vector<1x1x32xf32> to vector<1x32xf32>
    %cst_189 = arith.constant dense<0.000000e+00> : vector<5xf32>
    %245 = vector.multi_reduction <add>, %240, %cst_189 [1] : vector<5x32xf32> to vector<5xf32>
    %246 = vector.shape_cast %245 : vector<5xf32> to vector<5x1xf32>
    %cst_190 = arith.constant 3.200000e+01 : f32
    %247 = vector.broadcast %cst_190 : f32 to vector<5x1xf32>
    %248 = arith.divf %246, %247 : vector<5x1xf32>
    %249 = vector.broadcast %248 : vector<5x1xf32> to vector<5x32xf32>
    %250 = arith.subf %240, %249 : vector<5x32xf32>
    %251 = arith.mulf %250, %250 : vector<5x32xf32>
    %cst_191 = arith.constant dense<0.000000e+00> : vector<5xf32>
    %252 = vector.multi_reduction <add>, %251, %cst_191 [1] : vector<5x32xf32> to vector<5xf32>
    %253 = vector.shape_cast %252 : vector<5xf32> to vector<5x1xf32>
    %cst_192 = arith.constant 3.100000e+01 : f32
    %254 = vector.broadcast %cst_192 : f32 to vector<5x1xf32>
    %255 = arith.divf %253, %254 : vector<5x1xf32>
    %256 = math.sqrt %255 : vector<5x1xf32>
    %257 = vector.broadcast %242 : vector<1x32xf32> to vector<5x32xf32>
    %258 = arith.mulf %257, %250 : vector<5x32xf32>
    %cst_193 = arith.constant 9.99999997E-7 : f32
    %259 = vector.broadcast %cst_193 : f32 to vector<5x1xf32>
    %260 = arith.addf %256, %259 : vector<5x1xf32>
    %261 = vector.broadcast %260 : vector<5x1xf32> to vector<5x32xf32>
    %262 = arith.divf %258, %261 : vector<5x32xf32>
    %263 = vector.broadcast %244 : vector<1x32xf32> to vector<5x32xf32>
    %264 = arith.addf %262, %263 : vector<5x32xf32>
    %c0_194 = arith.constant 0 : index
    %c0_195 = arith.constant 0 : index
    %c0_196 = arith.constant 0 : index
    %265 = vector.load %arg16[%c0_194, %c0_195, %c0_196] : memref<2x32x96xbf16, #tpu.memory_space<vmem>>, vector<1x32x96xbf16>
    %266 = vector.shape_cast %265 : vector<1x32x96xbf16> to vector<32x96xbf16>
    %267 = arith.truncf %264 : vector<5x32xf32> to vector<5x32xbf16>
    %cst_197 = arith.constant dense<0.000000e+00> : vector<5x96xf32>
    %268 = tpu.matmul %267, %266, %cst_197 {dimension_numbers = #tpu.dot_dimension_numbers<[1], [0], [0], [1], [0, 0, 1, 1], [], []>} : vector<5x32xbf16>, vector<32x96xbf16>, vector<5x96xf32> -> vector<5x96xf32>
    %c0_198 = arith.constant 0 : index
    %c0_199 = arith.constant 0 : index
    %c0_200 = arith.constant 0 : index
    %269 = vector.load %arg17[%c0_198, %c0_199, %c0_200] : memref<2x1x96xf32, #tpu.memory_space<vmem>>, vector<1x1x96xf32>
    %270 = vector.shape_cast %269 : vector<1x1x96xf32> to vector<1x96xf32>
    %271 = vector.broadcast %270 : vector<1x96xf32> to vector<5x96xf32>
    %272 = arith.addf %268, %271 : vector<5x96xf32>
    %273 = vector.extract_strided_slice %272 {offsets = [0, 0], sizes = [5, 8], strides = [1, 1]} : vector<5x96xf32> to vector<5x8xf32>
    %274 = vector.extract_strided_slice %272 {offsets = [0, 32], sizes = [5, 8], strides = [1, 1]} : vector<5x96xf32> to vector<5x8xf32>
    %275 = vector.extract_strided_slice %272 {offsets = [0, 64], sizes = [5, 8], strides = [1, 1]} : vector<5x96xf32> to vector<5x8xf32>
    %276 = arith.truncf %273 : vector<5x8xf32> to vector<5x8xbf16>
    %277 = arith.truncf %274 : vector<5x8xf32> to vector<5x8xbf16>
    %cst_201 = arith.constant dense<0.000000e+00> : vector<5x5xf32>
    %278 = tpu.matmul %276, %277, %cst_201 {dimension_numbers = #tpu.dot_dimension_numbers<[1], [1], [0], [0], [0, 0, 1, 0], [], []>} : vector<5x8xbf16>, vector<5x8xbf16>, vector<5x5xf32> -> vector<5x5xf32>
    %cst_202 = arith.constant 0.353553385 : f32
    %279 = vector.broadcast %cst_202 : f32 to vector<5x5xf32>
    %280 = arith.mulf %278, %279 : vector<5x5xf32>
    %cst_203 = arith.constant dense<0xFF800000> : vector<5xf32>
    %281 = vector.multi_reduction <maximumf>, %280, %cst_203 [1] : vector<5x5xf32> to vector<5xf32>
    %282 = vector.shape_cast %281 : vector<5xf32> to vector<5x1xf32>
    %283 = vector.broadcast %282 : vector<5x1xf32> to vector<5x5xf32>
    %284 = arith.subf %280, %283 : vector<5x5xf32>
    %285 = math.exp %284 : vector<5x5xf32>
    %cst_204 = arith.constant dense<0.000000e+00> : vector<5xf32>
    %286 = vector.multi_reduction <add>, %285, %cst_204 [1] : vector<5x5xf32> to vector<5xf32>
    %287 = vector.shape_cast %286 : vector<5xf32> to vector<5x1xf32>
    %288 = vector.broadcast %287 : vector<5x1xf32> to vector<5x5xf32>
    %289 = arith.divf %285, %288 : vector<5x5xf32>
    %290 = arith.truncf %289 : vector<5x5xf32> to vector<5x5xbf16>
    %291 = arith.truncf %275 : vector<5x8xf32> to vector<5x8xbf16>
    %cst_205 = arith.constant dense<0.000000e+00> : vector<5x8xf32>
    %292 = tpu.matmul %290, %291, %cst_205 {dimension_numbers = #tpu.dot_dimension_numbers<[1], [0], [0], [1], [0, 0, 1, 1], [], []>} : vector<5x5xbf16>, vector<5x8xbf16>, vector<5x8xf32> -> vector<5x8xf32>
    %293 = vector.extract_strided_slice %272 {offsets = [0, 8], sizes = [5, 8], strides = [1, 1]} : vector<5x96xf32> to vector<5x8xf32>
    %294 = vector.extract_strided_slice %272 {offsets = [0, 40], sizes = [5, 8], strides = [1, 1]} : vector<5x96xf32> to vector<5x8xf32>
    %295 = vector.extract_strided_slice %272 {offsets = [0, 72], sizes = [5, 8], strides = [1, 1]} : vector<5x96xf32> to vector<5x8xf32>
    %296 = arith.truncf %293 : vector<5x8xf32> to vector<5x8xbf16>
    %297 = arith.truncf %294 : vector<5x8xf32> to vector<5x8xbf16>
    %cst_206 = arith.constant dense<0.000000e+00> : vector<5x5xf32>
    %298 = tpu.matmul %296, %297, %cst_206 {dimension_numbers = #tpu.dot_dimension_numbers<[1], [1], [0], [0], [0, 0, 1, 0], [], []>} : vector<5x8xbf16>, vector<5x8xbf16>, vector<5x5xf32> -> vector<5x5xf32>
    %cst_207 = arith.constant 0.353553385 : f32
    %299 = vector.broadcast %cst_207 : f32 to vector<5x5xf32>
    %300 = arith.mulf %298, %299 : vector<5x5xf32>
    %cst_208 = arith.constant dense<0xFF800000> : vector<5xf32>
    %301 = vector.multi_reduction <maximumf>, %300, %cst_208 [1] : vector<5x5xf32> to vector<5xf32>
    %302 = vector.shape_cast %301 : vector<5xf32> to vector<5x1xf32>
    %303 = vector.broadcast %302 : vector<5x1xf32> to vector<5x5xf32>
    %304 = arith.subf %300, %303 : vector<5x5xf32>
    %305 = math.exp %304 : vector<5x5xf32>
    %cst_209 = arith.constant dense<0.000000e+00> : vector<5xf32>
    %306 = vector.multi_reduction <add>, %305, %cst_209 [1] : vector<5x5xf32> to vector<5xf32>
    %307 = vector.shape_cast %306 : vector<5xf32> to vector<5x1xf32>
    %308 = vector.broadcast %307 : vector<5x1xf32> to vector<5x5xf32>
    %309 = arith.divf %305, %308 : vector<5x5xf32>
    %310 = arith.truncf %309 : vector<5x5xf32> to vector<5x5xbf16>
    %311 = arith.truncf %295 : vector<5x8xf32> to vector<5x8xbf16>
    %cst_210 = arith.constant dense<0.000000e+00> : vector<5x8xf32>
    %312 = tpu.matmul %310, %311, %cst_210 {dimension_numbers = #tpu.dot_dimension_numbers<[1], [0], [0], [1], [0, 0, 1, 1], [], []>} : vector<5x5xbf16>, vector<5x8xbf16>, vector<5x8xf32> -> vector<5x8xf32>
    %313 = vector.extract_strided_slice %272 {offsets = [0, 16], sizes = [5, 8], strides = [1, 1]} : vector<5x96xf32> to vector<5x8xf32>
    %314 = vector.extract_strided_slice %272 {offsets = [0, 48], sizes = [5, 8], strides = [1, 1]} : vector<5x96xf32> to vector<5x8xf32>
    %315 = vector.extract_strided_slice %272 {offsets = [0, 80], sizes = [5, 8], strides = [1, 1]} : vector<5x96xf32> to vector<5x8xf32>
    %316 = arith.truncf %313 : vector<5x8xf32> to vector<5x8xbf16>
    %317 = arith.truncf %314 : vector<5x8xf32> to vector<5x8xbf16>
    %cst_211 = arith.constant dense<0.000000e+00> : vector<5x5xf32>
    %318 = tpu.matmul %316, %317, %cst_211 {dimension_numbers = #tpu.dot_dimension_numbers<[1], [1], [0], [0], [0, 0, 1, 0], [], []>} : vector<5x8xbf16>, vector<5x8xbf16>, vector<5x5xf32> -> vector<5x5xf32>
    %cst_212 = arith.constant 0.353553385 : f32
    %319 = vector.broadcast %cst_212 : f32 to vector<5x5xf32>
    %320 = arith.mulf %318, %319 : vector<5x5xf32>
    %cst_213 = arith.constant dense<0xFF800000> : vector<5xf32>
    %321 = vector.multi_reduction <maximumf>, %320, %cst_213 [1] : vector<5x5xf32> to vector<5xf32>
    %322 = vector.shape_cast %321 : vector<5xf32> to vector<5x1xf32>
    %323 = vector.broadcast %322 : vector<5x1xf32> to vector<5x5xf32>
    %324 = arith.subf %320, %323 : vector<5x5xf32>
    %325 = math.exp %324 : vector<5x5xf32>
    %cst_214 = arith.constant dense<0.000000e+00> : vector<5xf32>
    %326 = vector.multi_reduction <add>, %325, %cst_214 [1] : vector<5x5xf32> to vector<5xf32>
    %327 = vector.shape_cast %326 : vector<5xf32> to vector<5x1xf32>
    %328 = vector.broadcast %327 : vector<5x1xf32> to vector<5x5xf32>
    %329 = arith.divf %325, %328 : vector<5x5xf32>
    %330 = arith.truncf %329 : vector<5x5xf32> to vector<5x5xbf16>
    %331 = arith.truncf %315 : vector<5x8xf32> to vector<5x8xbf16>
    %cst_215 = arith.constant dense<0.000000e+00> : vector<5x8xf32>
    %332 = tpu.matmul %330, %331, %cst_215 {dimension_numbers = #tpu.dot_dimension_numbers<[1], [0], [0], [1], [0, 0, 1, 1], [], []>} : vector<5x5xbf16>, vector<5x8xbf16>, vector<5x8xf32> -> vector<5x8xf32>
    %333 = vector.extract_strided_slice %272 {offsets = [0, 24], sizes = [5, 8], strides = [1, 1]} : vector<5x96xf32> to vector<5x8xf32>
    %334 = vector.extract_strided_slice %272 {offsets = [0, 56], sizes = [5, 8], strides = [1, 1]} : vector<5x96xf32> to vector<5x8xf32>
    %335 = vector.extract_strided_slice %272 {offsets = [0, 88], sizes = [5, 8], strides = [1, 1]} : vector<5x96xf32> to vector<5x8xf32>
    %336 = arith.truncf %333 : vector<5x8xf32> to vector<5x8xbf16>
    %337 = arith.truncf %334 : vector<5x8xf32> to vector<5x8xbf16>
    %cst_216 = arith.constant dense<0.000000e+00> : vector<5x5xf32>
    %338 = tpu.matmul %336, %337, %cst_216 {dimension_numbers = #tpu.dot_dimension_numbers<[1], [1], [0], [0], [0, 0, 1, 0], [], []>} : vector<5x8xbf16>, vector<5x8xbf16>, vector<5x5xf32> -> vector<5x5xf32>
    %cst_217 = arith.constant 0.353553385 : f32
    %339 = vector.broadcast %cst_217 : f32 to vector<5x5xf32>
    %340 = arith.mulf %338, %339 : vector<5x5xf32>
    %cst_218 = arith.constant dense<0xFF800000> : vector<5xf32>
    %341 = vector.multi_reduction <maximumf>, %340, %cst_218 [1] : vector<5x5xf32> to vector<5xf32>
    %342 = vector.shape_cast %341 : vector<5xf32> to vector<5x1xf32>
    %343 = vector.broadcast %342 : vector<5x1xf32> to vector<5x5xf32>
    %344 = arith.subf %340, %343 : vector<5x5xf32>
    %345 = math.exp %344 : vector<5x5xf32>
    %cst_219 = arith.constant dense<0.000000e+00> : vector<5xf32>
    %346 = vector.multi_reduction <add>, %345, %cst_219 [1] : vector<5x5xf32> to vector<5xf32>
    %347 = vector.shape_cast %346 : vector<5xf32> to vector<5x1xf32>
    %348 = vector.broadcast %347 : vector<5x1xf32> to vector<5x5xf32>
    %349 = arith.divf %345, %348 : vector<5x5xf32>
    %350 = arith.truncf %349 : vector<5x5xf32> to vector<5x5xbf16>
    %351 = arith.truncf %335 : vector<5x8xf32> to vector<5x8xbf16>
    %cst_220 = arith.constant dense<0.000000e+00> : vector<5x8xf32>
    %352 = tpu.matmul %350, %351, %cst_220 {dimension_numbers = #tpu.dot_dimension_numbers<[1], [0], [0], [1], [0, 0, 1, 1], [], []>} : vector<5x5xbf16>, vector<5x8xbf16>, vector<5x8xf32> -> vector<5x8xf32>
    %353 = tpu.concatenate %292, %312, %332, %352 in 1 : vector<5x8xf32>, vector<5x8xf32>, vector<5x8xf32>, vector<5x8xf32> -> vector<5x32xf32>
    %c0_221 = arith.constant 0 : index
    %c0_222 = arith.constant 0 : index
    %c0_223 = arith.constant 0 : index
    %354 = vector.load %arg18[%c0_221, %c0_222, %c0_223] : memref<2x32x32xbf16, #tpu.memory_space<vmem>>, vector<1x32x32xbf16>
    %355 = vector.shape_cast %354 : vector<1x32x32xbf16> to vector<32x32xbf16>
    %356 = arith.truncf %353 : vector<5x32xf32> to vector<5x32xbf16>
    %cst_224 = arith.constant dense<0.000000e+00> : vector<5x32xf32>
    %357 = tpu.matmul %356, %355, %cst_224 {dimension_numbers = #tpu.dot_dimension_numbers<[1], [0], [0], [1], [0, 0, 1, 1], [], []>} : vector<5x32xbf16>, vector<32x32xbf16>, vector<5x32xf32> -> vector<5x32xf32>
    %358 = arith.addf %240, %357 : vector<5x32xf32>
    %c0_225 = arith.constant 0 : index
    %c0_226 = arith.constant 0 : index
    %c0_227 = arith.constant 0 : index
    %359 = vector.load %arg19[%c0_225, %c0_226, %c0_227] : memref<2x1x32xf32, #tpu.memory_space<vmem>>, vector<1x1x32xf32>
    %360 = vector.shape_cast %359 : vector<1x1x32xf32> to vector<1x32xf32>
    %361 = vector.broadcast %360 : vector<1x32xf32> to vector<5x32xf32>
    %362 = arith.addf %358, %361 : vector<5x32xf32>
    %c0_228 = arith.constant 0 : index
    %c0_229 = arith.constant 0 : index
    %c0_230 = arith.constant 0 : index
    %363 = vector.load %arg20[%c0_228, %c0_229, %c0_230] : memref<2x1x32xf32, #tpu.memory_space<vmem>>, vector<1x1x32xf32>
    %364 = vector.shape_cast %363 : vector<1x1x32xf32> to vector<1x32xf32>
    %c0_231 = arith.constant 0 : index
    %c0_232 = arith.constant 0 : index
    %c0_233 = arith.constant 0 : index
    %365 = vector.load %arg21[%c0_231, %c0_232, %c0_233] : memref<2x1x32xf32, #tpu.memory_space<vmem>>, vector<1x1x32xf32>
    %366 = vector.shape_cast %365 : vector<1x1x32xf32> to vector<1x32xf32>
    %cst_234 = arith.constant dense<0.000000e+00> : vector<5xf32>
    %367 = vector.multi_reduction <add>, %362, %cst_234 [1] : vector<5x32xf32> to vector<5xf32>
    %368 = vector.shape_cast %367 : vector<5xf32> to vector<5x1xf32>
    %cst_235 = arith.constant 3.200000e+01 : f32
    %369 = vector.broadcast %cst_235 : f32 to vector<5x1xf32>
    %370 = arith.divf %368, %369 : vector<5x1xf32>
    %371 = vector.broadcast %370 : vector<5x1xf32> to vector<5x32xf32>
    %372 = arith.subf %362, %371 : vector<5x32xf32>
    %373 = arith.mulf %372, %372 : vector<5x32xf32>
    %cst_236 = arith.constant dense<0.000000e+00> : vector<5xf32>
    %374 = vector.multi_reduction <add>, %373, %cst_236 [1] : vector<5x32xf32> to vector<5xf32>
    %375 = vector.shape_cast %374 : vector<5xf32> to vector<5x1xf32>
    %cst_237 = arith.constant 3.100000e+01 : f32
    %376 = vector.broadcast %cst_237 : f32 to vector<5x1xf32>
    %377 = arith.divf %375, %376 : vector<5x1xf32>
    %378 = math.sqrt %377 : vector<5x1xf32>
    %379 = vector.broadcast %364 : vector<1x32xf32> to vector<5x32xf32>
    %380 = arith.mulf %379, %372 : vector<5x32xf32>
    %cst_238 = arith.constant 9.99999997E-7 : f32
    %381 = vector.broadcast %cst_238 : f32 to vector<5x1xf32>
    %382 = arith.addf %378, %381 : vector<5x1xf32>
    %383 = vector.broadcast %382 : vector<5x1xf32> to vector<5x32xf32>
    %384 = arith.divf %380, %383 : vector<5x32xf32>
    %385 = vector.broadcast %366 : vector<1x32xf32> to vector<5x32xf32>
    %386 = arith.addf %384, %385 : vector<5x32xf32>
    %c0_239 = arith.constant 0 : index
    %c0_240 = arith.constant 0 : index
    %c0_241 = arith.constant 0 : index
    %387 = vector.load %arg22[%c0_239, %c0_240, %c0_241] : memref<2x32x64xbf16, #tpu.memory_space<vmem>>, vector<1x32x64xbf16>
    %388 = vector.shape_cast %387 : vector<1x32x64xbf16> to vector<32x64xbf16>
    %389 = arith.truncf %386 : vector<5x32xf32> to vector<5x32xbf16>
    %cst_242 = arith.constant dense<0.000000e+00> : vector<5x64xf32>
    %390 = tpu.matmul %389, %388, %cst_242 {dimension_numbers = #tpu.dot_dimension_numbers<[1], [0], [0], [1], [0, 0, 1, 1], [], []>} : vector<5x32xbf16>, vector<32x64xbf16>, vector<5x64xf32> -> vector<5x64xf32>
    %c0_243 = arith.constant 0 : index
    %c0_244 = arith.constant 0 : index
    %c0_245 = arith.constant 0 : index
    %391 = vector.load %arg23[%c0_243, %c0_244, %c0_245] : memref<2x1x64xf32, #tpu.memory_space<vmem>>, vector<1x1x64xf32>
    %392 = vector.shape_cast %391 : vector<1x1x64xf32> to vector<1x64xf32>
    %393 = vector.broadcast %392 : vector<1x64xf32> to vector<5x64xf32>
    %394 = arith.addf %390, %393 : vector<5x64xf32>
    %cst_246 = arith.constant 0.000000e+00 : f32
    %395 = vector.broadcast %cst_246 : f32 to vector<5x64xf32>
    %396 = arith.maximumf %394, %395 : vector<5x64xf32>
    %c0_247 = arith.constant 0 : index
    %c0_248 = arith.constant 0 : index
    %c0_249 = arith.constant 0 : index
    %397 = vector.load %arg24[%c0_247, %c0_248, %c0_249] : memref<2x64x32xbf16, #tpu.memory_space<vmem>>, vector<1x64x32xbf16>
    %398 = vector.shape_cast %397 : vector<1x64x32xbf16> to vector<64x32xbf16>
    %399 = arith.truncf %396 : vector<5x64xf32> to vector<5x64xbf16>
    %cst_250 = arith.constant dense<0.000000e+00> : vector<5x32xf32>
    %400 = tpu.matmul %399, %398, %cst_250 {dimension_numbers = #tpu.dot_dimension_numbers<[1], [0], [0], [1], [0, 0, 1, 1], [], []>} : vector<5x64xbf16>, vector<64x32xbf16>, vector<5x32xf32> -> vector<5x32xf32>
    %401 = arith.addf %362, %400 : vector<5x32xf32>
    %c0_251 = arith.constant 0 : index
    %c0_252 = arith.constant 0 : index
    %c0_253 = arith.constant 0 : index
    %402 = vector.load %arg25[%c0_251, %c0_252, %c0_253] : memref<2x1x32xf32, #tpu.memory_space<vmem>>, vector<1x1x32xf32>
    %403 = vector.shape_cast %402 : vector<1x1x32xf32> to vector<1x32xf32>
    %404 = vector.broadcast %403 : vector<1x32xf32> to vector<5x32xf32>
    %405 = arith.addf %401, %404 : vector<5x32xf32>
    %c1_254 = arith.constant 1 : index
    %c0_255 = arith.constant 0 : index
    %c0_256 = arith.constant 0 : index
    %406 = vector.load %arg14[%c1_254, %c0_255, %c0_256] : memref<2x1x32xf32, #tpu.memory_space<vmem>>, vector<1x1x32xf32>
    %407 = vector.shape_cast %406 : vector<1x1x32xf32> to vector<1x32xf32>
    %c1_257 = arith.constant 1 : index
    %c0_258 = arith.constant 0 : index
    %c0_259 = arith.constant 0 : index
    %408 = vector.load %arg15[%c1_257, %c0_258, %c0_259] : memref<2x1x32xf32, #tpu.memory_space<vmem>>, vector<1x1x32xf32>
    %409 = vector.shape_cast %408 : vector<1x1x32xf32> to vector<1x32xf32>
    %cst_260 = arith.constant dense<0.000000e+00> : vector<5xf32>
    %410 = vector.multi_reduction <add>, %405, %cst_260 [1] : vector<5x32xf32> to vector<5xf32>
    %411 = vector.shape_cast %410 : vector<5xf32> to vector<5x1xf32>
    %cst_261 = arith.constant 3.200000e+01 : f32
    %412 = vector.broadcast %cst_261 : f32 to vector<5x1xf32>
    %413 = arith.divf %411, %412 : vector<5x1xf32>
    %414 = vector.broadcast %413 : vector<5x1xf32> to vector<5x32xf32>
    %415 = arith.subf %405, %414 : vector<5x32xf32>
    %416 = arith.mulf %415, %415 : vector<5x32xf32>
    %cst_262 = arith.constant dense<0.000000e+00> : vector<5xf32>
    %417 = vector.multi_reduction <add>, %416, %cst_262 [1] : vector<5x32xf32> to vector<5xf32>
    %418 = vector.shape_cast %417 : vector<5xf32> to vector<5x1xf32>
    %cst_263 = arith.constant 3.100000e+01 : f32
    %419 = vector.broadcast %cst_263 : f32 to vector<5x1xf32>
    %420 = arith.divf %418, %419 : vector<5x1xf32>
    %421 = math.sqrt %420 : vector<5x1xf32>
    %422 = vector.broadcast %407 : vector<1x32xf32> to vector<5x32xf32>
    %423 = arith.mulf %422, %415 : vector<5x32xf32>
    %cst_264 = arith.constant 9.99999997E-7 : f32
    %424 = vector.broadcast %cst_264 : f32 to vector<5x1xf32>
    %425 = arith.addf %421, %424 : vector<5x1xf32>
    %426 = vector.broadcast %425 : vector<5x1xf32> to vector<5x32xf32>
    %427 = arith.divf %423, %426 : vector<5x32xf32>
    %428 = vector.broadcast %409 : vector<1x32xf32> to vector<5x32xf32>
    %429 = arith.addf %427, %428 : vector<5x32xf32>
    %c1_265 = arith.constant 1 : index
    %c0_266 = arith.constant 0 : index
    %c0_267 = arith.constant 0 : index
    %430 = vector.load %arg16[%c1_265, %c0_266, %c0_267] : memref<2x32x96xbf16, #tpu.memory_space<vmem>>, vector<1x32x96xbf16>
    %431 = vector.shape_cast %430 : vector<1x32x96xbf16> to vector<32x96xbf16>
    %432 = arith.truncf %429 : vector<5x32xf32> to vector<5x32xbf16>
    %cst_268 = arith.constant dense<0.000000e+00> : vector<5x96xf32>
    %433 = tpu.matmul %432, %431, %cst_268 {dimension_numbers = #tpu.dot_dimension_numbers<[1], [0], [0], [1], [0, 0, 1, 1], [], []>} : vector<5x32xbf16>, vector<32x96xbf16>, vector<5x96xf32> -> vector<5x96xf32>
    %c1_269 = arith.constant 1 : index
    %c0_270 = arith.constant 0 : index
    %c0_271 = arith.constant 0 : index
    %434 = vector.load %arg17[%c1_269, %c0_270, %c0_271] : memref<2x1x96xf32, #tpu.memory_space<vmem>>, vector<1x1x96xf32>
    %435 = vector.shape_cast %434 : vector<1x1x96xf32> to vector<1x96xf32>
    %436 = vector.broadcast %435 : vector<1x96xf32> to vector<5x96xf32>
    %437 = arith.addf %433, %436 : vector<5x96xf32>
    %438 = vector.extract_strided_slice %437 {offsets = [0, 0], sizes = [5, 8], strides = [1, 1]} : vector<5x96xf32> to vector<5x8xf32>
    %439 = vector.extract_strided_slice %437 {offsets = [0, 32], sizes = [5, 8], strides = [1, 1]} : vector<5x96xf32> to vector<5x8xf32>
    %440 = vector.extract_strided_slice %437 {offsets = [0, 64], sizes = [5, 8], strides = [1, 1]} : vector<5x96xf32> to vector<5x8xf32>
    %441 = arith.truncf %438 : vector<5x8xf32> to vector<5x8xbf16>
    %442 = arith.truncf %439 : vector<5x8xf32> to vector<5x8xbf16>
    %cst_272 = arith.constant dense<0.000000e+00> : vector<5x5xf32>
    %443 = tpu.matmul %441, %442, %cst_272 {dimension_numbers = #tpu.dot_dimension_numbers<[1], [1], [0], [0], [0, 0, 1, 0], [], []>} : vector<5x8xbf16>, vector<5x8xbf16>, vector<5x5xf32> -> vector<5x5xf32>
    %cst_273 = arith.constant 0.353553385 : f32
    %444 = vector.broadcast %cst_273 : f32 to vector<5x5xf32>
    %445 = arith.mulf %443, %444 : vector<5x5xf32>
    %cst_274 = arith.constant dense<0xFF800000> : vector<5xf32>
    %446 = vector.multi_reduction <maximumf>, %445, %cst_274 [1] : vector<5x5xf32> to vector<5xf32>
    %447 = vector.shape_cast %446 : vector<5xf32> to vector<5x1xf32>
    %448 = vector.broadcast %447 : vector<5x1xf32> to vector<5x5xf32>
    %449 = arith.subf %445, %448 : vector<5x5xf32>
    %450 = math.exp %449 : vector<5x5xf32>
    %cst_275 = arith.constant dense<0.000000e+00> : vector<5xf32>
    %451 = vector.multi_reduction <add>, %450, %cst_275 [1] : vector<5x5xf32> to vector<5xf32>
    %452 = vector.shape_cast %451 : vector<5xf32> to vector<5x1xf32>
    %453 = vector.broadcast %452 : vector<5x1xf32> to vector<5x5xf32>
    %454 = arith.divf %450, %453 : vector<5x5xf32>
    %455 = arith.truncf %454 : vector<5x5xf32> to vector<5x5xbf16>
    %456 = arith.truncf %440 : vector<5x8xf32> to vector<5x8xbf16>
    %cst_276 = arith.constant dense<0.000000e+00> : vector<5x8xf32>
    %457 = tpu.matmul %455, %456, %cst_276 {dimension_numbers = #tpu.dot_dimension_numbers<[1], [0], [0], [1], [0, 0, 1, 1], [], []>} : vector<5x5xbf16>, vector<5x8xbf16>, vector<5x8xf32> -> vector<5x8xf32>
    %458 = vector.extract_strided_slice %437 {offsets = [0, 8], sizes = [5, 8], strides = [1, 1]} : vector<5x96xf32> to vector<5x8xf32>
    %459 = vector.extract_strided_slice %437 {offsets = [0, 40], sizes = [5, 8], strides = [1, 1]} : vector<5x96xf32> to vector<5x8xf32>
    %460 = vector.extract_strided_slice %437 {offsets = [0, 72], sizes = [5, 8], strides = [1, 1]} : vector<5x96xf32> to vector<5x8xf32>
    %461 = arith.truncf %458 : vector<5x8xf32> to vector<5x8xbf16>
    %462 = arith.truncf %459 : vector<5x8xf32> to vector<5x8xbf16>
    %cst_277 = arith.constant dense<0.000000e+00> : vector<5x5xf32>
    %463 = tpu.matmul %461, %462, %cst_277 {dimension_numbers = #tpu.dot_dimension_numbers<[1], [1], [0], [0], [0, 0, 1, 0], [], []>} : vector<5x8xbf16>, vector<5x8xbf16>, vector<5x5xf32> -> vector<5x5xf32>
    %cst_278 = arith.constant 0.353553385 : f32
    %464 = vector.broadcast %cst_278 : f32 to vector<5x5xf32>
    %465 = arith.mulf %463, %464 : vector<5x5xf32>
    %cst_279 = arith.constant dense<0xFF800000> : vector<5xf32>
    %466 = vector.multi_reduction <maximumf>, %465, %cst_279 [1] : vector<5x5xf32> to vector<5xf32>
    %467 = vector.shape_cast %466 : vector<5xf32> to vector<5x1xf32>
    %468 = vector.broadcast %467 : vector<5x1xf32> to vector<5x5xf32>
    %469 = arith.subf %465, %468 : vector<5x5xf32>
    %470 = math.exp %469 : vector<5x5xf32>
    %cst_280 = arith.constant dense<0.000000e+00> : vector<5xf32>
    %471 = vector.multi_reduction <add>, %470, %cst_280 [1] : vector<5x5xf32> to vector<5xf32>
    %472 = vector.shape_cast %471 : vector<5xf32> to vector<5x1xf32>
    %473 = vector.broadcast %472 : vector<5x1xf32> to vector<5x5xf32>
    %474 = arith.divf %470, %473 : vector<5x5xf32>
    %475 = arith.truncf %474 : vector<5x5xf32> to vector<5x5xbf16>
    %476 = arith.truncf %460 : vector<5x8xf32> to vector<5x8xbf16>
    %cst_281 = arith.constant dense<0.000000e+00> : vector<5x8xf32>
    %477 = tpu.matmul %475, %476, %cst_281 {dimension_numbers = #tpu.dot_dimension_numbers<[1], [0], [0], [1], [0, 0, 1, 1], [], []>} : vector<5x5xbf16>, vector<5x8xbf16>, vector<5x8xf32> -> vector<5x8xf32>
    %478 = vector.extract_strided_slice %437 {offsets = [0, 16], sizes = [5, 8], strides = [1, 1]} : vector<5x96xf32> to vector<5x8xf32>
    %479 = vector.extract_strided_slice %437 {offsets = [0, 48], sizes = [5, 8], strides = [1, 1]} : vector<5x96xf32> to vector<5x8xf32>
    %480 = vector.extract_strided_slice %437 {offsets = [0, 80], sizes = [5, 8], strides = [1, 1]} : vector<5x96xf32> to vector<5x8xf32>
    %481 = arith.truncf %478 : vector<5x8xf32> to vector<5x8xbf16>
    %482 = arith.truncf %479 : vector<5x8xf32> to vector<5x8xbf16>
    %cst_282 = arith.constant dense<0.000000e+00> : vector<5x5xf32>
    %483 = tpu.matmul %481, %482, %cst_282 {dimension_numbers = #tpu.dot_dimension_numbers<[1], [1], [0], [0], [0, 0, 1, 0], [], []>} : vector<5x8xbf16>, vector<5x8xbf16>, vector<5x5xf32> -> vector<5x5xf32>
    %cst_283 = arith.constant 0.353553385 : f32
    %484 = vector.broadcast %cst_283 : f32 to vector<5x5xf32>
    %485 = arith.mulf %483, %484 : vector<5x5xf32>
    %cst_284 = arith.constant dense<0xFF800000> : vector<5xf32>
    %486 = vector.multi_reduction <maximumf>, %485, %cst_284 [1] : vector<5x5xf32> to vector<5xf32>
    %487 = vector.shape_cast %486 : vector<5xf32> to vector<5x1xf32>
    %488 = vector.broadcast %487 : vector<5x1xf32> to vector<5x5xf32>
    %489 = arith.subf %485, %488 : vector<5x5xf32>
    %490 = math.exp %489 : vector<5x5xf32>
    %cst_285 = arith.constant dense<0.000000e+00> : vector<5xf32>
    %491 = vector.multi_reduction <add>, %490, %cst_285 [1] : vector<5x5xf32> to vector<5xf32>
    %492 = vector.shape_cast %491 : vector<5xf32> to vector<5x1xf32>
    %493 = vector.broadcast %492 : vector<5x1xf32> to vector<5x5xf32>
    %494 = arith.divf %490, %493 : vector<5x5xf32>
    %495 = arith.truncf %494 : vector<5x5xf32> to vector<5x5xbf16>
    %496 = arith.truncf %480 : vector<5x8xf32> to vector<5x8xbf16>
    %cst_286 = arith.constant dense<0.000000e+00> : vector<5x8xf32>
    %497 = tpu.matmul %495, %496, %cst_286 {dimension_numbers = #tpu.dot_dimension_numbers<[1], [0], [0], [1], [0, 0, 1, 1], [], []>} : vector<5x5xbf16>, vector<5x8xbf16>, vector<5x8xf32> -> vector<5x8xf32>
    %498 = vector.extract_strided_slice %437 {offsets = [0, 24], sizes = [5, 8], strides = [1, 1]} : vector<5x96xf32> to vector<5x8xf32>
    %499 = vector.extract_strided_slice %437 {offsets = [0, 56], sizes = [5, 8], strides = [1, 1]} : vector<5x96xf32> to vector<5x8xf32>
    %500 = vector.extract_strided_slice %437 {offsets = [0, 88], sizes = [5, 8], strides = [1, 1]} : vector<5x96xf32> to vector<5x8xf32>
    %501 = arith.truncf %498 : vector<5x8xf32> to vector<5x8xbf16>
    %502 = arith.truncf %499 : vector<5x8xf32> to vector<5x8xbf16>
    %cst_287 = arith.constant dense<0.000000e+00> : vector<5x5xf32>
    %503 = tpu.matmul %501, %502, %cst_287 {dimension_numbers = #tpu.dot_dimension_numbers<[1], [1], [0], [0], [0, 0, 1, 0], [], []>} : vector<5x8xbf16>, vector<5x8xbf16>, vector<5x5xf32> -> vector<5x5xf32>
    %cst_288 = arith.constant 0.353553385 : f32
    %504 = vector.broadcast %cst_288 : f32 to vector<5x5xf32>
    %505 = arith.mulf %503, %504 : vector<5x5xf32>
    %cst_289 = arith.constant dense<0xFF800000> : vector<5xf32>
    %506 = vector.multi_reduction <maximumf>, %505, %cst_289 [1] : vector<5x5xf32> to vector<5xf32>
    %507 = vector.shape_cast %506 : vector<5xf32> to vector<5x1xf32>
    %508 = vector.broadcast %507 : vector<5x1xf32> to vector<5x5xf32>
    %509 = arith.subf %505, %508 : vector<5x5xf32>
    %510 = math.exp %509 : vector<5x5xf32>
    %cst_290 = arith.constant dense<0.000000e+00> : vector<5xf32>
    %511 = vector.multi_reduction <add>, %510, %cst_290 [1] : vector<5x5xf32> to vector<5xf32>
    %512 = vector.shape_cast %511 : vector<5xf32> to vector<5x1xf32>
    %513 = vector.broadcast %512 : vector<5x1xf32> to vector<5x5xf32>
    %514 = arith.divf %510, %513 : vector<5x5xf32>
    %515 = arith.truncf %514 : vector<5x5xf32> to vector<5x5xbf16>
    %516 = arith.truncf %500 : vector<5x8xf32> to vector<5x8xbf16>
    %cst_291 = arith.constant dense<0.000000e+00> : vector<5x8xf32>
    %517 = tpu.matmul %515, %516, %cst_291 {dimension_numbers = #tpu.dot_dimension_numbers<[1], [0], [0], [1], [0, 0, 1, 1], [], []>} : vector<5x5xbf16>, vector<5x8xbf16>, vector<5x8xf32> -> vector<5x8xf32>
    %518 = tpu.concatenate %457, %477, %497, %517 in 1 : vector<5x8xf32>, vector<5x8xf32>, vector<5x8xf32>, vector<5x8xf32> -> vector<5x32xf32>
    %c1_292 = arith.constant 1 : index
    %c0_293 = arith.constant 0 : index
    %c0_294 = arith.constant 0 : index
    %519 = vector.load %arg18[%c1_292, %c0_293, %c0_294] : memref<2x32x32xbf16, #tpu.memory_space<vmem>>, vector<1x32x32xbf16>
    %520 = vector.shape_cast %519 : vector<1x32x32xbf16> to vector<32x32xbf16>
    %521 = arith.truncf %518 : vector<5x32xf32> to vector<5x32xbf16>
    %cst_295 = arith.constant dense<0.000000e+00> : vector<5x32xf32>
    %522 = tpu.matmul %521, %520, %cst_295 {dimension_numbers = #tpu.dot_dimension_numbers<[1], [0], [0], [1], [0, 0, 1, 1], [], []>} : vector<5x32xbf16>, vector<32x32xbf16>, vector<5x32xf32> -> vector<5x32xf32>
    %523 = arith.addf %405, %522 : vector<5x32xf32>
    %c1_296 = arith.constant 1 : index
    %c0_297 = arith.constant 0 : index
    %c0_298 = arith.constant 0 : index
    %524 = vector.load %arg19[%c1_296, %c0_297, %c0_298] : memref<2x1x32xf32, #tpu.memory_space<vmem>>, vector<1x1x32xf32>
    %525 = vector.shape_cast %524 : vector<1x1x32xf32> to vector<1x32xf32>
    %526 = vector.broadcast %525 : vector<1x32xf32> to vector<5x32xf32>
    %527 = arith.addf %523, %526 : vector<5x32xf32>
    %c1_299 = arith.constant 1 : index
    %c0_300 = arith.constant 0 : index
    %c0_301 = arith.constant 0 : index
    %528 = vector.load %arg20[%c1_299, %c0_300, %c0_301] : memref<2x1x32xf32, #tpu.memory_space<vmem>>, vector<1x1x32xf32>
    %529 = vector.shape_cast %528 : vector<1x1x32xf32> to vector<1x32xf32>
    %c1_302 = arith.constant 1 : index
    %c0_303 = arith.constant 0 : index
    %c0_304 = arith.constant 0 : index
    %530 = vector.load %arg21[%c1_302, %c0_303, %c0_304] : memref<2x1x32xf32, #tpu.memory_space<vmem>>, vector<1x1x32xf32>
    %531 = vector.shape_cast %530 : vector<1x1x32xf32> to vector<1x32xf32>
    %cst_305 = arith.constant dense<0.000000e+00> : vector<5xf32>
    %532 = vector.multi_reduction <add>, %527, %cst_305 [1] : vector<5x32xf32> to vector<5xf32>
    %533 = vector.shape_cast %532 : vector<5xf32> to vector<5x1xf32>
    %cst_306 = arith.constant 3.200000e+01 : f32
    %534 = vector.broadcast %cst_306 : f32 to vector<5x1xf32>
    %535 = arith.divf %533, %534 : vector<5x1xf32>
    %536 = vector.broadcast %535 : vector<5x1xf32> to vector<5x32xf32>
    %537 = arith.subf %527, %536 : vector<5x32xf32>
    %538 = arith.mulf %537, %537 : vector<5x32xf32>
    %cst_307 = arith.constant dense<0.000000e+00> : vector<5xf32>
    %539 = vector.multi_reduction <add>, %538, %cst_307 [1] : vector<5x32xf32> to vector<5xf32>
    %540 = vector.shape_cast %539 : vector<5xf32> to vector<5x1xf32>
    %cst_308 = arith.constant 3.100000e+01 : f32
    %541 = vector.broadcast %cst_308 : f32 to vector<5x1xf32>
    %542 = arith.divf %540, %541 : vector<5x1xf32>
    %543 = math.sqrt %542 : vector<5x1xf32>
    %544 = vector.broadcast %529 : vector<1x32xf32> to vector<5x32xf32>
    %545 = arith.mulf %544, %537 : vector<5x32xf32>
    %cst_309 = arith.constant 9.99999997E-7 : f32
    %546 = vector.broadcast %cst_309 : f32 to vector<5x1xf32>
    %547 = arith.addf %543, %546 : vector<5x1xf32>
    %548 = vector.broadcast %547 : vector<5x1xf32> to vector<5x32xf32>
    %549 = arith.divf %545, %548 : vector<5x32xf32>
    %550 = vector.broadcast %531 : vector<1x32xf32> to vector<5x32xf32>
    %551 = arith.addf %549, %550 : vector<5x32xf32>
    %c1_310 = arith.constant 1 : index
    %c0_311 = arith.constant 0 : index
    %c0_312 = arith.constant 0 : index
    %552 = vector.load %arg22[%c1_310, %c0_311, %c0_312] : memref<2x32x64xbf16, #tpu.memory_space<vmem>>, vector<1x32x64xbf16>
    %553 = vector.shape_cast %552 : vector<1x32x64xbf16> to vector<32x64xbf16>
    %554 = arith.truncf %551 : vector<5x32xf32> to vector<5x32xbf16>
    %cst_313 = arith.constant dense<0.000000e+00> : vector<5x64xf32>
    %555 = tpu.matmul %554, %553, %cst_313 {dimension_numbers = #tpu.dot_dimension_numbers<[1], [0], [0], [1], [0, 0, 1, 1], [], []>} : vector<5x32xbf16>, vector<32x64xbf16>, vector<5x64xf32> -> vector<5x64xf32>
    %c1_314 = arith.constant 1 : index
    %c0_315 = arith.constant 0 : index
    %c0_316 = arith.constant 0 : index
    %556 = vector.load %arg23[%c1_314, %c0_315, %c0_316] : memref<2x1x64xf32, #tpu.memory_space<vmem>>, vector<1x1x64xf32>
    %557 = vector.shape_cast %556 : vector<1x1x64xf32> to vector<1x64xf32>
    %558 = vector.broadcast %557 : vector<1x64xf32> to vector<5x64xf32>
    %559 = arith.addf %555, %558 : vector<5x64xf32>
    %cst_317 = arith.constant 0.000000e+00 : f32
    %560 = vector.broadcast %cst_317 : f32 to vector<5x64xf32>
    %561 = arith.maximumf %559, %560 : vector<5x64xf32>
    %c1_318 = arith.constant 1 : index
    %c0_319 = arith.constant 0 : index
    %c0_320 = arith.constant 0 : index
    %562 = vector.load %arg24[%c1_318, %c0_319, %c0_320] : memref<2x64x32xbf16, #tpu.memory_space<vmem>>, vector<1x64x32xbf16>
    %563 = vector.shape_cast %562 : vector<1x64x32xbf16> to vector<64x32xbf16>
    %564 = arith.truncf %561 : vector<5x64xf32> to vector<5x64xbf16>
    %cst_321 = arith.constant dense<0.000000e+00> : vector<5x32xf32>
    %565 = tpu.matmul %564, %563, %cst_321 {dimension_numbers = #tpu.dot_dimension_numbers<[1], [0], [0], [1], [0, 0, 1, 1], [], []>} : vector<5x64xbf16>, vector<64x32xbf16>, vector<5x32xf32> -> vector<5x32xf32>
    %566 = arith.addf %527, %565 : vector<5x32xf32>
    %c1_322 = arith.constant 1 : index
    %c0_323 = arith.constant 0 : index
    %c0_324 = arith.constant 0 : index
    %567 = vector.load %arg25[%c1_322, %c0_323, %c0_324] : memref<2x1x32xf32, #tpu.memory_space<vmem>>, vector<1x1x32xf32>
    %568 = vector.shape_cast %567 : vector<1x1x32xf32> to vector<1x32xf32>
    %569 = vector.broadcast %568 : vector<1x32xf32> to vector<5x32xf32>
    %570 = arith.addf %566, %569 : vector<5x32xf32>
    %c0_325 = arith.constant 0 : index
    %c0_326 = arith.constant 0 : index
    %571 = vector.load %arg26[%c0_325, %c0_326] : memref<1x32xf32, #tpu.memory_space<vmem>>, vector<1x32xf32>
    %c0_327 = arith.constant 0 : index
    %c0_328 = arith.constant 0 : index
    %572 = vector.load %arg27[%c0_327, %c0_328] : memref<1x32xf32, #tpu.memory_space<vmem>>, vector<1x32xf32>
    %cst_329 = arith.constant dense<0.000000e+00> : vector<5xf32>
    %573 = vector.multi_reduction <add>, %570, %cst_329 [1] : vector<5x32xf32> to vector<5xf32>
    %574 = vector.shape_cast %573 : vector<5xf32> to vector<5x1xf32>
    %cst_330 = arith.constant 3.200000e+01 : f32
    %575 = vector.broadcast %cst_330 : f32 to vector<5x1xf32>
    %576 = arith.divf %574, %575 : vector<5x1xf32>
    %577 = vector.broadcast %576 : vector<5x1xf32> to vector<5x32xf32>
    %578 = arith.subf %570, %577 : vector<5x32xf32>
    %579 = arith.mulf %578, %578 : vector<5x32xf32>
    %cst_331 = arith.constant dense<0.000000e+00> : vector<5xf32>
    %580 = vector.multi_reduction <add>, %579, %cst_331 [1] : vector<5x32xf32> to vector<5xf32>
    %581 = vector.shape_cast %580 : vector<5xf32> to vector<5x1xf32>
    %cst_332 = arith.constant 3.100000e+01 : f32
    %582 = vector.broadcast %cst_332 : f32 to vector<5x1xf32>
    %583 = arith.divf %581, %582 : vector<5x1xf32>
    %584 = math.sqrt %583 : vector<5x1xf32>
    %585 = vector.broadcast %571 : vector<1x32xf32> to vector<5x32xf32>
    %586 = arith.mulf %585, %578 : vector<5x32xf32>
    %cst_333 = arith.constant 9.99999997E-7 : f32
    %587 = vector.broadcast %cst_333 : f32 to vector<5x1xf32>
    %588 = arith.addf %584, %587 : vector<5x1xf32>
    %589 = vector.broadcast %588 : vector<5x1xf32> to vector<5x32xf32>
    %590 = arith.divf %586, %589 : vector<5x32xf32>
    %591 = vector.broadcast %572 : vector<1x32xf32> to vector<5x32xf32>
    %592 = arith.addf %590, %591 : vector<5x32xf32>
    %c0_334 = arith.constant 0 : index
    %c0_335 = arith.constant 0 : index
    %593 = vector.load %arg28[%c0_334, %c0_335] : memref<32x16xbf16, #tpu.memory_space<vmem>>, vector<32x16xbf16>
    %594 = arith.truncf %592 : vector<5x32xf32> to vector<5x32xbf16>
    %cst_336 = arith.constant dense<0.000000e+00> : vector<5x16xf32>
    %595 = tpu.matmul %594, %593, %cst_336 {dimension_numbers = #tpu.dot_dimension_numbers<[1], [0], [0], [1], [0, 0, 1, 1], [], []>} : vector<5x32xbf16>, vector<32x16xbf16>, vector<5x16xf32> -> vector<5x16xf32>
    %c0_337 = arith.constant 0 : index
    %c0_338 = arith.constant 0 : index
    %596 = vector.load %arg29[%c0_337, %c0_338] : memref<5x16xf32, #tpu.memory_space<vmem>>, vector<5x16xf32>
    %597 = arith.addf %595, %596 : vector<5x16xf32>
    %c0_339 = arith.constant 0 : index
    %c0_340 = arith.constant 0 : index
    %598 = vector.load %arg31[%c0_339, %c0_340] : memref<1x16xf32, #tpu.memory_space<vmem>>, vector<1x16xf32>
    %c0_341 = arith.constant 0 : index
    %c0_342 = arith.constant 0 : index
    %599 = vector.load %arg30[%c0_341, %c0_342] : memref<3x16xf32, #tpu.memory_space<vmem>>, vector<3x16xf32>
    %600 = vector.broadcast %598 : vector<1x16xf32> to vector<3x16xf32>
    %601 = arith.addf %600, %599 : vector<3x16xf32>
    %c0_343 = arith.constant 0 : index
    %c0_344 = arith.constant 0 : index
    %602 = vector.load %arg32[%c0_343, %c0_344] : memref<8x5xf32, #tpu.memory_space<vmem>>, vector<8x5xf32>
    %cst_345 = arith.constant dense<0.000000e+00> : vector<8x16xf32>
    %603 = tpu.matmul %602, %597, %cst_345 {dimension_numbers = #tpu.dot_dimension_numbers<[1], [0], [0], [1], [0, 0, 1, 1], [], []>} : vector<8x5xf32>, vector<5x16xf32>, vector<8x16xf32> -> vector<8x16xf32>
    %c0_346 = arith.constant 0 : index
    %c0_347 = arith.constant 0 : index
    %604 = vector.load %arg33[%c0_346, %c0_347] : memref<8x3xf32, #tpu.memory_space<vmem>>, vector<8x3xf32>
    %cst_348 = arith.constant dense<0.000000e+00> : vector<8x16xf32>
    %605 = tpu.matmul %604, %601, %cst_348 {dimension_numbers = #tpu.dot_dimension_numbers<[1], [0], [0], [1], [0, 0, 1, 1], [], []>} : vector<8x3xf32>, vector<3x16xf32>, vector<8x16xf32> -> vector<8x16xf32>
    %606 = arith.addf %603, %605 : vector<8x16xf32>
    %c0_349 = arith.constant 0 : index
    %c0_350 = arith.constant 0 : index
    %c0_351 = arith.constant 0 : index
    %607 = vector.load %arg34[%c0_349, %c0_350, %c0_351] : memref<1x1x16xf32, #tpu.memory_space<vmem>>, vector<1x1x16xf32>
    %608 = vector.shape_cast %607 : vector<1x1x16xf32> to vector<1x16xf32>
    %c0_352 = arith.constant 0 : index
    %c0_353 = arith.constant 0 : index
    %c0_354 = arith.constant 0 : index
    %609 = vector.load %arg35[%c0_352, %c0_353, %c0_354] : memref<1x1x16xf32, #tpu.memory_space<vmem>>, vector<1x1x16xf32>
    %610 = vector.shape_cast %609 : vector<1x1x16xf32> to vector<1x16xf32>
    %cst_355 = arith.constant dense<0.000000e+00> : vector<8xf32>
    %611 = vector.multi_reduction <add>, %606, %cst_355 [1] : vector<8x16xf32> to vector<8xf32>
    %612 = vector.shape_cast %611 : vector<8xf32> to vector<8x1xf32>
    %cst_356 = arith.constant 1.600000e+01 : f32
    %613 = vector.broadcast %cst_356 : f32 to vector<8x1xf32>
    %614 = arith.divf %612, %613 : vector<8x1xf32>
    %615 = vector.broadcast %614 : vector<8x1xf32> to vector<8x16xf32>
    %616 = arith.subf %606, %615 : vector<8x16xf32>
    %617 = arith.mulf %616, %616 : vector<8x16xf32>
    %cst_357 = arith.constant dense<0.000000e+00> : vector<8xf32>
    %618 = vector.multi_reduction <add>, %617, %cst_357 [1] : vector<8x16xf32> to vector<8xf32>
    %619 = vector.shape_cast %618 : vector<8xf32> to vector<8x1xf32>
    %cst_358 = arith.constant 1.500000e+01 : f32
    %620 = vector.broadcast %cst_358 : f32 to vector<8x1xf32>
    %621 = arith.divf %619, %620 : vector<8x1xf32>
    %622 = math.sqrt %621 : vector<8x1xf32>
    %623 = vector.broadcast %608 : vector<1x16xf32> to vector<8x16xf32>
    %624 = arith.mulf %623, %616 : vector<8x16xf32>
    %cst_359 = arith.constant 9.99999997E-7 : f32
    %625 = vector.broadcast %cst_359 : f32 to vector<8x1xf32>
    %626 = arith.addf %622, %625 : vector<8x1xf32>
    %627 = vector.broadcast %626 : vector<8x1xf32> to vector<8x16xf32>
    %628 = arith.divf %624, %627 : vector<8x16xf32>
    %629 = vector.broadcast %610 : vector<1x16xf32> to vector<8x16xf32>
    %630 = arith.addf %628, %629 : vector<8x16xf32>
    %c0_360 = arith.constant 0 : index
    %c0_361 = arith.constant 0 : index
    %c0_362 = arith.constant 0 : index
    %631 = vector.load %arg36[%c0_360, %c0_361, %c0_362] : memref<1x16x48xbf16, #tpu.memory_space<vmem>>, vector<1x16x48xbf16>
    %632 = vector.shape_cast %631 : vector<1x16x48xbf16> to vector<16x48xbf16>
    %633 = arith.truncf %630 : vector<8x16xf32> to vector<8x16xbf16>
    %cst_363 = arith.constant dense<0.000000e+00> : vector<8x48xf32>
    %634 = tpu.matmul %633, %632, %cst_363 {dimension_numbers = #tpu.dot_dimension_numbers<[1], [0], [0], [1], [0, 0, 1, 1], [], []>} : vector<8x16xbf16>, vector<16x48xbf16>, vector<8x48xf32> -> vector<8x48xf32>
    %c0_364 = arith.constant 0 : index
    %c0_365 = arith.constant 0 : index
    %c0_366 = arith.constant 0 : index
    %635 = vector.load %arg37[%c0_364, %c0_365, %c0_366] : memref<1x1x48xf32, #tpu.memory_space<vmem>>, vector<1x1x48xf32>
    %636 = vector.shape_cast %635 : vector<1x1x48xf32> to vector<1x48xf32>
    %637 = vector.broadcast %636 : vector<1x48xf32> to vector<8x48xf32>
    %638 = arith.addf %634, %637 : vector<8x48xf32>
    %639 = vector.extract_strided_slice %638 {offsets = [0, 0], sizes = [8, 8], strides = [1, 1]} : vector<8x48xf32> to vector<8x8xf32>
    %640 = vector.extract_strided_slice %638 {offsets = [0, 16], sizes = [8, 8], strides = [1, 1]} : vector<8x48xf32> to vector<8x8xf32>
    %641 = vector.extract_strided_slice %638 {offsets = [0, 32], sizes = [8, 8], strides = [1, 1]} : vector<8x48xf32> to vector<8x8xf32>
    %642 = arith.truncf %639 : vector<8x8xf32> to vector<8x8xbf16>
    %643 = arith.truncf %640 : vector<8x8xf32> to vector<8x8xbf16>
    %cst_367 = arith.constant dense<0.000000e+00> : vector<8x8xf32>
    %644 = tpu.matmul %642, %643, %cst_367 {dimension_numbers = #tpu.dot_dimension_numbers<[1], [1], [0], [0], [0, 0, 1, 0], [], []>} : vector<8x8xbf16>, vector<8x8xbf16>, vector<8x8xf32> -> vector<8x8xf32>
    %cst_368 = arith.constant 0.353553385 : f32
    %645 = vector.broadcast %cst_368 : f32 to vector<8x8xf32>
    %646 = arith.mulf %644, %645 : vector<8x8xf32>
    %cst_369 = arith.constant dense<0xFF800000> : vector<8xf32>
    %647 = vector.multi_reduction <maximumf>, %646, %cst_369 [1] : vector<8x8xf32> to vector<8xf32>
    %648 = vector.shape_cast %647 : vector<8xf32> to vector<8x1xf32>
    %649 = vector.broadcast %648 : vector<8x1xf32> to vector<8x8xf32>
    %650 = arith.subf %646, %649 : vector<8x8xf32>
    %651 = math.exp %650 : vector<8x8xf32>
    %cst_370 = arith.constant dense<0.000000e+00> : vector<8xf32>
    %652 = vector.multi_reduction <add>, %651, %cst_370 [1] : vector<8x8xf32> to vector<8xf32>
    %653 = vector.shape_cast %652 : vector<8xf32> to vector<8x1xf32>
    %654 = vector.broadcast %653 : vector<8x1xf32> to vector<8x8xf32>
    %655 = arith.divf %651, %654 : vector<8x8xf32>
    %656 = arith.truncf %655 : vector<8x8xf32> to vector<8x8xbf16>
    %657 = arith.truncf %641 : vector<8x8xf32> to vector<8x8xbf16>
    %cst_371 = arith.constant dense<0.000000e+00> : vector<8x8xf32>
    %658 = tpu.matmul %656, %657, %cst_371 {dimension_numbers = #tpu.dot_dimension_numbers<[1], [0], [0], [1], [0, 0, 1, 1], [], []>} : vector<8x8xbf16>, vector<8x8xbf16>, vector<8x8xf32> -> vector<8x8xf32>
    %659 = vector.extract_strided_slice %638 {offsets = [0, 8], sizes = [8, 8], strides = [1, 1]} : vector<8x48xf32> to vector<8x8xf32>
    %660 = vector.extract_strided_slice %638 {offsets = [0, 24], sizes = [8, 8], strides = [1, 1]} : vector<8x48xf32> to vector<8x8xf32>
    %661 = vector.extract_strided_slice %638 {offsets = [0, 40], sizes = [8, 8], strides = [1, 1]} : vector<8x48xf32> to vector<8x8xf32>
    %662 = arith.truncf %659 : vector<8x8xf32> to vector<8x8xbf16>
    %663 = arith.truncf %660 : vector<8x8xf32> to vector<8x8xbf16>
    %cst_372 = arith.constant dense<0.000000e+00> : vector<8x8xf32>
    %664 = tpu.matmul %662, %663, %cst_372 {dimension_numbers = #tpu.dot_dimension_numbers<[1], [1], [0], [0], [0, 0, 1, 0], [], []>} : vector<8x8xbf16>, vector<8x8xbf16>, vector<8x8xf32> -> vector<8x8xf32>
    %cst_373 = arith.constant 0.353553385 : f32
    %665 = vector.broadcast %cst_373 : f32 to vector<8x8xf32>
    %666 = arith.mulf %664, %665 : vector<8x8xf32>
    %cst_374 = arith.constant dense<0xFF800000> : vector<8xf32>
    %667 = vector.multi_reduction <maximumf>, %666, %cst_374 [1] : vector<8x8xf32> to vector<8xf32>
    %668 = vector.shape_cast %667 : vector<8xf32> to vector<8x1xf32>
    %669 = vector.broadcast %668 : vector<8x1xf32> to vector<8x8xf32>
    %670 = arith.subf %666, %669 : vector<8x8xf32>
    %671 = math.exp %670 : vector<8x8xf32>
    %cst_375 = arith.constant dense<0.000000e+00> : vector<8xf32>
    %672 = vector.multi_reduction <add>, %671, %cst_375 [1] : vector<8x8xf32> to vector<8xf32>
    %673 = vector.shape_cast %672 : vector<8xf32> to vector<8x1xf32>
    %674 = vector.broadcast %673 : vector<8x1xf32> to vector<8x8xf32>
    %675 = arith.divf %671, %674 : vector<8x8xf32>
    %676 = arith.truncf %675 : vector<8x8xf32> to vector<8x8xbf16>
    %677 = arith.truncf %661 : vector<8x8xf32> to vector<8x8xbf16>
    %cst_376 = arith.constant dense<0.000000e+00> : vector<8x8xf32>
    %678 = tpu.matmul %676, %677, %cst_376 {dimension_numbers = #tpu.dot_dimension_numbers<[1], [0], [0], [1], [0, 0, 1, 1], [], []>} : vector<8x8xbf16>, vector<8x8xbf16>, vector<8x8xf32> -> vector<8x8xf32>
    %679 = tpu.concatenate %658, %678 in 1 : vector<8x8xf32>, vector<8x8xf32> -> vector<8x16xf32>
    %c0_377 = arith.constant 0 : index
    %c0_378 = arith.constant 0 : index
    %c0_379 = arith.constant 0 : index
    %680 = vector.load %arg38[%c0_377, %c0_378, %c0_379] : memref<1x16x16xbf16, #tpu.memory_space<vmem>>, vector<1x16x16xbf16>
    %681 = vector.shape_cast %680 : vector<1x16x16xbf16> to vector<16x16xbf16>
    %682 = arith.truncf %679 : vector<8x16xf32> to vector<8x16xbf16>
    %cst_380 = arith.constant dense<0.000000e+00> : vector<8x16xf32>
    %683 = tpu.matmul %682, %681, %cst_380 {dimension_numbers = #tpu.dot_dimension_numbers<[1], [0], [0], [1], [0, 0, 1, 1], [], []>} : vector<8x16xbf16>, vector<16x16xbf16>, vector<8x16xf32> -> vector<8x16xf32>
    %684 = arith.addf %606, %683 : vector<8x16xf32>
    %c0_381 = arith.constant 0 : index
    %c0_382 = arith.constant 0 : index
    %c0_383 = arith.constant 0 : index
    %685 = vector.load %arg39[%c0_381, %c0_382, %c0_383] : memref<1x1x16xf32, #tpu.memory_space<vmem>>, vector<1x1x16xf32>
    %686 = vector.shape_cast %685 : vector<1x1x16xf32> to vector<1x16xf32>
    %687 = vector.broadcast %686 : vector<1x16xf32> to vector<8x16xf32>
    %688 = arith.addf %684, %687 : vector<8x16xf32>
    %c0_384 = arith.constant 0 : index
    %c0_385 = arith.constant 0 : index
    %c0_386 = arith.constant 0 : index
    %689 = vector.load %arg40[%c0_384, %c0_385, %c0_386] : memref<1x1x16xf32, #tpu.memory_space<vmem>>, vector<1x1x16xf32>
    %690 = vector.shape_cast %689 : vector<1x1x16xf32> to vector<1x16xf32>
    %c0_387 = arith.constant 0 : index
    %c0_388 = arith.constant 0 : index
    %c0_389 = arith.constant 0 : index
    %691 = vector.load %arg41[%c0_387, %c0_388, %c0_389] : memref<1x1x16xf32, #tpu.memory_space<vmem>>, vector<1x1x16xf32>
    %692 = vector.shape_cast %691 : vector<1x1x16xf32> to vector<1x16xf32>
    %cst_390 = arith.constant dense<0.000000e+00> : vector<8xf32>
    %693 = vector.multi_reduction <add>, %688, %cst_390 [1] : vector<8x16xf32> to vector<8xf32>
    %694 = vector.shape_cast %693 : vector<8xf32> to vector<8x1xf32>
    %cst_391 = arith.constant 1.600000e+01 : f32
    %695 = vector.broadcast %cst_391 : f32 to vector<8x1xf32>
    %696 = arith.divf %694, %695 : vector<8x1xf32>
    %697 = vector.broadcast %696 : vector<8x1xf32> to vector<8x16xf32>
    %698 = arith.subf %688, %697 : vector<8x16xf32>
    %699 = arith.mulf %698, %698 : vector<8x16xf32>
    %cst_392 = arith.constant dense<0.000000e+00> : vector<8xf32>
    %700 = vector.multi_reduction <add>, %699, %cst_392 [1] : vector<8x16xf32> to vector<8xf32>
    %701 = vector.shape_cast %700 : vector<8xf32> to vector<8x1xf32>
    %cst_393 = arith.constant 1.500000e+01 : f32
    %702 = vector.broadcast %cst_393 : f32 to vector<8x1xf32>
    %703 = arith.divf %701, %702 : vector<8x1xf32>
    %704 = math.sqrt %703 : vector<8x1xf32>
    %705 = vector.broadcast %690 : vector<1x16xf32> to vector<8x16xf32>
    %706 = arith.mulf %705, %698 : vector<8x16xf32>
    %cst_394 = arith.constant 9.99999997E-7 : f32
    %707 = vector.broadcast %cst_394 : f32 to vector<8x1xf32>
    %708 = arith.addf %704, %707 : vector<8x1xf32>
    %709 = vector.broadcast %708 : vector<8x1xf32> to vector<8x16xf32>
    %710 = arith.divf %706, %709 : vector<8x16xf32>
    %711 = vector.broadcast %692 : vector<1x16xf32> to vector<8x16xf32>
    %712 = arith.addf %710, %711 : vector<8x16xf32>
    %c0_395 = arith.constant 0 : index
    %c0_396 = arith.constant 0 : index
    %c0_397 = arith.constant 0 : index
    %713 = vector.load %arg42[%c0_395, %c0_396, %c0_397] : memref<1x16x32xbf16, #tpu.memory_space<vmem>>, vector<1x16x32xbf16>
    %714 = vector.shape_cast %713 : vector<1x16x32xbf16> to vector<16x32xbf16>
    %715 = arith.truncf %712 : vector<8x16xf32> to vector<8x16xbf16>
    %cst_398 = arith.constant dense<0.000000e+00> : vector<8x32xf32>
    %716 = tpu.matmul %715, %714, %cst_398 {dimension_numbers = #tpu.dot_dimension_numbers<[1], [0], [0], [1], [0, 0, 1, 1], [], []>} : vector<8x16xbf16>, vector<16x32xbf16>, vector<8x32xf32> -> vector<8x32xf32>
    %c0_399 = arith.constant 0 : index
    %c0_400 = arith.constant 0 : index
    %c0_401 = arith.constant 0 : index
    %717 = vector.load %arg43[%c0_399, %c0_400, %c0_401] : memref<1x1x32xf32, #tpu.memory_space<vmem>>, vector<1x1x32xf32>
    %718 = vector.shape_cast %717 : vector<1x1x32xf32> to vector<1x32xf32>
    %719 = vector.broadcast %718 : vector<1x32xf32> to vector<8x32xf32>
    %720 = arith.addf %716, %719 : vector<8x32xf32>
    %cst_402 = arith.constant 0.000000e+00 : f32
    %721 = vector.broadcast %cst_402 : f32 to vector<8x32xf32>
    %722 = arith.maximumf %720, %721 : vector<8x32xf32>
    %c0_403 = arith.constant 0 : index
    %c0_404 = arith.constant 0 : index
    %c0_405 = arith.constant 0 : index
    %723 = vector.load %arg44[%c0_403, %c0_404, %c0_405] : memref<1x32x16xbf16, #tpu.memory_space<vmem>>, vector<1x32x16xbf16>
    %724 = vector.shape_cast %723 : vector<1x32x16xbf16> to vector<32x16xbf16>
    %725 = arith.truncf %722 : vector<8x32xf32> to vector<8x32xbf16>
    %cst_406 = arith.constant dense<0.000000e+00> : vector<8x16xf32>
    %726 = tpu.matmul %725, %724, %cst_406 {dimension_numbers = #tpu.dot_dimension_numbers<[1], [0], [0], [1], [0, 0, 1, 1], [], []>} : vector<8x32xbf16>, vector<32x16xbf16>, vector<8x16xf32> -> vector<8x16xf32>
    %727 = arith.addf %688, %726 : vector<8x16xf32>
    %c0_407 = arith.constant 0 : index
    %c0_408 = arith.constant 0 : index
    %c0_409 = arith.constant 0 : index
    %728 = vector.load %arg45[%c0_407, %c0_408, %c0_409] : memref<1x1x16xf32, #tpu.memory_space<vmem>>, vector<1x1x16xf32>
    %729 = vector.shape_cast %728 : vector<1x1x16xf32> to vector<1x16xf32>
    %730 = vector.broadcast %729 : vector<1x16xf32> to vector<8x16xf32>
    %731 = arith.addf %727, %730 : vector<8x16xf32>
    %c0_410 = arith.constant 0 : index
    %c0_411 = arith.constant 0 : index
    %732 = vector.load %arg46[%c0_410, %c0_411] : memref<16x128xbf16, #tpu.memory_space<vmem>>, vector<16x128xbf16>
    %733 = arith.truncf %731 : vector<8x16xf32> to vector<8x16xbf16>
    %cst_412 = arith.constant dense<0.000000e+00> : vector<8x128xf32>
    %734 = tpu.matmul %733, %732, %cst_412 {dimension_numbers = #tpu.dot_dimension_numbers<[1], [0], [0], [1], [0, 0, 1, 1], [], []>} : vector<8x16xbf16>, vector<16x128xbf16>, vector<8x128xf32> -> vector<8x128xf32>
    %c0_413 = arith.constant 0 : index
    %c0_414 = arith.constant 0 : index
    %735 = vector.load %arg47[%c0_413, %c0_414] : memref<1x128xf32, #tpu.memory_space<vmem>>, vector<1x128xf32>
    %736 = vector.broadcast %735 : vector<1x128xf32> to vector<8x128xf32>
    %737 = arith.addf %734, %736 : vector<8x128xf32>
    %c0_415 = arith.constant 0 : index
    %c0_416 = arith.constant 0 : index
    %c0_417 = arith.constant 0 : index
    %738 = vector.load %arg48[%c0_415, %c0_416, %c0_417] : memref<1x8x128xf32, #tpu.memory_space<vmem>>, vector<1x8x128xf32>
    %739 = vector.shape_cast %738 : vector<1x8x128xf32> to vector<8x128xf32>
    %740 = vector.shape_cast %737 : vector<8x128xf32> to vector<1x8x128xf32>
    tpu.vector_store %arg48[%c0_415, %c0_416, %c0_417], %740 {strides = array<i32>} : memref<1x8x128xf32, #tpu.memory_space<vmem>>, vector<1x8x128xf32>,
    return
  }
  func.func @transform_0(%arg0: i32) -> (i32, i32, i32) {
    %c0_i32 = arith.constant 0 : i32
    %c0_i32_0 = arith.constant 0 : i32
    %c0_i32_1 = arith.constant 0 : i32
    return %arg0, %c0_i32, %c0_i32_0 : i32, i32, i32
  }
  func.func @transform_1(%arg0: i32) -> (i32, i32, i32) {
    %c0_i32 = arith.constant 0 : i32
    %c0_i32_0 = arith.constant 0 : i32
    %c0_i32_1 = arith.constant 0 : i32
    %c0_i32_2 = arith.constant 0 : i32
    return %c0_i32, %c0_i32_0, %c0_i32_1 : i32, i32, i32
  }
  func.func @transform_2(%arg0: i32) -> (i32, i32, i32) {
    %c0_i32 = arith.constant 0 : i32
    %c0_i32_0 = arith.constant 0 : i32
    %c0_i32_1 = arith.constant 0 : i32
    %c0_i32_2 = arith.constant 0 : i32
    return %c0_i32, %c0_i32_0, %c0_i32_1 : i32, i32, i32
  }
  func.func @transform_3(%arg0: i32) -> (i32, i32, i32) {
    %c0_i32 = arith.constant 0 : i32
    %c0_i32_0 = arith.constant 0 : i32
    %c0_i32_1 = arith.constant 0 : i32
    %c0_i32_2 = arith.constant 0 : i32
    return %c0_i32, %c0_i32_0, %c0_i32_1 : i32, i32, i32
  }
  func.func @transform_4(%arg0: i32) -> (i32, i32, i32) {
    %c0_i32 = arith.constant 0 : i32
    %c0_i32_0 = arith.constant 0 : i32
    %c0_i32_1 = arith.constant 0 : i32
    %c0_i32_2 = arith.constant 0 : i32
    return %c0_i32, %c0_i32_0, %c0_i32_1 : i32, i32, i32
  }
  func.func @transform_5(%arg0: i32) -> (i32, i32, i32, i32) {
    %c0_i32 = arith.constant 0 : i32
    %c0_i32_0 = arith.constant 0 : i32
    %c0_i32_1 = arith.constant 0 : i32
    %c0_i32_2 = arith.constant 0 : i32
    %c0_i32_3 = arith.constant 0 : i32
    return %c0_i32, %c0_i32_0, %c0_i32_1, %c0_i32_2 : i32, i32, i32, i32
  }
  func.func @transform_6(%arg0: i32) -> (i32, i32, i32, i32) {
    %c0_i32 = arith.constant 0 : i32
    %c0_i32_0 = arith.constant 0 : i32
    %c0_i32_1 = arith.constant 0 : i32
    %c0_i32_2 = arith.constant 0 : i32
    %c0_i32_3 = arith.constant 0 : i32
    return %c0_i32, %c0_i32_0, %c0_i32_1, %c0_i32_2 : i32, i32, i32, i32
  }
  func.func @transform_7(%arg0: i32) -> (i32, i32, i32, i32) {
    %c0_i32 = arith.constant 0 : i32
    %c0_i32_0 = arith.constant 0 : i32
    %c0_i32_1 = arith.constant 0 : i32
    %c0_i32_2 = arith.constant 0 : i32
    %c0_i32_3 = arith.constant 0 : i32
    return %c0_i32, %c0_i32_0, %c0_i32_1, %c0_i32_2 : i32, i32, i32, i32
  }
  func.func @transform_8(%arg0: i32) -> (i32, i32, i32, i32) {
    %c0_i32 = arith.constant 0 : i32
    %c0_i32_0 = arith.constant 0 : i32
    %c0_i32_1 = arith.constant 0 : i32
    %c0_i32_2 = arith.constant 0 : i32
    %c0_i32_3 = arith.constant 0 : i32
    return %c0_i32, %c0_i32_0, %c0_i32_1, %c0_i32_2 : i32, i32, i32, i32
  }
  func.func @transform_9(%arg0: i32) -> (i32, i32, i32) {
    %c0_i32 = arith.constant 0 : i32
    %c0_i32_0 = arith.constant 0 : i32
    %c0_i32_1 = arith.constant 0 : i32
    %c0_i32_2 = arith.constant 0 : i32
    return %c0_i32, %c0_i32_0, %c0_i32_1 : i32, i32, i32
  }
  func.func @transform_10(%arg0: i32) -> (i32, i32, i32) {
    %c0_i32 = arith.constant 0 : i32
    %c0_i32_0 = arith.constant 0 : i32
    %c0_i32_1 = arith.constant 0 : i32
    %c0_i32_2 = arith.constant 0 : i32
    return %c0_i32, %c0_i32_0, %c0_i32_1 : i32, i32, i32
  }
  func.func @transform_11(%arg0: i32) -> (i32, i32) {
    %c0_i32 = arith.constant 0 : i32
    %c0_i32_0 = arith.constant 0 : i32
    %c0_i32_1 = arith.constant 0 : i32
    return %c0_i32, %c0_i32_0 : i32, i32
  }
  func.func @transform_12(%arg0: i32) -> (i32, i32) {
    %c0_i32 = arith.constant 0 : i32
    %c0_i32_0 = arith.constant 0 : i32
    %c0_i32_1 = arith.constant 0 : i32
    return %c0_i32, %c0_i32_0 : i32, i32
  }
  func.func @transform_13(%arg0: i32) -> (i32, i32, i32) {
    %c0_i32 = arith.constant 0 : i32
    %c0_i32_0 = arith.constant 0 : i32
    %c0_i32_1 = arith.constant 0 : i32
    %c0_i32_2 = arith.constant 0 : i32
    return %c0_i32, %c0_i32_0, %c0_i32_1 : i32, i32, i32
  }
  func.func @transform_14(%arg0: i32) -> (i32, i32, i32) {
    %c0_i32 = arith.constant 0 : i32
    %c0_i32_0 = arith.constant 0 : i32
    %c0_i32_1 = arith.constant 0 : i32
    %c0_i32_2 = arith.constant 0 : i32
    return %c0_i32, %c0_i32_0, %c0_i32_1 : i32, i32, i32
  }
  func.func @transform_15(%arg0: i32) -> (i32, i32, i32) {
    %c0_i32 = arith.constant 0 : i32
    %c0_i32_0 = arith.constant 0 : i32
    %c0_i32_1 = arith.constant 0 : i32
    %c0_i32_2 = arith.constant 0 : i32
    return %c0_i32, %c0_i32_0, %c0_i32_1 : i32, i32, i32
  }
  func.func @transform_16(%arg0: i32) -> (i32, i32, i32) {
    %c0_i32 = arith.constant 0 : i32
    %c0_i32_0 = arith.constant 0 : i32
    %c0_i32_1 = arith.constant 0 : i32
    %c0_i32_2 = arith.constant 0 : i32
    return %c0_i32, %c0_i32_0, %c0_i32_1 : i32, i32, i32
  }
  func.func @transform_17(%arg0: i32) -> (i32, i32, i32) {
    %c0_i32 = arith.constant 0 : i32
    %c0_i32_0 = arith.constant 0 : i32
    %c0_i32_1 = arith.constant 0 : i32
    %c0_i32_2 = arith.constant 0 : i32
    return %c0_i32, %c0_i32_0, %c0_i32_1 : i32, i32, i32
  }
  func.func @transform_18(%arg0: i32) -> (i32, i32, i32) {
    %c0_i32 = arith.constant 0 : i32
    %c0_i32_0 = arith.constant 0 : i32
    %c0_i32_1 = arith.constant 0 : i32
    %c0_i32_2 = arith.constant 0 : i32
    return %c0_i32, %c0_i32_0, %c0_i32_1 : i32, i32, i32
  }
  func.func @transform_19(%arg0: i32) -> (i32, i32, i32) {
    %c0_i32 = arith.constant 0 : i32
    %c0_i32_0 = arith.constant 0 : i32
    %c0_i32_1 = arith.constant 0 : i32
    %c0_i32_2 = arith.constant 0 : i32
    return %c0_i32, %c0_i32_0, %c0_i32_1 : i32, i32, i32
  }
  func.func @transform_20(%arg0: i32) -> (i32, i32, i32) {
    %c0_i32 = arith.constant 0 : i32
    %c0_i32_0 = arith.constant 0 : i32
    %c0_i32_1 = arith.constant 0 : i32
    %c0_i32_2 = arith.constant 0 : i32
    return %c0_i32, %c0_i32_0, %c0_i32_1 : i32, i32, i32
  }
  func.func @transform_21(%arg0: i32) -> (i32, i32, i32) {
    %c0_i32 = arith.constant 0 : i32
    %c0_i32_0 = arith.constant 0 : i32
    %c0_i32_1 = arith.constant 0 : i32
    %c0_i32_2 = arith.constant 0 : i32
    return %c0_i32, %c0_i32_0, %c0_i32_1 : i32, i32, i32
  }
  func.func @transform_22(%arg0: i32) -> (i32, i32, i32) {
    %c0_i32 = arith.constant 0 : i32
    %c0_i32_0 = arith.constant 0 : i32
    %c0_i32_1 = arith.constant 0 : i32
    %c0_i32_2 = arith.constant 0 : i32
    return %c0_i32, %c0_i32_0, %c0_i32_1 : i32, i32, i32
  }
  func.func @transform_23(%arg0: i32) -> (i32, i32, i32) {
    %c0_i32 = arith.constant 0 : i32
    %c0_i32_0 = arith.constant 0 : i32
    %c0_i32_1 = arith.constant 0 : i32
    %c0_i32_2 = arith.constant 0 : i32
    return %c0_i32, %c0_i32_0, %c0_i32_1 : i32, i32, i32
  }
  func.func @transform_24(%arg0: i32) -> (i32, i32, i32) {
    %c0_i32 = arith.constant 0 : i32
    %c0_i32_0 = arith.constant 0 : i32
    %c0_i32_1 = arith.constant 0 : i32
    %c0_i32_2 = arith.constant 0 : i32
    return %c0_i32, %c0_i32_0, %c0_i32_1 : i32, i32, i32
  }
  func.func @transform_25(%arg0: i32) -> (i32, i32) {
    %c0_i32 = arith.constant 0 : i32
    %c0_i32_0 = arith.constant 0 : i32
    %c0_i32_1 = arith.constant 0 : i32
    return %c0_i32, %c0_i32_0 : i32, i32
  }
  func.func @transform_26(%arg0: i32) -> (i32, i32) {
    %c0_i32 = arith.constant 0 : i32
    %c0_i32_0 = arith.constant 0 : i32
    %c0_i32_1 = arith.constant 0 : i32
    return %c0_i32, %c0_i32_0 : i32, i32
  }
  func.func @transform_27(%arg0: i32) -> (i32, i32) {
    %c0_i32 = arith.constant 0 : i32
    %c0_i32_0 = arith.constant 0 : i32
    %c0_i32_1 = arith.constant 0 : i32
    return %c0_i32, %c0_i32_0 : i32, i32
  }
  func.func @transform_28(%arg0: i32) -> (i32, i32) {
    %c0_i32 = arith.constant 0 : i32
    %c0_i32_0 = arith.constant 0 : i32
    %c0_i32_1 = arith.constant 0 : i32
    return %c0_i32, %c0_i32_0 : i32, i32
  }
  func.func @transform_29(%arg0: i32) -> (i32, i32) {
    %c0_i32 = arith.constant 0 : i32
    %c0_i32_0 = arith.constant 0 : i32
    %c0_i32_1 = arith.constant 0 : i32
    return %c0_i32, %c0_i32_0 : i32, i32
  }
  func.func @transform_30(%arg0: i32) -> (i32, i32) {
    %c0_i32 = arith.constant 0 : i32
    %c0_i32_0 = arith.constant 0 : i32
    %c0_i32_1 = arith.constant 0 : i32
    return %c0_i32, %c0_i32_0 : i32, i32
  }
  func.func @transform_31(%arg0: i32) -> (i32, i32) {
    %c0_i32 = arith.constant 0 : i32
    %c0_i32_0 = arith.constant 0 : i32
    %c0_i32_1 = arith.constant 0 : i32
    return %c0_i32, %c0_i32_0 : i32, i32
  }
  func.func @transform_32(%arg0: i32) -> (i32, i32) {
    %c0_i32 = arith.constant 0 : i32
    %c0_i32_0 = arith.constant 0 : i32
    %c0_i32_1 = arith.constant 0 : i32
    return %c0_i32, %c0_i32_0 : i32, i32
  }
  func.func @transform_33(%arg0: i32) -> (i32, i32, i32) {
    %c0_i32 = arith.constant 0 : i32
    %c0_i32_0 = arith.constant 0 : i32
    %c0_i32_1 = arith.constant 0 : i32
    %c0_i32_2 = arith.constant 0 : i32
    return %c0_i32, %c0_i32_0, %c0_i32_1 : i32, i32, i32
  }
  func.func @transform_34(%arg0: i32) -> (i32, i32, i32) {
    %c0_i32 = arith.constant 0 : i32
    %c0_i32_0 = arith.constant 0 : i32
    %c0_i32_1 = arith.constant 0 : i32
    %c0_i32_2 = arith.constant 0 : i32
    return %c0_i32, %c0_i32_0, %c0_i32_1 : i32, i32, i32
  }
  func.func @transform_35(%arg0: i32) -> (i32, i32, i32) {
    %c0_i32 = arith.constant 0 : i32
    %c0_i32_0 = arith.constant 0 : i32
    %c0_i32_1 = arith.constant 0 : i32
    %c0_i32_2 = arith.constant 0 : i32
    return %c0_i32, %c0_i32_0, %c0_i32_1 : i32, i32, i32
  }
  func.func @transform_36(%arg0: i32) -> (i32, i32, i32) {
    %c0_i32 = arith.constant 0 : i32
    %c0_i32_0 = arith.constant 0 : i32
    %c0_i32_1 = arith.constant 0 : i32
    %c0_i32_2 = arith.constant 0 : i32
    return %c0_i32, %c0_i32_0, %c0_i32_1 : i32, i32, i32
  }
  func.func @transform_37(%arg0: i32) -> (i32, i32, i32) {
    %c0_i32 = arith.constant 0 : i32
    %c0_i32_0 = arith.constant 0 : i32
    %c0_i32_1 = arith.constant 0 : i32
    %c0_i32_2 = arith.constant 0 : i32
    return %c0_i32, %c0_i32_0, %c0_i32_1 : i32, i32, i32
  }
  func.func @transform_38(%arg0: i32) -> (i32, i32, i32) {
    %c0_i32 = arith.constant 0 : i32
    %c0_i32_0 = arith.constant 0 : i32
    %c0_i32_1 = arith.constant 0 : i32
    %c0_i32_2 = arith.constant 0 : i32
    return %c0_i32, %c0_i32_0, %c0_i32_1 : i32, i32, i32
  }
  func.func @transform_39(%arg0: i32) -> (i32, i32, i32) {
    %c0_i32 = arith.constant 0 : i32
    %c0_i32_0 = arith.constant 0 : i32
    %c0_i32_1 = arith.constant 0 : i32
    %c0_i32_2 = arith.constant 0 : i32
    return %c0_i32, %c0_i32_0, %c0_i32_1 : i32, i32, i32
  }
  func.func @transform_40(%arg0: i32) -> (i32, i32, i32) {
    %c0_i32 = arith.constant 0 : i32
    %c0_i32_0 = arith.constant 0 : i32
    %c0_i32_1 = arith.constant 0 : i32
    %c0_i32_2 = arith.constant 0 : i32
    return %c0_i32, %c0_i32_0, %c0_i32_1 : i32, i32, i32
  }
  func.func @transform_41(%arg0: i32) -> (i32, i32, i32) {
    %c0_i32 = arith.constant 0 : i32
    %c0_i32_0 = arith.constant 0 : i32
    %c0_i32_1 = arith.constant 0 : i32
    %c0_i32_2 = arith.constant 0 : i32
    return %c0_i32, %c0_i32_0, %c0_i32_1 : i32, i32, i32
  }
  func.func @transform_42(%arg0: i32) -> (i32, i32, i32) {
    %c0_i32 = arith.constant 0 : i32
    %c0_i32_0 = arith.constant 0 : i32
    %c0_i32_1 = arith.constant 0 : i32
    %c0_i32_2 = arith.constant 0 : i32
    return %c0_i32, %c0_i32_0, %c0_i32_1 : i32, i32, i32
  }
  func.func @transform_43(%arg0: i32) -> (i32, i32, i32) {
    %c0_i32 = arith.constant 0 : i32
    %c0_i32_0 = arith.constant 0 : i32
    %c0_i32_1 = arith.constant 0 : i32
    %c0_i32_2 = arith.constant 0 : i32
    return %c0_i32, %c0_i32_0, %c0_i32_1 : i32, i32, i32
  }
  func.func @transform_44(%arg0: i32) -> (i32, i32, i32) {
    %c0_i32 = arith.constant 0 : i32
    %c0_i32_0 = arith.constant 0 : i32
    %c0_i32_1 = arith.constant 0 : i32
    %c0_i32_2 = arith.constant 0 : i32
    return %c0_i32, %c0_i32_0, %c0_i32_1 : i32, i32, i32
  }
  func.func @transform_45(%arg0: i32) -> (i32, i32) {
    %c0_i32 = arith.constant 0 : i32
    %c0_i32_0 = arith.constant 0 : i32
    %c0_i32_1 = arith.constant 0 : i32
    return %c0_i32, %c0_i32_0 : i32, i32
  }
  func.func @transform_46(%arg0: i32) -> (i32, i32) {
    %c0_i32 = arith.constant 0 : i32
    %c0_i32_0 = arith.constant 0 : i32
    %c0_i32_1 = arith.constant 0 : i32
    return %c0_i32, %c0_i32_0 : i32, i32
  }
  func.func @transform_47(%arg0: i32) -> (i32, i32, i32) {
    %c0_i32 = arith.constant 0 : i32
    %c0_i32_0 = arith.constant 0 : i32
    %c0_i32_1 = arith.constant 0 : i32
    return %arg0, %c0_i32, %c0_i32_0 : i32, i32, i32
  }
}

</mosaic_0001>

<llo_original>
// kernel: _lambda_.1
$region0: #{_lambda_.1}
  #allocation0 [shape = 'u32[]', space=smem, size = 0x4, offset = 0x4, fixed_abs, tag = 'smem constant byte address 0x4 - core index']
  #allocation1 [shape = 'u32[144,128]{1,0:T(1,128)}', space=vmem, size = 0x12000, scoped, tag = 'internal scratch']
  %s0 = inlined_call_operand.smem [shape: u32[48], index: -1, kind: input, shape index: {}]
  %s1 = sld [smem:[%s0]]
  %s2 = scalar_lea.smem %s0, 1
  %s3 = sld [smem:[%s2]]
  %s4 = scalar_lea.smem %s0, 2
  %s5 = sld [smem:[%s4]]
  %s6 = scalar_lea.smem %s0, 3
  %s7 = sld [smem:[%s6]]
  %s8 = scalar_lea.smem %s0, 4
  %s9 = sld [smem:[%s8]]
  %s10 = scalar_lea.smem %s0, 5
  %s11 = sld [smem:[%s10]]
  %s12 = scalar_lea.smem %s0, 6
  %s13 = sld [smem:[%s12]]
  %s14 = scalar_lea.smem %s0, 7
  %s15 = sld [smem:[%s14]]
  %s16 = scalar_lea.smem %s0, 8
  %s17 = sld [smem:[%s16]]
  %s18 = scalar_lea.smem %s0, 9
  %s19 = sld [smem:[%s18]]
  %s20 = scalar_lea.smem %s0, 10
  %s21 = sld [smem:[%s20]]
  %s22 = scalar_lea.smem %s0, 11
  %s23 = sld [smem:[%s22]]
  %s24 = scalar_lea.smem %s0, 12
  %s25 = sld [smem:[%s24]]
  %s26 = scalar_lea.smem %s0, 13
  %s27 = sld [smem:[%s26]]
  %s28 = scalar_lea.smem %s0, 14
  %s29 = sld [smem:[%s28]]
  %s30 = scalar_lea.smem %s0, 15
  %s31 = sld [smem:[%s30]]
  %s32 = scalar_lea.smem %s0, 16
  %s33 = sld [smem:[%s32]]
  %s34 = scalar_lea.smem %s0, 17
  %s35 = sld [smem:[%s34]]
  %s36 = scalar_lea.smem %s0, 18
  %s37 = sld [smem:[%s36]]
  %s38 = scalar_lea.smem %s0, 19
  %s39 = sld [smem:[%s38]]
  %s40 = scalar_lea.smem %s0, 20
  %s41 = sld [smem:[%s40]]
  %s42 = scalar_lea.smem %s0, 21
  %s43 = sld [smem:[%s42]]
  %s44 = scalar_lea.smem %s0, 22
  %s45 = sld [smem:[%s44]]
  %s46 = scalar_lea.smem %s0, 23
  %s47 = sld [smem:[%s46]]
  %s48 = scalar_lea.smem %s0, 24
  %s49 = sld [smem:[%s48]]
  %s50 = scalar_lea.smem %s0, 25
  %s51 = sld [smem:[%s50]]
  %s52 = scalar_lea.smem %s0, 26
  %s53 = sld [smem:[%s52]]
  %s54 = scalar_lea.smem %s0, 27
  %s55 = sld [smem:[%s54]]
  %s56 = scalar_lea.smem %s0, 28
  %s57 = sld [smem:[%s56]]
  %s58 = scalar_lea.smem %s0, 29
  %s59 = sld [smem:[%s58]]
  %s60 = scalar_lea.smem %s0, 30
  %s61 = sld [smem:[%s60]]
  %s62 = scalar_lea.smem %s0, 31
  %s63 = sld [smem:[%s62]]
  %s64 = scalar_lea.smem %s0, 32
  %s65 = sld [smem:[%s64]]
  %s66 = scalar_lea.smem %s0, 33
  %s67 = sld [smem:[%s66]]
  %s68 = scalar_lea.smem %s0, 34
  %s69 = sld [smem:[%s68]]
  %s70 = scalar_lea.smem %s0, 35
  %s71 = sld [smem:[%s70]]
  %s72 = scalar_lea.smem %s0, 36
  %s73 = sld [smem:[%s72]]
  %s74 = scalar_lea.smem %s0, 37
  %s75 = sld [smem:[%s74]]
  %s76 = scalar_lea.smem %s0, 38
  %s77 = sld [smem:[%s76]]
  %s78 = scalar_lea.smem %s0, 39
  %s79 = sld [smem:[%s78]]
  %s80 = scalar_lea.smem %s0, 40
  %s81 = sld [smem:[%s80]]
  %s82 = scalar_lea.smem %s0, 41
  %s83 = sld [smem:[%s82]]
  %s84 = scalar_lea.smem %s0, 42
  %s85 = sld [smem:[%s84]]
  %s86 = scalar_lea.smem %s0, 43
  %s87 = sld [smem:[%s86]]
  %s88 = scalar_lea.smem %s0, 44
  %s89 = sld [smem:[%s88]]
  %s90 = scalar_lea.smem %s0, 45
  %s91 = sld [smem:[%s90]]
  %s92 = scalar_lea.smem %s0, 46
  %s93 = sld [smem:[%s92]]
  %s94 = scalar_lea.smem %s0, 47
  %s95 = sld [smem:[%s94]]
  %s96 = sld [smem:[#allocation0]]
  $region249: #{_lambda_.1} parent=0
    _
  %s98 = ssub.s32 1, %s96
  %s99 = scalar_select 0, %s98, %s96
  $region1: #{_lambda_.1} parent=0
    #allocation2 [shape = 'u8[512]{0}', space=vmem, size = 0x400, scoped, tag = 'input window, operand 36, single buffered']
    #allocation3 [shape = 's32[2]{0}', space=sflag, size = 0x8, scoped, tag = 'scoped memory for _lambda_.1']
    #allocation4 [shape = 'u8[512]{0}', space=vmem, size = 0x400, scoped, tag = 'input window, operand 38, single buffered']
    #allocation5 [shape = 's32[1]{0}', space=sflag, size = 0x4, scoped, tag = 'scoped memory for _lambda_.1']
    #allocation6 [shape = 'u8[512]{0}', space=vmem, size = 0x400, scoped, tag = 'input window, operand 39, single buffered']
    #allocation7 [shape = 'u8[512]{0}', space=vmem, size = 0x400, scoped, tag = 'input window, operand 40, single buffered']
    #allocation8 [shape = 's32[1]{0}', space=sflag, size = 0x4, scoped, tag = 'scoped memory for _lambda_.1']
    #allocation9 [shape = 'u8[512]{0}', space=vmem, size = 0x400, scoped, tag = 'input window, operand 42, single buffered']
    #allocation10 [shape = 'u8[512]{0}', space=vmem, size = 0x400, scoped, tag = 'input window, operand 44, single buffered']
    #allocation11 [shape = 's32[1]{0}', space=sflag, size = 0x4, scoped, tag = 'scoped memory for _lambda_.1']
    #allocation12 [shape = 'u8[512]{0}', space=vmem, size = 0x400, scoped, tag = 'input window, operand 46, single buffered']
    %100 = vsyncpa [#allocation3], 0
    %101 = vsyncpa [#allocation5], 0
    %102 = vsyncpa [#allocation8], 0
    %103 = vsyncpa [#allocation11], 0
    loop: start=0, step=1, limit=4
    $region2: #{_lambda_.1} parent=1 // loop_pre_header
      _
    $region3: #{_lambda_.1} parent=1 // loop_header
      %s105 = sphi 0, %s109
      %p106 = scmp.ge.s32.totalorder %s105, 4
      %s115 = sphi 0, %s117
      %s118 = sphi 0, %s115
      %s119 = sphi 0, %s118
      %s135 = sphi 0, %s119
      %s139 = sphi 0, %s139
      %s141 = sphi 0, %s139
      %s142 = sphi 0, %s141
      %s156 = sphi 0, %s142
      %s160 = sphi 0, %s160
      %s162 = sphi 0, %s160
      %s163 = sphi 0, %s162
      %s177 = sphi 0, %s163
      %s181 = sphi 0, %s181
      %s183 = sphi 0, %s181
      %s184 = sphi 0, %s183
      %s198 = sphi 0, %s184
      %s202 = sphi 0, %s202
      %s204 = sphi 0, %s202
      %s205 = sphi 0, %s204
      %s219 = sphi 0, %s205
      %s223 = sphi 0, %s223
      %s225 = sphi 0, %s223
      %s226 = sphi 0, %s225
      %s240 = sphi 0, %s226
      %s244 = sphi 0, %s244
      %s246 = sphi 0, %s244
      %s247 = sphi 0, %s246
      %s261 = sphi 0, %s247
      %s265 = sphi 0, %s265
      %s267 = sphi 0, %s265
      %s268 = sphi 0, %s267
      %s282 = sphi 0, %s268
      %s286 = sphi 0, %s286
      %s288 = sphi 0, %s286
      %s289 = sphi 0, %s288
      %s303 = sphi 0, %s289
      %s307 = sphi 0, %s307
      %s309 = sphi 0, %s307
      %s310 = sphi 0, %s309
      %s324 = sphi 0, %s310
      %s328 = sphi 0, %s328
      %s330 = sphi 0, %s328
      %s331 = sphi 0, %s330
      %s345 = sphi 0, %s331
      %s349 = sphi 0, %s349
      %s351 = sphi 0, %s349
      %s352 = sphi 0, %s351
      %s366 = sphi 0, %s352
      %s370 = sphi 0, %s370
      %s372 = sphi 0, %s370
      %s373 = sphi 0, %s372
      %s387 = sphi 0, %s373
      %s391 = sphi 0, %s391
      %s393 = sphi 0, %s391
      %s394 = sphi 0, %s393
      %s408 = sphi 0, %s394
      %s412 = sphi 0, %s412
      %s414 = sphi 0, %s412
      %s415 = sphi 0, %s414
      %s429 = sphi 0, %s415
      %s433 = sphi 0, %s433
      %s435 = sphi 0, %s433
      %s436 = sphi 0, %s435
      %s450 = sphi 0, %s436
      %s454 = sphi 0, %s454
      %s456 = sphi 0, %s454
      %s457 = sphi 0, %s456
      %s471 = sphi 0, %s457
      %s475 = sphi 0, %s475
      %s477 = sphi 0, %s475
      %s478 = sphi 0, %s477
      %s492 = sphi 0, %s478
      %s496 = sphi 0, %s496
      %s498 = sphi 0, %s496
      %s499 = sphi 0, %s498
      %s513 = sphi 0, %s499
      %s517 = sphi 0, %s517
      %s519 = sphi 0, %s517
      %s520 = sphi 0, %s519
      %s534 = sphi 0, %s520
      %s538 = sphi 0, %s538
      %s540 = sphi 0, %s538
      %s541 = sphi 0, %s540
      %s555 = sphi 0, %s541
      %s559 = sphi 0, %s559
      %s561 = sphi 0, %s559
      %s562 = sphi 0, %s561
      %s576 = sphi 0, %s562
      %s580 = sphi 0, %s580
      %s582 = sphi 0, %s580
      %s583 = sphi 0, %s582
      %s597 = sphi 0, %s583
      %s601 = sphi 0, %s601
      %s603 = sphi 0, %s601
      %s604 = sphi 0, %s603
      %s618 = sphi 0, %s604
      %s622 = sphi 0, %s622
      %s624 = sphi 0, %s622
      %s625 = sphi 0, %s624
      %s639 = sphi 0, %s625
      %s643 = sphi 0, %s643
      %s645 = sphi 0, %s643
      %s646 = sphi 0, %s645
      %s660 = sphi 0, %s646
      %s664 = sphi 0, %s664
      %s666 = sphi 0, %s664
      %s667 = sphi 0, %s666
      %s681 = sphi 0, %s667
      %s685 = sphi 0, %s685
      %s687 = sphi 0, %s685
      %s688 = sphi 0, %s687
      %s702 = sphi 0, %s688
      %s706 = sphi 0, %s706
      %s708 = sphi 0, %s706
      %s709 = sphi 0, %s708
      %s723 = sphi 0, %s709
      %s727 = sphi 0, %s727
      %s729 = sphi 0, %s727
      %s730 = sphi 0, %s729
      %s744 = sphi 0, %s730
      %s748 = sphi 0, %s748
      %s750 = sphi 0, %s748
      %s751 = sphi 0, %s750
      %s765 = sphi 0, %s751
      %s769 = sphi 0, %s769
      %s771 = sphi 0, %s769
      %s772 = sphi 0, %s771
      %s786 = sphi 0, %s772
      %s790 = sphi 0, %s790
      %s792 = sphi 0, %s790
      %s793 = sphi 0, %s792
      %s807 = sphi 0, %s793
      %s811 = sphi 0, %s811
      %s813 = sphi 0, %s811
      %s814 = sphi 0, %s813
      %s828 = sphi 0, %s814
      %s832 = sphi 0, %s832
      %s834 = sphi 0, %s832
      %s835 = sphi 0, %s834
      %s849 = sphi 0, %s835
      %s853 = sphi 0, %s853
      %s855 = sphi 0, %s853
      %s856 = sphi 0, %s855
      %s870 = sphi 0, %s856
      %s874 = sphi 0, %s874
      %s876 = sphi 0, %s874
      %s877 = sphi 0, %s876
      %s891 = sphi 0, %s877
      %s895 = sphi 0, %s895
      %s897 = sphi 0, %s895
      %s898 = sphi 0, %s897
      %s912 = sphi 0, %s898
      %s916 = sphi 0, %s916
      %s918 = sphi 0, %s916
      %s919 = sphi 0, %s918
      %s933 = sphi 0, %s919
      %s937 = sphi 0, %s937
      %s939 = sphi 0, %s937
      %s940 = sphi 0, %s939
      %s954 = sphi 0, %s940
      %s958 = sphi 0, %s958
      %s960 = sphi 0, %s958
      %s961 = sphi 0, %s960
      %s975 = sphi 0, %s961
      %s979 = sphi 0, %s979
      %s981 = sphi 0, %s979
      %s982 = sphi 0, %s981
      %s996 = sphi 0, %s982
      %s1000 = sphi 0, %s1000
      %s1002 = sphi 0, %s1000
      %s1003 = sphi 0, %s1002
      %s1017 = sphi 0, %s1003
      %s1021 = sphi 0, %s1021
      %s1023 = sphi 0, %s1021
      %s1024 = sphi 0, %s1023
      %s1038 = sphi 0, %s1024
      %s1042 = sphi 0, %s1042
      %s1044 = sphi 0, %s1042
      %s1045 = sphi 0, %s1044
      %s1059 = sphi 0, %s1045
      %s1063 = sphi 0, %s1063
      %s1065 = sphi 0, %s1063
      %s1066 = sphi 0, %s1065
      %s1080 = sphi 0, %s1066
      %s1084 = sphi 0, %s1084
      %s1086 = sphi 0, %s1084
      %s1087 = sphi 0, %s1086
      %s1101 = sphi 0, %s1087
      %s1107 = sphi 0, %s1109
      %s1110 = sphi 0, %s1107
      %s1111 = sphi 0, %s1110
      %s1127 = sphi 0, %s1111
    $region4: #{_lambda_.1} parent=1 // loop_header_branch
      %108 = sbr.rel (%p106) target = $region8
    $region5: #{_lambda_.1} parent=1 // loop_body
      %s110 = ssub.s32 %s105, 1
      %s111 = ssub.s32 %s105, 2
      %s112 = sadd.s32 %s105, 1
      %s113 = ssub.s32 %s105, %s112
      %p114 = scmp.eq.s32.totalorder %s113, 0
      %s116 = sadd.s32 %s115, 1
      %s117 = scalar_select %p114, %s115, %s116
      %p120 = pneg %p114
      %p121 = scmp.eq.s32.totalorder %s105, 1
      %p122 = por %p120, %p121
      %p123 = scmp.ne.s32.totalorder %s115, %s118
      %p124 = scmp.eq.s32.totalorder %s105, 0
      %p125 = por %p123, %p124
      %p126 = scmp.ne.s32.totalorder %s115, %s118
      %p127 = scmp.eq.s32.totalorder %s110, 1
      %p128 = por %p126, %p127
      %p129 = scmp.ne.s32.totalorder %s118, %s119
      %p130 = scmp.eq.s32.totalorder %s110, 0
      %p131 = por %p129, %p130
      %p132 = scmp.ne.s32.totalorder %s118, %s119
      %p133 = scmp.eq.s32.totalorder %s111, 1
      %p134 = por %p132, %p133
      %p136 = scmp.ne.s32.totalorder %s119, %s135
      %p137 = scmp.eq.s32.totalorder %s111, 0
      %p138 = por %p136, %p137
      %s140 = sadd.s32 %s139, 1
      %p143 = scmp.eq.s32.totalorder %s105, 1
      %p144 = scmp.ne.s32.totalorder %s139, %s141
      %p145 = scmp.eq.s32.totalorder %s105, 0
      %p146 = por %p144, %p145
      %p147 = scmp.ne.s32.totalorder %s139, %s141
      %p148 = scmp.eq.s32.totalorder %s110, 1
      %p149 = por %p147, %p148
      %p150 = scmp.ne.s32.totalorder %s141, %s142
      %p151 = scmp.eq.s32.totalorder %s110, 0
      %p152 = por %p150, %p151
      %p153 = scmp.ne.s32.totalorder %s141, %s142
      %p154 = scmp.eq.s32.totalorder %s111, 1
      %p155 = por %p153, %p154
      %p157 = scmp.ne.s32.totalorder %s142, %s156
      %p158 = scmp.eq.s32.totalorder %s111, 0
      %p159 = por %p157, %p158
      %s161 = sadd.s32 %s160, 1
      %p164 = scmp.eq.s32.totalorder %s105, 1
      %p165 = scmp.ne.s32.totalorder %s160, %s162
      %p166 = scmp.eq.s32.totalorder %s105, 0
      %p167 = por %p165, %p166
      %p168 = scmp.ne.s32.totalorder %s160, %s162
      %p169 = scmp.eq.s32.totalorder %s110, 1
      %p170 = por %p168, %p169
      %p171 = scmp.ne.s32.totalorder %s162, %s163
      %p172 = scmp.eq.s32.totalorder %s110, 0
      %p173 = por %p171, %p172
      %p174 = scmp.ne.s32.totalorder %s162, %s163
      %p175 = scmp.eq.s32.totalorder %s111, 1
      %p176 = por %p174, %p175
      %p178 = scmp.ne.s32.totalorder %s163, %s177
      %p179 = scmp.eq.s32.totalorder %s111, 0
      %p180 = por %p178, %p179
      %s182 = sadd.s32 %s181, 1
      %p185 = scmp.eq.s32.totalorder %s105, 1
      %p186 = scmp.ne.s32.totalorder %s181, %s183
      %p187 = scmp.eq.s32.totalorder %s105, 0
      %p188 = por %p186, %p187
      %p189 = scmp.ne.s32.totalorder %s181, %s183
      %p190 = scmp.eq.s32.totalorder %s110, 1
      %p191 = por %p189, %p190
      %p192 = scmp.ne.s32.totalorder %s183, %s184
      %p193 = scmp.eq.s32.totalorder %s110, 0
      %p194 = por %p192, %p193
      %p195 = scmp.ne.s32.totalorder %s183, %s184
      %p196 = scmp.eq.s32.totalorder %s111, 1
      %p197 = por %p195, %p196
      %p199 = scmp.ne.s32.totalorder %s184, %s198
      %p200 = scmp.eq.s32.totalorder %s111, 0
      %p201 = por %p199, %p200
      %s203 = sadd.s32 %s202, 1
      %p206 = scmp.eq.s32.totalorder %s105, 1
      %p207 = scmp.ne.s32.totalorder %s202, %s204
      %p208 = scmp.eq.s32.totalorder %s105, 0
      %p209 = por %p207, %p208
      %p210 = scmp.ne.s32.totalorder %s202, %s204
      %p211 = scmp.eq.s32.totalorder %s110, 1
      %p212 = por %p210, %p211
      %p213 = scmp.ne.s32.totalorder %s204, %s205
      %p214 = scmp.eq.s32.totalorder %s110, 0
      %p215 = por %p213, %p214
      %p216 = scmp.ne.s32.totalorder %s204, %s205
      %p217 = scmp.eq.s32.totalorder %s111, 1
      %p218 = por %p216, %p217
      %p220 = scmp.ne.s32.totalorder %s205, %s219
      %p221 = scmp.eq.s32.totalorder %s111, 0
      %p222 = por %p220, %p221
      %s224 = sadd.s32 %s223, 1
      %p227 = scmp.eq.s32.totalorder %s105, 1
      %p228 = scmp.ne.s32.totalorder %s223, %s225
      %p229 = scmp.eq.s32.totalorder %s105, 0
      %p230 = por %p228, %p229
      %p231 = scmp.ne.s32.totalorder %s223, %s225
      %p232 = scmp.eq.s32.totalorder %s110, 1
      %p233 = por %p231, %p232
      %p234 = scmp.ne.s32.totalorder %s225, %s226
      %p235 = scmp.eq.s32.totalorder %s110, 0
      %p236 = por %p234, %p235
      %p237 = scmp.ne.s32.totalorder %s225, %s226
      %p238 = scmp.eq.s32.totalorder %s111, 1
      %p239 = por %p237, %p238
      %p241 = scmp.ne.s32.totalorder %s226, %s240
      %p242 = scmp.eq.s32.totalorder %s111, 0
      %p243 = por %p241, %p242
      %s245 = sadd.s32 %s244, 1
      %p248 = scmp.eq.s32.totalorder %s105, 1
      %p249 = scmp.ne.s32.totalorder %s244, %s246
      %p250 = scmp.eq.s32.totalorder %s105, 0
      %p251 = por %p249, %p250
      %p252 = scmp.ne.s32.totalorder %s244, %s246
      %p253 = scmp.eq.s32.totalorder %s110, 1
      %p254 = por %p252, %p253
      %p255 = scmp.ne.s32.totalorder %s246, %s247
      %p256 = scmp.eq.s32.totalorder %s110, 0
      %p257 = por %p255, %p256
      %p258 = scmp.ne.s32.totalorder %s246, %s247
      %p259 = scmp.eq.s32.totalorder %s111, 1
      %p260 = por %p258, %p259
      %p262 = scmp.ne.s32.totalorder %s247, %s261
      %p263 = scmp.eq.s32.totalorder %s111, 0
      %p264 = por %p262, %p263
      %s266 = sadd.s32 %s265, 1
      %p269 = scmp.eq.s32.totalorder %s105, 1
      %p270 = scmp.ne.s32.totalorder %s265, %s267
      %p271 = scmp.eq.s32.totalorder %s105, 0
      %p272 = por %p270, %p271
      %p273 = scmp.ne.s32.totalorder %s265, %s267
      %p274 = scmp.eq.s32.totalorder %s110, 1
      %p275 = por %p273, %p274
      %p276 = scmp.ne.s32.totalorder %s267, %s268
      %p277 = scmp.eq.s32.totalorder %s110, 0
      %p278 = por %p276, %p277
      %p279 = scmp.ne.s32.totalorder %s267, %s268
      %p280 = scmp.eq.s32.totalorder %s111, 1
      %p281 = por %p279, %p280
      %p283 = scmp.ne.s32.totalorder %s268, %s282
      %p284 = scmp.eq.s32.totalorder %s111, 0
      %p285 = por %p283, %p284
      %s287 = sadd.s32 %s286, 1
      %p290 = scmp.eq.s32.totalorder %s105, 1
      %p291 = scmp.ne.s32.totalorder %s286, %s288
      %p292 = scmp.eq.s32.totalorder %s105, 0
      %p293 = por %p291, %p292
      %p294 = scmp.ne.s32.totalorder %s286, %s288
      %p295 = scmp.eq.s32.totalorder %s110, 1
      %p296 = por %p294, %p295
      %p297 = scmp.ne.s32.totalorder %s288, %s289
      %p298 = scmp.eq.s32.totalorder %s110, 0
      %p299 = por %p297, %p298
      %p300 = scmp.ne.s32.totalorder %s288, %s289
      %p301 = scmp.eq.s32.totalorder %s111, 1
      %p302 = por %p300, %p301
      %p304 = scmp.ne.s32.totalorder %s289, %s303
      %p305 = scmp.eq.s32.totalorder %s111, 0
      %p306 = por %p304, %p305
      %s308 = sadd.s32 %s307, 1
      %p311 = scmp.eq.s32.totalorder %s105, 1
      %p312 = scmp.ne.s32.totalorder %s307, %s309
      %p313 = scmp.eq.s32.totalorder %s105, 0
      %p314 = por %p312, %p313
      %p315 = scmp.ne.s32.totalorder %s307, %s309
      %p316 = scmp.eq.s32.totalorder %s110, 1
      %p317 = por %p315, %p316
      %p318 = scmp.ne.s32.totalorder %s309, %s310
      %p319 = scmp.eq.s32.totalorder %s110, 0
      %p320 = por %p318, %p319
      %p321 = scmp.ne.s32.totalorder %s309, %s310
      %p322 = scmp.eq.s32.totalorder %s111, 1
      %p323 = por %p321, %p322
      %p325 = scmp.ne.s32.totalorder %s310, %s324
      %p326 = scmp.eq.s32.totalorder %s111, 0
      %p327 = por %p325, %p326
      %s329 = sadd.s32 %s328, 1
      %p332 = scmp.eq.s32.totalorder %s105, 1
      %p333 = scmp.ne.s32.totalorder %s328, %s330
      %p334 = scmp.eq.s32.totalorder %s105, 0
      %p335 = por %p333, %p334
      %p336 = scmp.ne.s32.totalorder %s328, %s330
      %p337 = scmp.eq.s32.totalorder %s110, 1
      %p338 = por %p336, %p337
      %p339 = scmp.ne.s32.totalorder %s330, %s331
      %p340 = scmp.eq.s32.totalorder %s110, 0
      %p341 = por %p339, %p340
      %p342 = scmp.ne.s32.totalorder %s330, %s331
      %p343 = scmp.eq.s32.totalorder %s111, 1
      %p344 = por %p342, %p343
      %p346 = scmp.ne.s32.totalorder %s331, %s345
      %p347 = scmp.eq.s32.totalorder %s111, 0
      %p348 = por %p346, %p347
      %s350 = sadd.s32 %s349, 1
      %p353 = scmp.eq.s32.totalorder %s105, 1
      %p354 = scmp.ne.s32.totalorder %s349, %s351
      %p355 = scmp.eq.s32.totalorder %s105, 0
      %p356 = por %p354, %p355
      %p357 = scmp.ne.s32.totalorder %s349, %s351
      %p358 = scmp.eq.s32.totalorder %s110, 1
      %p359 = por %p357, %p358
      %p360 = scmp.ne.s32.totalorder %s351, %s352
      %p361 = scmp.eq.s32.totalorder %s110, 0
      %p362 = por %p360, %p361
      %p363 = scmp.ne.s32.totalorder %s351, %s352
      %p364 = scmp.eq.s32.totalorder %s111, 1
      %p365 = por %p363, %p364
      %p367 = scmp.ne.s32.totalorder %s352, %s366
      %p368 = scmp.eq.s32.totalorder %s111, 0
      %p369 = por %p367, %p368
      %s371 = sadd.s32 %s370, 1
      %p374 = scmp.eq.s32.totalorder %s105, 1
      %p375 = scmp.ne.s32.totalorder %s370, %s372
      %p376 = scmp.eq.s32.totalorder %s105, 0
      %p377 = por %p375, %p376
      %p378 = scmp.ne.s32.totalorder %s370, %s372
      %p379 = scmp.eq.s32.totalorder %s110, 1
      %p380 = por %p378, %p379
      %p381 = scmp.ne.s32.totalorder %s372, %s373
      %p382 = scmp.eq.s32.totalorder %s110, 0
      %p383 = por %p381, %p382
      %p384 = scmp.ne.s32.totalorder %s372, %s373
      %p385 = scmp.eq.s32.totalorder %s111, 1
      %p386 = por %p384, %p385
      %p388 = scmp.ne.s32.totalorder %s373, %s387
      %p389 = scmp.eq.s32.totalorder %s111, 0
      %p390 = por %p388, %p389
      %s392 = sadd.s32 %s391, 1
      %p395 = scmp.eq.s32.totalorder %s105, 1
      %p396 = scmp.ne.s32.totalorder %s391, %s393
      %p397 = scmp.eq.s32.totalorder %s105, 0
      %p398 = por %p396, %p397
      %p399 = scmp.ne.s32.totalorder %s391, %s393
      %p400 = scmp.eq.s32.totalorder %s110, 1
      %p401 = por %p399, %p400
      %p402 = scmp.ne.s32.totalorder %s393, %s394
      %p403 = scmp.eq.s32.totalorder %s110, 0
      %p404 = por %p402, %p403
      %p405 = scmp.ne.s32.totalorder %s393, %s394
      %p406 = scmp.eq.s32.totalorder %s111, 1
      %p407 = por %p405, %p406
      %p409 = scmp.ne.s32.totalorder %s394, %s408
      %p410 = scmp.eq.s32.totalorder %s111, 0
      %p411 = por %p409, %p410
      %s413 = sadd.s32 %s412, 1
      %p416 = scmp.eq.s32.totalorder %s105, 1
      %p417 = scmp.ne.s32.totalorder %s412, %s414
      %p418 = scmp.eq.s32.totalorder %s105, 0
      %p419 = por %p417, %p418
      %p420 = scmp.ne.s32.totalorder %s412, %s414
      %p421 = scmp.eq.s32.totalorder %s110, 1
      %p422 = por %p420, %p421
      %p423 = scmp.ne.s32.totalorder %s414, %s415
      %p424 = scmp.eq.s32.totalorder %s110, 0
      %p425 = por %p423, %p424
      %p426 = scmp.ne.s32.totalorder %s414, %s415
      %p427 = scmp.eq.s32.totalorder %s111, 1
      %p428 = por %p426, %p427
      %p430 = scmp.ne.s32.totalorder %s415, %s429
      %p431 = scmp.eq.s32.totalorder %s111, 0
      %p432 = por %p430, %p431
      %s434 = sadd.s32 %s433, 1
      %p437 = scmp.eq.s32.totalorder %s105, 1
      %p438 = scmp.ne.s32.totalorder %s433, %s435
      %p439 = scmp.eq.s32.totalorder %s105, 0
      %p440 = por %p438, %p439
      %p441 = scmp.ne.s32.totalorder %s433, %s435
      %p442 = scmp.eq.s32.totalorder %s110, 1
      %p443 = por %p441, %p442
      %p444 = scmp.ne.s32.totalorder %s435, %s436
      %p445 = scmp.eq.s32.totalorder %s110, 0
      %p446 = por %p444, %p445
      %p447 = scmp.ne.s32.totalorder %s435, %s436
      %p448 = scmp.eq.s32.totalorder %s111, 1
      %p449 = por %p447, %p448
      %p451 = scmp.ne.s32.totalorder %s436, %s450
      %p452 = scmp.eq.s32.totalorder %s111, 0
      %p453 = por %p451, %p452
      %s455 = sadd.s32 %s454, 1
      %p458 = scmp.eq.s32.totalorder %s105, 1
      %p459 = scmp.ne.s32.totalorder %s454, %s456
      %p460 = scmp.eq.s32.totalorder %s105, 0
      %p461 = por %p459, %p460
      %p462 = scmp.ne.s32.totalorder %s454, %s456
      %p463 = scmp.eq.s32.totalorder %s110, 1
      %p464 = por %p462, %p463
      %p465 = scmp.ne.s32.totalorder %s456, %s457
      %p466 = scmp.eq.s32.totalorder %s110, 0
      %p467 = por %p465, %p466
      %p468 = scmp.ne.s32.totalorder %s456, %s457
      %p469 = scmp.eq.s32.totalorder %s111, 1
      %p470 = por %p468, %p469
      %p472 = scmp.ne.s32.totalorder %s457, %s471
      %p473 = scmp.eq.s32.totalorder %s111, 0
      %p474 = por %p472, %p473
      %s476 = sadd.s32 %s475, 1
      %p479 = scmp.eq.s32.totalorder %s105, 1
      %p480 = scmp.ne.s32.totalorder %s475, %s477
      %p481 = scmp.eq.s32.totalorder %s105, 0
      %p482 = por %p480, %p481
      %p483 = scmp.ne.s32.totalorder %s475, %s477
      %p484 = scmp.eq.s32.totalorder %s110, 1
      %p485 = por %p483, %p484
      %p486 = scmp.ne.s32.totalorder %s477, %s478
      %p487 = scmp.eq.s32.totalorder %s110, 0
      %p488 = por %p486, %p487
      %p489 = scmp.ne.s32.totalorder %s477, %s478
      %p490 = scmp.eq.s32.totalorder %s111, 1
      %p491 = por %p489, %p490
      %p493 = scmp.ne.s32.totalorder %s478, %s492
      %p494 = scmp.eq.s32.totalorder %s111, 0
      %p495 = por %p493, %p494
      %s497 = sadd.s32 %s496, 1
      %p500 = scmp.eq.s32.totalorder %s105, 1
      %p501 = scmp.ne.s32.totalorder %s496, %s498
      %p502 = scmp.eq.s32.totalorder %s105, 0
      %p503 = por %p501, %p502
      %p504 = scmp.ne.s32.totalorder %s496, %s498
      %p505 = scmp.eq.s32.totalorder %s110, 1
      %p506 = por %p504, %p505
      %p507 = scmp.ne.s32.totalorder %s498, %s499
      %p508 = scmp.eq.s32.totalorder %s110, 0
      %p509 = por %p507, %p508
      %p510 = scmp.ne.s32.totalorder %s498, %s499
      %p511 = scmp.eq.s32.totalorder %s111, 1
      %p512 = por %p510, %p511
      %p514 = scmp.ne.s32.totalorder %s499, %s513
      %p515 = scmp.eq.s32.totalorder %s111, 0
      %p516 = por %p514, %p515
      %s518 = sadd.s32 %s517, 1
      %p521 = scmp.eq.s32.totalorder %s105, 1
      %p522 = scmp.ne.s32.totalorder %s517, %s519
      %p523 = scmp.eq.s32.totalorder %s105, 0
      %p524 = por %p522, %p523
      %p525 = scmp.ne.s32.totalorder %s517, %s519
      %p526 = scmp.eq.s32.totalorder %s110, 1
      %p527 = por %p525, %p526
      %p528 = scmp.ne.s32.totalorder %s519, %s520
      %p529 = scmp.eq.s32.totalorder %s110, 0
      %p530 = por %p528, %p529
      %p531 = scmp.ne.s32.totalorder %s519, %s520
      %p532 = scmp.eq.s32.totalorder %s111, 1
      %p533 = por %p531, %p532
      %p535 = scmp.ne.s32.totalorder %s520, %s534
      %p536 = scmp.eq.s32.totalorder %s111, 0
      %p537 = por %p535, %p536
      %s539 = sadd.s32 %s538, 1
      %p542 = scmp.eq.s32.totalorder %s105, 1
      %p543 = scmp.ne.s32.totalorder %s538, %s540
      %p544 = scmp.eq.s32.totalorder %s105, 0
      %p545 = por %p543, %p544
      %p546 = scmp.ne.s32.totalorder %s538, %s540
      %p547 = scmp.eq.s32.totalorder %s110, 1
      %p548 = por %p546, %p547
      %p549 = scmp.ne.s32.totalorder %s540, %s541
      %p550 = scmp.eq.s32.totalorder %s110, 0
      %p551 = por %p549, %p550
      %p552 = scmp.ne.s32.totalorder %s540, %s541
      %p553 = scmp.eq.s32.totalorder %s111, 1
      %p554 = por %p552, %p553
      %p556 = scmp.ne.s32.totalorder %s541, %s555
      %p557 = scmp.eq.s32.totalorder %s111, 0
      %p558 = por %p556, %p557
      %s560 = sadd.s32 %s559, 1
      %p563 = scmp.eq.s32.totalorder %s105, 1
      %p564 = scmp.ne.s32.totalorder %s559, %s561
      %p565 = scmp.eq.s32.totalorder %s105, 0
      %p566 = por %p564, %p565
      %p567 = scmp.ne.s32.totalorder %s559, %s561
      %p568 = scmp.eq.s32.totalorder %s110, 1
      %p569 = por %p567, %p568
      %p570 = scmp.ne.s32.totalorder %s561, %s562
      %p571 = scmp.eq.s32.totalorder %s110, 0
      %p572 = por %p570, %p571
      %p573 = scmp.ne.s32.totalorder %s561, %s562
      %p574 = scmp.eq.s32.totalorder %s111, 1
      %p575 = por %p573, %p574
      %p577 = scmp.ne.s32.totalorder %s562, %s576
      %p578 = scmp.eq.s32.totalorder %s111, 0
      %p579 = por %p577, %p578
      %s581 = sadd.s32 %s580, 1
      %p584 = scmp.eq.s32.totalorder %s105, 1
      %p585 = scmp.ne.s32.totalorder %s580, %s582
      %p586 = scmp.eq.s32.totalorder %s105, 0
      %p587 = por %p585, %p586
      %p588 = scmp.ne.s32.totalorder %s580, %s582
      %p589 = scmp.eq.s32.totalorder %s110, 1
      %p590 = por %p588, %p589
      %p591 = scmp.ne.s32.totalorder %s582, %s583
      %p592 = scmp.eq.s32.totalorder %s110, 0
      %p593 = por %p591, %p592
      %p594 = scmp.ne.s32.totalorder %s582, %s583
      %p595 = scmp.eq.s32.totalorder %s111, 1
      %p596 = por %p594, %p595
      %p598 = scmp.ne.s32.totalorder %s583, %s597
      %p599 = scmp.eq.s32.totalorder %s111, 0
      %p600 = por %p598, %p599
      %s602 = sadd.s32 %s601, 1
      %p605 = scmp.eq.s32.totalorder %s105, 1
      %p606 = scmp.ne.s32.totalorder %s601, %s603
      %p607 = scmp.eq.s32.totalorder %s105, 0
      %p608 = por %p606, %p607
      %p609 = scmp.ne.s32.totalorder %s601, %s603
      %p610 = scmp.eq.s32.totalorder %s110, 1
      %p611 = por %p609, %p610
      %p612 = scmp.ne.s32.totalorder %s603, %s604
      %p613 = scmp.eq.s32.totalorder %s110, 0
      %p614 = por %p612, %p613
      %p615 = scmp.ne.s32.totalorder %s603, %s604
      %p616 = scmp.eq.s32.totalorder %s111, 1
      %p617 = por %p615, %p616
      %p619 = scmp.ne.s32.totalorder %s604, %s618
      %p620 = scmp.eq.s32.totalorder %s111, 0
      %p621 = por %p619, %p620
      %s623 = sadd.s32 %s622, 1
      %p626 = scmp.eq.s32.totalorder %s105, 1
      %p627 = scmp.ne.s32.totalorder %s622, %s624
      %p628 = scmp.eq.s32.totalorder %s105, 0
      %p629 = por %p627, %p628
      %p630 = scmp.ne.s32.totalorder %s622, %s624
      %p631 = scmp.eq.s32.totalorder %s110, 1
      %p632 = por %p630, %p631
      %p633 = scmp.ne.s32.totalorder %s624, %s625
      %p634 = scmp.eq.s32.totalorder %s110, 0
      %p635 = por %p633, %p634
      %p636 = scmp.ne.s32.totalorder %s624, %s625
      %p637 = scmp.eq.s32.totalorder %s111, 1
      %p638 = por %p636, %p637
      %p640 = scmp.ne.s32.totalorder %s625, %s639
      %p641 = scmp.eq.s32.totalorder %s111, 0
      %p642 = por %p640, %p641
      %s644 = sadd.s32 %s643, 1
      %p647 = scmp.eq.s32.totalorder %s105, 1
      %p648 = scmp.ne.s32.totalorder %s643, %s645
      %p649 = scmp.eq.s32.totalorder %s105, 0
      %p650 = por %p648, %p649
      %p651 = scmp.ne.s32.totalorder %s643, %s645
      %p652 = scmp.eq.s32.totalorder %s110, 1
      %p653 = por %p651, %p652
      %p654 = scmp.ne.s32.totalorder %s645, %s646
      %p655 = scmp.eq.s32.totalorder %s110, 0
      %p656 = por %p654, %p655
      %p657 = scmp.ne.s32.totalorder %s645, %s646
      %p658 = scmp.eq.s32.totalorder %s111, 1
      %p659 = por %p657, %p658
      %p661 = scmp.ne.s32.totalorder %s646, %s660
      %p662 = scmp.eq.s32.totalorder %s111, 0
      %p663 = por %p661, %p662
      %s665 = sadd.s32 %s664, 1
      %p668 = scmp.eq.s32.totalorder %s105, 1
      %p669 = scmp.ne.s32.totalorder %s664, %s666
      %p670 = scmp.eq.s32.totalorder %s105, 0
      %p671 = por %p669, %p670
      %p672 = scmp.ne.s32.totalorder %s664, %s666
      %p673 = scmp.eq.s32.totalorder %s110, 1
      %p674 = por %p672, %p673
      %p675 = scmp.ne.s32.totalorder %s666, %s667
      %p676 = scmp.eq.s32.totalorder %s110, 0
      %p677 = por %p675, %p676
      %p678 = scmp.ne.s32.totalorder %s666, %s667
      %p679 = scmp.eq.s32.totalorder %s111, 1
      %p680 = por %p678, %p679
      %p682 = scmp.ne.s32.totalorder %s667, %s681
      %p683 = scmp.eq.s32.totalorder %s111, 0
      %p684 = por %p682, %p683
      %s686 = sadd.s32 %s685, 1
      %p689 = scmp.eq.s32.totalorder %s105, 1
      %p690 = scmp.ne.s32.totalorder %s685, %s687
      %p691 = scmp.eq.s32.totalorder %s105, 0
      %p692 = por %p690, %p691
      %p693 = scmp.ne.s32.totalorder %s685, %s687
      %p694 = scmp.eq.s32.totalorder %s110, 1
      %p695 = por %p693, %p694
      %p696 = scmp.ne.s32.totalorder %s687, %s688
      %p697 = scmp.eq.s32.totalorder %s110, 0
      %p698 = por %p696, %p697
      %p699 = scmp.ne.s32.totalorder %s687, %s688
      %p700 = scmp.eq.s32.totalorder %s111, 1
      %p701 = por %p699, %p700
      %p703 = scmp.ne.s32.totalorder %s688, %s702
      %p704 = scmp.eq.s32.totalorder %s111, 0
      %p705 = por %p703, %p704
      %s707 = sadd.s32 %s706, 1
      %p710 = scmp.eq.s32.totalorder %s105, 1
      %p711 = scmp.ne.s32.totalorder %s706, %s708
      %p712 = scmp.eq.s32.totalorder %s105, 0
      %p713 = por %p711, %p712
      %p714 = scmp.ne.s32.totalorder %s706, %s708
      %p715 = scmp.eq.s32.totalorder %s110, 1
      %p716 = por %p714, %p715
      %p717 = scmp.ne.s32.totalorder %s708, %s709
      %p718 = scmp.eq.s32.totalorder %s110, 0
      %p719 = por %p717, %p718
      %p720 = scmp.ne.s32.totalorder %s708, %s709
      %p721 = scmp.eq.s32.totalorder %s111, 1
      %p722 = por %p720, %p721
      %p724 = scmp.ne.s32.totalorder %s709, %s723
      %p725 = scmp.eq.s32.totalorder %s111, 0
      %p726 = por %p724, %p725
      %s728 = sadd.s32 %s727, 1
      %p731 = scmp.eq.s32.totalorder %s105, 1
      %p732 = scmp.ne.s32.totalorder %s727, %s729
      %p733 = scmp.eq.s32.totalorder %s105, 0
      %p734 = por %p732, %p733
      %p735 = scmp.ne.s32.totalorder %s727, %s729
      %p736 = scmp.eq.s32.totalorder %s110, 1
      %p737 = por %p735, %p736
      %p738 = scmp.ne.s32.totalorder %s729, %s730
      %p739 = scmp.eq.s32.totalorder %s110, 0
      %p740 = por %p738, %p739
      %p741 = scmp.ne.s32.totalorder %s729, %s730
      %p742 = scmp.eq.s32.totalorder %s111, 1
      %p743 = por %p741, %p742
      %p745 = scmp.ne.s32.totalorder %s730, %s744
      %p746 = scmp.eq.s32.totalorder %s111, 0
      %p747 = por %p745, %p746
      %s749 = sadd.s32 %s748, 1
      %p752 = scmp.eq.s32.totalorder %s105, 1
      %p753 = scmp.ne.s32.totalorder %s748, %s750
      %p754 = scmp.eq.s32.totalorder %s105, 0
      %p755 = por %p753, %p754
      %p756 = scmp.ne.s32.totalorder %s748, %s750
      %p757 = scmp.eq.s32.totalorder %s110, 1
      %p758 = por %p756, %p757
      %p759 = scmp.ne.s32.totalorder %s750, %s751
      %p760 = scmp.eq.s32.totalorder %s110, 0
      %p761 = por %p759, %p760
      %p762 = scmp.ne.s32.totalorder %s750, %s751
      %p763 = scmp.eq.s32.totalorder %s111, 1
      %p764 = por %p762, %p763
      %p766 = scmp.ne.s32.totalorder %s751, %s765
      %p767 = scmp.eq.s32.totalorder %s111, 0
      %p768 = por %p766, %p767
      %s770 = sadd.s32 %s769, 1
      %p773 = scmp.eq.s32.totalorder %s105, 1
      %p774 = scmp.ne.s32.totalorder %s769, %s771
      %p775 = scmp.eq.s32.totalorder %s105, 0
      %p776 = por %p774, %p775
      %p777 = scmp.ne.s32.totalorder %s769, %s771
      %p778 = scmp.eq.s32.totalorder %s110, 1
      %p779 = por %p777, %p778
      %p780 = scmp.ne.s32.totalorder %s771, %s772
      %p781 = scmp.eq.s32.totalorder %s110, 0
      %p782 = por %p780, %p781
      %p783 = scmp.ne.s32.totalorder %s771, %s772
      %p784 = scmp.eq.s32.totalorder %s111, 1
      %p785 = por %p783, %p784
      %p787 = scmp.ne.s32.totalorder %s772, %s786
      %p788 = scmp.eq.s32.totalorder %s111, 0
      %p789 = por %p787, %p788
      %s791 = sadd.s32 %s790, 1
      %p794 = scmp.eq.s32.totalorder %s105, 1
      %p795 = scmp.ne.s32.totalorder %s790, %s792
      %p796 = scmp.eq.s32.totalorder %s105, 0
      %p797 = por %p795, %p796
      %p798 = scmp.ne.s32.totalorder %s790, %s792
      %p799 = scmp.eq.s32.totalorder %s110, 1
      %p800 = por %p798, %p799
      %p801 = scmp.ne.s32.totalorder %s792, %s793
      %p802 = scmp.eq.s32.totalorder %s110, 0
      %p803 = por %p801, %p802
      %p804 = scmp.ne.s32.totalorder %s792, %s793
      %p805 = scmp.eq.s32.totalorder %s111, 1
      %p806 = por %p804, %p805
      %p808 = scmp.ne.s32.totalorder %s793, %s807
      %p809 = scmp.eq.s32.totalorder %s111, 0
      %p810 = por %p808, %p809
      %s812 = sadd.s32 %s811, 1
      %p815 = scmp.eq.s32.totalorder %s105, 1
      %p816 = scmp.ne.s32.totalorder %s811, %s813
      %p817 = scmp.eq.s32.totalorder %s105, 0
      %p818 = por %p816, %p817
      %p819 = scmp.ne.s32.totalorder %s811, %s813
      %p820 = scmp.eq.s32.totalorder %s110, 1
      %p821 = por %p819, %p820
      %p822 = scmp.ne.s32.totalorder %s813, %s814
      %p823 = scmp.eq.s32.totalorder %s110, 0
      %p824 = por %p822, %p823
      %p825 = scmp.ne.s32.totalorder %s813, %s814
      %p826 = scmp.eq.s32.totalorder %s111, 1
      %p827 = por %p825, %p826
      %p829 = scmp.ne.s32.totalorder %s814, %s828
      %p830 = scmp.eq.s32.totalorder %s111, 0
      %p831 = por %p829, %p830
      %s833 = sadd.s32 %s832, 1
      %p836 = scmp.eq.s32.totalorder %s105, 1
      %p837 = scmp.ne.s32.totalorder %s832, %s834
      %p838 = scmp.eq.s32.totalorder %s105, 0
      %p839 = por %p837, %p838
      %p840 = scmp.ne.s32.totalorder %s832, %s834
      %p841 = scmp.eq.s32.totalorder %s110, 1
      %p842 = por %p840, %p841
      %p843 = scmp.ne.s32.totalorder %s834, %s835
      %p844 = scmp.eq.s32.totalorder %s110, 0
      %p845 = por %p843, %p844
      %p846 = scmp.ne.s32.totalorder %s834, %s835
      %p847 = scmp.eq.s32.totalorder %s111, 1
      %p848 = por %p846, %p847
      %p850 = scmp.ne.s32.totalorder %s835, %s849
      %p851 = scmp.eq.s32.totalorder %s111, 0
      %p852 = por %p850, %p851
      %s854 = sadd.s32 %s853, 1
      %p857 = scmp.eq.s32.totalorder %s105, 1
      %p858 = scmp.ne.s32.totalorder %s853, %s855
      %p859 = scmp.eq.s32.totalorder %s105, 0
      %p860 = por %p858, %p859
      %p861 = scmp.ne.s32.totalorder %s853, %s855
      %p862 = scmp.eq.s32.totalorder %s110, 1
      %p863 = por %p861, %p862
      %p864 = scmp.ne.s32.totalorder %s855, %s856
      %p865 = scmp.eq.s32.totalorder %s110, 0
      %p866 = por %p864, %p865
      %p867 = scmp.ne.s32.totalorder %s855, %s856
      %p868 = scmp.eq.s32.totalorder %s111, 1
      %p869 = por %p867, %p868
      %p871 = scmp.ne.s32.totalorder %s856, %s870
      %p872 = scmp.eq.s32.totalorder %s111, 0
      %p873 = por %p871, %p872
      %s875 = sadd.s32 %s874, 1
      %p878 = scmp.eq.s32.totalorder %s105, 1
      %p879 = scmp.ne.s32.totalorder %s874, %s876
      %p880 = scmp.eq.s32.totalorder %s105, 0
      %p881 = por %p879, %p880
      %p882 = scmp.ne.s32.totalorder %s874, %s876
      %p883 = scmp.eq.s32.totalorder %s110, 1
      %p884 = por %p882, %p883
      %p885 = scmp.ne.s32.totalorder %s876, %s877
      %p886 = scmp.eq.s32.totalorder %s110, 0
      %p887 = por %p885, %p886
      %p888 = scmp.ne.s32.totalorder %s876, %s877
      %p889 = scmp.eq.s32.totalorder %s111, 1
      %p890 = por %p888, %p889
      %p892 = scmp.ne.s32.totalorder %s877, %s891
      %p893 = scmp.eq.s32.totalorder %s111, 0
      %p894 = por %p892, %p893
      %s896 = sadd.s32 %s895, 1
      %p899 = scmp.eq.s32.totalorder %s105, 1
      %p900 = scmp.ne.s32.totalorder %s895, %s897
      %p901 = scmp.eq.s32.totalorder %s105, 0
      %p902 = por %p900, %p901
      %p903 = scmp.ne.s32.totalorder %s895, %s897
      %p904 = scmp.eq.s32.totalorder %s110, 1
      %p905 = por %p903, %p904
      %p906 = scmp.ne.s32.totalorder %s897, %s898
      %p907 = scmp.eq.s32.totalorder %s110, 0
      %p908 = por %p906, %p907
      %p909 = scmp.ne.s32.totalorder %s897, %s898
      %p910 = scmp.eq.s32.totalorder %s111, 1
      %p911 = por %p909, %p910
      %p913 = scmp.ne.s32.totalorder %s898, %s912
      %p914 = scmp.eq.s32.totalorder %s111, 0
      %p915 = por %p913, %p914
      %s917 = sadd.s32 %s916, 1
      %p920 = scmp.eq.s32.totalorder %s105, 1
      %p921 = scmp.ne.s32.totalorder %s916, %s918
      %p922 = scmp.eq.s32.totalorder %s105, 0
      %p923 = por %p921, %p922
      %p924 = scmp.ne.s32.totalorder %s916, %s918
      %p925 = scmp.eq.s32.totalorder %s110, 1
      %p926 = por %p924, %p925
      %p927 = scmp.ne.s32.totalorder %s918, %s919
      %p928 = scmp.eq.s32.totalorder %s110, 0
      %p929 = por %p927, %p928
      %p930 = scmp.ne.s32.totalorder %s918, %s919
      %p931 = scmp.eq.s32.totalorder %s111, 1
      %p932 = por %p930, %p931
      %p934 = scmp.ne.s32.totalorder %s919, %s933
      %p935 = scmp.eq.s32.totalorder %s111, 0
      %p936 = por %p934, %p935
      %s938 = sadd.s32 %s937, 1
      %p941 = scmp.eq.s32.totalorder %s105, 1
      %p942 = scmp.ne.s32.totalorder %s937, %s939
      %p943 = scmp.eq.s32.totalorder %s105, 0
      %p944 = por %p942, %p943
      %p945 = scmp.ne.s32.totalorder %s937, %s939
      %p946 = scmp.eq.s32.totalorder %s110, 1
      %p947 = por %p945, %p946
      %p948 = scmp.ne.s32.totalorder %s939, %s940
      %p949 = scmp.eq.s32.totalorder %s110, 0
      %p950 = por %p948, %p949
      %p951 = scmp.ne.s32.totalorder %s939, %s940
      %p952 = scmp.eq.s32.totalorder %s111, 1
      %p953 = por %p951, %p952
      %p955 = scmp.ne.s32.totalorder %s940, %s954
      %p956 = scmp.eq.s32.totalorder %s111, 0
      %p957 = por %p955, %p956
      %s959 = sadd.s32 %s958, 1
      %p962 = scmp.eq.s32.totalorder %s105, 1
      %p963 = scmp.ne.s32.totalorder %s958, %s960
      %p964 = scmp.eq.s32.totalorder %s105, 0
      %p965 = por %p963, %p964
      %p966 = scmp.ne.s32.totalorder %s958, %s960
      %p967 = scmp.eq.s32.totalorder %s110, 1
      %p968 = por %p966, %p967
      %p969 = scmp.ne.s32.totalorder %s960, %s961
      %p970 = scmp.eq.s32.totalorder %s110, 0
      %p971 = por %p969, %p970
      %p972 = scmp.ne.s32.totalorder %s960, %s961
      %p973 = scmp.eq.s32.totalorder %s111, 1
      %p974 = por %p972, %p973
      %p976 = scmp.ne.s32.totalorder %s961, %s975
      %p977 = scmp.eq.s32.totalorder %s111, 0
      %p978 = por %p976, %p977
      %s980 = sadd.s32 %s979, 1
      %p983 = scmp.eq.s32.totalorder %s105, 1
      %p984 = scmp.ne.s32.totalorder %s979, %s981
      %p985 = scmp.eq.s32.totalorder %s105, 0
      %p986 = por %p984, %p985
      %p987 = scmp.ne.s32.totalorder %s979, %s981
      %p988 = scmp.eq.s32.totalorder %s110, 1
      %p989 = por %p987, %p988
      %p990 = scmp.ne.s32.totalorder %s981, %s982
      %p991 = scmp.eq.s32.totalorder %s110, 0
      %p992 = por %p990, %p991
      %p993 = scmp.ne.s32.totalorder %s981, %s982
      %p994 = scmp.eq.s32.totalorder %s111, 1
      %p995 = por %p993, %p994
      %p997 = scmp.ne.s32.totalorder %s982, %s996
      %p998 = scmp.eq.s32.totalorder %s111, 0
      %p999 = por %p997, %p998
      %s1001 = sadd.s32 %s1000, 1
      %p1004 = scmp.eq.s32.totalorder %s105, 1
      %p1005 = scmp.ne.s32.totalorder %s1000, %s1002
      %p1006 = scmp.eq.s32.totalorder %s105, 0
      %p1007 = por %p1005, %p1006
      %p1008 = scmp.ne.s32.totalorder %s1000, %s1002
      %p1009 = scmp.eq.s32.totalorder %s110, 1
      %p1010 = por %p1008, %p1009
      %p1011 = scmp.ne.s32.totalorder %s1002, %s1003
      %p1012 = scmp.eq.s32.totalorder %s110, 0
      %p1013 = por %p1011, %p1012
      %p1014 = scmp.ne.s32.totalorder %s1002, %s1003
      %p1015 = scmp.eq.s32.totalorder %s111, 1
      %p1016 = por %p1014, %p1015
      %p1018 = scmp.ne.s32.totalorder %s1003, %s1017
      %p1019 = scmp.eq.s32.totalorder %s111, 0
      %p1020 = por %p1018, %p1019
      %s1022 = sadd.s32 %s1021, 1
      %p1025 = scmp.eq.s32.totalorder %s105, 1
      %p1026 = scmp.ne.s32.totalorder %s1021, %s1023
      %p1027 = scmp.eq.s32.totalorder %s105, 0
      %p1028 = por %p1026, %p1027
      %p1029 = scmp.ne.s32.totalorder %s1021, %s1023
      %p1030 = scmp.eq.s32.totalorder %s110, 1
      %p1031 = por %p1029, %p1030
      %p1032 = scmp.ne.s32.totalorder %s1023, %s1024
      %p1033 = scmp.eq.s32.totalorder %s110, 0
      %p1034 = por %p1032, %p1033
      %p1035 = scmp.ne.s32.totalorder %s1023, %s1024
      %p1036 = scmp.eq.s32.totalorder %s111, 1
      %p1037 = por %p1035, %p1036
      %p1039 = scmp.ne.s32.totalorder %s1024, %s1038
      %p1040 = scmp.eq.s32.totalorder %s111, 0
      %p1041 = por %p1039, %p1040
      %s1043 = sadd.s32 %s1042, 1
      %p1046 = scmp.eq.s32.totalorder %s105, 1
      %p1047 = scmp.ne.s32.totalorder %s1042, %s1044
      %p1048 = scmp.eq.s32.totalorder %s105, 0
      %p1049 = por %p1047, %p1048
      %p1050 = scmp.ne.s32.totalorder %s1042, %s1044
      %p1051 = scmp.eq.s32.totalorder %s110, 1
      %p1052 = por %p1050, %p1051
      %p1053 = scmp.ne.s32.totalorder %s1044, %s1045
      %p1054 = scmp.eq.s32.totalorder %s110, 0
      %p1055 = por %p1053, %p1054
      %p1056 = scmp.ne.s32.totalorder %s1044, %s1045
      %p1057 = scmp.eq.s32.totalorder %s111, 1
      %p1058 = por %p1056, %p1057
      %p1060 = scmp.ne.s32.totalorder %s1045, %s1059
      %p1061 = scmp.eq.s32.totalorder %s111, 0
      %p1062 = por %p1060, %p1061
      %s1064 = sadd.s32 %s1063, 1
      %p1067 = scmp.eq.s32.totalorder %s105, 1
      %p1068 = scmp.ne.s32.totalorder %s1063, %s1065
      %p1069 = scmp.eq.s32.totalorder %s105, 0
      %p1070 = por %p1068, %p1069
      %p1071 = scmp.ne.s32.totalorder %s1063, %s1065
      %p1072 = scmp.eq.s32.totalorder %s110, 1
      %p1073 = por %p1071, %p1072
      %p1074 = scmp.ne.s32.totalorder %s1065, %s1066
      %p1075 = scmp.eq.s32.totalorder %s110, 0
      %p1076 = por %p1074, %p1075
      %p1077 = scmp.ne.s32.totalorder %s1065, %s1066
      %p1078 = scmp.eq.s32.totalorder %s111, 1
      %p1079 = por %p1077, %p1078
      %p1081 = scmp.ne.s32.totalorder %s1066, %s1080
      %p1082 = scmp.eq.s32.totalorder %s111, 0
      %p1083 = por %p1081, %p1082
      %s1085 = sadd.s32 %s1084, 1
      %p1088 = scmp.eq.s32.totalorder %s105, 1
      %p1089 = scmp.ne.s32.totalorder %s1084, %s1086
      %p1090 = scmp.eq.s32.totalorder %s105, 0
      %p1091 = por %p1089, %p1090
      %p1092 = scmp.ne.s32.totalorder %s1084, %s1086
      %p1093 = scmp.eq.s32.totalorder %s110, 1
      %p1094 = por %p1092, %p1093
      %p1095 = scmp.ne.s32.totalorder %s1086, %s1087
      %p1096 = scmp.eq.s32.totalorder %s110, 0
      %p1097 = por %p1095, %p1096
      %p1098 = scmp.ne.s32.totalorder %s1086, %s1087
      %p1099 = scmp.eq.s32.totalorder %s111, 1
      %p1100 = por %p1098, %p1099
      %p1102 = scmp.ne.s32.totalorder %s1087, %s1101
      %p1103 = scmp.eq.s32.totalorder %s111, 0
      %p1104 = por %p1102, %p1103
      %s1105 = ssub.s32 %s105, %s112
      %p1106 = scmp.eq.s32.totalorder %s1105, 0
      %s1108 = sadd.s32 %s1107, 1
      %s1109 = scalar_select %p1106, %s1107, %s1108
      %p1112 = pneg %p1106
      %p1113 = scmp.eq.s32.totalorder %s105, 1
      %p1114 = por %p1112, %p1113
      %p1115 = scmp.ne.s32.totalorder %s1107, %s1110
      %p1116 = scmp.eq.s32.totalorder %s105, 0
      %p1117 = por %p1115, %p1116
      %p1118 = scmp.ne.s32.totalorder %s1107, %s1110
      %p1119 = scmp.eq.s32.totalorder %s110, 1
      %p1120 = por %p1118, %p1119
      %p1121 = scmp.ne.s32.totalorder %s1110, %s1111
      %p1122 = scmp.eq.s32.totalorder %s110, 0
      %p1123 = por %p1121, %p1122
      %p1124 = scmp.ne.s32.totalorder %s1110, %s1111
      %p1125 = scmp.eq.s32.totalorder %s111, 1
      %p1126 = por %p1124, %p1125
      %p1128 = scmp.ne.s32.totalorder %s1111, %s1127
      %p1129 = scmp.eq.s32.totalorder %s111, 0
      %p1130 = por %p1128, %p1129
      %p1131 = scmp.le.s32.totalorder 1, %s105
      %p1132 = scmp.lt.s32.totalorder %s105, 3
      %p1133 = pnand %p1131, %p1132
      %p1134 = pneg %p1133
      // Predicated region
      $region9: #{_lambda_.1} parent=5 // pred_check
        _
      $region10: #{_lambda_.1} parent=5 // pred_check_branch
        %1136 = sbr.rel (%p1133) target = $region12
      $region11: #{_lambda_.1} parent=5 // pred_region
        %s1137 = ssub.s32 %s105, 1
        // Predicated region
        $region13: #{_lambda_.1} parent=11 // pred_check
          %p1138 = pneg %p152
        $region14: #{_lambda_.1} parent=11 // pred_check_branch
          %1140 = sbr.rel (%p1138) target = $region16
        $region15: #{_lambda_.1} parent=11 // pred_region
          _
        $region16: #{_lambda_.1} parent=11 // pred_fallthru
          _
        // Predicated region
        $region17: #{_lambda_.1} parent=11 // pred_check
          %p1141 = pneg %p173
        $region18: #{_lambda_.1} parent=11 // pred_check_branch
          %1143 = sbr.rel (%p1141) target = $region20
        $region19: #{_lambda_.1} parent=11 // pred_region
          _
        $region20: #{_lambda_.1} parent=11 // pred_fallthru
          _
        // Predicated region
        $region21: #{_lambda_.1} parent=11 // pred_check
          %p1144 = pneg %p194
        $region22: #{_lambda_.1} parent=11 // pred_check_branch
          %1146 = sbr.rel (%p1144) target = $region24
        $region23: #{_lambda_.1} parent=11 // pred_region
          _
        $region24: #{_lambda_.1} parent=11 // pred_fallthru
          _
        // Predicated region
        $region25: #{_lambda_.1} parent=11 // pred_check
          %p1147 = pneg %p215
        $region26: #{_lambda_.1} parent=11 // pred_check_branch
          %1149 = sbr.rel (%p1147) target = $region28
        $region27: #{_lambda_.1} parent=11 // pred_region
          _
        $region28: #{_lambda_.1} parent=11 // pred_fallthru
          _
        // Predicated region
        $region29: #{_lambda_.1} parent=11 // pred_check
          %p1150 = pneg %p236
        $region30: #{_lambda_.1} parent=11 // pred_check_branch
          %1152 = sbr.rel (%p1150) target = $region32
        $region31: #{_lambda_.1} parent=11 // pred_region
          _
        $region32: #{_lambda_.1} parent=11 // pred_fallthru
          _
        // Predicated region
        $region33: #{_lambda_.1} parent=11 // pred_check
          %p1153 = pneg %p257
        $region34: #{_lambda_.1} parent=11 // pred_check_branch
          %1155 = sbr.rel (%p1153) target = $region36
        $region35: #{_lambda_.1} parent=11 // pred_region
          _
        $region36: #{_lambda_.1} parent=11 // pred_fallthru
          _
        // Predicated region
        $region37: #{_lambda_.1} parent=11 // pred_check
          %p1156 = pneg %p278
        $region38: #{_lambda_.1} parent=11 // pred_check_branch
          %1158 = sbr.rel (%p1156) target = $region40
        $region39: #{_lambda_.1} parent=11 // pred_region
          _
        $region40: #{_lambda_.1} parent=11 // pred_fallthru
          _
        // Predicated region
        $region41: #{_lambda_.1} parent=11 // pred_check
          %p1159 = pneg %p299
        $region42: #{_lambda_.1} parent=11 // pred_check_branch
          %1161 = sbr.rel (%p1159) target = $region44
        $region43: #{_lambda_.1} parent=11 // pred_region
          _
        $region44: #{_lambda_.1} parent=11 // pred_fallthru
          _
        // Predicated region
        $region45: #{_lambda_.1} parent=11 // pred_check
          %p1162 = pneg %p320
        $region46: #{_lambda_.1} parent=11 // pred_check_branch
          %1164 = sbr.rel (%p1162) target = $region48
        $region47: #{_lambda_.1} parent=11 // pred_region
          _
        $region48: #{_lambda_.1} parent=11 // pred_fallthru
          _
        // Predicated region
        $region49: #{_lambda_.1} parent=11 // pred_check
          %p1165 = pneg %p341
        $region50: #{_lambda_.1} parent=11 // pred_check_branch
          %1167 = sbr.rel (%p1165) target = $region52
        $region51: #{_lambda_.1} parent=11 // pred_region
          _
        $region52: #{_lambda_.1} parent=11 // pred_fallthru
          _
        // Predicated region
        $region53: #{_lambda_.1} parent=11 // pred_check
          %p1168 = pneg %p362
        $region54: #{_lambda_.1} parent=11 // pred_check_branch
          %1170 = sbr.rel (%p1168) target = $region56
        $region55: #{_lambda_.1} parent=11 // pred_region
          _
        $region56: #{_lambda_.1} parent=11 // pred_fallthru
          _
        // Predicated region
        $region57: #{_lambda_.1} parent=11 // pred_check
          %p1171 = pneg %p383
        $region58: #{_lambda_.1} parent=11 // pred_check_branch
          %1173 = sbr.rel (%p1171) target = $region60
        $region59: #{_lambda_.1} parent=11 // pred_region
          _
        $region60: #{_lambda_.1} parent=11 // pred_fallthru
          _
        // Predicated region
        $region61: #{_lambda_.1} parent=11 // pred_check
          %p1174 = pneg %p404
        $region62: #{_lambda_.1} parent=11 // pred_check_branch
          %1176 = sbr.rel (%p1174) target = $region64
        $region63: #{_lambda_.1} parent=11 // pred_region
          _
        $region64: #{_lambda_.1} parent=11 // pred_fallthru
          _
        // Predicated region
        $region65: #{_lambda_.1} parent=11 // pred_check
          %p1177 = pneg %p425
        $region66: #{_lambda_.1} parent=11 // pred_check_branch
          %1179 = sbr.rel (%p1177) target = $region68
        $region67: #{_lambda_.1} parent=11 // pred_region
          _
        $region68: #{_lambda_.1} parent=11 // pred_fallthru
          _
        // Predicated region
        $region69: #{_lambda_.1} parent=11 // pred_check
          %p1180 = pneg %p446
        $region70: #{_lambda_.1} parent=11 // pred_check_branch
          %1182 = sbr.rel (%p1180) target = $region72
        $region71: #{_lambda_.1} parent=11 // pred_region
          _
        $region72: #{_lambda_.1} parent=11 // pred_fallthru
          _
        // Predicated region
        $region73: #{_lambda_.1} parent=11 // pred_check
          %p1183 = pneg %p467
        $region74: #{_lambda_.1} parent=11 // pred_check_branch
          %1185 = sbr.rel (%p1183) target = $region76
        $region75: #{_lambda_.1} parent=11 // pred_region
          _
        $region76: #{_lambda_.1} parent=11 // pred_fallthru
          _
        // Predicated region
        $region77: #{_lambda_.1} parent=11 // pred_check
          %p1186 = pneg %p488
        $region78: #{_lambda_.1} parent=11 // pred_check_branch
          %1188 = sbr.rel (%p1186) target = $region80
        $region79: #{_lambda_.1} parent=11 // pred_region
          _
        $region80: #{_lambda_.1} parent=11 // pred_fallthru
          _
        // Predicated region
        $region81: #{_lambda_.1} parent=11 // pred_check
          %p1189 = pneg %p509
        $region82: #{_lambda_.1} parent=11 // pred_check_branch
          %1191 = sbr.rel (%p1189) target = $region84
        $region83: #{_lambda_.1} parent=11 // pred_region
          _
        $region84: #{_lambda_.1} parent=11 // pred_fallthru
          _
        // Predicated region
        $region85: #{_lambda_.1} parent=11 // pred_check
          %p1192 = pneg %p530
        $region86: #{_lambda_.1} parent=11 // pred_check_branch
          %1194 = sbr.rel (%p1192) target = $region88
        $region87: #{_lambda_.1} parent=11 // pred_region
          _
        $region88: #{_lambda_.1} parent=11 // pred_fallthru
          _
        // Predicated region
        $region89: #{_lambda_.1} parent=11 // pred_check
          %p1195 = pneg %p551
        $region90: #{_lambda_.1} parent=11 // pred_check_branch
          %1197 = sbr.rel (%p1195) target = $region92
        $region91: #{_lambda_.1} parent=11 // pred_region
          _
        $region92: #{_lambda_.1} parent=11 // pred_fallthru
          _
        // Predicated region
        $region93: #{_lambda_.1} parent=11 // pred_check
          %p1198 = pneg %p572
        $region94: #{_lambda_.1} parent=11 // pred_check_branch
          %1200 = sbr.rel (%p1198) target = $region96
        $region95: #{_lambda_.1} parent=11 // pred_region
          _
        $region96: #{_lambda_.1} parent=11 // pred_fallthru
          _
        // Predicated region
        $region97: #{_lambda_.1} parent=11 // pred_check
          %p1201 = pneg %p593
        $region98: #{_lambda_.1} parent=11 // pred_check_branch
          %1203 = sbr.rel (%p1201) target = $region100
        $region99: #{_lambda_.1} parent=11 // pred_region
          _
        $region100: #{_lambda_.1} parent=11 // pred_fallthru
          _
        // Predicated region
        $region101: #{_lambda_.1} parent=11 // pred_check
          %p1204 = pneg %p614
        $region102: #{_lambda_.1} parent=11 // pred_check_branch
          %1206 = sbr.rel (%p1204) target = $region104
        $region103: #{_lambda_.1} parent=11 // pred_region
          _
        $region104: #{_lambda_.1} parent=11 // pred_fallthru
          _
        // Predicated region
        $region105: #{_lambda_.1} parent=11 // pred_check
          %p1207 = pneg %p635
        $region106: #{_lambda_.1} parent=11 // pred_check_branch
          %1209 = sbr.rel (%p1207) target = $region108
        $region107: #{_lambda_.1} parent=11 // pred_region
          _
        $region108: #{_lambda_.1} parent=11 // pred_fallthru
          _
        // Predicated region
        $region109: #{_lambda_.1} parent=11 // pred_check
          %p1210 = pneg %p656
        $region110: #{_lambda_.1} parent=11 // pred_check_branch
          %1212 = sbr.rel (%p1210) target = $region112
        $region111: #{_lambda_.1} parent=11 // pred_region
          _
        $region112: #{_lambda_.1} parent=11 // pred_fallthru
          _
        // Predicated region
        $region113: #{_lambda_.1} parent=11 // pred_check
          %p1213 = pneg %p677
        $region114: #{_lambda_.1} parent=11 // pred_check_branch
          %1215 = sbr.rel (%p1213) target = $region116
        $region115: #{_lambda_.1} parent=11 // pred_region
          _
        $region116: #{_lambda_.1} parent=11 // pred_fallthru
          _
        // Predicated region
        $region117: #{_lambda_.1} parent=11 // pred_check
          %p1216 = pneg %p698
        $region118: #{_lambda_.1} parent=11 // pred_check_branch
          %1218 = sbr.rel (%p1216) target = $region120
        $region119: #{_lambda_.1} parent=11 // pred_region
          _
        $region120: #{_lambda_.1} parent=11 // pred_fallthru
          _
        // Predicated region
        $region121: #{_lambda_.1} parent=11 // pred_check
          %p1219 = pneg %p719
        $region122: #{_lambda_.1} parent=11 // pred_check_branch
          %1221 = sbr.rel (%p1219) target = $region124
        $region123: #{_lambda_.1} parent=11 // pred_region
          _
        $region124: #{_lambda_.1} parent=11 // pred_fallthru
          _
        // Predicated region
        $region125: #{_lambda_.1} parent=11 // pred_check
          %p1222 = pneg %p740
        $region126: #{_lambda_.1} parent=11 // pred_check_branch
          %1224 = sbr.rel (%p1222) target = $region128
        $region127: #{_lambda_.1} parent=11 // pred_region
          _
        $region128: #{_lambda_.1} parent=11 // pred_fallthru
          _
        // Predicated region
        $region129: #{_lambda_.1} parent=11 // pred_check
          %p1225 = pneg %p761
        $region130: #{_lambda_.1} parent=11 // pred_check_branch
          %1227 = sbr.rel (%p1225) target = $region132
        $region131: #{_lambda_.1} parent=11 // pred_region
          _
        $region132: #{_lambda_.1} parent=11 // pred_fallthru
          _
        // Predicated region
        $region133: #{_lambda_.1} parent=11 // pred_check
          %p1228 = pneg %p782
        $region134: #{_lambda_.1} parent=11 // pred_check_branch
          %1230 = sbr.rel (%p1228) target = $region136
        $region135: #{_lambda_.1} parent=11 // pred_region
          _
        $region136: #{_lambda_.1} parent=11 // pred_fallthru
          _
        // Predicated region
        $region137: #{_lambda_.1} parent=11 // pred_check
          %p1231 = pneg %p803
        $region138: #{_lambda_.1} parent=11 // pred_check_branch
          %1233 = sbr.rel (%p1231) target = $region140
        $region139: #{_lambda_.1} parent=11 // pred_region
          _
        $region140: #{_lambda_.1} parent=11 // pred_fallthru
          _
        // Predicated region
        $region141: #{_lambda_.1} parent=11 // pred_check
          %p1234 = pneg %p824
        $region142: #{_lambda_.1} parent=11 // pred_check_branch
          %1236 = sbr.rel (%p1234) target = $region144
        $region143: #{_lambda_.1} parent=11 // pred_region
          _
        $region144: #{_lambda_.1} parent=11 // pred_fallthru
          _
        // Predicated region
        $region145: #{_lambda_.1} parent=11 // pred_check
          %p1237 = pneg %p845
        $region146: #{_lambda_.1} parent=11 // pred_check_branch
          %1239 = sbr.rel (%p1237) target = $region148
        $region147: #{_lambda_.1} parent=11 // pred_region
          _
        $region148: #{_lambda_.1} parent=11 // pred_fallthru
          _
        // Predicated region
        $region149: #{_lambda_.1} parent=11 // pred_check
          %p1240 = pneg %p866
        $region150: #{_lambda_.1} parent=11 // pred_check_branch
          %1242 = sbr.rel (%p1240) target = $region152
        $region151: #{_lambda_.1} parent=11 // pred_region
          _
        $region152: #{_lambda_.1} parent=11 // pred_fallthru
          _
        // Predicated region
        $region153: #{_lambda_.1} parent=11 // pred_check
          %p1243 = pneg %p887
        $region154: #{_lambda_.1} parent=11 // pred_check_branch
          %1245 = sbr.rel (%p1243) target = $region156
        $region155: #{_lambda_.1} parent=11 // pred_region
          %s1247 = ssub.s32 16, 16
          %1248 = vsyncadd [#allocation3], %s1247
          %s1250 = sshll.u32 [#allocation2], 4
          %s1251 = int_to_ptr.vmem [resolvable:$true] %s1250
          %1253 = dma.hbm_to_vmem [thread:$0]  %s73, 16, %s1251, [#allocation3]
        $region156: #{_lambda_.1} parent=11 // pred_fallthru
          _
        // Predicated region
        $region157: #{_lambda_.1} parent=11 // pred_check
          %p1254 = pneg %p908
        $region158: #{_lambda_.1} parent=11 // pred_check_branch
          %1256 = sbr.rel (%p1254) target = $region160
        $region159: #{_lambda_.1} parent=11 // pred_region
          _
        $region160: #{_lambda_.1} parent=11 // pred_fallthru
          _
        // Predicated region
        $region161: #{_lambda_.1} parent=11 // pred_check
          %p1257 = pneg %p929
        $region162: #{_lambda_.1} parent=11 // pred_check_branch
          %1259 = sbr.rel (%p1257) target = $region164
        $region163: #{_lambda_.1} parent=11 // pred_region
          %s1261 = ssub.s32 16, 16
          %1262 = vsyncadd [#allocation5], %s1261
          %s1264 = sshll.u32 [#allocation4], 4
          %s1265 = int_to_ptr.vmem [resolvable:$true] %s1264
          %1267 = dma.hbm_to_vmem [thread:$0]  %s77, 16, %s1265, [#allocation5]
        $region164: #{_lambda_.1} parent=11 // pred_fallthru
          _
        // Predicated region
        $region165: #{_lambda_.1} parent=11 // pred_check
          %p1268 = pneg %p950
        $region166: #{_lambda_.1} parent=11 // pred_check_branch
          %1270 = sbr.rel (%p1268) target = $region168
        $region167: #{_lambda_.1} parent=11 // pred_region
          %s1272 = ssub.s32 16, 16
          %1273 = vsyncadd [#allocation5], %s1272
          %s1275 = sshll.u32 [#allocation6], 4
          %s1276 = int_to_ptr.vmem [resolvable:$true] %s1275
          %1278 = dma.hbm_to_vmem [thread:$0]  %s79, 16, %s1276, [#allocation5]
        $region168: #{_lambda_.1} parent=11 // pred_fallthru
          _
        // Predicated region
        $region169: #{_lambda_.1} parent=11 // pred_check
          %p1279 = pneg %p971
        $region170: #{_lambda_.1} parent=11 // pred_check_branch
          %1281 = sbr.rel (%p1279) target = $region172
        $region171: #{_lambda_.1} parent=11 // pred_region
          %s1283 = ssub.s32 16, 16
          %1284 = vsyncadd [#allocation8], %s1283
          %s1286 = sshll.u32 [#allocation7], 4
          %s1287 = int_to_ptr.vmem [resolvable:$true] %s1286
          %1289 = dma.hbm_to_vmem [thread:$0]  %s81, 16, %s1287, [#allocation8]
        $region172: #{_lambda_.1} parent=11 // pred_fallthru
          _
        // Predicated region
        $region173: #{_lambda_.1} parent=11 // pred_check
          %p1290 = pneg %p992
        $region174: #{_lambda_.1} parent=11 // pred_check_branch
          %1292 = sbr.rel (%p1290) target = $region176
        $region175: #{_lambda_.1} parent=11 // pred_region
          _
        $region176: #{_lambda_.1} parent=11 // pred_fallthru
          _
        // Predicated region
        $region177: #{_lambda_.1} parent=11 // pred_check
          %p1293 = pneg %p1013
        $region178: #{_lambda_.1} parent=11 // pred_check_branch
          %1295 = sbr.rel (%p1293) target = $region180
        $region179: #{_lambda_.1} parent=11 // pred_region
          %s1297 = ssub.s32 16, 16
          %1298 = vsyncadd [#allocation8], %s1297
          %s1300 = sshll.u32 [#allocation9], 4
          %s1301 = int_to_ptr.vmem [resolvable:$true] %s1300
          %1303 = dma.hbm_to_vmem [thread:$0]  %s85, 16, %s1301, [#allocation8]
        $region180: #{_lambda_.1} parent=11 // pred_fallthru
          _
        // Predicated region
        $region181: #{_lambda_.1} parent=11 // pred_check
          %p1304 = pneg %p1034
        $region182: #{_lambda_.1} parent=11 // pred_check_branch
          %1306 = sbr.rel (%p1304) target = $region184
        $region183: #{_lambda_.1} parent=11 // pred_region
          _
        $region184: #{_lambda_.1} parent=11 // pred_fallthru
          _
        // Predicated region
        $region185: #{_lambda_.1} parent=11 // pred_check
          %p1307 = pneg %p1055
        $region186: #{_lambda_.1} parent=11 // pred_check_branch
          %1309 = sbr.rel (%p1307) target = $region188
        $region187: #{_lambda_.1} parent=11 // pred_region
          %s1311 = ssub.s32 16, 16
          %1312 = vsyncadd [#allocation11], %s1311
          %s1314 = sshll.u32 [#allocation10], 4
          %s1315 = int_to_ptr.vmem [resolvable:$true] %s1314
          %1317 = dma.hbm_to_vmem [thread:$0]  %s89, 16, %s1315, [#allocation11]
        $region188: #{_lambda_.1} parent=11 // pred_fallthru
          _
        // Predicated region
        $region189: #{_lambda_.1} parent=11 // pred_check
          %p1318 = pneg %p1076
        $region190: #{_lambda_.1} parent=11 // pred_check_branch
          %1320 = sbr.rel (%p1318) target = $region192
        $region191: #{_lambda_.1} parent=11 // pred_region
          _
        $region192: #{_lambda_.1} parent=11 // pred_fallthru
          _
        // Predicated region
        $region193: #{_lambda_.1} parent=11 // pred_check
          %p1321 = pneg %p1097
        $region194: #{_lambda_.1} parent=11 // pred_check_branch
          %1323 = sbr.rel (%p1321) target = $region196
        $region195: #{_lambda_.1} parent=11 // pred_region
          %s1325 = ssub.s32 16, 16
          %1326 = vsyncadd [#allocation11], %s1325
          %s1328 = sshll.u32 [#allocation12], 4
          %s1329 = int_to_ptr.vmem [resolvable:$true] %s1328
          %1331 = dma.hbm_to_vmem [thread:$0]  %s93, 16, %s1329, [#allocation11]
        $region196: #{_lambda_.1} parent=11 // pred_fallthru
          _
      $region12: #{_lambda_.1} parent=5 // pred_fallthru
        _
      %p1332 = scmp.lt.s32.totalorder %s105, 2
      // Predicated region
      $region197: #{_lambda_.1} parent=5 // pred_check
        %p1333 = pneg %p1332
      $region198: #{_lambda_.1} parent=5 // pred_check_branch
        %1335 = sbr.rel (%p1333) target = $region200
      $region199: #{_lambda_.1} parent=5 // pred_region
        // Predicated region
        $region201: #{_lambda_.1} parent=199 // pred_check
          %p1336 = pneg %p125
        $region202: #{_lambda_.1} parent=199 // pred_check_branch
          %1338 = sbr.rel (%p1336) target = $region204
        $region203: #{_lambda_.1} parent=199 // pred_region
          %p1339 = scmp.lt.s32.totalorder %s105, 1
          %s1340 = scalar_select %p1339, %s105, 1
          %s1341 = smul.addr %s1340, 8
          %s1342 = scalar_lea.vmem %s1, %s1341
        $region204: #{_lambda_.1} parent=199 // pred_fallthru
          _
      $region200: #{_lambda_.1} parent=5 // pred_fallthru
        _
      %p1343 = scmp.le.s32.totalorder 1, %s105
      %p1344 = scmp.lt.s32.totalorder %s105, 3
      %p1345 = pnand %p1343, %p1344
      %p1346 = pneg %p1345
      // Predicated region
      $region205: #{_lambda_.1} parent=5 // pred_check
        _
      $region206: #{_lambda_.1} parent=5 // pred_check_branch
        %1348 = sbr.rel (%p1345) target = $region208
      $region207: #{_lambda_.1} parent=5 // pred_region
        %s1349 = ssub.s32 %s105, 1
        // Predicated region
        $region209: #{_lambda_.1} parent=207 // pred_check
          %p1350 = pneg %p887
        $region210: #{_lambda_.1} parent=207 // pred_check_branch
          %1352 = sbr.rel (%p1350) target = $region212
        $region211: #{_lambda_.1} parent=207 // pred_region
          %1353 = dma.done [#allocation3], 16
        $region212: #{_lambda_.1} parent=207 // pred_fallthru
          _
        // Predicated region
        $region213: #{_lambda_.1} parent=207 // pred_check
          %p1354 = pneg %p929
        $region214: #{_lambda_.1} parent=207 // pred_check_branch
          %1356 = sbr.rel (%p1354) target = $region216
        $region215: #{_lambda_.1} parent=207 // pred_region
          %1357 = dma.done [#allocation5], 16
        $region216: #{_lambda_.1} parent=207 // pred_fallthru
          _
        // Predicated region
        $region217: #{_lambda_.1} parent=207 // pred_check
          %p1358 = pneg %p950
        $region218: #{_lambda_.1} parent=207 // pred_check_branch
          %1360 = sbr.rel (%p1358) target = $region220
        $region219: #{_lambda_.1} parent=207 // pred_region
          %1361 = dma.done [#allocation5], 16
        $region220: #{_lambda_.1} parent=207 // pred_fallthru
          _
        // Predicated region
        $region221: #{_lambda_.1} parent=207 // pred_check
          %p1362 = pneg %p971
        $region222: #{_lambda_.1} parent=207 // pred_check_branch
          %1364 = sbr.rel (%p1362) target = $region224
        $region223: #{_lambda_.1} parent=207 // pred_region
          %1365 = dma.done [#allocation8], 16
        $region224: #{_lambda_.1} parent=207 // pred_fallthru
          _
        // Predicated region
        $region225: #{_lambda_.1} parent=207 // pred_check
          %p1366 = pneg %p1013
        $region226: #{_lambda_.1} parent=207 // pred_check_branch
          %1368 = sbr.rel (%p1366) target = $region228
        $region227: #{_lambda_.1} parent=207 // pred_region
          %1369 = dma.done [#allocation8], 16
        $region228: #{_lambda_.1} parent=207 // pred_fallthru
          _
        // Predicated region
        $region229: #{_lambda_.1} parent=207 // pred_check
          %p1370 = pneg %p1055
        $region230: #{_lambda_.1} parent=207 // pred_check_branch
          %1372 = sbr.rel (%p1370) target = $region232
        $region231: #{_lambda_.1} parent=207 // pred_region
          %1373 = dma.done [#allocation11], 16
        $region232: #{_lambda_.1} parent=207 // pred_fallthru
          _
        // Predicated region
        $region233: #{_lambda_.1} parent=207 // pred_check
          %p1374 = pneg %p1097
        $region234: #{_lambda_.1} parent=207 // pred_check_branch
          %1376 = sbr.rel (%p1374) target = $region236
        $region235: #{_lambda_.1} parent=207 // pred_region
          %1377 = dma.done [#allocation11], 16
        $region236: #{_lambda_.1} parent=207 // pred_fallthru
          _
        %p1378 = scmp.lt.s32.totalorder %s110, 1
        %s1379 = scalar_select %p1378, %s110, 1
        %s1380 = smul.addr %s1379, 8
        %s1381 = scalar_lea.vmem %s1, %s1380
        %p1382 = pneg %p131
        %p1383 = pneg %p128
        %p1384 = pneg %p152
        %p1385 = pneg %p149
        %p1386 = pneg %p173
        %p1387 = pneg %p170
        %p1388 = pneg %p194
        %p1389 = pneg %p191
        %p1390 = pneg %p215
        %p1391 = pneg %p212
        %p1392 = pneg %p236
        %p1393 = pneg %p233
        %p1394 = pneg %p257
        %p1395 = pneg %p254
        %p1396 = pneg %p278
        %p1397 = pneg %p275
        %p1398 = pneg %p299
        %p1399 = pneg %p296
        %p1400 = pneg %p320
        %p1401 = pneg %p317
        %p1402 = pneg %p341
        %p1403 = pneg %p338
        %p1404 = pneg %p362
        %p1405 = pneg %p359
        %p1406 = pneg %p383
        %p1407 = pneg %p380
        %p1408 = pneg %p404
        %p1409 = pneg %p401
        %p1410 = pneg %p425
        %p1411 = pneg %p422
        %p1412 = pneg %p446
        %p1413 = pneg %p443
        %p1414 = pneg %p467
        %p1415 = pneg %p464
        %p1416 = pneg %p488
        %p1417 = pneg %p485
        %p1418 = pneg %p509
        %p1419 = pneg %p506
        %p1420 = pneg %p530
        %p1421 = pneg %p527
        %p1422 = pneg %p551
        %p1423 = pneg %p548
        %p1424 = pneg %p572
        %p1425 = pneg %p569
        %p1426 = pneg %p593
        %p1427 = pneg %p590
        %p1428 = pneg %p614
        %p1429 = pneg %p611
        %p1430 = pneg %p635
        %p1431 = pneg %p632
        %p1432 = pneg %p656
        %p1433 = pneg %p653
        %p1434 = pneg %p677
        %p1435 = pneg %p674
        %p1436 = pneg %p698
        %p1437 = pneg %p695
        %p1438 = pneg %p719
        %p1439 = pneg %p716
        %p1440 = pneg %p740
        %p1441 = pneg %p737
        %p1442 = pneg %p761
        %p1443 = pneg %p758
        %p1444 = pneg %p782
        %p1445 = pneg %p779
        %p1446 = pneg %p803
        %p1447 = pneg %p800
        %p1448 = pneg %p824
        %p1449 = pneg %p821
        %p1450 = pneg %p845
        %p1451 = pneg %p842
        %p1452 = pneg %p866
        %p1453 = pneg %p863
        %p1454 = pneg %p887
        %p1455 = pneg %p884
        %p1456 = pneg %p908
        %p1457 = pneg %p905
        %p1458 = pneg %p929
        %p1459 = pneg %p926
        %p1460 = pneg %p950
        %p1461 = pneg %p947
        %p1462 = pneg %p971
        %p1463 = pneg %p968
        %p1464 = pneg %p992
        %p1465 = pneg %p989
        %p1466 = pneg %p1013
        %p1467 = pneg %p1010
        %p1468 = pneg %p1034
        %p1469 = pneg %p1031
        %p1470 = pneg %p1055
        %p1471 = pneg %p1052
        %p1472 = pneg %p1076
        %p1473 = pneg %p1073
        %p1474 = pneg %p1097
        %p1475 = pneg %p1094
        %p1476 = pneg %p1123
        %p1477 = pneg %p1120
        %p1478 = scmp.lt.s32.totalorder %s110, 1
        %s1479 = scalar_select %p1478, %s110, 1
        %s1480 = smul.addr %s1479, 8
        %s1481 = scalar_lea.vmem %s95, %s1480
        %p1482 = scmp.lt.s32.totalorder %s110, 1
        %s1483 = scalar_select %p1482, %s110, 1
        %s1484 = smul.addr %s1483, 8
        %s1485 = scalar_lea.vmem %s1, %s1484
        %p1486 = scmp.lt.s32.totalorder %s110, 1
        %s1487 = scalar_select %p1486, %s110, 1
        %s1488 = smul.addr %s1487, 8
        %s1489 = scalar_lea.vmem %s95, %s1488
        %v1491 = vld [vmem:[%s1485] sm:$0xff]
        %v1492 = vld [vmem:[%s3] sm:$0xff]
        %v1493 = vld [vmem:[%s5] sm:$0x1]
        %v1494 = vsub.f32 1.0, %v1492
        %v1495 = vmul.f32 %v1491, %v1494
        %v1497 = vlaneseq
        %v1498 = vshrl.u32 %v1497, 7
        %v1499 = vsub.s32 0, %v1498
        %v1500 = vrot.slane %v1493, %v1499
        %v1502 = vmul.f32 %v1500, %v1492
        %v1503 = vadd.f32 %v1495, %v1502
        %v1504 = vld [vmem:[%s7] sm:$0xf]
        %v1505 = vld [vmem:[%s7 + $0x4] sm:$0xf]
        %v1506 = vpack.c.bf16 %v1503, %v1503
        %v1507 = vld [vmem:[%s9] sm:$0x1]
        %v1509 = vlaneseq
        %v1510 = vshrl.u32 %v1509, 7
        %v1511 = vsub.s32 0, %v1510
        %v1512 = vrot.slane %v1507, %v1511
        %v1516 = vunpack.c.l.b16 %v1504
        %v1517 = vunpack.c.l.b16 %v1505
        %v1518 = vpack.c.b16 %v1517, %v1516
        %vm1520 = vcmask 130048
        %v1522 = vsel %vm1520, %v1506, 0
        %1524 = vmatprep.subr.bf16.mxu0 0
        %1525 = vmatpush1.bf16.msra.mxu0 %v1518
        %1526 = vmatprep.subr.bf16.mxu0 0
        %1527 = vmatpush1.bf16.msra.mxu0 0
        %1528 = vmatprep.subr.bf16.mxu0 0
        %1529 = vmatpush1.bf16.msra.mxu0 0
        %1530 = vmatprep.subr.bf16.mxu0 0
        %1531 = vmatpush1.bf16.msra.mxu0 0
        %1532 = vmatprep.subr.bf16.mxu0 0
        %1533 = vmatpush1.bf16.msra.mxu0 0
        %1534 = vmatprep.subr.bf16.mxu0 0
        %1535 = vmatpush1.bf16.msra.mxu0 0
        %1536 = vmatprep.subr.bf16.mxu0 0
        %1537 = vmatpush1.bf16.msra.mxu0 0
        %1538 = vmatprep.subr.bf16.mxu0 0
        %1539 = vmatpush1.bf16.msra.mxu0 0
        %1540 = vmatprep.subr.bf16.mxu0 0
        %1541 = vmatpush1.bf16.msra.mxu0 0
        %1542 = vmatprep.subr.bf16.mxu0 0
        %1543 = vmatpush1.bf16.msra.mxu0 0
        %1544 = vmatprep.subr.bf16.mxu0 0
        %1545 = vmatpush1.bf16.msra.mxu0 0
        %1546 = vmatprep.subr.bf16.mxu0 0
        %1547 = vmatpush1.bf16.msra.mxu0 0
        %1548 = vmatprep.subr.bf16.mxu0 0
        %1549 = vmatpush1.bf16.msra.mxu0 0
        %1550 = vmatprep.subr.bf16.mxu0 0
        %1551 = vmatpush1.bf16.msra.mxu0 0
        %1552 = vmatprep.subr.bf16.mxu0 0
        %1553 = vmatpush1.bf16.msra.mxu0 0
        %1554 = vmatprep.subr.bf16.mxu0 0
        %1555 = vmatpush1.bf16.msra.mxu0 0
        %1556 = vmatprep.mubr.bf16.mxu0 0
        %1557 = vmatmul.mubr.bf16.gmra.mrb[0].mxu0 %v1522
        %v1558 = vpop.f32.mrb[0].mxu0
        %v1559 = vadd.f32 %v1512, %v1558
        %v1560 = vpop.f32.mrb[0].mxu0
        %v1561 = vpop.f32.mrb[0].mxu0
        %v1562 = vpop.f32.mrb[0].mxu0
        %1563 = vdwg.mxu0
        %vm1564 = vcmp.ge.f32.partialorder %v1559, 0.0
        %v1565 = vmul.f32 %v1559, 0.2
        %v1566 = vsel %vm1564, %v1559, %v1565
        %v1567 = vld [vmem:[%s11] sm:$0xf]
        %v1568 = vld [vmem:[%s11 + $0x4] sm:$0xf]
        %v1569 = vld [vmem:[%s11 + $0x8] sm:$0xf]
        %v1570 = vld [vmem:[%s11 + $0xc] sm:$0xf]
        %v1571 = vld [vmem:[%s11 + $0x10] sm:$0xf]
        %v1572 = vld [vmem:[%s11 + $0x14] sm:$0xf]
        %v1573 = vld [vmem:[%s11 + $0x18] sm:$0xf]
        %v1574 = vld [vmem:[%s11 + $0x1c] sm:$0xf]
        %v1575 = vpack.c.bf16 %v1566, %v1566
        %v1576 = vld [vmem:[%s13] sm:$0x1]
        %v1578 = vlaneseq
        %v1579 = vshrl.u32 %v1578, 7
        %v1580 = vsub.s32 0, %v1579
        %v1581 = vrot.slane %v1576, %v1580
        %v1591 = vunpack.c.l.b16 %v1567
        %v1592 = vunpack.c.l.b16 %v1568
        %v1593 = vunpack.c.l.b16 %v1569
        %v1594 = vunpack.c.l.b16 %v1570
        %v1595 = vunpack.c.l.b16 %v1571
        %v1596 = vunpack.c.l.b16 %v1572
        %v1597 = vunpack.c.l.b16 %v1573
        %v1598 = vunpack.c.l.b16 %v1574
        %v1599 = vpack.c.b16 %v1592, %v1591
        %v1600 = vpack.c.b16 %v1594, %v1593
        %v1601 = vpack.c.b16 %v1596, %v1595
        %v1602 = vpack.c.b16 %v1598, %v1597
        %vm1607 = vcmask 523264
        %v1609 = vsel %vm1607, %v1575, 0
        %1611 = vmatprep.subr.bf16.mxu0 0
        %1612 = vmatpush1.bf16.msra.mxu0 %v1599
        %1613 = vmatprep.subr.bf16.mxu0 0
        %1614 = vmatpush1.bf16.msra.mxu0 %v1600
        %1615 = vmatprep.subr.bf16.mxu0 0
        %1616 = vmatpush1.bf16.msra.mxu0 %v1601
        %1617 = vmatprep.subr.bf16.mxu0 0
        %1618 = vmatpush1.bf16.msra.mxu0 %v1602
        %1619 = vmatprep.subr.bf16.mxu0 0
        %1620 = vmatpush1.bf16.msra.mxu0 0
        %1621 = vmatprep.subr.bf16.mxu0 0
        %1622 = vmatpush1.bf16.msra.mxu0 0
        %1623 = vmatprep.subr.bf16.mxu0 0
        %1624 = vmatpush1.bf16.msra.mxu0 0
        %1625 = vmatprep.subr.bf16.mxu0 0
        %1626 = vmatpush1.bf16.msra.mxu0 0
        %1627 = vmatprep.subr.bf16.mxu0 0
        %1628 = vmatpush1.bf16.msra.mxu0 0
        %1629 = vmatprep.subr.bf16.mxu0 0
        %1630 = vmatpush1.bf16.msra.mxu0 0
        %1631 = vmatprep.subr.bf16.mxu0 0
        %1632 = vmatpush1.bf16.msra.mxu0 0
        %1633 = vmatprep.subr.bf16.mxu0 0
        %1634 = vmatpush1.bf16.msra.mxu0 0
        %1635 = vmatprep.subr.bf16.mxu0 0
        %1636 = vmatpush1.bf16.msra.mxu0 0
        %1637 = vmatprep.subr.bf16.mxu0 0
        %1638 = vmatpush1.bf16.msra.mxu0 0
        %1639 = vmatprep.subr.bf16.mxu0 0
        %1640 = vmatpush1.bf16.msra.mxu0 0
        %1641 = vmatprep.subr.bf16.mxu0 0
        %1642 = vmatpush1.bf16.msra.mxu0 0
        %1643 = vmatprep.mubr.bf16.mxu0 0
        %1644 = vmatmul.mubr.bf16.gmra.mrb[0].mxu0 %v1609
        %v1645 = vpop.f32.mrb[0].mxu0
        %v1646 = vadd.f32 %v1581, %v1645
        %v1647 = vpop.f32.mrb[0].mxu0
        %v1648 = vpop.f32.mrb[0].mxu0
        %v1649 = vpop.f32.mrb[0].mxu0
        %1650 = vdwg.mxu0
        %vm1651 = vcmp.ge.f32.partialorder %v1646, 0.0
        %v1652 = vmul.f32 %v1646, 0.2
        %v1653 = vsel %vm1651, %v1646, %v1652
        %v1654 = vld [vmem:[%s15] sm:$0xf]
        %v1655 = vld [vmem:[%s15 + $0x4] sm:$0xf]
        %v1656 = vld [vmem:[%s15 + $0x8] sm:$0xf]
        %v1657 = vld [vmem:[%s15 + $0xc] sm:$0xf]
        %v1658 = vld [vmem:[%s15 + $0x10] sm:$0xf]
        %v1659 = vld [vmem:[%s15 + $0x14] sm:$0xf]
        %v1660 = vld [vmem:[%s15 + $0x18] sm:$0xf]
        %v1661 = vld [vmem:[%s15 + $0x1c] sm:$0xf]
        %v1662 = vpack.c.bf16 %v1653, %v1653
        %v1663 = vld [vmem:[%s17] sm:$0x1]
        %v1665 = vlaneseq
        %v1666 = vshrl.u32 %v1665, 7
        %v1667 = vsub.s32 0, %v1666
        %v1668 = vrot.slane %v1663, %v1667
        %v1678 = vunpack.c.l.b16 %v1654
        %v1679 = vunpack.c.l.b16 %v1655
        %v1680 = vunpack.c.l.b16 %v1656
        %v1681 = vunpack.c.l.b16 %v1657
        %v1682 = vunpack.c.l.b16 %v1658
        %v1683 = vunpack.c.l.b16 %v1659
        %v1684 = vunpack.c.l.b16 %v1660
        %v1685 = vunpack.c.l.b16 %v1661
        %v1686 = vpack.c.b16 %v1679, %v1678
        %v1687 = vpack.c.b16 %v1681, %v1680
        %v1688 = vpack.c.b16 %v1683, %v1682
        %v1689 = vpack.c.b16 %v1685, %v1684
        %v1695 = vsel %vm1607, %v1662, 0
        %1697 = vmatprep.subr.bf16.mxu0 0
        %1698 = vmatpush1.bf16.msra.mxu0 %v1686
        %1699 = vmatprep.subr.bf16.mxu0 0
        %1700 = vmatpush1.bf16.msra.mxu0 %v1687
        %1701 = vmatprep.subr.bf16.mxu0 0
        %1702 = vmatpush1.bf16.msra.mxu0 %v1688
        %1703 = vmatprep.subr.bf16.mxu0 0
        %1704 = vmatpush1.bf16.msra.mxu0 %v1689
        %1705 = vmatprep.subr.bf16.mxu0 0
        %1706 = vmatpush1.bf16.msra.mxu0 0
        %1707 = vmatprep.subr.bf16.mxu0 0
        %1708 = vmatpush1.bf16.msra.mxu0 0
        %1709 = vmatprep.subr.bf16.mxu0 0
        %1710 = vmatpush1.bf16.msra.mxu0 0
        %1711 = vmatprep.subr.bf16.mxu0 0
        %1712 = vmatpush1.bf16.msra.mxu0 0
        %1713 = vmatprep.subr.bf16.mxu0 0
        %1714 = vmatpush1.bf16.msra.mxu0 0
        %1715 = vmatprep.subr.bf16.mxu0 0
        %1716 = vmatpush1.bf16.msra.mxu0 0
        %1717 = vmatprep.subr.bf16.mxu0 0
        %1718 = vmatpush1.bf16.msra.mxu0 0
        %1719 = vmatprep.subr.bf16.mxu0 0
        %1720 = vmatpush1.bf16.msra.mxu0 0
        %1721 = vmatprep.subr.bf16.mxu0 0
        %1722 = vmatpush1.bf16.msra.mxu0 0
        %1723 = vmatprep.subr.bf16.mxu0 0
        %1724 = vmatpush1.bf16.msra.mxu0 0
        %1725 = vmatprep.subr.bf16.mxu0 0
        %1726 = vmatpush1.bf16.msra.mxu0 0
        %1727 = vmatprep.subr.bf16.mxu0 0
        %1728 = vmatpush1.bf16.msra.mxu0 0
        %1729 = vmatprep.mubr.bf16.mxu0 0
        %1730 = vmatmul.mubr.bf16.gmra.mrb[0].mxu0 %v1695
        %v1731 = vpop.f32.mrb[0].mxu0
        %v1732 = vadd.f32 %v1668, %v1731
        %v1733 = vpop.f32.mrb[0].mxu0
        %v1734 = vpop.f32.mrb[0].mxu0
        %v1735 = vpop.f32.mrb[0].mxu0
        %1736 = vdwg.mxu0
        %vm1737 = vcmp.ge.f32.partialorder %v1732, 0.0
        %v1738 = vmul.f32 %v1732, 0.2
        %v1739 = vsel %vm1737, %v1732, %v1738
        %v1740 = vadd.f32 %v1566, %v1739
        %v1741 = vld [vmem:[%s19] sm:$0xf]
        %v1742 = vld [vmem:[%s19 + $0x4] sm:$0xf]
        %v1743 = vld [vmem:[%s19 + $0x8] sm:$0xf]
        %v1744 = vld [vmem:[%s19 + $0xc] sm:$0xf]
        %v1745 = vld [vmem:[%s19 + $0x10] sm:$0xf]
        %v1746 = vld [vmem:[%s19 + $0x14] sm:$0xf]
        %v1747 = vld [vmem:[%s19 + $0x18] sm:$0xf]
        %v1748 = vld [vmem:[%s19 + $0x1c] sm:$0xf]
        %v1749 = vpack.c.bf16 %v1740, %v1740
        %v1750 = vld [vmem:[%s21] sm:$0x1]
        %v1752 = vlaneseq
        %v1753 = vshrl.u32 %v1752, 7
        %v1754 = vsub.s32 0, %v1753
        %v1755 = vrot.slane %v1750, %v1754
        %v1765 = vunpack.c.l.b16 %v1741
        %v1766 = vunpack.c.l.b16 %v1742
        %v1767 = vunpack.c.l.b16 %v1743
        %v1768 = vunpack.c.l.b16 %v1744
        %v1769 = vunpack.c.l.b16 %v1745
        %v1770 = vunpack.c.l.b16 %v1746
        %v1771 = vunpack.c.l.b16 %v1747
        %v1772 = vunpack.c.l.b16 %v1748
        %v1773 = vpack.c.b16 %v1766, %v1765
        %v1774 = vpack.c.b16 %v1768, %v1767
        %v1775 = vpack.c.b16 %v1770, %v1769
        %v1776 = vpack.c.b16 %v1772, %v1771
        %v1782 = vsel %vm1607, %v1749, 0
        %1784 = vmatprep.subr.bf16.mxu0 0
        %1785 = vmatpush1.bf16.msra.mxu0 %v1773
        %1786 = vmatprep.subr.bf16.mxu0 0
        %1787 = vmatpush1.bf16.msra.mxu0 %v1774
        %1788 = vmatprep.subr.bf16.mxu0 0
        %1789 = vmatpush1.bf16.msra.mxu0 %v1775
        %1790 = vmatprep.subr.bf16.mxu0 0
        %1791 = vmatpush1.bf16.msra.mxu0 %v1776
        %1792 = vmatprep.subr.bf16.mxu0 0
        %1793 = vmatpush1.bf16.msra.mxu0 0
        %1794 = vmatprep.subr.bf16.mxu0 0
        %1795 = vmatpush1.bf16.msra.mxu0 0
        %1796 = vmatprep.subr.bf16.mxu0 0
        %1797 = vmatpush1.bf16.msra.mxu0 0
        %1798 = vmatprep.subr.bf16.mxu0 0
        %1799 = vmatpush1.bf16.msra.mxu0 0
        %1800 = vmatprep.subr.bf16.mxu0 0
        %1801 = vmatpush1.bf16.msra.mxu0 0
        %1802 = vmatprep.subr.bf16.mxu0 0
        %1803 = vmatpush1.bf16.msra.mxu0 0
        %1804 = vmatprep.subr.bf16.mxu0 0
        %1805 = vmatpush1.bf16.msra.mxu0 0
        %1806 = vmatprep.subr.bf16.mxu0 0
        %1807 = vmatpush1.bf16.msra.mxu0 0
        %1808 = vmatprep.subr.bf16.mxu0 0
        %1809 = vmatpush1.bf16.msra.mxu0 0
        %1810 = vmatprep.subr.bf16.mxu0 0
        %1811 = vmatpush1.bf16.msra.mxu0 0
        %1812 = vmatprep.subr.bf16.mxu0 0
        %1813 = vmatpush1.bf16.msra.mxu0 0
        %1814 = vmatprep.subr.bf16.mxu0 0
        %1815 = vmatpush1.bf16.msra.mxu0 0
        %1816 = vmatprep.mubr.bf16.mxu0 0
        %1817 = vmatmul.mubr.bf16.gmra.mrb[0].mxu0 %v1782
        %v1818 = vpop.f32.mrb[0].mxu0
        %v1819 = vadd.f32 %v1755, %v1818
        %v1820 = vpop.f32.mrb[0].mxu0
        %v1821 = vpop.f32.mrb[0].mxu0
        %v1822 = vpop.f32.mrb[0].mxu0
        %1823 = vdwg.mxu0
        %s1824 = scalar_lea.vmem %s3, 8
        %v1825 = vld [vmem:[%s1824] sm:$0xff]
        %s1826 = scalar_lea.vmem %s5, 1
        %v1827 = vld [vmem:[%s1826] sm:$0x1]
        %v1828 = vsub.f32 1.0, %v1825
        %v1829 = vmul.f32 %v1491, %v1828
        %v1831 = vlaneseq
        %v1832 = vshrl.u32 %v1831, 7
        %v1833 = vsub.s32 0, %v1832
        %v1834 = vrot.slane %v1827, %v1833
        %v1836 = vmul.f32 %v1834, %v1825
        %v1837 = vadd.f32 %v1829, %v1836
        %s1838 = scalar_lea.vmem %s7, 8
        %v1839 = vld [vmem:[%s1838] sm:$0xf]
        %v1840 = vld [vmem:[%s1838 + $0x4] sm:$0xf]
        %v1841 = vpack.c.bf16 %v1837, %v1837
        %s1842 = scalar_lea.vmem %s9, 1
        %v1843 = vld [vmem:[%s1842] sm:$0x1]
        %v1845 = vlaneseq
        %v1846 = vshrl.u32 %v1845, 7
        %v1847 = vsub.s32 0, %v1846
        %v1848 = vrot.slane %v1843, %v1847
        %v1852 = vunpack.c.l.b16 %v1839
        %v1853 = vunpack.c.l.b16 %v1840
        %v1854 = vpack.c.b16 %v1853, %v1852
        %v1857 = vsel %vm1520, %v1841, 0
        %1859 = vmatprep.subr.bf16.mxu0 0
        %1860 = vmatpush1.bf16.msra.mxu0 %v1854
        %1861 = vmatprep.subr.bf16.mxu0 0
        %1862 = vmatpush1.bf16.msra.mxu0 0
        %1863 = vmatprep.subr.bf16.mxu0 0
        %1864 = vmatpush1.bf16.msra.mxu0 0
        %1865 = vmatprep.subr.bf16.mxu0 0
        %1866 = vmatpush1.bf16.msra.mxu0 0
        %1867 = vmatprep.subr.bf16.mxu0 0
        %1868 = vmatpush1.bf16.msra.mxu0 0
        %1869 = vmatprep.subr.bf16.mxu0 0
        %1870 = vmatpush1.bf16.msra.mxu0 0
        %1871 = vmatprep.subr.bf16.mxu0 0
        %1872 = vmatpush1.bf16.msra.mxu0 0
        %1873 = vmatprep.subr.bf16.mxu0 0
        %1874 = vmatpush1.bf16.msra.mxu0 0
        %1875 = vmatprep.subr.bf16.mxu0 0
        %1876 = vmatpush1.bf16.msra.mxu0 0
        %1877 = vmatprep.subr.bf16.mxu0 0
        %1878 = vmatpush1.bf16.msra.mxu0 0
        %1879 = vmatprep.subr.bf16.mxu0 0
        %1880 = vmatpush1.bf16.msra.mxu0 0
        %1881 = vmatprep.subr.bf16.mxu0 0
        %1882 = vmatpush1.bf16.msra.mxu0 0
        %1883 = vmatprep.subr.bf16.mxu0 0
        %1884 = vmatpush1.bf16.msra.mxu0 0
        %1885 = vmatprep.subr.bf16.mxu0 0
        %1886 = vmatpush1.bf16.msra.mxu0 0
        %1887 = vmatprep.subr.bf16.mxu0 0
        %1888 = vmatpush1.bf16.msra.mxu0 0
        %1889 = vmatprep.subr.bf16.mxu0 0
        %1890 = vmatpush1.bf16.msra.mxu0 0
        %1891 = vmatprep.mubr.bf16.mxu0 0
        %1892 = vmatmul.mubr.bf16.gmra.mrb[0].mxu0 %v1857
        %v1893 = vpop.f32.mrb[0].mxu0
        %v1894 = vadd.f32 %v1848, %v1893
        %v1895 = vpop.f32.mrb[0].mxu0
        %v1896 = vpop.f32.mrb[0].mxu0
        %v1897 = vpop.f32.mrb[0].mxu0
        %1898 = vdwg.mxu0
        %vm1899 = vcmp.ge.f32.partialorder %v1894, 0.0
        %v1900 = vmul.f32 %v1894, 0.2
        %v1901 = vsel %vm1899, %v1894, %v1900
        %s1902 = scalar_lea.vmem %s11, 32
        %v1903 = vld [vmem:[%s1902] sm:$0xf]
        %v1904 = vld [vmem:[%s1902 + $0x4] sm:$0xf]
        %v1905 = vld [vmem:[%s1902 + $0x8] sm:$0xf]
        %v1906 = vld [vmem:[%s1902 + $0xc] sm:$0xf]
        %v1907 = vld [vmem:[%s1902 + $0x10] sm:$0xf]
        %v1908 = vld [vmem:[%s1902 + $0x14] sm:$0xf]
        %v1909 = vld [vmem:[%s1902 + $0x18] sm:$0xf]
        %v1910 = vld [vmem:[%s1902 + $0x1c] sm:$0xf]
        %v1911 = vpack.c.bf16 %v1901, %v1901
        %s1912 = scalar_lea.vmem %s13, 1
        %v1913 = vld [vmem:[%s1912] sm:$0x1]
        %v1915 = vlaneseq
        %v1916 = vshrl.u32 %v1915, 7
        %v1917 = vsub.s32 0, %v1916
        %v1918 = vrot.slane %v1913, %v1917
        %v1928 = vunpack.c.l.b16 %v1903
        %v1929 = vunpack.c.l.b16 %v1904
        %v1930 = vunpack.c.l.b16 %v1905
        %v1931 = vunpack.c.l.b16 %v1906
        %v1932 = vunpack.c.l.b16 %v1907
        %v1933 = vunpack.c.l.b16 %v1908
        %v1934 = vunpack.c.l.b16 %v1909
        %v1935 = vunpack.c.l.b16 %v1910
        %v1936 = vpack.c.b16 %v1929, %v1928
        %v1937 = vpack.c.b16 %v1931, %v1930
        %v1938 = vpack.c.b16 %v1933, %v1932
        %v1939 = vpack.c.b16 %v1935, %v1934
        %v1945 = vsel %vm1607, %v1911, 0
        %1947 = vmatprep.subr.bf16.mxu0 0
        %1948 = vmatpush1.bf16.msra.mxu0 %v1936
        %1949 = vmatprep.subr.bf16.mxu0 0
        %1950 = vmatpush1.bf16.msra.mxu0 %v1937
        %1951 = vmatprep.subr.bf16.mxu0 0
        %1952 = vmatpush1.bf16.msra.mxu0 %v1938
        %1953 = vmatprep.subr.bf16.mxu0 0
        %1954 = vmatpush1.bf16.msra.mxu0 %v1939
        %1955 = vmatprep.subr.bf16.mxu0 0
        %1956 = vmatpush1.bf16.msra.mxu0 0
        %1957 = vmatprep.subr.bf16.mxu0 0
        %1958 = vmatpush1.bf16.msra.mxu0 0
        %1959 = vmatprep.subr.bf16.mxu0 0
        %1960 = vmatpush1.bf16.msra.mxu0 0
        %1961 = vmatprep.subr.bf16.mxu0 0
        %1962 = vmatpush1.bf16.msra.mxu0 0
        %1963 = vmatprep.subr.bf16.mxu0 0
        %1964 = vmatpush1.bf16.msra.mxu0 0
        %1965 = vmatprep.subr.bf16.mxu0 0
        %1966 = vmatpush1.bf16.msra.mxu0 0
        %1967 = vmatprep.subr.bf16.mxu0 0
        %1968 = vmatpush1.bf16.msra.mxu0 0
        %1969 = vmatprep.subr.bf16.mxu0 0
        %1970 = vmatpush1.bf16.msra.mxu0 0
        %1971 = vmatprep.subr.bf16.mxu0 0
        %1972 = vmatpush1.bf16.msra.mxu0 0
        %1973 = vmatprep.subr.bf16.mxu0 0
        %1974 = vmatpush1.bf16.msra.mxu0 0
        %1975 = vmatprep.subr.bf16.mxu0 0
        %1976 = vmatpush1.bf16.msra.mxu0 0
        %1977 = vmatprep.subr.bf16.mxu0 0
        %1978 = vmatpush1.bf16.msra.mxu0 0
        %1979 = vmatprep.mubr.bf16.mxu0 0
        %1980 = vmatmul.mubr.bf16.gmra.mrb[0].mxu0 %v1945
        %v1981 = vpop.f32.mrb[0].mxu0
        %v1982 = vadd.f32 %v1918, %v1981
        %v1983 = vpop.f32.mrb[0].mxu0
        %v1984 = vpop.f32.mrb[0].mxu0
        %v1985 = vpop.f32.mrb[0].mxu0
        %1986 = vdwg.mxu0
        %vm1987 = vcmp.ge.f32.partialorder %v1982, 0.0
        %v1988 = vmul.f32 %v1982, 0.2
        %v1989 = vsel %vm1987, %v1982, %v1988
        %s1990 = scalar_lea.vmem %s15, 32
        %v1991 = vld [vmem:[%s1990] sm:$0xf]
        %v1992 = vld [vmem:[%s1990 + $0x4] sm:$0xf]
        %v1993 = vld [vmem:[%s1990 + $0x8] sm:$0xf]
        %v1994 = vld [vmem:[%s1990 + $0xc] sm:$0xf]
        %v1995 = vld [vmem:[%s1990 + $0x10] sm:$0xf]
        %v1996 = vld [vmem:[%s1990 + $0x14] sm:$0xf]
        %v1997 = vld [vmem:[%s1990 + $0x18] sm:$0xf]
        %v1998 = vld [vmem:[%s1990 + $0x1c] sm:$0xf]
        %v1999 = vpack.c.bf16 %v1989, %v1989
        %s2000 = scalar_lea.vmem %s17, 1
        %v2001 = vld [vmem:[%s2000] sm:$0x1]
        %v2003 = vlaneseq
        %v2004 = vshrl.u32 %v2003, 7
        %v2005 = vsub.s32 0, %v2004
        %v2006 = vrot.slane %v2001, %v2005
        %v2016 = vunpack.c.l.b16 %v1991
        %v2017 = vunpack.c.l.b16 %v1992
        %v2018 = vunpack.c.l.b16 %v1993
        %v2019 = vunpack.c.l.b16 %v1994
        %v2020 = vunpack.c.l.b16 %v1995
        %v2021 = vunpack.c.l.b16 %v1996
        %v2022 = vunpack.c.l.b16 %v1997
        %v2023 = vunpack.c.l.b16 %v1998
        %v2024 = vpack.c.b16 %v2017, %v2016
        %v2025 = vpack.c.b16 %v2019, %v2018
        %v2026 = vpack.c.b16 %v2021, %v2020
        %v2027 = vpack.c.b16 %v2023, %v2022
        %v2033 = vsel %vm1607, %v1999, 0
        %2035 = vmatprep.subr.bf16.mxu0 0
        %2036 = vmatpush1.bf16.msra.mxu0 %v2024
        %2037 = vmatprep.subr.bf16.mxu0 0
        %2038 = vmatpush1.bf16.msra.mxu0 %v2025
        %2039 = vmatprep.subr.bf16.mxu0 0
        %2040 = vmatpush1.bf16.msra.mxu0 %v2026
        %2041 = vmatprep.subr.bf16.mxu0 0
        %2042 = vmatpush1.bf16.msra.mxu0 %v2027
        %2043 = vmatprep.subr.bf16.mxu0 0
        %2044 = vmatpush1.bf16.msra.mxu0 0
        %2045 = vmatprep.subr.bf16.mxu0 0
        %2046 = vmatpush1.bf16.msra.mxu0 0
        %2047 = vmatprep.subr.bf16.mxu0 0
        %2048 = vmatpush1.bf16.msra.mxu0 0
        %2049 = vmatprep.subr.bf16.mxu0 0
        %2050 = vmatpush1.bf16.msra.mxu0 0
        %2051 = vmatprep.subr.bf16.mxu0 0
        %2052 = vmatpush1.bf16.msra.mxu0 0
        %2053 = vmatprep.subr.bf16.mxu0 0
        %2054 = vmatpush1.bf16.msra.mxu0 0
        %2055 = vmatprep.subr.bf16.mxu0 0
        %2056 = vmatpush1.bf16.msra.mxu0 0
        %2057 = vmatprep.subr.bf16.mxu0 0
        %2058 = vmatpush1.bf16.msra.mxu0 0
        %2059 = vmatprep.subr.bf16.mxu0 0
        %2060 = vmatpush1.bf16.msra.mxu0 0
        %2061 = vmatprep.subr.bf16.mxu0 0
        %2062 = vmatpush1.bf16.msra.mxu0 0
        %2063 = vmatprep.subr.bf16.mxu0 0
        %2064 = vmatpush1.bf16.msra.mxu0 0
        %2065 = vmatprep.subr.bf16.mxu0 0
        %2066 = vmatpush1.bf16.msra.mxu0 0
        %2067 = vmatprep.mubr.bf16.mxu0 0
        %2068 = vmatmul.mubr.bf16.gmra.mrb[0].mxu0 %v2033
        %v2069 = vpop.f32.mrb[0].mxu0
        %v2070 = vadd.f32 %v2006, %v2069
        %v2071 = vpop.f32.mrb[0].mxu0
        %v2072 = vpop.f32.mrb[0].mxu0
        %v2073 = vpop.f32.mrb[0].mxu0
        %2074 = vdwg.mxu0
        %vm2075 = vcmp.ge.f32.partialorder %v2070, 0.0
        %v2076 = vmul.f32 %v2070, 0.2
        %v2077 = vsel %vm2075, %v2070, %v2076
        %v2078 = vadd.f32 %v1901, %v2077
        %s2079 = scalar_lea.vmem %s19, 32
        %v2080 = vld [vmem:[%s2079] sm:$0xf]
        %v2081 = vld [vmem:[%s2079 + $0x4] sm:$0xf]
        %v2082 = vld [vmem:[%s2079 + $0x8] sm:$0xf]
        %v2083 = vld [vmem:[%s2079 + $0xc] sm:$0xf]
        %v2084 = vld [vmem:[%s2079 + $0x10] sm:$0xf]
        %v2085 = vld [vmem:[%s2079 + $0x14] sm:$0xf]
        %v2086 = vld [vmem:[%s2079 + $0x18] sm:$0xf]
        %v2087 = vld [vmem:[%s2079 + $0x1c] sm:$0xf]
        %v2088 = vpack.c.bf16 %v2078, %v2078
        %s2089 = scalar_lea.vmem %s21, 1
        %v2090 = vld [vmem:[%s2089] sm:$0x1]
        %v2092 = vlaneseq
        %v2093 = vshrl.u32 %v2092, 7
        %v2094 = vsub.s32 0, %v2093
        %v2095 = vrot.slane %v2090, %v2094
        %v2105 = vunpack.c.l.b16 %v2080
        %v2106 = vunpack.c.l.b16 %v2081
        %v2107 = vunpack.c.l.b16 %v2082
        %v2108 = vunpack.c.l.b16 %v2083
        %v2109 = vunpack.c.l.b16 %v2084
        %v2110 = vunpack.c.l.b16 %v2085
        %v2111 = vunpack.c.l.b16 %v2086
        %v2112 = vunpack.c.l.b16 %v2087
        %v2113 = vpack.c.b16 %v2106, %v2105
        %v2114 = vpack.c.b16 %v2108, %v2107
        %v2115 = vpack.c.b16 %v2110, %v2109
        %v2116 = vpack.c.b16 %v2112, %v2111
        %v2122 = vsel %vm1607, %v2088, 0
        %2124 = vmatprep.subr.bf16.mxu0 0
        %2125 = vmatpush1.bf16.msra.mxu0 %v2113
        %2126 = vmatprep.subr.bf16.mxu0 0
        %2127 = vmatpush1.bf16.msra.mxu0 %v2114
        %2128 = vmatprep.subr.bf16.mxu0 0
        %2129 = vmatpush1.bf16.msra.mxu0 %v2115
        %2130 = vmatprep.subr.bf16.mxu0 0
        %2131 = vmatpush1.bf16.msra.mxu0 %v2116
        %2132 = vmatprep.subr.bf16.mxu0 0
        %2133 = vmatpush1.bf16.msra.mxu0 0
        %2134 = vmatprep.subr.bf16.mxu0 0
        %2135 = vmatpush1.bf16.msra.mxu0 0
        %2136 = vmatprep.subr.bf16.mxu0 0
        %2137 = vmatpush1.bf16.msra.mxu0 0
        %2138 = vmatprep.subr.bf16.mxu0 0
        %2139 = vmatpush1.bf16.msra.mxu0 0
        %2140 = vmatprep.subr.bf16.mxu0 0
        %2141 = vmatpush1.bf16.msra.mxu0 0
        %2142 = vmatprep.subr.bf16.mxu0 0
        %2143 = vmatpush1.bf16.msra.mxu0 0
        %2144 = vmatprep.subr.bf16.mxu0 0
        %2145 = vmatpush1.bf16.msra.mxu0 0
        %2146 = vmatprep.subr.bf16.mxu0 0
        %2147 = vmatpush1.bf16.msra.mxu0 0
        %2148 = vmatprep.subr.bf16.mxu0 0
        %2149 = vmatpush1.bf16.msra.mxu0 0
        %2150 = vmatprep.subr.bf16.mxu0 0
        %2151 = vmatpush1.bf16.msra.mxu0 0
        %2152 = vmatprep.subr.bf16.mxu0 0
        %2153 = vmatpush1.bf16.msra.mxu0 0
        %2154 = vmatprep.subr.bf16.mxu0 0
        %2155 = vmatpush1.bf16.msra.mxu0 0
        %2156 = vmatprep.mubr.bf16.mxu0 0
        %2157 = vmatmul.mubr.bf16.gmra.mrb[0].mxu0 %v2122
        %v2158 = vpop.f32.mrb[0].mxu0
        %v2159 = vadd.f32 %v2095, %v2158
        %v2160 = vpop.f32.mrb[0].mxu0
        %v2161 = vpop.f32.mrb[0].mxu0
        %v2162 = vpop.f32.mrb[0].mxu0
        %2163 = vdwg.mxu0
        %v2164 = vmul.f32 %v1819, %v2159
        %s2165 = scalar_lea.vmem %s3, 16
        %v2166 = vld [vmem:[%s2165] sm:$0xff]
        %s2167 = scalar_lea.vmem %s5, 2
        %v2168 = vld [vmem:[%s2167] sm:$0x1]
        %v2169 = vsub.f32 1.0, %v2166
        %v2170 = vmul.f32 %v1491, %v2169
        %v2172 = vlaneseq
        %v2173 = vshrl.u32 %v2172, 7
        %v2174 = vsub.s32 0, %v2173
        %v2175 = vrot.slane %v2168, %v2174
        %v2177 = vmul.f32 %v2175, %v2166
        %v2178 = vadd.f32 %v2170, %v2177
        %s2179 = scalar_lea.vmem %s7, 16
        %v2180 = vld [vmem:[%s2179] sm:$0xf]
        %v2181 = vld [vmem:[%s2179 + $0x4] sm:$0xf]
        %v2182 = vpack.c.bf16 %v2178, %v2178
        %s2183 = scalar_lea.vmem %s9, 2
        %v2184 = vld [vmem:[%s2183] sm:$0x1]
        %v2186 = vlaneseq
        %v2187 = vshrl.u32 %v2186, 7
        %v2188 = vsub.s32 0, %v2187
        %v2189 = vrot.slane %v2184, %v2188
        %v2193 = vunpack.c.l.b16 %v2180
        %v2194 = vunpack.c.l.b16 %v2181
        %v2195 = vpack.c.b16 %v2194, %v2193
        %v2198 = vsel %vm1520, %v2182, 0
        %2200 = vmatprep.subr.bf16.mxu0 0
        %2201 = vmatpush1.bf16.msra.mxu0 %v2195
        %2202 = vmatprep.subr.bf16.mxu0 0
        %2203 = vmatpush1.bf16.msra.mxu0 0
        %2204 = vmatprep.subr.bf16.mxu0 0
        %2205 = vmatpush1.bf16.msra.mxu0 0
        %2206 = vmatprep.subr.bf16.mxu0 0
        %2207 = vmatpush1.bf16.msra.mxu0 0
        %2208 = vmatprep.subr.bf16.mxu0 0
        %2209 = vmatpush1.bf16.msra.mxu0 0
        %2210 = vmatprep.subr.bf16.mxu0 0
        %2211 = vmatpush1.bf16.msra.mxu0 0
        %2212 = vmatprep.subr.bf16.mxu0 0
        %2213 = vmatpush1.bf16.msra.mxu0 0
        %2214 = vmatprep.subr.bf16.mxu0 0
        %2215 = vmatpush1.bf16.msra.mxu0 0
        %2216 = vmatprep.subr.bf16.mxu0 0
        %2217 = vmatpush1.bf16.msra.mxu0 0
        %2218 = vmatprep.subr.bf16.mxu0 0
        %2219 = vmatpush1.bf16.msra.mxu0 0
        %2220 = vmatprep.subr.bf16.mxu0 0
        %2221 = vmatpush1.bf16.msra.mxu0 0
        %2222 = vmatprep.subr.bf16.mxu0 0
        %2223 = vmatpush1.bf16.msra.mxu0 0
        %2224 = vmatprep.subr.bf16.mxu0 0
        %2225 = vmatpush1.bf16.msra.mxu0 0
        %2226 = vmatprep.subr.bf16.mxu0 0
        %2227 = vmatpush1.bf16.msra.mxu0 0
        %2228 = vmatprep.subr.bf16.mxu0 0
        %2229 = vmatpush1.bf16.msra.mxu0 0
        %2230 = vmatprep.subr.bf16.mxu0 0
        %2231 = vmatpush1.bf16.msra.mxu0 0
        %2232 = vmatprep.mubr.bf16.mxu0 0
        %2233 = vmatmul.mubr.bf16.gmra.mrb[0].mxu0 %v2198
        %v2234 = vpop.f32.mrb[0].mxu0
        %v2235 = vadd.f32 %v2189, %v2234
        %v2236 = vpop.f32.mrb[0].mxu0
        %v2237 = vpop.f32.mrb[0].mxu0
        %v2238 = vpop.f32.mrb[0].mxu0
        %2239 = vdwg.mxu0
        %vm2240 = vcmp.ge.f32.partialorder %v2235, 0.0
        %v2241 = vmul.f32 %v2235, 0.2
        %v2242 = vsel %vm2240, %v2235, %v2241
        %s2243 = scalar_lea.vmem %s11, 64
        %v2244 = vld [vmem:[%s2243] sm:$0xf]
        %v2245 = vld [vmem:[%s2243 + $0x4] sm:$0xf]
        %v2246 = vld [vmem:[%s2243 + $0x8] sm:$0xf]
        %v2247 = vld [vmem:[%s2243 + $0xc] sm:$0xf]
        %v2248 = vld [vmem:[%s2243 + $0x10] sm:$0xf]
        %v2249 = vld [vmem:[%s2243 + $0x14] sm:$0xf]
        %v2250 = vld [vmem:[%s2243 + $0x18] sm:$0xf]
        %v2251 = vld [vmem:[%s2243 + $0x1c] sm:$0xf]
        %v2252 = vpack.c.bf16 %v2242, %v2242
        %s2253 = scalar_lea.vmem %s13, 2
        %v2254 = vld [vmem:[%s2253] sm:$0x1]
        %v2256 = vlaneseq
        %v2257 = vshrl.u32 %v2256, 7
        %v2258 = vsub.s32 0, %v2257
        %v2259 = vrot.slane %v2254, %v2258
        %v2269 = vunpack.c.l.b16 %v2244
        %v2270 = vunpack.c.l.b16 %v2245
        %v2271 = vunpack.c.l.b16 %v2246
        %v2272 = vunpack.c.l.b16 %v2247
        %v2273 = vunpack.c.l.b16 %v2248
        %v2274 = vunpack.c.l.b16 %v2249
        %v2275 = vunpack.c.l.b16 %v2250
        %v2276 = vunpack.c.l.b16 %v2251
        %v2277 = vpack.c.b16 %v2270, %v2269
        %v2278 = vpack.c.b16 %v2272, %v2271
        %v2279 = vpack.c.b16 %v2274, %v2273
        %v2280 = vpack.c.b16 %v2276, %v2275
        %v2286 = vsel %vm1607, %v2252, 0
        %2288 = vmatprep.subr.bf16.mxu0 0
        %2289 = vmatpush1.bf16.msra.mxu0 %v2277
        %2290 = vmatprep.subr.bf16.mxu0 0
        %2291 = vmatpush1.bf16.msra.mxu0 %v2278
        %2292 = vmatprep.subr.bf16.mxu0 0
        %2293 = vmatpush1.bf16.msra.mxu0 %v2279
        %2294 = vmatprep.subr.bf16.mxu0 0
        %2295 = vmatpush1.bf16.msra.mxu0 %v2280
        %2296 = vmatprep.subr.bf16.mxu0 0
        %2297 = vmatpush1.bf16.msra.mxu0 0
        %2298 = vmatprep.subr.bf16.mxu0 0
        %2299 = vmatpush1.bf16.msra.mxu0 0
        %2300 = vmatprep.subr.bf16.mxu0 0
        %2301 = vmatpush1.bf16.msra.mxu0 0
        %2302 = vmatprep.subr.bf16.mxu0 0
        %2303 = vmatpush1.bf16.msra.mxu0 0
        %2304 = vmatprep.subr.bf16.mxu0 0
        %2305 = vmatpush1.bf16.msra.mxu0 0
        %2306 = vmatprep.subr.bf16.mxu0 0
        %2307 = vmatpush1.bf16.msra.mxu0 0
        %2308 = vmatprep.subr.bf16.mxu0 0
        %2309 = vmatpush1.bf16.msra.mxu0 0
        %2310 = vmatprep.subr.bf16.mxu0 0
        %2311 = vmatpush1.bf16.msra.mxu0 0
        %2312 = vmatprep.subr.bf16.mxu0 0
        %2313 = vmatpush1.bf16.msra.mxu0 0
        %2314 = vmatprep.subr.bf16.mxu0 0
        %2315 = vmatpush1.bf16.msra.mxu0 0
        %2316 = vmatprep.subr.bf16.mxu0 0
        %2317 = vmatpush1.bf16.msra.mxu0 0
        %2318 = vmatprep.subr.bf16.mxu0 0
        %2319 = vmatpush1.bf16.msra.mxu0 0
        %2320 = vmatprep.mubr.bf16.mxu0 0
        %2321 = vmatmul.mubr.bf16.gmra.mrb[0].mxu0 %v2286
        %v2322 = vpop.f32.mrb[0].mxu0
        %v2323 = vadd.f32 %v2259, %v2322
        %v2324 = vpop.f32.mrb[0].mxu0
        %v2325 = vpop.f32.mrb[0].mxu0
        %v2326 = vpop.f32.mrb[0].mxu0
        %2327 = vdwg.mxu0
        %vm2328 = vcmp.ge.f32.partialorder %v2323, 0.0
        %v2329 = vmul.f32 %v2323, 0.2
        %v2330 = vsel %vm2328, %v2323, %v2329
        %s2331 = scalar_lea.vmem %s15, 64
        %v2332 = vld [vmem:[%s2331] sm:$0xf]
        %v2333 = vld [vmem:[%s2331 + $0x4] sm:$0xf]
        %v2334 = vld [vmem:[%s2331 + $0x8] sm:$0xf]
        %v2335 = vld [vmem:[%s2331 + $0xc] sm:$0xf]
        %v2336 = vld [vmem:[%s2331 + $0x10] sm:$0xf]
        %v2337 = vld [vmem:[%s2331 + $0x14] sm:$0xf]
        %v2338 = vld [vmem:[%s2331 + $0x18] sm:$0xf]
        %v2339 = vld [vmem:[%s2331 + $0x1c] sm:$0xf]
        %v2340 = vpack.c.bf16 %v2330, %v2330
        %s2341 = scalar_lea.vmem %s17, 2
        %v2342 = vld [vmem:[%s2341] sm:$0x1]
        %v2344 = vlaneseq
        %v2345 = vshrl.u32 %v2344, 7
        %v2346 = vsub.s32 0, %v2345
        %v2347 = vrot.slane %v2342, %v2346
        %v2357 = vunpack.c.l.b16 %v2332
        %v2358 = vunpack.c.l.b16 %v2333
        %v2359 = vunpack.c.l.b16 %v2334
        %v2360 = vunpack.c.l.b16 %v2335
        %v2361 = vunpack.c.l.b16 %v2336
        %v2362 = vunpack.c.l.b16 %v2337
        %v2363 = vunpack.c.l.b16 %v2338
        %v2364 = vunpack.c.l.b16 %v2339
        %v2365 = vpack.c.b16 %v2358, %v2357
        %v2366 = vpack.c.b16 %v2360, %v2359
        %v2367 = vpack.c.b16 %v2362, %v2361
        %v2368 = vpack.c.b16 %v2364, %v2363
        %v2374 = vsel %vm1607, %v2340, 0
        %2376 = vmatprep.subr.bf16.mxu0 0
        %2377 = vmatpush1.bf16.msra.mxu0 %v2365
        %2378 = vmatprep.subr.bf16.mxu0 0
        %2379 = vmatpush1.bf16.msra.mxu0 %v2366
        %2380 = vmatprep.subr.bf16.mxu0 0
        %2381 = vmatpush1.bf16.msra.mxu0 %v2367
        %2382 = vmatprep.subr.bf16.mxu0 0
        %2383 = vmatpush1.bf16.msra.mxu0 %v2368
        %2384 = vmatprep.subr.bf16.mxu0 0
        %2385 = vmatpush1.bf16.msra.mxu0 0
        %2386 = vmatprep.subr.bf16.mxu0 0
        %2387 = vmatpush1.bf16.msra.mxu0 0
        %2388 = vmatprep.subr.bf16.mxu0 0
        %2389 = vmatpush1.bf16.msra.mxu0 0
        %2390 = vmatprep.subr.bf16.mxu0 0
        %2391 = vmatpush1.bf16.msra.mxu0 0
        %2392 = vmatprep.subr.bf16.mxu0 0
        %2393 = vmatpush1.bf16.msra.mxu0 0
        %2394 = vmatprep.subr.bf16.mxu0 0
        %2395 = vmatpush1.bf16.msra.mxu0 0
        %2396 = vmatprep.subr.bf16.mxu0 0
        %2397 = vmatpush1.bf16.msra.mxu0 0
        %2398 = vmatprep.subr.bf16.mxu0 0
        %2399 = vmatpush1.bf16.msra.mxu0 0
        %2400 = vmatprep.subr.bf16.mxu0 0
        %2401 = vmatpush1.bf16.msra.mxu0 0
        %2402 = vmatprep.subr.bf16.mxu0 0
        %2403 = vmatpush1.bf16.msra.mxu0 0
        %2404 = vmatprep.subr.bf16.mxu0 0
        %2405 = vmatpush1.bf16.msra.mxu0 0
        %2406 = vmatprep.subr.bf16.mxu0 0
        %2407 = vmatpush1.bf16.msra.mxu0 0
        %2408 = vmatprep.mubr.bf16.mxu0 0
        %2409 = vmatmul.mubr.bf16.gmra.mrb[0].mxu0 %v2374
        %v2410 = vpop.f32.mrb[0].mxu0
        %v2411 = vadd.f32 %v2347, %v2410
        %v2412 = vpop.f32.mrb[0].mxu0
        %v2413 = vpop.f32.mrb[0].mxu0
        %v2414 = vpop.f32.mrb[0].mxu0
        %2415 = vdwg.mxu0
        %vm2416 = vcmp.ge.f32.partialorder %v2411, 0.0
        %v2417 = vmul.f32 %v2411, 0.2
        %v2418 = vsel %vm2416, %v2411, %v2417
        %v2419 = vadd.f32 %v2242, %v2418
        %s2420 = scalar_lea.vmem %s19, 64
        %v2421 = vld [vmem:[%s2420] sm:$0xf]
        %v2422 = vld [vmem:[%s2420 + $0x4] sm:$0xf]
        %v2423 = vld [vmem:[%s2420 + $0x8] sm:$0xf]
        %v2424 = vld [vmem:[%s2420 + $0xc] sm:$0xf]
        %v2425 = vld [vmem:[%s2420 + $0x10] sm:$0xf]
        %v2426 = vld [vmem:[%s2420 + $0x14] sm:$0xf]
        %v2427 = vld [vmem:[%s2420 + $0x18] sm:$0xf]
        %v2428 = vld [vmem:[%s2420 + $0x1c] sm:$0xf]
        %v2429 = vpack.c.bf16 %v2419, %v2419
        %s2430 = scalar_lea.vmem %s21, 2
        %v2431 = vld [vmem:[%s2430] sm:$0x1]
        %v2433 = vlaneseq
        %v2434 = vshrl.u32 %v2433, 7
        %v2435 = vsub.s32 0, %v2434
        %v2436 = vrot.slane %v2431, %v2435
        %v2446 = vunpack.c.l.b16 %v2421
        %v2447 = vunpack.c.l.b16 %v2422
        %v2448 = vunpack.c.l.b16 %v2423
        %v2449 = vunpack.c.l.b16 %v2424
        %v2450 = vunpack.c.l.b16 %v2425
        %v2451 = vunpack.c.l.b16 %v2426
        %v2452 = vunpack.c.l.b16 %v2427
        %v2453 = vunpack.c.l.b16 %v2428
        %v2454 = vpack.c.b16 %v2447, %v2446
        %v2455 = vpack.c.b16 %v2449, %v2448
        %v2456 = vpack.c.b16 %v2451, %v2450
        %v2457 = vpack.c.b16 %v2453, %v2452
        %v2463 = vsel %vm1607, %v2429, 0
        %2465 = vmatprep.subr.bf16.mxu0 0
        %2466 = vmatpush1.bf16.msra.mxu0 %v2454
        %2467 = vmatprep.subr.bf16.mxu0 0
        %2468 = vmatpush1.bf16.msra.mxu0 %v2455
        %2469 = vmatprep.subr.bf16.mxu0 0
        %2470 = vmatpush1.bf16.msra.mxu0 %v2456
        %2471 = vmatprep.subr.bf16.mxu0 0
        %2472 = vmatpush1.bf16.msra.mxu0 %v2457
        %2473 = vmatprep.subr.bf16.mxu0 0
        %2474 = vmatpush1.bf16.msra.mxu0 0
        %2475 = vmatprep.subr.bf16.mxu0 0
        %2476 = vmatpush1.bf16.msra.mxu0 0
        %2477 = vmatprep.subr.bf16.mxu0 0
        %2478 = vmatpush1.bf16.msra.mxu0 0
        %2479 = vmatprep.subr.bf16.mxu0 0
        %2480 = vmatpush1.bf16.msra.mxu0 0
        %2481 = vmatprep.subr.bf16.mxu0 0
        %2482 = vmatpush1.bf16.msra.mxu0 0
        %2483 = vmatprep.subr.bf16.mxu0 0
        %2484 = vmatpush1.bf16.msra.mxu0 0
        %2485 = vmatprep.subr.bf16.mxu0 0
        %2486 = vmatpush1.bf16.msra.mxu0 0
        %2487 = vmatprep.subr.bf16.mxu0 0
        %2488 = vmatpush1.bf16.msra.mxu0 0
        %2489 = vmatprep.subr.bf16.mxu0 0
        %2490 = vmatpush1.bf16.msra.mxu0 0
        %2491 = vmatprep.subr.bf16.mxu0 0
        %2492 = vmatpush1.bf16.msra.mxu0 0
        %2493 = vmatprep.subr.bf16.mxu0 0
        %2494 = vmatpush1.bf16.msra.mxu0 0
        %2495 = vmatprep.subr.bf16.mxu0 0
        %2496 = vmatpush1.bf16.msra.mxu0 0
        %2497 = vmatprep.mubr.bf16.mxu0 0
        %2498 = vmatmul.mubr.bf16.gmra.mrb[0].mxu0 %v2463
        %v2499 = vpop.f32.mrb[0].mxu0
        %v2500 = vadd.f32 %v2436, %v2499
        %v2501 = vpop.f32.mrb[0].mxu0
        %v2502 = vpop.f32.mrb[0].mxu0
        %v2503 = vpop.f32.mrb[0].mxu0
        %2504 = vdwg.mxu0
        %v2505 = vmul.f32 %v2164, %v2500
        %s2506 = scalar_lea.vmem %s3, 24
        %v2507 = vld [vmem:[%s2506] sm:$0xff]
        %s2508 = scalar_lea.vmem %s5, 3
        %v2509 = vld [vmem:[%s2508] sm:$0x1]
        %v2510 = vsub.f32 1.0, %v2507
        %v2511 = vmul.f32 %v1491, %v2510
        %v2513 = vlaneseq
        %v2514 = vshrl.u32 %v2513, 7
        %v2515 = vsub.s32 0, %v2514
        %v2516 = vrot.slane %v2509, %v2515
        %v2518 = vmul.f32 %v2516, %v2507
        %v2519 = vadd.f32 %v2511, %v2518
        %s2520 = scalar_lea.vmem %s7, 24
        %v2521 = vld [vmem:[%s2520] sm:$0xf]
        %v2522 = vld [vmem:[%s2520 + $0x4] sm:$0xf]
        %v2523 = vpack.c.bf16 %v2519, %v2519
        %s2524 = scalar_lea.vmem %s9, 3
        %v2525 = vld [vmem:[%s2524] sm:$0x1]
        %v2527 = vlaneseq
        %v2528 = vshrl.u32 %v2527, 7
        %v2529 = vsub.s32 0, %v2528
        %v2530 = vrot.slane %v2525, %v2529
        %v2534 = vunpack.c.l.b16 %v2521
        %v2535 = vunpack.c.l.b16 %v2522
        %v2536 = vpack.c.b16 %v2535, %v2534
        %v2539 = vsel %vm1520, %v2523, 0
        %2541 = vmatprep.subr.bf16.mxu0 0
        %2542 = vmatpush1.bf16.msra.mxu0 %v2536
        %2543 = vmatprep.subr.bf16.mxu0 0
        %2544 = vmatpush1.bf16.msra.mxu0 0
        %2545 = vmatprep.subr.bf16.mxu0 0
        %2546 = vmatpush1.bf16.msra.mxu0 0
        %2547 = vmatprep.subr.bf16.mxu0 0
        %2548 = vmatpush1.bf16.msra.mxu0 0
        %2549 = vmatprep.subr.bf16.mxu0 0
        %2550 = vmatpush1.bf16.msra.mxu0 0
        %2551 = vmatprep.subr.bf16.mxu0 0
        %2552 = vmatpush1.bf16.msra.mxu0 0
        %2553 = vmatprep.subr.bf16.mxu0 0
        %2554 = vmatpush1.bf16.msra.mxu0 0
        %2555 = vmatprep.subr.bf16.mxu0 0
        %2556 = vmatpush1.bf16.msra.mxu0 0
        %2557 = vmatprep.subr.bf16.mxu0 0
        %2558 = vmatpush1.bf16.msra.mxu0 0
        %2559 = vmatprep.subr.bf16.mxu0 0
        %2560 = vmatpush1.bf16.msra.mxu0 0
        %2561 = vmatprep.subr.bf16.mxu0 0
        %2562 = vmatpush1.bf16.msra.mxu0 0
        %2563 = vmatprep.subr.bf16.mxu0 0
        %2564 = vmatpush1.bf16.msra.mxu0 0
        %2565 = vmatprep.subr.bf16.mxu0 0
        %2566 = vmatpush1.bf16.msra.mxu0 0
        %2567 = vmatprep.subr.bf16.mxu0 0
        %2568 = vmatpush1.bf16.msra.mxu0 0
        %2569 = vmatprep.subr.bf16.mxu0 0
        %2570 = vmatpush1.bf16.msra.mxu0 0
        %2571 = vmatprep.subr.bf16.mxu0 0
        %2572 = vmatpush1.bf16.msra.mxu0 0
        %2573 = vmatprep.mubr.bf16.mxu0 0
        %2574 = vmatmul.mubr.bf16.gmra.mrb[0].mxu0 %v2539
        %v2575 = vpop.f32.mrb[0].mxu0
        %v2576 = vadd.f32 %v2530, %v2575
        %v2577 = vpop.f32.mrb[0].mxu0
        %v2578 = vpop.f32.mrb[0].mxu0
        %v2579 = vpop.f32.mrb[0].mxu0
        %2580 = vdwg.mxu0
        %vm2581 = vcmp.ge.f32.partialorder %v2576, 0.0
        %v2582 = vmul.f32 %v2576, 0.2
        %v2583 = vsel %vm2581, %v2576, %v2582
        %s2584 = scalar_lea.vmem %s11, 96
        %v2585 = vld [vmem:[%s2584] sm:$0xf]
        %v2586 = vld [vmem:[%s2584 + $0x4] sm:$0xf]
        %v2587 = vld [vmem:[%s2584 + $0x8] sm:$0xf]
        %v2588 = vld [vmem:[%s2584 + $0xc] sm:$0xf]
        %v2589 = vld [vmem:[%s2584 + $0x10] sm:$0xf]
        %v2590 = vld [vmem:[%s2584 + $0x14] sm:$0xf]
        %v2591 = vld [vmem:[%s2584 + $0x18] sm:$0xf]
        %v2592 = vld [vmem:[%s2584 + $0x1c] sm:$0xf]
        %v2593 = vpack.c.bf16 %v2583, %v2583
        %s2594 = scalar_lea.vmem %s13, 3
        %v2595 = vld [vmem:[%s2594] sm:$0x1]
        %v2597 = vlaneseq
        %v2598 = vshrl.u32 %v2597, 7
        %v2599 = vsub.s32 0, %v2598
        %v2600 = vrot.slane %v2595, %v2599
        %v2610 = vunpack.c.l.b16 %v2585
        %v2611 = vunpack.c.l.b16 %v2586
        %v2612 = vunpack.c.l.b16 %v2587
        %v2613 = vunpack.c.l.b16 %v2588
        %v2614 = vunpack.c.l.b16 %v2589
        %v2615 = vunpack.c.l.b16 %v2590
        %v2616 = vunpack.c.l.b16 %v2591
        %v2617 = vunpack.c.l.b16 %v2592
        %v2618 = vpack.c.b16 %v2611, %v2610
        %v2619 = vpack.c.b16 %v2613, %v2612
        %v2620 = vpack.c.b16 %v2615, %v2614
        %v2621 = vpack.c.b16 %v2617, %v2616
        %v2627 = vsel %vm1607, %v2593, 0
        %2629 = vmatprep.subr.bf16.mxu0 0
        %2630 = vmatpush1.bf16.msra.mxu0 %v2618
        %2631 = vmatprep.subr.bf16.mxu0 0
        %2632 = vmatpush1.bf16.msra.mxu0 %v2619
        %2633 = vmatprep.subr.bf16.mxu0 0
        %2634 = vmatpush1.bf16.msra.mxu0 %v2620
        %2635 = vmatprep.subr.bf16.mxu0 0
        %2636 = vmatpush1.bf16.msra.mxu0 %v2621
        %2637 = vmatprep.subr.bf16.mxu0 0
        %2638 = vmatpush1.bf16.msra.mxu0 0
        %2639 = vmatprep.subr.bf16.mxu0 0
        %2640 = vmatpush1.bf16.msra.mxu0 0
        %2641 = vmatprep.subr.bf16.mxu0 0
        %2642 = vmatpush1.bf16.msra.mxu0 0
        %2643 = vmatprep.subr.bf16.mxu0 0
        %2644 = vmatpush1.bf16.msra.mxu0 0
        %2645 = vmatprep.subr.bf16.mxu0 0
        %2646 = vmatpush1.bf16.msra.mxu0 0
        %2647 = vmatprep.subr.bf16.mxu0 0
        %2648 = vmatpush1.bf16.msra.mxu0 0
        %2649 = vmatprep.subr.bf16.mxu0 0
        %2650 = vmatpush1.bf16.msra.mxu0 0
        %2651 = vmatprep.subr.bf16.mxu0 0
        %2652 = vmatpush1.bf16.msra.mxu0 0
        %2653 = vmatprep.subr.bf16.mxu0 0
        %2654 = vmatpush1.bf16.msra.mxu0 0
        %2655 = vmatprep.subr.bf16.mxu0 0
        %2656 = vmatpush1.bf16.msra.mxu0 0
        %2657 = vmatprep.subr.bf16.mxu0 0
        %2658 = vmatpush1.bf16.msra.mxu0 0
        %2659 = vmatprep.subr.bf16.mxu0 0
        %2660 = vmatpush1.bf16.msra.mxu0 0
        %2661 = vmatprep.mubr.bf16.mxu0 0
        %2662 = vmatmul.mubr.bf16.gmra.mrb[0].mxu0 %v2627
        %v2663 = vpop.f32.mrb[0].mxu0
        %v2664 = vadd.f32 %v2600, %v2663
        %v2665 = vpop.f32.mrb[0].mxu0
        %v2666 = vpop.f32.mrb[0].mxu0
        %v2667 = vpop.f32.mrb[0].mxu0
        %2668 = vdwg.mxu0
        %vm2669 = vcmp.ge.f32.partialorder %v2664, 0.0
        %v2670 = vmul.f32 %v2664, 0.2
        %v2671 = vsel %vm2669, %v2664, %v2670
        %s2672 = scalar_lea.vmem %s15, 96
        %v2673 = vld [vmem:[%s2672] sm:$0xf]
        %v2674 = vld [vmem:[%s2672 + $0x4] sm:$0xf]
        %v2675 = vld [vmem:[%s2672 + $0x8] sm:$0xf]
        %v2676 = vld [vmem:[%s2672 + $0xc] sm:$0xf]
        %v2677 = vld [vmem:[%s2672 + $0x10] sm:$0xf]
        %v2678 = vld [vmem:[%s2672 + $0x14] sm:$0xf]
        %v2679 = vld [vmem:[%s2672 + $0x18] sm:$0xf]
        %v2680 = vld [vmem:[%s2672 + $0x1c] sm:$0xf]
        %v2681 = vpack.c.bf16 %v2671, %v2671
        %s2682 = scalar_lea.vmem %s17, 3
        %v2683 = vld [vmem:[%s2682] sm:$0x1]
        %v2685 = vlaneseq
        %v2686 = vshrl.u32 %v2685, 7
        %v2687 = vsub.s32 0, %v2686
        %v2688 = vrot.slane %v2683, %v2687
        %v2698 = vunpack.c.l.b16 %v2673
        %v2699 = vunpack.c.l.b16 %v2674
        %v2700 = vunpack.c.l.b16 %v2675
        %v2701 = vunpack.c.l.b16 %v2676
        %v2702 = vunpack.c.l.b16 %v2677
        %v2703 = vunpack.c.l.b16 %v2678
        %v2704 = vunpack.c.l.b16 %v2679
        %v2705 = vunpack.c.l.b16 %v2680
        %v2706 = vpack.c.b16 %v2699, %v2698
        %v2707 = vpack.c.b16 %v2701, %v2700
        %v2708 = vpack.c.b16 %v2703, %v2702
        %v2709 = vpack.c.b16 %v2705, %v2704
        %v2715 = vsel %vm1607, %v2681, 0
        %2717 = vmatprep.subr.bf16.mxu0 0
        %2718 = vmatpush1.bf16.msra.mxu0 %v2706
        %2719 = vmatprep.subr.bf16.mxu0 0
        %2720 = vmatpush1.bf16.msra.mxu0 %v2707
        %2721 = vmatprep.subr.bf16.mxu0 0
        %2722 = vmatpush1.bf16.msra.mxu0 %v2708
        %2723 = vmatprep.subr.bf16.mxu0 0
        %2724 = vmatpush1.bf16.msra.mxu0 %v2709
        %2725 = vmatprep.subr.bf16.mxu0 0
        %2726 = vmatpush1.bf16.msra.mxu0 0
        %2727 = vmatprep.subr.bf16.mxu0 0
        %2728 = vmatpush1.bf16.msra.mxu0 0
        %2729 = vmatprep.subr.bf16.mxu0 0
        %2730 = vmatpush1.bf16.msra.mxu0 0
        %2731 = vmatprep.subr.bf16.mxu0 0
        %2732 = vmatpush1.bf16.msra.mxu0 0
        %2733 = vmatprep.subr.bf16.mxu0 0
        %2734 = vmatpush1.bf16.msra.mxu0 0
        %2735 = vmatprep.subr.bf16.mxu0 0
        %2736 = vmatpush1.bf16.msra.mxu0 0
        %2737 = vmatprep.subr.bf16.mxu0 0
        %2738 = vmatpush1.bf16.msra.mxu0 0
        %2739 = vmatprep.subr.bf16.mxu0 0
        %2740 = vmatpush1.bf16.msra.mxu0 0
        %2741 = vmatprep.subr.bf16.mxu0 0
        %2742 = vmatpush1.bf16.msra.mxu0 0
        %2743 = vmatprep.subr.bf16.mxu0 0
        %2744 = vmatpush1.bf16.msra.mxu0 0
        %2745 = vmatprep.subr.bf16.mxu0 0
        %2746 = vmatpush1.bf16.msra.mxu0 0
        %2747 = vmatprep.subr.bf16.mxu0 0
        %2748 = vmatpush1.bf16.msra.mxu0 0
        %2749 = vmatprep.mubr.bf16.mxu0 0
        %2750 = vmatmul.mubr.bf16.gmra.mrb[0].mxu0 %v2715
        %v2751 = vpop.f32.mrb[0].mxu0
        %v2752 = vadd.f32 %v2688, %v2751
        %v2753 = vpop.f32.mrb[0].mxu0
        %v2754 = vpop.f32.mrb[0].mxu0
        %v2755 = vpop.f32.mrb[0].mxu0
        %2756 = vdwg.mxu0
        %vm2757 = vcmp.ge.f32.partialorder %v2752, 0.0
        %v2758 = vmul.f32 %v2752, 0.2
        %v2759 = vsel %vm2757, %v2752, %v2758
        %v2760 = vadd.f32 %v2583, %v2759
        %s2761 = scalar_lea.vmem %s19, 96
        %v2762 = vld [vmem:[%s2761] sm:$0xf]
        %v2763 = vld [vmem:[%s2761 + $0x4] sm:$0xf]
        %v2764 = vld [vmem:[%s2761 + $0x8] sm:$0xf]
        %v2765 = vld [vmem:[%s2761 + $0xc] sm:$0xf]
        %v2766 = vld [vmem:[%s2761 + $0x10] sm:$0xf]
        %v2767 = vld [vmem:[%s2761 + $0x14] sm:$0xf]
        %v2768 = vld [vmem:[%s2761 + $0x18] sm:$0xf]
        %v2769 = vld [vmem:[%s2761 + $0x1c] sm:$0xf]
        %v2770 = vpack.c.bf16 %v2760, %v2760
        %s2771 = scalar_lea.vmem %s21, 3
        %v2772 = vld [vmem:[%s2771] sm:$0x1]
        %v2774 = vlaneseq
        %v2775 = vshrl.u32 %v2774, 7
        %v2776 = vsub.s32 0, %v2775
        %v2777 = vrot.slane %v2772, %v2776
        %v2787 = vunpack.c.l.b16 %v2762
        %v2788 = vunpack.c.l.b16 %v2763
        %v2789 = vunpack.c.l.b16 %v2764
        %v2790 = vunpack.c.l.b16 %v2765
        %v2791 = vunpack.c.l.b16 %v2766
        %v2792 = vunpack.c.l.b16 %v2767
        %v2793 = vunpack.c.l.b16 %v2768
        %v2794 = vunpack.c.l.b16 %v2769
        %v2795 = vpack.c.b16 %v2788, %v2787
        %v2796 = vpack.c.b16 %v2790, %v2789
        %v2797 = vpack.c.b16 %v2792, %v2791
        %v2798 = vpack.c.b16 %v2794, %v2793
        %v2804 = vsel %vm1607, %v2770, 0
        %2806 = vmatprep.subr.bf16.mxu0 0
        %2807 = vmatpush1.bf16.msra.mxu0 %v2795
        %2808 = vmatprep.subr.bf16.mxu0 0
        %2809 = vmatpush1.bf16.msra.mxu0 %v2796
        %2810 = vmatprep.subr.bf16.mxu0 0
        %2811 = vmatpush1.bf16.msra.mxu0 %v2797
        %2812 = vmatprep.subr.bf16.mxu0 0
        %2813 = vmatpush1.bf16.msra.mxu0 %v2798
        %2814 = vmatprep.subr.bf16.mxu0 0
        %2815 = vmatpush1.bf16.msra.mxu0 0
        %2816 = vmatprep.subr.bf16.mxu0 0
        %2817 = vmatpush1.bf16.msra.mxu0 0
        %2818 = vmatprep.subr.bf16.mxu0 0
        %2819 = vmatpush1.bf16.msra.mxu0 0
        %2820 = vmatprep.subr.bf16.mxu0 0
        %2821 = vmatpush1.bf16.msra.mxu0 0
        %2822 = vmatprep.subr.bf16.mxu0 0
        %2823 = vmatpush1.bf16.msra.mxu0 0
        %2824 = vmatprep.subr.bf16.mxu0 0
        %2825 = vmatpush1.bf16.msra.mxu0 0
        %2826 = vmatprep.subr.bf16.mxu0 0
        %2827 = vmatpush1.bf16.msra.mxu0 0
        %2828 = vmatprep.subr.bf16.mxu0 0
        %2829 = vmatpush1.bf16.msra.mxu0 0
        %2830 = vmatprep.subr.bf16.mxu0 0
        %2831 = vmatpush1.bf16.msra.mxu0 0
        %2832 = vmatprep.subr.bf16.mxu0 0
        %2833 = vmatpush1.bf16.msra.mxu0 0
        %2834 = vmatprep.subr.bf16.mxu0 0
        %2835 = vmatpush1.bf16.msra.mxu0 0
        %2836 = vmatprep.subr.bf16.mxu0 0
        %2837 = vmatpush1.bf16.msra.mxu0 0
        %2838 = vmatprep.mubr.bf16.mxu0 0
        %2839 = vmatmul.mubr.bf16.gmra.mrb[0].mxu0 %v2804
        %v2840 = vpop.f32.mrb[0].mxu0
        %v2841 = vadd.f32 %v2777, %v2840
        %v2842 = vpop.f32.mrb[0].mxu0
        %v2843 = vpop.f32.mrb[0].mxu0
        %v2844 = vpop.f32.mrb[0].mxu0
        %2845 = vdwg.mxu0
        %v2846 = vmul.f32 %v2505, %v2841
        %v2847 = vld [vmem:[%s25] sm:$0x1f]
        %v2848 = vld [vmem:[%s23] sm:$0x1f]
        %vm2849 = vcmask 64512
        %v2851 = vsel %vm2849, %v2847, 0
        %2853 = vmatprep.subr.mxu0 0.0
        %2854 = vmatpush1.msra.mxu0 %v2846
        %2855 = vmatprep.subr.mxu0 0.0
        %2856 = vmatpush1.msra.mxu0 0.0
        %2857 = vmatprep.subr.mxu0 0.0
        %2858 = vmatpush1.msra.mxu0 0.0
        %2859 = vmatprep.subr.mxu0 0.0
        %2860 = vmatpush1.msra.mxu0 0.0
        %2861 = vmatprep.subr.mxu0 0.0
        %2862 = vmatpush1.msra.mxu0 0.0
        %2863 = vmatprep.subr.mxu0 0.0
        %2864 = vmatpush1.msra.mxu0 0.0
        %2865 = vmatprep.subr.mxu0 0.0
        %2866 = vmatpush1.msra.mxu0 0.0
        %2867 = vmatprep.subr.mxu0 0.0
        %2868 = vmatpush1.msra.mxu0 0.0
        %2869 = vmatprep.subr.mxu0 0.0
        %2870 = vmatpush1.msra.mxu0 0.0
        %2871 = vmatprep.subr.mxu0 0.0
        %2872 = vmatpush1.msra.mxu0 0.0
        %2873 = vmatprep.subr.mxu0 0.0
        %2874 = vmatpush1.msra.mxu0 0.0
        %2875 = vmatprep.subr.mxu0 0.0
        %2876 = vmatpush1.msra.mxu0 0.0
        %2877 = vmatprep.subr.mxu0 0.0
        %2878 = vmatpush1.msra.mxu0 0.0
        %2879 = vmatprep.subr.mxu0 0.0
        %2880 = vmatpush1.msra.mxu0 0.0
        %2881 = vmatprep.subr.mxu0 0.0
        %2882 = vmatpush1.msra.mxu0 0.0
        %2883 = vmatprep.subr.mxu0 0.0
        %2884 = vmatpush1.msra.mxu0 0.0
        %2885 = vmatprep.subr.mxu0 0.0
        %2886 = vmatpush1.msra.mxu0 0.0
        %2887 = vmatprep.subr.mxu0 0.0
        %2888 = vmatpush1.msra.mxu0 0.0
        %2889 = vmatprep.subr.mxu0 0.0
        %2890 = vmatpush1.msra.mxu0 0.0
        %2891 = vmatprep.subr.mxu0 0.0
        %2892 = vmatpush1.msra.mxu0 0.0
        %2893 = vmatprep.subr.mxu0 0.0
        %2894 = vmatpush1.msra.mxu0 0.0
        %2895 = vmatprep.subr.mxu0 0.0
        %2896 = vmatpush1.msra.mxu0 0.0
        %2897 = vmatprep.subr.mxu0 0.0
        %2898 = vmatpush1.msra.mxu0 0.0
        %2899 = vmatprep.subr.mxu0 0.0
        %2900 = vmatpush1.msra.mxu0 0.0
        %2901 = vmatprep.subr.mxu0 0.0
        %2902 = vmatpush1.msra.mxu0 0.0
        %2903 = vmatprep.subr.mxu0 0.0
        %2904 = vmatpush1.msra.mxu0 0.0
        %2905 = vmatprep.subr.mxu0 0.0
        %2906 = vmatpush1.msra.mxu0 0.0
        %2907 = vmatprep.subr.mxu0 0.0
        %2908 = vmatpush1.msra.mxu0 0.0
        %2909 = vmatprep.subr.mxu0 0.0
        %2910 = vmatpush1.msra.mxu0 0.0
        %2911 = vmatprep.subr.mxu0 0.0
        %2912 = vmatpush1.msra.mxu0 0.0
        %2913 = vmatprep.subr.mxu0 0.0
        %2914 = vmatpush1.msra.mxu0 0.0
        %2915 = vmatprep.subr.mxu0 0.0
        %2916 = vmatpush1.msra.mxu0 0.0
        %2917 = vmatprep.mubr.f32.mxu0 0.0
        %2918 = vmatmul.mubr.f32.gmra.mrb[0].mxu0 %v2851
        %v2919 = vpop.f32.mrb[0].mxu0
        %v2920 = vadd.f32 %v2848, %v2919
        %v2921 = vpop.f32.mrb[0].mxu0
        %2922 = vdwg.mxu0
        %v2923 = vld [vmem:[%s27] sm:$0x1]
        %v2924 = vld [vmem:[%s29] sm:$0x1]
        %vm2925 = vcmask 258048
        %v2926 = vsel %vm2925, %v2920, 0.0
        %2927 = vadd.xlane.f32.xlu0 %v2926
        %v2928 = vpop.xlane.xlu0 %2927
        %v2929 = vrcp.pop 32.0
        %v2930 = vmul.f32 %v2928, %v2929
        %v2931 = vsub.f32 %v2920, %v2930
        %v2932 = vmul.f32 %v2931, %v2931
        %v2933 = vsel %vm2925, %v2932, 0.0
        %2934 = vadd.xlane.f32.xlu0 %v2933
        %v2935 = vpop.xlane.xlu0 %2934
        %v2936 = vrcp.pop 31.0
        %v2937 = vmul.f32 %v2935, %v2936
        %v2938 = vrsqrt.pop %v2937
        %v2939 = vmul.f32 %v2937, %v2938
        %vm2940 = vcmp.eq.f32.partialorder %v2937, inf
        %v2941 = vsel %vm2940, %v2937, %v2939
        %vm2942 = vcmp.eq.f32.partialorder %v2937, 0.0
        %v2943 = vand.u32 %v2937, 2147483648
        %v2944 = vsel %vm2942, %v2943, %v2941
        %v2946 = vlaneseq
        %v2947 = vshrl.u32 %v2946, 7
        %v2948 = vsub.s32 0, %v2947
        %v2949 = vrot.slane %v2923, %v2948
        %v2951 = vmul.f32 %v2949, %v2931
        %v2952 = vadd.f32 %v2944, 1e-06
        %v2953 = vrcp.pop %v2952
        %v2954 = vmul.f32 %v2951, %v2953
        %v2956 = vlaneseq
        %v2957 = vshrl.u32 %v2956, 7
        %v2958 = vsub.s32 0, %v2957
        %v2959 = vrot.slane %v2924, %v2958
        %v2961 = vadd.f32 %v2954, %v2959
        %v2962 = vld [vmem:[%s31] sm:$0xf]
        %v2963 = vld [vmem:[%s31 + $0x4] sm:$0xf]
        %v2964 = vld [vmem:[%s31 + $0x8] sm:$0xf]
        %v2965 = vld [vmem:[%s31 + $0xc] sm:$0xf]
        %v2966 = vpack.c.bf16 %v2961, %v2961
        %v2967 = vld [vmem:[%s33] sm:$0x1]
        %v2969 = vlaneseq
        %v2970 = vshrl.u32 %v2969, 7
        %v2971 = vsub.s32 0, %v2970
        %v2972 = vrot.slane %v2967, %v2971
        %v2978 = vunpack.c.l.b16 %v2962
        %v2979 = vunpack.c.l.b16 %v2963
        %v2980 = vunpack.c.l.b16 %v2964
        %v2981 = vunpack.c.l.b16 %v2965
        %v2982 = vpack.c.b16 %v2979, %v2978
        %v2983 = vpack.c.b16 %v2981, %v2980
        %vm2986 = vcmask 261120
        %v2988 = vsel %vm2986, %v2966, 0
        %2990 = vmatprep.subr.bf16.mxu0 0
        %2991 = vmatpush1.bf16.msra.mxu0 %v2982
        %2992 = vmatprep.subr.bf16.mxu0 0
        %2993 = vmatpush1.bf16.msra.mxu0 %v2983
        %2994 = vmatprep.subr.bf16.mxu0 0
        %2995 = vmatpush1.bf16.msra.mxu0 0
        %2996 = vmatprep.subr.bf16.mxu0 0
        %2997 = vmatpush1.bf16.msra.mxu0 0
        %2998 = vmatprep.subr.bf16.mxu0 0
        %2999 = vmatpush1.bf16.msra.mxu0 0
        %3000 = vmatprep.subr.bf16.mxu0 0
        %3001 = vmatpush1.bf16.msra.mxu0 0
        %3002 = vmatprep.subr.bf16.mxu0 0
        %3003 = vmatpush1.bf16.msra.mxu0 0
        %3004 = vmatprep.subr.bf16.mxu0 0
        %3005 = vmatpush1.bf16.msra.mxu0 0
        %3006 = vmatprep.subr.bf16.mxu0 0
        %3007 = vmatpush1.bf16.msra.mxu0 0
        %3008 = vmatprep.subr.bf16.mxu0 0
        %3009 = vmatpush1.bf16.msra.mxu0 0
        %3010 = vmatprep.subr.bf16.mxu0 0
        %3011 = vmatpush1.bf16.msra.mxu0 0
        %3012 = vmatprep.subr.bf16.mxu0 0
        %3013 = vmatpush1.bf16.msra.mxu0 0
        %3014 = vmatprep.subr.bf16.mxu0 0
        %3015 = vmatpush1.bf16.msra.mxu0 0
        %3016 = vmatprep.subr.bf16.mxu0 0
        %3017 = vmatpush1.bf16.msra.mxu0 0
        %3018 = vmatprep.subr.bf16.mxu0 0
        %3019 = vmatpush1.bf16.msra.mxu0 0
        %3020 = vmatprep.subr.bf16.mxu0 0
        %3021 = vmatpush1.bf16.msra.mxu0 0
        %3022 = vmatprep.mubr.bf16.mxu0 0
        %3023 = vmatmul.mubr.bf16.gmra.mrb[0].mxu0 %v2988
        %v3024 = vpop.f32.mrb[0].mxu0
        %v3025 = vadd.f32 %v2972, %v3024
        %v3026 = vpop.f32.mrb[0].mxu0
        %v3027 = vpop.f32.mrb[0].mxu0
        %v3028 = vpop.f32.mrb[0].mxu0
        %3029 = vdwg.mxu0
        %v3030 = vpack.c.bf16 %v3025, %v3025
        %3032 = vrot.lane.b32.xlu0 %v3030, 96
        %v3033 = vpop.permute.xlu0 %3032
        %v3035 = vsel %vm2849, %v3030, 0
        %v3038 = vsel %vm2849, %v3033, 0
        %3040 = vmatprep.subr.bf16.mxu0 0
        %3041 = vmatpush1.bf16.xpose.msra.mxu0 %v3038
        %3042 = vmatprep.subr.bf16.mxu0 0
        %3043 = vmatpush1.bf16.xpose.msra.mxu0 0
        %3044 = vmatprep.subr.bf16.mxu0 0
        %3045 = vmatpush1.bf16.xpose.msra.mxu0 0
        %3046 = vmatprep.subr.bf16.mxu0 0
        %3047 = vmatpush1.bf16.xpose.msra.mxu0 0
        %3048 = vmatprep.subr.bf16.mxu0 0
        %3049 = vmatpush1.bf16.xpose.msra.mxu0 0
        %3050 = vmatprep.subr.bf16.mxu0 0
        %3051 = vmatpush1.bf16.xpose.msra.mxu0 0
        %3052 = vmatprep.subr.bf16.mxu0 0
        %3053 = vmatpush1.bf16.xpose.msra.mxu0 0
        %3054 = vmatprep.subr.bf16.mxu0 0
        %3055 = vmatpush1.bf16.xpose.msra.mxu0 0
        %3056 = vmatprep.subr.bf16.mxu0 0
        %3057 = vmatpush1.bf16.xpose.msra.mxu0 0
        %3058 = vmatprep.subr.bf16.mxu0 0
        %3059 = vmatpush1.bf16.xpose.msra.mxu0 0
        %3060 = vmatprep.subr.bf16.mxu0 0
        %3061 = vmatpush1.bf16.xpose.msra.mxu0 0
        %3062 = vmatprep.subr.bf16.mxu0 0
        %3063 = vmatpush1.bf16.xpose.msra.mxu0 0
        %3064 = vmatprep.subr.bf16.mxu0 0
        %3065 = vmatpush1.bf16.xpose.msra.mxu0 0
        %3066 = vmatprep.subr.bf16.mxu0 0
        %3067 = vmatpush1.bf16.xpose.msra.mxu0 0
        %3068 = vmatprep.subr.bf16.mxu0 0
        %3069 = vmatpush1.bf16.xpose.msra.mxu0 0
        %3070 = vmatprep.subr.bf16.mxu0 0
        %3071 = vmatpush1.bf16.xpose.msra.mxu0 0
        %3072 = vmatprep.mubr.bf16.mxu0 0
        %3073 = vmatmul.mubr.bf16.gmra.mrb[0].mxu0 %v3035
        %v3074 = vpop.f32.mrb[0].mxu0
        %v3075 = vadd.f32 0.0, %v3074
        %v3076 = vpop.f32.mrb[0].mxu0
        %v3077 = vpop.f32.mrb[0].mxu0
        %v3078 = vpop.f32.mrb[0].mxu0
        %3079 = vdwg.mxu0
        %v3080 = vmul.f32 %v3075, 0.35355338
        %vm3081 = vcmask 36864
        %v3082 = vsel %vm3081, %v3080, -inf
        %3083 = vmax.xlane.f32.xlu0 %v3082
        %v3084 = vpop.xlane.xlu0 %3083
        %v3085 = vsub.f32 %v3080, %v3084
        %v3086 = vmul.f32 %v3085, 1.442695
        %v3087 = vpow.pop %v3086
        %v3088 = vsel %vm3081, %v3087, 0.0
        %3089 = vadd.xlane.f32.xlu0 %v3088
        %v3090 = vpop.xlane.xlu0 %3089
        %v3091 = vrcp.pop %v3090
        %v3092 = vmul.f32 %v3087, %v3091
        %v3093 = vpack.c.bf16 %v3092, %v3092
        %3094 = vrot.lane.b32.xlu0 %v3030, 64
        %v3095 = vpop.permute.xlu0 %3094
        %vm3096 = vcmask 39936
        %v3098 = vsel %vm3096, %v3093, 0
        %vm3100 = vcmask 1041408
        %vm3101 = vcmask 1042432
        %v3102 = vsel %vm3100, 4294967295, 65535
        %v3103 = vsel %vm3101, %v3102, 0
        %v3105 = vand.u32 %v3095, %v3103
        %3107 = vmatprep.subr.bf16.mxu0 0
        %3108 = vmatpush1.bf16.msra.mxu0 %v3105
        %3109 = vmatprep.subr.bf16.mxu0 0
        %3110 = vmatpush1.bf16.msra.mxu0 0
        %3111 = vmatprep.subr.bf16.mxu0 0
        %3112 = vmatpush1.bf16.msra.mxu0 0
        %3113 = vmatprep.subr.bf16.mxu0 0
        %3114 = vmatpush1.bf16.msra.mxu0 0
        %3115 = vmatprep.subr.bf16.mxu0 0
        %3116 = vmatpush1.bf16.msra.mxu0 0
        %3117 = vmatprep.subr.bf16.mxu0 0
        %3118 = vmatpush1.bf16.msra.mxu0 0
        %3119 = vmatprep.subr.bf16.mxu0 0
        %3120 = vmatpush1.bf16.msra.mxu0 0
        %3121 = vmatprep.subr.bf16.mxu0 0
        %3122 = vmatpush1.bf16.msra.mxu0 0
        %3123 = vmatprep.subr.bf16.mxu0 0
        %3124 = vmatpush1.bf16.msra.mxu0 0
        %3125 = vmatprep.subr.bf16.mxu0 0
        %3126 = vmatpush1.bf16.msra.mxu0 0
        %3127 = vmatprep.subr.bf16.mxu0 0
        %3128 = vmatpush1.bf16.msra.mxu0 0
        %3129 = vmatprep.subr.bf16.mxu0 0
        %3130 = vmatpush1.bf16.msra.mxu0 0
        %3131 = vmatprep.subr.bf16.mxu0 0
        %3132 = vmatpush1.bf16.msra.mxu0 0
        %3133 = vmatprep.subr.bf16.mxu0 0
        %3134 = vmatpush1.bf16.msra.mxu0 0
        %3135 = vmatprep.subr.bf16.mxu0 0
        %3136 = vmatpush1.bf16.msra.mxu0 0
        %3137 = vmatprep.subr.bf16.mxu0 0
        %3138 = vmatpush1.bf16.msra.mxu0 0
        %3139 = vmatprep.mubr.bf16.mxu0 0
        %3140 = vmatmul.mubr.bf16.gmra.mrb[0].mxu0 %v3098
        %v3141 = vpop.f32.mrb[0].mxu0
        %v3142 = vadd.f32 0.0, %v3141
        %v3143 = vpop.f32.mrb[0].mxu0
        %v3144 = vpop.f32.mrb[0].mxu0
        %v3145 = vpop.f32.mrb[0].mxu0
        %3146 = vdwg.mxu0
        %3147 = vrot.lane.b32.xlu0 %v3030, 120
        %v3148 = vpop.permute.xlu0 %3147
        %3149 = vrot.lane.b32.xlu0 %v3030, 88
        %v3150 = vpop.permute.xlu0 %3149
        %v3152 = vsel %vm2849, %v3148, 0
        %v3155 = vsel %vm2849, %v3150, 0
        %3157 = vmatprep.subr.bf16.mxu0 0
        %3158 = vmatpush1.bf16.xpose.msra.mxu0 %v3155
        %3159 = vmatprep.subr.bf16.mxu0 0
        %3160 = vmatpush1.bf16.xpose.msra.mxu0 0
        %3161 = vmatprep.subr.bf16.mxu0 0
        %3162 = vmatpush1.bf16.xpose.msra.mxu0 0
        %3163 = vmatprep.subr.bf16.mxu0 0
        %3164 = vmatpush1.bf16.xpose.msra.mxu0 0
        %3165 = vmatprep.subr.bf16.mxu0 0
        %3166 = vmatpush1.bf16.xpose.msra.mxu0 0
        %3167 = vmatprep.subr.bf16.mxu0 0
        %3168 = vmatpush1.bf16.xpose.msra.mxu0 0
        %3169 = vmatprep.subr.bf16.mxu0 0
        %3170 = vmatpush1.bf16.xpose.msra.mxu0 0
        %3171 = vmatprep.subr.bf16.mxu0 0
        %3172 = vmatpush1.bf16.xpose.msra.mxu0 0
        %3173 = vmatprep.subr.bf16.mxu0 0
        %3174 = vmatpush1.bf16.xpose.msra.mxu0 0
        %3175 = vmatprep.subr.bf16.mxu0 0
        %3176 = vmatpush1.bf16.xpose.msra.mxu0 0
        %3177 = vmatprep.subr.bf16.mxu0 0
        %3178 = vmatpush1.bf16.xpose.msra.mxu0 0
        %3179 = vmatprep.subr.bf16.mxu0 0
        %3180 = vmatpush1.bf16.xpose.msra.mxu0 0
        %3181 = vmatprep.subr.bf16.mxu0 0
        %3182 = vmatpush1.bf16.xpose.msra.mxu0 0
        %3183 = vmatprep.subr.bf16.mxu0 0
        %3184 = vmatpush1.bf16.xpose.msra.mxu0 0
        %3185 = vmatprep.subr.bf16.mxu0 0
        %3186 = vmatpush1.bf16.xpose.msra.mxu0 0
        %3187 = vmatprep.subr.bf16.mxu0 0
        %3188 = vmatpush1.bf16.xpose.msra.mxu0 0
        %3189 = vmatprep.mubr.bf16.mxu0 0
        %3190 = vmatmul.mubr.bf16.gmra.mrb[0].mxu0 %v3152
        %v3191 = vpop.f32.mrb[0].mxu0
        %v3192 = vadd.f32 0.0, %v3191
        %v3193 = vpop.f32.mrb[0].mxu0
        %v3194 = vpop.f32.mrb[0].mxu0
        %v3195 = vpop.f32.mrb[0].mxu0
        %3196 = vdwg.mxu0
        %v3197 = vmul.f32 %v3192, 0.35355338
        %v3198 = vsel %vm3081, %v3197, -inf
        %3199 = vmax.xlane.f32.xlu0 %v3198
        %v3200 = vpop.xlane.xlu0 %3199
        %v3201 = vsub.f32 %v3197, %v3200
        %v3202 = vmul.f32 %v3201, 1.442695
        %v3203 = vpow.pop %v3202
        %v3204 = vsel %vm3081, %v3203, 0.0
        %3205 = vadd.xlane.f32.xlu0 %v3204
        %v3206 = vpop.xlane.xlu0 %3205
        %v3207 = vrcp.pop %v3206
        %v3208 = vmul.f32 %v3203, %v3207
        %v3209 = vpack.c.bf16 %v3208, %v3208
        %3210 = vrot.lane.b32.xlu0 %v3030, 56
        %v3211 = vpop.permute.xlu0 %3210
        %v3213 = vsel %vm3096, %v3209, 0
        %v3216 = vand.u32 %v3211, %v3103
        %3218 = vmatprep.subr.bf16.mxu0 0
        %3219 = vmatpush1.bf16.msra.mxu0 %v3216
        %3220 = vmatprep.subr.bf16.mxu0 0
        %3221 = vmatpush1.bf16.msra.mxu0 0
        %3222 = vmatprep.subr.bf16.mxu0 0
        %3223 = vmatpush1.bf16.msra.mxu0 0
        %3224 = vmatprep.subr.bf16.mxu0 0
        %3225 = vmatpush1.bf16.msra.mxu0 0
        %3226 = vmatprep.subr.bf16.mxu0 0
        %3227 = vmatpush1.bf16.msra.mxu0 0
        %3228 = vmatprep.subr.bf16.mxu0 0
        %3229 = vmatpush1.bf16.msra.mxu0 0
        %3230 = vmatprep.subr.bf16.mxu0 0
        %3231 = vmatpush1.bf16.msra.mxu0 0
        %3232 = vmatprep.subr.bf16.mxu0 0
        %3233 = vmatpush1.bf16.msra.mxu0 0
        %3234 = vmatprep.subr.bf16.mxu0 0
        %3235 = vmatpush1.bf16.msra.mxu0 0
        %3236 = vmatprep.subr.bf16.mxu0 0
        %3237 = vmatpush1.bf16.msra.mxu0 0
        %3238 = vmatprep.subr.bf16.mxu0 0
        %3239 = vmatpush1.bf16.msra.mxu0 0
        %3240 = vmatprep.subr.bf16.mxu0 0
        %3241 = vmatpush1.bf16.msra.mxu0 0
        %3242 = vmatprep.subr.bf16.mxu0 0
        %3243 = vmatpush1.bf16.msra.mxu0 0
        %3244 = vmatprep.subr.bf16.mxu0 0
        %3245 = vmatpush1.bf16.msra.mxu0 0
        %3246 = vmatprep.subr.bf16.mxu0 0
        %3247 = vmatpush1.bf16.msra.mxu0 0
        %3248 = vmatprep.subr.bf16.mxu0 0
        %3249 = vmatpush1.bf16.msra.mxu0 0
        %3250 = vmatprep.mubr.bf16.mxu0 0
        %3251 = vmatmul.mubr.bf16.gmra.mrb[0].mxu0 %v3213
        %v3252 = vpop.f32.mrb[0].mxu0
        %v3253 = vadd.f32 0.0, %v3252
        %v3254 = vpop.f32.mrb[0].mxu0
        %v3255 = vpop.f32.mrb[0].mxu0
        %v3256 = vpop.f32.mrb[0].mxu0
        %3257 = vdwg.mxu0
        %3258 = vrot.lane.b32.xlu0 %v3030, 112
        %v3259 = vpop.permute.xlu0 %3258
        %3260 = vrot.lane.b32.xlu0 %v3030, 80
        %v3261 = vpop.permute.xlu0 %3260
        %v3263 = vsel %vm2849, %v3259, 0
        %v3266 = vsel %vm2849, %v3261, 0
        %3268 = vmatprep.subr.bf16.mxu0 0
        %3269 = vmatpush1.bf16.xpose.msra.mxu0 %v3266
        %3270 = vmatprep.subr.bf16.mxu0 0
        %3271 = vmatpush1.bf16.xpose.msra.mxu0 0
        %3272 = vmatprep.subr.bf16.mxu0 0
        %3273 = vmatpush1.bf16.xpose.msra.mxu0 0
        %3274 = vmatprep.subr.bf16.mxu0 0
        %3275 = vmatpush1.bf16.xpose.msra.mxu0 0
        %3276 = vmatprep.subr.bf16.mxu0 0
        %3277 = vmatpush1.bf16.xpose.msra.mxu0 0
        %3278 = vmatprep.subr.bf16.mxu0 0
        %3279 = vmatpush1.bf16.xpose.msra.mxu0 0
        %3280 = vmatprep.subr.bf16.mxu0 0
        %3281 = vmatpush1.bf16.xpose.msra.mxu0 0
        %3282 = vmatprep.subr.bf16.mxu0 0
        %3283 = vmatpush1.bf16.xpose.msra.mxu0 0
        %3284 = vmatprep.subr.bf16.mxu0 0
        %3285 = vmatpush1.bf16.xpose.msra.mxu0 0
        %3286 = vmatprep.subr.bf16.mxu0 0
        %3287 = vmatpush1.bf16.xpose.msra.mxu0 0
        %3288 = vmatprep.subr.bf16.mxu0 0
        %3289 = vmatpush1.bf16.xpose.msra.mxu0 0
        %3290 = vmatprep.subr.bf16.mxu0 0
        %3291 = vmatpush1.bf16.xpose.msra.mxu0 0
        %3292 = vmatprep.subr.bf16.mxu0 0
        %3293 = vmatpush1.bf16.xpose.msra.mxu0 0
        %3294 = vmatprep.subr.bf16.mxu0 0
        %3295 = vmatpush1.bf16.xpose.msra.mxu0 0
        %3296 = vmatprep.subr.bf16.mxu0 0
        %3297 = vmatpush1.bf16.xpose.msra.mxu0 0
        %3298 = vmatprep.subr.bf16.mxu0 0
        %3299 = vmatpush1.bf16.xpose.msra.mxu0 0
        %3300 = vmatprep.mubr.bf16.mxu0 0
        %3301 = vmatmul.mubr.bf16.gmra.mrb[0].mxu0 %v3263
        %v3302 = vpop.f32.mrb[0].mxu0
        %v3303 = vadd.f32 0.0, %v3302
        %v3304 = vpop.f32.mrb[0].mxu0
        %v3305 = vpop.f32.mrb[0].mxu0
        %v3306 = vpop.f32.mrb[0].mxu0
        %3307 = vdwg.mxu0
        %v3308 = vmul.f32 %v3303, 0.35355338
        %v3309 = vsel %vm3081, %v3308, -inf
        %3310 = vmax.xlane.f32.xlu0 %v3309
        %v3311 = vpop.xlane.xlu0 %3310
        %v3312 = vsub.f32 %v3308, %v3311
        %v3313 = vmul.f32 %v3312, 1.442695
        %v3314 = vpow.pop %v3313
        %v3315 = vsel %vm3081, %v3314, 0.0
        %3316 = vadd.xlane.f32.xlu0 %v3315
        %v3317 = vpop.xlane.xlu0 %3316
        %v3318 = vrcp.pop %v3317
        %v3319 = vmul.f32 %v3314, %v3318
        %v3320 = vpack.c.bf16 %v3319, %v3319
        %3321 = vrot.lane.b32.xlu0 %v3030, 48
        %v3322 = vpop.permute.xlu0 %3321
        %v3324 = vsel %vm3096, %v3320, 0
        %v3327 = vand.u32 %v3322, %v3103
        %3329 = vmatprep.subr.bf16.mxu0 0
        %3330 = vmatpush1.bf16.msra.mxu0 %v3327
        %3331 = vmatprep.subr.bf16.mxu0 0
        %3332 = vmatpush1.bf16.msra.mxu0 0
        %3333 = vmatprep.subr.bf16.mxu0 0
        %3334 = vmatpush1.bf16.msra.mxu0 0
        %3335 = vmatprep.subr.bf16.mxu0 0
        %3336 = vmatpush1.bf16.msra.mxu0 0
        %3337 = vmatprep.subr.bf16.mxu0 0
        %3338 = vmatpush1.bf16.msra.mxu0 0
        %3339 = vmatprep.subr.bf16.mxu0 0
        %3340 = vmatpush1.bf16.msra.mxu0 0
        %3341 = vmatprep.subr.bf16.mxu0 0
        %3342 = vmatpush1.bf16.msra.mxu0 0
        %3343 = vmatprep.subr.bf16.mxu0 0
        %3344 = vmatpush1.bf16.msra.mxu0 0
        %3345 = vmatprep.subr.bf16.mxu0 0
        %3346 = vmatpush1.bf16.msra.mxu0 0
        %3347 = vmatprep.subr.bf16.mxu0 0
        %3348 = vmatpush1.bf16.msra.mxu0 0
        %3349 = vmatprep.subr.bf16.mxu0 0
        %3350 = vmatpush1.bf16.msra.mxu0 0
        %3351 = vmatprep.subr.bf16.mxu0 0
        %3352 = vmatpush1.bf16.msra.mxu0 0
        %3353 = vmatprep.subr.bf16.mxu0 0
        %3354 = vmatpush1.bf16.msra.mxu0 0
        %3355 = vmatprep.subr.bf16.mxu0 0
        %3356 = vmatpush1.bf16.msra.mxu0 0
        %3357 = vmatprep.subr.bf16.mxu0 0
        %3358 = vmatpush1.bf16.msra.mxu0 0
        %3359 = vmatprep.subr.bf16.mxu0 0
        %3360 = vmatpush1.bf16.msra.mxu0 0
        %3361 = vmatprep.mubr.bf16.mxu0 0
        %3362 = vmatmul.mubr.bf16.gmra.mrb[0].mxu0 %v3324
        %v3363 = vpop.f32.mrb[0].mxu0
        %v3364 = vadd.f32 0.0, %v3363
        %v3365 = vpop.f32.mrb[0].mxu0
        %v3366 = vpop.f32.mrb[0].mxu0
        %v3367 = vpop.f32.mrb[0].mxu0
        %3368 = vdwg.mxu0
        %3369 = vrot.lane.b32.xlu0 %v3030, 104
        %v3370 = vpop.permute.xlu0 %3369
        %3371 = vrot.lane.b32.xlu0 %v3030, 72
        %v3372 = vpop.permute.xlu0 %3371
        %v3374 = vsel %vm2849, %v3370, 0
        %v3377 = vsel %vm2849, %v3372, 0
        %3379 = vmatprep.subr.bf16.mxu0 0
        %3380 = vmatpush1.bf16.xpose.msra.mxu0 %v3377
        %3381 = vmatprep.subr.bf16.mxu0 0
        %3382 = vmatpush1.bf16.xpose.msra.mxu0 0
        %3383 = vmatprep.subr.bf16.mxu0 0
        %3384 = vmatpush1.bf16.xpose.msra.mxu0 0
        %3385 = vmatprep.subr.bf16.mxu0 0
        %3386 = vmatpush1.bf16.xpose.msra.mxu0 0
        %3387 = vmatprep.subr.bf16.mxu0 0
        %3388 = vmatpush1.bf16.xpose.msra.mxu0 0
        %3389 = vmatprep.subr.bf16.mxu0 0
        %3390 = vmatpush1.bf16.xpose.msra.mxu0 0
        %3391 = vmatprep.subr.bf16.mxu0 0
        %3392 = vmatpush1.bf16.xpose.msra.mxu0 0
        %3393 = vmatprep.subr.bf16.mxu0 0
        %3394 = vmatpush1.bf16.xpose.msra.mxu0 0
        %3395 = vmatprep.subr.bf16.mxu0 0
        %3396 = vmatpush1.bf16.xpose.msra.mxu0 0
        %3397 = vmatprep.subr.bf16.mxu0 0
        %3398 = vmatpush1.bf16.xpose.msra.mxu0 0
        %3399 = vmatprep.subr.bf16.mxu0 0
        %3400 = vmatpush1.bf16.xpose.msra.mxu0 0
        %3401 = vmatprep.subr.bf16.mxu0 0
        %3402 = vmatpush1.bf16.xpose.msra.mxu0 0
        %3403 = vmatprep.subr.bf16.mxu0 0
        %3404 = vmatpush1.bf16.xpose.msra.mxu0 0
        %3405 = vmatprep.subr.bf16.mxu0 0
        %3406 = vmatpush1.bf16.xpose.msra.mxu0 0
        %3407 = vmatprep.subr.bf16.mxu0 0
        %3408 = vmatpush1.bf16.xpose.msra.mxu0 0
        %3409 = vmatprep.subr.bf16.mxu0 0
        %3410 = vmatpush1.bf16.xpose.msra.mxu0 0
        %3411 = vmatprep.mubr.bf16.mxu0 0
        %3412 = vmatmul.mubr.bf16.gmra.mrb[0].mxu0 %v3374
        %v3413 = vpop.f32.mrb[0].mxu0
        %v3414 = vadd.f32 0.0, %v3413
        %v3415 = vpop.f32.mrb[0].mxu0
        %v3416 = vpop.f32.mrb[0].mxu0
        %v3417 = vpop.f32.mrb[0].mxu0
        %3418 = vdwg.mxu0
        %v3419 = vmul.f32 %v3414, 0.35355338
        %v3420 = vsel %vm3081, %v3419, -inf
        %3421 = vmax.xlane.f32.xlu0 %v3420
        %v3422 = vpop.xlane.xlu0 %3421
        %v3423 = vsub.f32 %v3419, %v3422
        %v3424 = vmul.f32 %v3423, 1.442695
        %v3425 = vpow.pop %v3424
        %v3426 = vsel %vm3081, %v3425, 0.0
        %3427 = vadd.xlane.f32.xlu0 %v3426
        %v3428 = vpop.xlane.xlu0 %3427
        %v3429 = vrcp.pop %v3428
        %v3430 = vmul.f32 %v3425, %v3429
        %v3431 = vpack.c.bf16 %v3430, %v3430
        %3432 = vrot.lane.b32.xlu0 %v3030, 40
        %v3433 = vpop.permute.xlu0 %3432
        %v3435 = vsel %vm3096, %v3431, 0
        %v3438 = vand.u32 %v3433, %v3103
        %3440 = vmatprep.subr.bf16.mxu0 0
        %3441 = vmatpush1.bf16.msra.mxu0 %v3438
        %3442 = vmatprep.subr.bf16.mxu0 0
        %3443 = vmatpush1.bf16.msra.mxu0 0
        %3444 = vmatprep.subr.bf16.mxu0 0
        %3445 = vmatpush1.bf16.msra.mxu0 0
        %3446 = vmatprep.subr.bf16.mxu0 0
        %3447 = vmatpush1.bf16.msra.mxu0 0
        %3448 = vmatprep.subr.bf16.mxu0 0
        %3449 = vmatpush1.bf16.msra.mxu0 0
        %3450 = vmatprep.subr.bf16.mxu0 0
        %3451 = vmatpush1.bf16.msra.mxu0 0
        %3452 = vmatprep.subr.bf16.mxu0 0
        %3453 = vmatpush1.bf16.msra.mxu0 0
        %3454 = vmatprep.subr.bf16.mxu0 0
        %3455 = vmatpush1.bf16.msra.mxu0 0
        %3456 = vmatprep.subr.bf16.mxu0 0
        %3457 = vmatpush1.bf16.msra.mxu0 0
        %3458 = vmatprep.subr.bf16.mxu0 0
        %3459 = vmatpush1.bf16.msra.mxu0 0
        %3460 = vmatprep.subr.bf16.mxu0 0
        %3461 = vmatpush1.bf16.msra.mxu0 0
        %3462 = vmatprep.subr.bf16.mxu0 0
        %3463 = vmatpush1.bf16.msra.mxu0 0
        %3464 = vmatprep.subr.bf16.mxu0 0
        %3465 = vmatpush1.bf16.msra.mxu0 0
        %3466 = vmatprep.subr.bf16.mxu0 0
        %3467 = vmatpush1.bf16.msra.mxu0 0
        %3468 = vmatprep.subr.bf16.mxu0 0
        %3469 = vmatpush1.bf16.msra.mxu0 0
        %3470 = vmatprep.subr.bf16.mxu0 0
        %3471 = vmatpush1.bf16.msra.mxu0 0
        %3472 = vmatprep.mubr.bf16.mxu0 0
        %3473 = vmatmul.mubr.bf16.gmra.mrb[0].mxu0 %v3435
        %v3474 = vpop.f32.mrb[0].mxu0
        %v3475 = vadd.f32 0.0, %v3474
        %v3476 = vpop.f32.mrb[0].mxu0
        %v3477 = vpop.f32.mrb[0].mxu0
        %v3478 = vpop.f32.mrb[0].mxu0
        %3479 = vdwg.mxu0
        %3481 = vrot.lane.b32.xlu0 %v3253, 8
        %v3482 = vpop.permute.xlu0 %3481
        %3485 = vrot.lane.b32.xlu0 %v3364, 16
        %v3486 = vpop.permute.xlu0 %3485
        %3489 = vrot.lane.b32.xlu0 %v3475, 24
        %v3490 = vpop.permute.xlu0 %3489
        %v3492 = vsel %vm2849, %v3142, %v3482
        %v3493 = vsel %vm1520, %v3492, %v3486
        %vm3494 = vcmask 195584
        %v3495 = vsel %vm3494, %v3493, %v3490
        %v3496 = vld [vmem:[%s35] sm:$0xf]
        %v3497 = vld [vmem:[%s35 + $0x4] sm:$0xf]
        %v3498 = vld [vmem:[%s35 + $0x8] sm:$0xf]
        %v3499 = vld [vmem:[%s35 + $0xc] sm:$0xf]
        %v3500 = vpack.c.bf16 %v3495, %v3495
        %v3505 = vunpack.c.l.b16 %v3496
        %v3506 = vunpack.c.l.b16 %v3497
        %v3507 = vunpack.c.l.b16 %v3498
        %v3508 = vunpack.c.l.b16 %v3499
        %v3509 = vpack.c.b16 %v3506, %v3505
        %v3510 = vpack.c.b16 %v3508, %v3507
        %v3514 = vsel %vm2986, %v3500, 0
        %3516 = vmatprep.subr.bf16.mxu0 0
        %3517 = vmatpush1.bf16.msra.mxu0 %v3509
        %3518 = vmatprep.subr.bf16.mxu0 0
        %3519 = vmatpush1.bf16.msra.mxu0 %v3510
        %3520 = vmatprep.subr.bf16.mxu0 0
        %3521 = vmatpush1.bf16.msra.mxu0 0
        %3522 = vmatprep.subr.bf16.mxu0 0
        %3523 = vmatpush1.bf16.msra.mxu0 0
        %3524 = vmatprep.subr.bf16.mxu0 0
        %3525 = vmatpush1.bf16.msra.mxu0 0
        %3526 = vmatprep.subr.bf16.mxu0 0
        %3527 = vmatpush1.bf16.msra.mxu0 0
        %3528 = vmatprep.subr.bf16.mxu0 0
        %3529 = vmatpush1.bf16.msra.mxu0 0
        %3530 = vmatprep.subr.bf16.mxu0 0
        %3531 = vmatpush1.bf16.msra.mxu0 0
        %3532 = vmatprep.subr.bf16.mxu0 0
        %3533 = vmatpush1.bf16.msra.mxu0 0
        %3534 = vmatprep.subr.bf16.mxu0 0
        %3535 = vmatpush1.bf16.msra.mxu0 0
        %3536 = vmatprep.subr.bf16.mxu0 0
        %3537 = vmatpush1.bf16.msra.mxu0 0
        %3538 = vmatprep.subr.bf16.mxu0 0
        %3539 = vmatpush1.bf16.msra.mxu0 0
        %3540 = vmatprep.subr.bf16.mxu0 0
        %3541 = vmatpush1.bf16.msra.mxu0 0
        %3542 = vmatprep.subr.bf16.mxu0 0
        %3543 = vmatpush1.bf16.msra.mxu0 0
        %3544 = vmatprep.subr.bf16.mxu0 0
        %3545 = vmatpush1.bf16.msra.mxu0 0
        %3546 = vmatprep.subr.bf16.mxu0 0
        %3547 = vmatpush1.bf16.msra.mxu0 0
        %3548 = vmatprep.mubr.bf16.mxu0 0
        %3549 = vmatmul.mubr.bf16.gmra.mrb[0].mxu0 %v3514
        %v3550 = vpop.f32.mrb[0].mxu0
        %v3551 = vadd.f32 0.0, %v3550
        %v3552 = vpop.f32.mrb[0].mxu0
        %v3553 = vpop.f32.mrb[0].mxu0
        %v3554 = vpop.f32.mrb[0].mxu0
        %3555 = vdwg.mxu0
        %v3556 = vadd.f32 %v2920, %v3551
        %v3557 = vld [vmem:[%s37] sm:$0x1]
        %v3559 = vlaneseq
        %v3560 = vshrl.u32 %v3559, 7
        %v3561 = vsub.s32 0, %v3560
        %v3562 = vrot.slane %v3557, %v3561
        %v3564 = vadd.f32 %v3556, %v3562
        %v3565 = vld [vmem:[%s39] sm:$0x1]
        %v3566 = vld [vmem:[%s41] sm:$0x1]
        %v3567 = vsel %vm2925, %v3564, 0.0
        %3568 = vadd.xlane.f32.xlu0 %v3567
        %v3569 = vpop.xlane.xlu0 %3568
        %v3570 = vmul.f32 %v3569, %v2929
        %v3571 = vsub.f32 %v3564, %v3570
        %v3572 = vmul.f32 %v3571, %v3571
        %v3573 = vsel %vm2925, %v3572, 0.0
        %3574 = vadd.xlane.f32.xlu0 %v3573
        %v3575 = vpop.xlane.xlu0 %3574
        %v3576 = vmul.f32 %v3575, %v2936
        %v3577 = vrsqrt.pop %v3576
        %v3578 = vmul.f32 %v3576, %v3577
        %vm3579 = vcmp.eq.f32.partialorder %v3576, inf
        %v3580 = vsel %vm3579, %v3576, %v3578
        %vm3581 = vcmp.eq.f32.partialorder %v3576, 0.0
        %v3582 = vand.u32 %v3576, 2147483648
        %v3583 = vsel %vm3581, %v3582, %v3580
        %v3585 = vlaneseq
        %v3586 = vshrl.u32 %v3585, 7
        %v3587 = vsub.s32 0, %v3586
        %v3588 = vrot.slane %v3565, %v3587
        %v3590 = vmul.f32 %v3588, %v3571
        %v3591 = vadd.f32 %v3583, 1e-06
        %v3592 = vrcp.pop %v3591
        %v3593 = vmul.f32 %v3590, %v3592
        %v3595 = vlaneseq
        %v3596 = vshrl.u32 %v3595, 7
        %v3597 = vsub.s32 0, %v3596
        %v3598 = vrot.slane %v3566, %v3597
        %v3600 = vadd.f32 %v3593, %v3598
        %v3601 = vld [vmem:[%s43] sm:$0xf]
        %v3602 = vld [vmem:[%s43 + $0x4] sm:$0xf]
        %v3603 = vld [vmem:[%s43 + $0x8] sm:$0xf]
        %v3604 = vld [vmem:[%s43 + $0xc] sm:$0xf]
        %v3605 = vpack.c.bf16 %v3600, %v3600
        %v3606 = vld [vmem:[%s45] sm:$0x1]
        %v3608 = vlaneseq
        %v3609 = vshrl.u32 %v3608, 7
        %v3610 = vsub.s32 0, %v3609
        %v3611 = vrot.slane %v3606, %v3610
        %v3617 = vunpack.c.l.b16 %v3601
        %v3618 = vunpack.c.l.b16 %v3602
        %v3619 = vunpack.c.l.b16 %v3603
        %v3620 = vunpack.c.l.b16 %v3604
        %v3621 = vpack.c.b16 %v3618, %v3617
        %v3622 = vpack.c.b16 %v3620, %v3619
        %v3626 = vsel %vm2986, %v3605, 0
        %3628 = vmatprep.subr.bf16.mxu0 0
        %3629 = vmatpush1.bf16.msra.mxu0 %v3621
        %3630 = vmatprep.subr.bf16.mxu0 0
        %3631 = vmatpush1.bf16.msra.mxu0 %v3622
        %3632 = vmatprep.subr.bf16.mxu0 0
        %3633 = vmatpush1.bf16.msra.mxu0 0
        %3634 = vmatprep.subr.bf16.mxu0 0
        %3635 = vmatpush1.bf16.msra.mxu0 0
        %3636 = vmatprep.subr.bf16.mxu0 0
        %3637 = vmatpush1.bf16.msra.mxu0 0
        %3638 = vmatprep.subr.bf16.mxu0 0
        %3639 = vmatpush1.bf16.msra.mxu0 0
        %3640 = vmatprep.subr.bf16.mxu0 0
        %3641 = vmatpush1.bf16.msra.mxu0 0
        %3642 = vmatprep.subr.bf16.mxu0 0
        %3643 = vmatpush1.bf16.msra.mxu0 0
        %3644 = vmatprep.subr.bf16.mxu0 0
        %3645 = vmatpush1.bf16.msra.mxu0 0
        %3646 = vmatprep.subr.bf16.mxu0 0
        %3647 = vmatpush1.bf16.msra.mxu0 0
        %3648 = vmatprep.subr.bf16.mxu0 0
        %3649 = vmatpush1.bf16.msra.mxu0 0
        %3650 = vmatprep.subr.bf16.mxu0 0
        %3651 = vmatpush1.bf16.msra.mxu0 0
        %3652 = vmatprep.subr.bf16.mxu0 0
        %3653 = vmatpush1.bf16.msra.mxu0 0
        %3654 = vmatprep.subr.bf16.mxu0 0
        %3655 = vmatpush1.bf16.msra.mxu0 0
        %3656 = vmatprep.subr.bf16.mxu0 0
        %3657 = vmatpush1.bf16.msra.mxu0 0
        %3658 = vmatprep.subr.bf16.mxu0 0
        %3659 = vmatpush1.bf16.msra.mxu0 0
        %3660 = vmatprep.mubr.bf16.mxu0 0
        %3661 = vmatmul.mubr.bf16.gmra.mrb[0].mxu0 %v3626
        %v3662 = vpop.f32.mrb[0].mxu0
        %v3663 = vadd.f32 %v3611, %v3662
        %v3664 = vpop.f32.mrb[0].mxu0
        %v3665 = vpop.f32.mrb[0].mxu0
        %v3666 = vpop.f32.mrb[0].mxu0
        %3667 = vdwg.mxu0
        %v3668 = vmax.f32 %v3663, 0.0
        %v3669 = vld [vmem:[%s47] sm:$0xf]
        %v3670 = vld [vmem:[%s47 + $0x4] sm:$0xf]
        %v3671 = vld [vmem:[%s47 + $0x8] sm:$0xf]
        %v3672 = vld [vmem:[%s47 + $0xc] sm:$0xf]
        %v3673 = vld [vmem:[%s47 + $0x10] sm:$0xf]
        %v3674 = vld [vmem:[%s47 + $0x14] sm:$0xf]
        %v3675 = vld [vmem:[%s47 + $0x18] sm:$0xf]
        %v3676 = vld [vmem:[%s47 + $0x1c] sm:$0xf]
        %v3677 = vpack.c.bf16 %v3668, %v3668
        %v3686 = vunpack.c.l.b16 %v3669
        %v3687 = vunpack.c.l.b16 %v3670
        %v3688 = vunpack.c.l.b16 %v3671
        %v3689 = vunpack.c.l.b16 %v3672
        %v3690 = vunpack.c.l.b16 %v3673
        %v3691 = vunpack.c.l.b16 %v3674
        %v3692 = vunpack.c.l.b16 %v3675
        %v3693 = vunpack.c.l.b16 %v3676
        %v3694 = vpack.c.b16 %v3687, %v3686
        %v3695 = vpack.c.b16 %v3689, %v3688
        %v3696 = vpack.c.b16 %v3691, %v3690
        %v3697 = vpack.c.b16 %v3693, %v3692
        %v3703 = vsel %vm1607, %v3677, 0
        %3705 = vmatprep.subr.bf16.mxu0 0
        %3706 = vmatpush1.bf16.msra.mxu0 %v3694
        %3707 = vmatprep.subr.bf16.mxu0 0
        %3708 = vmatpush1.bf16.msra.mxu0 %v3695
        %3709 = vmatprep.subr.bf16.mxu0 0
        %3710 = vmatpush1.bf16.msra.mxu0 %v3696
        %3711 = vmatprep.subr.bf16.mxu0 0
        %3712 = vmatpush1.bf16.msra.mxu0 %v3697
        %3713 = vmatprep.subr.bf16.mxu0 0
        %3714 = vmatpush1.bf16.msra.mxu0 0
        %3715 = vmatprep.subr.bf16.mxu0 0
        %3716 = vmatpush1.bf16.msra.mxu0 0
        %3717 = vmatprep.subr.bf16.mxu0 0
        %3718 = vmatpush1.bf16.msra.mxu0 0
        %3719 = vmatprep.subr.bf16.mxu0 0
        %3720 = vmatpush1.bf16.msra.mxu0 0
        %3721 = vmatprep.subr.bf16.mxu0 0
        %3722 = vmatpush1.bf16.msra.mxu0 0
        %3723 = vmatprep.subr.bf16.mxu0 0
        %3724 = vmatpush1.bf16.msra.mxu0 0
        %3725 = vmatprep.subr.bf16.mxu0 0
        %3726 = vmatpush1.bf16.msra.mxu0 0
        %3727 = vmatprep.subr.bf16.mxu0 0
        %3728 = vmatpush1.bf16.msra.mxu0 0
        %3729 = vmatprep.subr.bf16.mxu0 0
        %3730 = vmatpush1.bf16.msra.mxu0 0
        %3731 = vmatprep.subr.bf16.mxu0 0
        %3732 = vmatpush1.bf16.msra.mxu0 0
        %3733 = vmatprep.subr.bf16.mxu0 0
        %3734 = vmatpush1.bf16.msra.mxu0 0
        %3735 = vmatprep.subr.bf16.mxu0 0
        %3736 = vmatpush1.bf16.msra.mxu0 0
        %3737 = vmatprep.mubr.bf16.mxu0 0
        %3738 = vmatmul.mubr.bf16.gmra.mrb[0].mxu0 %v3703
        %v3739 = vpop.f32.mrb[0].mxu0
        %v3740 = vadd.f32 0.0, %v3739
        %v3741 = vpop.f32.mrb[0].mxu0
        %v3742 = vpop.f32.mrb[0].mxu0
        %v3743 = vpop.f32.mrb[0].mxu0
        %3744 = vdwg.mxu0
        %v3745 = vadd.f32 %v3564, %v3740
        %v3746 = vld [vmem:[%s49] sm:$0x1]
        %v3748 = vlaneseq
        %v3749 = vshrl.u32 %v3748, 7
        %v3750 = vsub.s32 0, %v3749
        %v3751 = vrot.slane %v3746, %v3750
        %v3753 = vadd.f32 %v3745, %v3751
        %s3754 = scalar_lea.vmem %s27, 1
        %v3755 = vld [vmem:[%s3754] sm:$0x1]
        %s3756 = scalar_lea.vmem %s29, 1
        %v3757 = vld [vmem:[%s3756] sm:$0x1]
        %v3758 = vsel %vm2925, %v3753, 0.0
        %3759 = vadd.xlane.f32.xlu0 %v3758
        %v3760 = vpop.xlane.xlu0 %3759
        %v3761 = vmul.f32 %v3760, %v2929
        %v3762 = vsub.f32 %v3753, %v3761
        %v3763 = vmul.f32 %v3762, %v3762
        %v3764 = vsel %vm2925, %v3763, 0.0
        %3765 = vadd.xlane.f32.xlu0 %v3764
        %v3766 = vpop.xlane.xlu0 %3765
        %v3767 = vmul.f32 %v3766, %v2936
        %v3768 = vrsqrt.pop %v3767
        %v3769 = vmul.f32 %v3767, %v3768
        %vm3770 = vcmp.eq.f32.partialorder %v3767, inf
        %v3771 = vsel %vm3770, %v3767, %v3769
        %vm3772 = vcmp.eq.f32.partialorder %v3767, 0.0
        %v3773 = vand.u32 %v3767, 2147483648
        %v3774 = vsel %vm3772, %v3773, %v3771
        %v3776 = vlaneseq
        %v3777 = vshrl.u32 %v3776, 7
        %v3778 = vsub.s32 0, %v3777
        %v3779 = vrot.slane %v3755, %v3778
        %v3781 = vmul.f32 %v3779, %v3762
        %v3782 = vadd.f32 %v3774, 1e-06
        %v3783 = vrcp.pop %v3782
        %v3784 = vmul.f32 %v3781, %v3783
        %v3786 = vlaneseq
        %v3787 = vshrl.u32 %v3786, 7
        %v3788 = vsub.s32 0, %v3787
        %v3789 = vrot.slane %v3757, %v3788
        %v3791 = vadd.f32 %v3784, %v3789
        %s3792 = scalar_lea.vmem %s31, 16
        %v3793 = vld [vmem:[%s3792] sm:$0xf]
        %v3794 = vld [vmem:[%s3792 + $0x4] sm:$0xf]
        %v3795 = vld [vmem:[%s3792 + $0x8] sm:$0xf]
        %v3796 = vld [vmem:[%s3792 + $0xc] sm:$0xf]
        %v3797 = vpack.c.bf16 %v3791, %v3791
        %s3798 = scalar_lea.vmem %s33, 1
        %v3799 = vld [vmem:[%s3798] sm:$0x1]
        %v3801 = vlaneseq
        %v3802 = vshrl.u32 %v3801, 7
        %v3803 = vsub.s32 0, %v3802
        %v3804 = vrot.slane %v3799, %v3803
        %v3810 = vunpack.c.l.b16 %v3793
        %v3811 = vunpack.c.l.b16 %v3794
        %v3812 = vunpack.c.l.b16 %v3795
        %v3813 = vunpack.c.l.b16 %v3796
        %v3814 = vpack.c.b16 %v3811, %v3810
        %v3815 = vpack.c.b16 %v3813, %v3812
        %v3819 = vsel %vm2986, %v3797, 0
        %3821 = vmatprep.subr.bf16.mxu0 0
        %3822 = vmatpush1.bf16.msra.mxu0 %v3814
        %3823 = vmatprep.subr.bf16.mxu0 0
        %3824 = vmatpush1.bf16.msra.mxu0 %v3815
        %3825 = vmatprep.subr.bf16.mxu0 0
        %3826 = vmatpush1.bf16.msra.mxu0 0
        %3827 = vmatprep.subr.bf16.mxu0 0
        %3828 = vmatpush1.bf16.msra.mxu0 0
        %3829 = vmatprep.subr.bf16.mxu0 0
        %3830 = vmatpush1.bf16.msra.mxu0 0
        %3831 = vmatprep.subr.bf16.mxu0 0
        %3832 = vmatpush1.bf16.msra.mxu0 0
        %3833 = vmatprep.subr.bf16.mxu0 0
        %3834 = vmatpush1.bf16.msra.mxu0 0
        %3835 = vmatprep.subr.bf16.mxu0 0
        %3836 = vmatpush1.bf16.msra.mxu0 0
        %3837 = vmatprep.subr.bf16.mxu0 0
        %3838 = vmatpush1.bf16.msra.mxu0 0
        %3839 = vmatprep.subr.bf16.mxu0 0
        %3840 = vmatpush1.bf16.msra.mxu0 0
        %3841 = vmatprep.subr.bf16.mxu0 0
        %3842 = vmatpush1.bf16.msra.mxu0 0
        %3843 = vmatprep.subr.bf16.mxu0 0
        %3844 = vmatpush1.bf16.msra.mxu0 0
        %3845 = vmatprep.subr.bf16.mxu0 0
        %3846 = vmatpush1.bf16.msra.mxu0 0
        %3847 = vmatprep.subr.bf16.mxu0 0
        %3848 = vmatpush1.bf16.msra.mxu0 0
        %3849 = vmatprep.subr.bf16.mxu0 0
        %3850 = vmatpush1.bf16.msra.mxu0 0
        %3851 = vmatprep.subr.bf16.mxu0 0
        %3852 = vmatpush1.bf16.msra.mxu0 0
        %3853 = vmatprep.mubr.bf16.mxu0 0
        %3854 = vmatmul.mubr.bf16.gmra.mrb[0].mxu0 %v3819
        %v3855 = vpop.f32.mrb[0].mxu0
        %v3856 = vadd.f32 %v3804, %v3855
        %v3857 = vpop.f32.mrb[0].mxu0
        %v3858 = vpop.f32.mrb[0].mxu0
        %v3859 = vpop.f32.mrb[0].mxu0
        %3860 = vdwg.mxu0
        %v3861 = vpack.c.bf16 %v3856, %v3856
        %3863 = vrot.lane.b32.xlu0 %v3861, 96
        %v3864 = vpop.permute.xlu0 %3863
        %v3866 = vsel %vm2849, %v3861, 0
        %v3869 = vsel %vm2849, %v3864, 0
        %3871 = vmatprep.subr.bf16.mxu0 0
        %3872 = vmatpush1.bf16.xpose.msra.mxu0 %v3869
        %3873 = vmatprep.subr.bf16.mxu0 0
        %3874 = vmatpush1.bf16.xpose.msra.mxu0 0
        %3875 = vmatprep.subr.bf16.mxu0 0
        %3876 = vmatpush1.bf16.xpose.msra.mxu0 0
        %3877 = vmatprep.subr.bf16.mxu0 0
        %3878 = vmatpush1.bf16.xpose.msra.mxu0 0
        %3879 = vmatprep.subr.bf16.mxu0 0
        %3880 = vmatpush1.bf16.xpose.msra.mxu0 0
        %3881 = vmatprep.subr.bf16.mxu0 0
        %3882 = vmatpush1.bf16.xpose.msra.mxu0 0
        %3883 = vmatprep.subr.bf16.mxu0 0
        %3884 = vmatpush1.bf16.xpose.msra.mxu0 0
        %3885 = vmatprep.subr.bf16.mxu0 0
        %3886 = vmatpush1.bf16.xpose.msra.mxu0 0
        %3887 = vmatprep.subr.bf16.mxu0 0
        %3888 = vmatpush1.bf16.xpose.msra.mxu0 0
        %3889 = vmatprep.subr.bf16.mxu0 0
        %3890 = vmatpush1.bf16.xpose.msra.mxu0 0
        %3891 = vmatprep.subr.bf16.mxu0 0
        %3892 = vmatpush1.bf16.xpose.msra.mxu0 0
        %3893 = vmatprep.subr.bf16.mxu0 0
        %3894 = vmatpush1.bf16.xpose.msra.mxu0 0
        %3895 = vmatprep.subr.bf16.mxu0 0
        %3896 = vmatpush1.bf16.xpose.msra.mxu0 0
        %3897 = vmatprep.subr.bf16.mxu0 0
        %3898 = vmatpush1.bf16.xpose.msra.mxu0 0
        %3899 = vmatprep.subr.bf16.mxu0 0
        %3900 = vmatpush1.bf16.xpose.msra.mxu0 0
        %3901 = vmatprep.subr.bf16.mxu0 0
        %3902 = vmatpush1.bf16.xpose.msra.mxu0 0
        %3903 = vmatprep.mubr.bf16.mxu0 0
        %3904 = vmatmul.mubr.bf16.gmra.mrb[0].mxu0 %v3866
        %v3905 = vpop.f32.mrb[0].mxu0
        %v3906 = vadd.f32 0.0, %v3905
        %v3907 = vpop.f32.mrb[0].mxu0
        %v3908 = vpop.f32.mrb[0].mxu0
        %v3909 = vpop.f32.mrb[0].mxu0
        %3910 = vdwg.mxu0
        %v3911 = vmul.f32 %v3906, 0.35355338
        %v3912 = vsel %vm3081, %v3911, -inf
        %3913 = vmax.xlane.f32.xlu0 %v3912
        %v3914 = vpop.xlane.xlu0 %3913
        %v3915 = vsub.f32 %v3911, %v3914
        %v3916 = vmul.f32 %v3915, 1.442695
        %v3917 = vpow.pop %v3916
        %v3918 = vsel %vm3081, %v3917, 0.0
        %3919 = vadd.xlane.f32.xlu0 %v3918
        %v3920 = vpop.xlane.xlu0 %3919
        %v3921 = vrcp.pop %v3920
        %v3922 = vmul.f32 %v3917, %v3921
        %v3923 = vpack.c.bf16 %v3922, %v3922
        %3924 = vrot.lane.b32.xlu0 %v3861, 64
        %v3925 = vpop.permute.xlu0 %3924
        %v3927 = vsel %vm3096, %v3923, 0
        %v3930 = vand.u32 %v3925, %v3103
        %3932 = vmatprep.subr.bf16.mxu0 0
        %3933 = vmatpush1.bf16.msra.mxu0 %v3930
        %3934 = vmatprep.subr.bf16.mxu0 0
        %3935 = vmatpush1.bf16.msra.mxu0 0
        %3936 = vmatprep.subr.bf16.mxu0 0
        %3937 = vmatpush1.bf16.msra.mxu0 0
        %3938 = vmatprep.subr.bf16.mxu0 0
        %3939 = vmatpush1.bf16.msra.mxu0 0
        %3940 = vmatprep.subr.bf16.mxu0 0
        %3941 = vmatpush1.bf16.msra.mxu0 0
        %3942 = vmatprep.subr.bf16.mxu0 0
        %3943 = vmatpush1.bf16.msra.mxu0 0
        %3944 = vmatprep.subr.bf16.mxu0 0
        %3945 = vmatpush1.bf16.msra.mxu0 0
        %3946 = vmatprep.subr.bf16.mxu0 0
        %3947 = vmatpush1.bf16.msra.mxu0 0
        %3948 = vmatprep.subr.bf16.mxu0 0
        %3949 = vmatpush1.bf16.msra.mxu0 0
        %3950 = vmatprep.subr.bf16.mxu0 0
        %3951 = vmatpush1.bf16.msra.mxu0 0
        %3952 = vmatprep.subr.bf16.mxu0 0
        %3953 = vmatpush1.bf16.msra.mxu0 0
        %3954 = vmatprep.subr.bf16.mxu0 0
        %3955 = vmatpush1.bf16.msra.mxu0 0
        %3956 = vmatprep.subr.bf16.mxu0 0
        %3957 = vmatpush1.bf16.msra.mxu0 0
        %3958 = vmatprep.subr.bf16.mxu0 0
        %3959 = vmatpush1.bf16.msra.mxu0 0
        %3960 = vmatprep.subr.bf16.mxu0 0
        %3961 = vmatpush1.bf16.msra.mxu0 0
        %3962 = vmatprep.subr.bf16.mxu0 0
        %3963 = vmatpush1.bf16.msra.mxu0 0
        %3964 = vmatprep.mubr.bf16.mxu0 0
        %3965 = vmatmul.mubr.bf16.gmra.mrb[0].mxu0 %v3927
        %v3966 = vpop.f32.mrb[0].mxu0
        %v3967 = vadd.f32 0.0, %v3966
        %v3968 = vpop.f32.mrb[0].mxu0
        %v3969 = vpop.f32.mrb[0].mxu0
        %v3970 = vpop.f32.mrb[0].mxu0
        %3971 = vdwg.mxu0
        %3972 = vrot.lane.b32.xlu0 %v3861, 120
        %v3973 = vpop.permute.xlu0 %3972
        %3974 = vrot.lane.b32.xlu0 %v3861, 88
        %v3975 = vpop.permute.xlu0 %3974
        %v3977 = vsel %vm2849, %v3973, 0
        %v3980 = vsel %vm2849, %v3975, 0
        %3982 = vmatprep.subr.bf16.mxu0 0
        %3983 = vmatpush1.bf16.xpose.msra.mxu0 %v3980
        %3984 = vmatprep.subr.bf16.mxu0 0
        %3985 = vmatpush1.bf16.xpose.msra.mxu0 0
        %3986 = vmatprep.subr.bf16.mxu0 0
        %3987 = vmatpush1.bf16.xpose.msra.mxu0 0
        %3988 = vmatprep.subr.bf16.mxu0 0
        %3989 = vmatpush1.bf16.xpose.msra.mxu0 0
        %3990 = vmatprep.subr.bf16.mxu0 0
        %3991 = vmatpush1.bf16.xpose.msra.mxu0 0
        %3992 = vmatprep.subr.bf16.mxu0 0
        %3993 = vmatpush1.bf16.xpose.msra.mxu0 0
        %3994 = vmatprep.subr.bf16.mxu0 0
        %3995 = vmatpush1.bf16.xpose.msra.mxu0 0
        %3996 = vmatprep.subr.bf16.mxu0 0
        %3997 = vmatpush1.bf16.xpose.msra.mxu0 0
        %3998 = vmatprep.subr.bf16.mxu0 0
        %3999 = vmatpush1.bf16.xpose.msra.mxu0 0
        %4000 = vmatprep.subr.bf16.mxu0 0
        %4001 = vmatpush1.bf16.xpose.msra.mxu0 0
        %4002 = vmatprep.subr.bf16.mxu0 0
        %4003 = vmatpush1.bf16.xpose.msra.mxu0 0
        %4004 = vmatprep.subr.bf16.mxu0 0
        %4005 = vmatpush1.bf16.xpose.msra.mxu0 0
        %4006 = vmatprep.subr.bf16.mxu0 0
        %4007 = vmatpush1.bf16.xpose.msra.mxu0 0
        %4008 = vmatprep.subr.bf16.mxu0 0
        %4009 = vmatpush1.bf16.xpose.msra.mxu0 0
        %4010 = vmatprep.subr.bf16.mxu0 0
        %4011 = vmatpush1.bf16.xpose.msra.mxu0 0
        %4012 = vmatprep.subr.bf16.mxu0 0
        %4013 = vmatpush1.bf16.xpose.msra.mxu0 0
        %4014 = vmatprep.mubr.bf16.mxu0 0
        %4015 = vmatmul.mubr.bf16.gmra.mrb[0].mxu0 %v3977
        %v4016 = vpop.f32.mrb[0].mxu0
        %v4017 = vadd.f32 0.0, %v4016
        %v4018 = vpop.f32.mrb[0].mxu0
        %v4019 = vpop.f32.mrb[0].mxu0
        %v4020 = vpop.f32.mrb[0].mxu0
        %4021 = vdwg.mxu0
        %v4022 = vmul.f32 %v4017, 0.35355338
        %v4023 = vsel %vm3081, %v4022, -inf
        %4024 = vmax.xlane.f32.xlu0 %v4023
        %v4025 = vpop.xlane.xlu0 %4024
        %v4026 = vsub.f32 %v4022, %v4025
        %v4027 = vmul.f32 %v4026, 1.442695
        %v4028 = vpow.pop %v4027
        %v4029 = vsel %vm3081, %v4028, 0.0
        %4030 = vadd.xlane.f32.xlu0 %v4029
        %v4031 = vpop.xlane.xlu0 %4030
        %v4032 = vrcp.pop %v4031
        %v4033 = vmul.f32 %v4028, %v4032
        %v4034 = vpack.c.bf16 %v4033, %v4033
        %4035 = vrot.lane.b32.xlu0 %v3861, 56
        %v4036 = vpop.permute.xlu0 %4035
        %v4038 = vsel %vm3096, %v4034, 0
        %v4041 = vand.u32 %v4036, %v3103
        %4043 = vmatprep.subr.bf16.mxu0 0
        %4044 = vmatpush1.bf16.msra.mxu0 %v4041
        %4045 = vmatprep.subr.bf16.mxu0 0
        %4046 = vmatpush1.bf16.msra.mxu0 0
        %4047 = vmatprep.subr.bf16.mxu0 0
        %4048 = vmatpush1.bf16.msra.mxu0 0
        %4049 = vmatprep.subr.bf16.mxu0 0
        %4050 = vmatpush1.bf16.msra.mxu0 0
        %4051 = vmatprep.subr.bf16.mxu0 0
        %4052 = vmatpush1.bf16.msra.mxu0 0
        %4053 = vmatprep.subr.bf16.mxu0 0
        %4054 = vmatpush1.bf16.msra.mxu0 0
        %4055 = vmatprep.subr.bf16.mxu0 0
        %4056 = vmatpush1.bf16.msra.mxu0 0
        %4057 = vmatprep.subr.bf16.mxu0 0
        %4058 = vmatpush1.bf16.msra.mxu0 0
        %4059 = vmatprep.subr.bf16.mxu0 0
        %4060 = vmatpush1.bf16.msra.mxu0 0
        %4061 = vmatprep.subr.bf16.mxu0 0
        %4062 = vmatpush1.bf16.msra.mxu0 0
        %4063 = vmatprep.subr.bf16.mxu0 0
        %4064 = vmatpush1.bf16.msra.mxu0 0
        %4065 = vmatprep.subr.bf16.mxu0 0
        %4066 = vmatpush1.bf16.msra.mxu0 0
        %4067 = vmatprep.subr.bf16.mxu0 0
        %4068 = vmatpush1.bf16.msra.mxu0 0
        %4069 = vmatprep.subr.bf16.mxu0 0
        %4070 = vmatpush1.bf16.msra.mxu0 0
        %4071 = vmatprep.subr.bf16.mxu0 0
        %4072 = vmatpush1.bf16.msra.mxu0 0
        %4073 = vmatprep.subr.bf16.mxu0 0
        %4074 = vmatpush1.bf16.msra.mxu0 0
        %4075 = vmatprep.mubr.bf16.mxu0 0
        %4076 = vmatmul.mubr.bf16.gmra.mrb[0].mxu0 %v4038
        %v4077 = vpop.f32.mrb[0].mxu0
        %v4078 = vadd.f32 0.0, %v4077
        %v4079 = vpop.f32.mrb[0].mxu0
        %v4080 = vpop.f32.mrb[0].mxu0
        %v4081 = vpop.f32.mrb[0].mxu0
        %4082 = vdwg.mxu0
        %4083 = vrot.lane.b32.xlu0 %v3861, 112
        %v4084 = vpop.permute.xlu0 %4083
        %4085 = vrot.lane.b32.xlu0 %v3861, 80
        %v4086 = vpop.permute.xlu0 %4085
        %v4088 = vsel %vm2849, %v4084, 0
        %v4091 = vsel %vm2849, %v4086, 0
        %4093 = vmatprep.subr.bf16.mxu0 0
        %4094 = vmatpush1.bf16.xpose.msra.mxu0 %v4091
        %4095 = vmatprep.subr.bf16.mxu0 0
        %4096 = vmatpush1.bf16.xpose.msra.mxu0 0
        %4097 = vmatprep.subr.bf16.mxu0 0
        %4098 = vmatpush1.bf16.xpose.msra.mxu0 0
        %4099 = vmatprep.subr.bf16.mxu0 0
        %4100 = vmatpush1.bf16.xpose.msra.mxu0 0
        %4101 = vmatprep.subr.bf16.mxu0 0
        %4102 = vmatpush1.bf16.xpose.msra.mxu0 0
        %4103 = vmatprep.subr.bf16.mxu0 0
        %4104 = vmatpush1.bf16.xpose.msra.mxu0 0
        %4105 = vmatprep.subr.bf16.mxu0 0
        %4106 = vmatpush1.bf16.xpose.msra.mxu0 0
        %4107 = vmatprep.subr.bf16.mxu0 0
        %4108 = vmatpush1.bf16.xpose.msra.mxu0 0
        %4109 = vmatprep.subr.bf16.mxu0 0
        %4110 = vmatpush1.bf16.xpose.msra.mxu0 0
        %4111 = vmatprep.subr.bf16.mxu0 0
        %4112 = vmatpush1.bf16.xpose.msra.mxu0 0
        %4113 = vmatprep.subr.bf16.mxu0 0
        %4114 = vmatpush1.bf16.xpose.msra.mxu0 0
        %4115 = vmatprep.subr.bf16.mxu0 0
        %4116 = vmatpush1.bf16.xpose.msra.mxu0 0
        %4117 = vmatprep.subr.bf16.mxu0 0
        %4118 = vmatpush1.bf16.xpose.msra.mxu0 0
        %4119 = vmatprep.subr.bf16.mxu0 0
        %4120 = vmatpush1.bf16.xpose.msra.mxu0 0
        %4121 = vmatprep.subr.bf16.mxu0 0
        %4122 = vmatpush1.bf16.xpose.msra.mxu0 0
        %4123 = vmatprep.subr.bf16.mxu0 0
        %4124 = vmatpush1.bf16.xpose.msra.mxu0 0
        %4125 = vmatprep.mubr.bf16.mxu0 0
        %4126 = vmatmul.mubr.bf16.gmra.mrb[0].mxu0 %v4088
        %v4127 = vpop.f32.mrb[0].mxu0
        %v4128 = vadd.f32 0.0, %v4127
        %v4129 = vpop.f32.mrb[0].mxu0
        %v4130 = vpop.f32.mrb[0].mxu0
        %v4131 = vpop.f32.mrb[0].mxu0
        %4132 = vdwg.mxu0
        %v4133 = vmul.f32 %v4128, 0.35355338
        %v4134 = vsel %vm3081, %v4133, -inf
        %4135 = vmax.xlane.f32.xlu0 %v4134
        %v4136 = vpop.xlane.xlu0 %4135
        %v4137 = vsub.f32 %v4133, %v4136
        %v4138 = vmul.f32 %v4137, 1.442695
        %v4139 = vpow.pop %v4138
        %v4140 = vsel %vm3081, %v4139, 0.0
        %4141 = vadd.xlane.f32.xlu0 %v4140
        %v4142 = vpop.xlane.xlu0 %4141
        %v4143 = vrcp.pop %v4142
        %v4144 = vmul.f32 %v4139, %v4143
        %v4145 = vpack.c.bf16 %v4144, %v4144
        %4146 = vrot.lane.b32.xlu0 %v3861, 48
        %v4147 = vpop.permute.xlu0 %4146
        %v4149 = vsel %vm3096, %v4145, 0
        %v4152 = vand.u32 %v4147, %v3103
        %4154 = vmatprep.subr.bf16.mxu0 0
        %4155 = vmatpush1.bf16.msra.mxu0 %v4152
        %4156 = vmatprep.subr.bf16.mxu0 0
        %4157 = vmatpush1.bf16.msra.mxu0 0
        %4158 = vmatprep.subr.bf16.mxu0 0
        %4159 = vmatpush1.bf16.msra.mxu0 0
        %4160 = vmatprep.subr.bf16.mxu0 0
        %4161 = vmatpush1.bf16.msra.mxu0 0
        %4162 = vmatprep.subr.bf16.mxu0 0
        %4163 = vmatpush1.bf16.msra.mxu0 0
        %4164 = vmatprep.subr.bf16.mxu0 0
        %4165 = vmatpush1.bf16.msra.mxu0 0
        %4166 = vmatprep.subr.bf16.mxu0 0
        %4167 = vmatpush1.bf16.msra.mxu0 0
        %4168 = vmatprep.subr.bf16.mxu0 0
        %4169 = vmatpush1.bf16.msra.mxu0 0
        %4170 = vmatprep.subr.bf16.mxu0 0
        %4171 = vmatpush1.bf16.msra.mxu0 0
        %4172 = vmatprep.subr.bf16.mxu0 0
        %4173 = vmatpush1.bf16.msra.mxu0 0
        %4174 = vmatprep.subr.bf16.mxu0 0
        %4175 = vmatpush1.bf16.msra.mxu0 0
        %4176 = vmatprep.subr.bf16.mxu0 0
        %4177 = vmatpush1.bf16.msra.mxu0 0
        %4178 = vmatprep.subr.bf16.mxu0 0
        %4179 = vmatpush1.bf16.msra.mxu0 0
        %4180 = vmatprep.subr.bf16.mxu0 0
        %4181 = vmatpush1.bf16.msra.mxu0 0
        %4182 = vmatprep.subr.bf16.mxu0 0
        %4183 = vmatpush1.bf16.msra.mxu0 0
        %4184 = vmatprep.subr.bf16.mxu0 0
        %4185 = vmatpush1.bf16.msra.mxu0 0
        %4186 = vmatprep.mubr.bf16.mxu0 0
        %4187 = vmatmul.mubr.bf16.gmra.mrb[0].mxu0 %v4149
        %v4188 = vpop.f32.mrb[0].mxu0
        %v4189 = vadd.f32 0.0, %v4188
        %v4190 = vpop.f32.mrb[0].mxu0
        %v4191 = vpop.f32.mrb[0].mxu0
        %v4192 = vpop.f32.mrb[0].mxu0
        %4193 = vdwg.mxu0
        %4194 = vrot.lane.b32.xlu0 %v3861, 104
        %v4195 = vpop.permute.xlu0 %4194
        %4196 = vrot.lane.b32.xlu0 %v3861, 72
        %v4197 = vpop.permute.xlu0 %4196
        %v4199 = vsel %vm2849, %v4195, 0
        %v4202 = vsel %vm2849, %v4197, 0
        %4204 = vmatprep.subr.bf16.mxu0 0
        %4205 = vmatpush1.bf16.xpose.msra.mxu0 %v4202
        %4206 = vmatprep.subr.bf16.mxu0 0
        %4207 = vmatpush1.bf16.xpose.msra.mxu0 0
        %4208 = vmatprep.subr.bf16.mxu0 0
        %4209 = vmatpush1.bf16.xpose.msra.mxu0 0
        %4210 = vmatprep.subr.bf16.mxu0 0
        %4211 = vmatpush1.bf16.xpose.msra.mxu0 0
        %4212 = vmatprep.subr.bf16.mxu0 0
        %4213 = vmatpush1.bf16.xpose.msra.mxu0 0
        %4214 = vmatprep.subr.bf16.mxu0 0
        %4215 = vmatpush1.bf16.xpose.msra.mxu0 0
        %4216 = vmatprep.subr.bf16.mxu0 0
        %4217 = vmatpush1.bf16.xpose.msra.mxu0 0
        %4218 = vmatprep.subr.bf16.mxu0 0
        %4219 = vmatpush1.bf16.xpose.msra.mxu0 0
        %4220 = vmatprep.subr.bf16.mxu0 0
        %4221 = vmatpush1.bf16.xpose.msra.mxu0 0
        %4222 = vmatprep.subr.bf16.mxu0 0
        %4223 = vmatpush1.bf16.xpose.msra.mxu0 0
        %4224 = vmatprep.subr.bf16.mxu0 0
        %4225 = vmatpush1.bf16.xpose.msra.mxu0 0
        %4226 = vmatprep.subr.bf16.mxu0 0
        %4227 = vmatpush1.bf16.xpose.msra.mxu0 0
        %4228 = vmatprep.subr.bf16.mxu0 0
        %4229 = vmatpush1.bf16.xpose.msra.mxu0 0
        %4230 = vmatprep.subr.bf16.mxu0 0
        %4231 = vmatpush1.bf16.xpose.msra.mxu0 0
        %4232 = vmatprep.subr.bf16.mxu0 0
        %4233 = vmatpush1.bf16.xpose.msra.mxu0 0
        %4234 = vmatprep.subr.bf16.mxu0 0
        %4235 = vmatpush1.bf16.xpose.msra.mxu0 0
        %4236 = vmatprep.mubr.bf16.mxu0 0
        %4237 = vmatmul.mubr.bf16.gmra.mrb[0].mxu0 %v4199
        %v4238 = vpop.f32.mrb[0].mxu0
        %v4239 = vadd.f32 0.0, %v4238
        %v4240 = vpop.f32.mrb[0].mxu0
        %v4241 = vpop.f32.mrb[0].mxu0
        %v4242 = vpop.f32.mrb[0].mxu0
        %4243 = vdwg.mxu0
        %v4244 = vmul.f32 %v4239, 0.35355338
        %v4245 = vsel %vm3081, %v4244, -inf
        %4246 = vmax.xlane.f32.xlu0 %v4245
        %v4247 = vpop.xlane.xlu0 %4246
        %v4248 = vsub.f32 %v4244, %v4247
        %v4249 = vmul.f32 %v4248, 1.442695
        %v4250 = vpow.pop %v4249
        %v4251 = vsel %vm3081, %v4250, 0.0
        %4252 = vadd.xlane.f32.xlu0 %v4251
        %v4253 = vpop.xlane.xlu0 %4252
        %v4254 = vrcp.pop %v4253
        %v4255 = vmul.f32 %v4250, %v4254
        %v4256 = vpack.c.bf16 %v4255, %v4255
        %4257 = vrot.lane.b32.xlu0 %v3861, 40
        %v4258 = vpop.permute.xlu0 %4257
        %v4260 = vsel %vm3096, %v4256, 0
        %v4263 = vand.u32 %v4258, %v3103
        %4265 = vmatprep.subr.bf16.mxu0 0
        %4266 = vmatpush1.bf16.msra.mxu0 %v4263
        %4267 = vmatprep.subr.bf16.mxu0 0
        %4268 = vmatpush1.bf16.msra.mxu0 0
        %4269 = vmatprep.subr.bf16.mxu0 0
        %4270 = vmatpush1.bf16.msra.mxu0 0
        %4271 = vmatprep.subr.bf16.mxu0 0
        %4272 = vmatpush1.bf16.msra.mxu0 0
        %4273 = vmatprep.subr.bf16.mxu0 0
        %4274 = vmatpush1.bf16.msra.mxu0 0
        %4275 = vmatprep.subr.bf16.mxu0 0
        %4276 = vmatpush1.bf16.msra.mxu0 0
        %4277 = vmatprep.subr.bf16.mxu0 0
        %4278 = vmatpush1.bf16.msra.mxu0 0
        %4279 = vmatprep.subr.bf16.mxu0 0
        %4280 = vmatpush1.bf16.msra.mxu0 0
        %4281 = vmatprep.subr.bf16.mxu0 0
        %4282 = vmatpush1.bf16.msra.mxu0 0
        %4283 = vmatprep.subr.bf16.mxu0 0
        %4284 = vmatpush1.bf16.msra.mxu0 0
        %4285 = vmatprep.subr.bf16.mxu0 0
        %4286 = vmatpush1.bf16.msra.mxu0 0
        %4287 = vmatprep.subr.bf16.mxu0 0
        %4288 = vmatpush1.bf16.msra.mxu0 0
        %4289 = vmatprep.subr.bf16.mxu0 0
        %4290 = vmatpush1.bf16.msra.mxu0 0
        %4291 = vmatprep.subr.bf16.mxu0 0
        %4292 = vmatpush1.bf16.msra.mxu0 0
        %4293 = vmatprep.subr.bf16.mxu0 0
        %4294 = vmatpush1.bf16.msra.mxu0 0
        %4295 = vmatprep.subr.bf16.mxu0 0
        %4296 = vmatpush1.bf16.msra.mxu0 0
        %4297 = vmatprep.mubr.bf16.mxu0 0
        %4298 = vmatmul.mubr.bf16.gmra.mrb[0].mxu0 %v4260
        %v4299 = vpop.f32.mrb[0].mxu0
        %v4300 = vadd.f32 0.0, %v4299
        %v4301 = vpop.f32.mrb[0].mxu0
        %v4302 = vpop.f32.mrb[0].mxu0
        %v4303 = vpop.f32.mrb[0].mxu0
        %4304 = vdwg.mxu0
        %4306 = vrot.lane.b32.xlu0 %v4078, 8
        %v4307 = vpop.permute.xlu0 %4306
        %4310 = vrot.lane.b32.xlu0 %v4189, 16
        %v4311 = vpop.permute.xlu0 %4310
        %4314 = vrot.lane.b32.xlu0 %v4300, 24
        %v4315 = vpop.permute.xlu0 %4314
        %v4317 = vsel %vm2849, %v3967, %v4307
        %v4318 = vsel %vm1520, %v4317, %v4311
        %v4319 = vsel %vm3494, %v4318, %v4315
        %s4320 = scalar_lea.vmem %s35, 16
        %v4321 = vld [vmem:[%s4320] sm:$0xf]
        %v4322 = vld [vmem:[%s4320 + $0x4] sm:$0xf]
        %v4323 = vld [vmem:[%s4320 + $0x8] sm:$0xf]
        %v4324 = vld [vmem:[%s4320 + $0xc] sm:$0xf]
        %v4325 = vpack.c.bf16 %v4319, %v4319
        %v4330 = vunpack.c.l.b16 %v4321
        %v4331 = vunpack.c.l.b16 %v4322
        %v4332 = vunpack.c.l.b16 %v4323
        %v4333 = vunpack.c.l.b16 %v4324
        %v4334 = vpack.c.b16 %v4331, %v4330
        %v4335 = vpack.c.b16 %v4333, %v4332
        %v4339 = vsel %vm2986, %v4325, 0
        %4341 = vmatprep.subr.bf16.mxu0 0
        %4342 = vmatpush1.bf16.msra.mxu0 %v4334
        %4343 = vmatprep.subr.bf16.mxu0 0
        %4344 = vmatpush1.bf16.msra.mxu0 %v4335
        %4345 = vmatprep.subr.bf16.mxu0 0
        %4346 = vmatpush1.bf16.msra.mxu0 0
        %4347 = vmatprep.subr.bf16.mxu0 0
        %4348 = vmatpush1.bf16.msra.mxu0 0
        %4349 = vmatprep.subr.bf16.mxu0 0
        %4350 = vmatpush1.bf16.msra.mxu0 0
        %4351 = vmatprep.subr.bf16.mxu0 0
        %4352 = vmatpush1.bf16.msra.mxu0 0
        %4353 = vmatprep.subr.bf16.mxu0 0
        %4354 = vmatpush1.bf16.msra.mxu0 0
        %4355 = vmatprep.subr.bf16.mxu0 0
        %4356 = vmatpush1.bf16.msra.mxu0 0
        %4357 = vmatprep.subr.bf16.mxu0 0
        %4358 = vmatpush1.bf16.msra.mxu0 0
        %4359 = vmatprep.subr.bf16.mxu0 0
        %4360 = vmatpush1.bf16.msra.mxu0 0
        %4361 = vmatprep.subr.bf16.mxu0 0
        %4362 = vmatpush1.bf16.msra.mxu0 0
        %4363 = vmatprep.subr.bf16.mxu0 0
        %4364 = vmatpush1.bf16.msra.mxu0 0
        %4365 = vmatprep.subr.bf16.mxu0 0
        %4366 = vmatpush1.bf16.msra.mxu0 0
        %4367 = vmatprep.subr.bf16.mxu0 0
        %4368 = vmatpush1.bf16.msra.mxu0 0
        %4369 = vmatprep.subr.bf16.mxu0 0
        %4370 = vmatpush1.bf16.msra.mxu0 0
        %4371 = vmatprep.subr.bf16.mxu0 0
        %4372 = vmatpush1.bf16.msra.mxu0 0
        %4373 = vmatprep.mubr.bf16.mxu0 0
        %4374 = vmatmul.mubr.bf16.gmra.mrb[0].mxu0 %v4339
        %v4375 = vpop.f32.mrb[0].mxu0
        %v4376 = vadd.f32 0.0, %v4375
        %v4377 = vpop.f32.mrb[0].mxu0
        %v4378 = vpop.f32.mrb[0].mxu0
        %v4379 = vpop.f32.mrb[0].mxu0
        %4380 = vdwg.mxu0
        %v4381 = vadd.f32 %v3753, %v4376
        %s4382 = scalar_lea.vmem %s37, 1
        %v4383 = vld [vmem:[%s4382] sm:$0x1]
        %v4385 = vlaneseq
        %v4386 = vshrl.u32 %v4385, 7
        %v4387 = vsub.s32 0, %v4386
        %v4388 = vrot.slane %v4383, %v4387
        %v4390 = vadd.f32 %v4381, %v4388
        %s4391 = scalar_lea.vmem %s39, 1
        %v4392 = vld [vmem:[%s4391] sm:$0x1]
        %s4393 = scalar_lea.vmem %s41, 1
        %v4394 = vld [vmem:[%s4393] sm:$0x1]
        %v4395 = vsel %vm2925, %v4390, 0.0
        %4396 = vadd.xlane.f32.xlu0 %v4395
        %v4397 = vpop.xlane.xlu0 %4396
        %v4398 = vmul.f32 %v4397, %v2929
        %v4399 = vsub.f32 %v4390, %v4398
        %v4400 = vmul.f32 %v4399, %v4399
        %v4401 = vsel %vm2925, %v4400, 0.0
        %4402 = vadd.xlane.f32.xlu0 %v4401
        %v4403 = vpop.xlane.xlu0 %4402
        %v4404 = vmul.f32 %v4403, %v2936
        %v4405 = vrsqrt.pop %v4404
        %v4406 = vmul.f32 %v4404, %v4405
        %vm4407 = vcmp.eq.f32.partialorder %v4404, inf
        %v4408 = vsel %vm4407, %v4404, %v4406
        %vm4409 = vcmp.eq.f32.partialorder %v4404, 0.0
        %v4410 = vand.u32 %v4404, 2147483648
        %v4411 = vsel %vm4409, %v4410, %v4408
        %v4413 = vlaneseq
        %v4414 = vshrl.u32 %v4413, 7
        %v4415 = vsub.s32 0, %v4414
        %v4416 = vrot.slane %v4392, %v4415
        %v4418 = vmul.f32 %v4416, %v4399
        %v4419 = vadd.f32 %v4411, 1e-06
        %v4420 = vrcp.pop %v4419
        %v4421 = vmul.f32 %v4418, %v4420
        %v4423 = vlaneseq
        %v4424 = vshrl.u32 %v4423, 7
        %v4425 = vsub.s32 0, %v4424
        %v4426 = vrot.slane %v4394, %v4425
        %v4428 = vadd.f32 %v4421, %v4426
        %s4429 = scalar_lea.vmem %s43, 16
        %v4430 = vld [vmem:[%s4429] sm:$0xf]
        %v4431 = vld [vmem:[%s4429 + $0x4] sm:$0xf]
        %v4432 = vld [vmem:[%s4429 + $0x8] sm:$0xf]
        %v4433 = vld [vmem:[%s4429 + $0xc] sm:$0xf]
        %v4434 = vpack.c.bf16 %v4428, %v4428
        %s4435 = scalar_lea.vmem %s45, 1
        %v4436 = vld [vmem:[%s4435] sm:$0x1]
        %v4438 = vlaneseq
        %v4439 = vshrl.u32 %v4438, 7
        %v4440 = vsub.s32 0, %v4439
        %v4441 = vrot.slane %v4436, %v4440
        %v4447 = vunpack.c.l.b16 %v4430
        %v4448 = vunpack.c.l.b16 %v4431
        %v4449 = vunpack.c.l.b16 %v4432
        %v4450 = vunpack.c.l.b16 %v4433
        %v4451 = vpack.c.b16 %v4448, %v4447
        %v4452 = vpack.c.b16 %v4450, %v4449
        %v4456 = vsel %vm2986, %v4434, 0
        %4458 = vmatprep.subr.bf16.mxu0 0
        %4459 = vmatpush1.bf16.msra.mxu0 %v4451
        %4460 = vmatprep.subr.bf16.mxu0 0
        %4461 = vmatpush1.bf16.msra.mxu0 %v4452
        %4462 = vmatprep.subr.bf16.mxu0 0
        %4463 = vmatpush1.bf16.msra.mxu0 0
        %4464 = vmatprep.subr.bf16.mxu0 0
        %4465 = vmatpush1.bf16.msra.mxu0 0
        %4466 = vmatprep.subr.bf16.mxu0 0
        %4467 = vmatpush1.bf16.msra.mxu0 0
        %4468 = vmatprep.subr.bf16.mxu0 0
        %4469 = vmatpush1.bf16.msra.mxu0 0
        %4470 = vmatprep.subr.bf16.mxu0 0
        %4471 = vmatpush1.bf16.msra.mxu0 0
        %4472 = vmatprep.subr.bf16.mxu0 0
        %4473 = vmatpush1.bf16.msra.mxu0 0
        %4474 = vmatprep.subr.bf16.mxu0 0
        %4475 = vmatpush1.bf16.msra.mxu0 0
        %4476 = vmatprep.subr.bf16.mxu0 0
        %4477 = vmatpush1.bf16.msra.mxu0 0
        %4478 = vmatprep.subr.bf16.mxu0 0
        %4479 = vmatpush1.bf16.msra.mxu0 0
        %4480 = vmatprep.subr.bf16.mxu0 0
        %4481 = vmatpush1.bf16.msra.mxu0 0
        %4482 = vmatprep.subr.bf16.mxu0 0
        %4483 = vmatpush1.bf16.msra.mxu0 0
        %4484 = vmatprep.subr.bf16.mxu0 0
        %4485 = vmatpush1.bf16.msra.mxu0 0
        %4486 = vmatprep.subr.bf16.mxu0 0
        %4487 = vmatpush1.bf16.msra.mxu0 0
        %4488 = vmatprep.subr.bf16.mxu0 0
        %4489 = vmatpush1.bf16.msra.mxu0 0
        %4490 = vmatprep.mubr.bf16.mxu0 0
        %4491 = vmatmul.mubr.bf16.gmra.mrb[0].mxu0 %v4456
        %v4492 = vpop.f32.mrb[0].mxu0
        %v4493 = vadd.f32 %v4441, %v4492
        %v4494 = vpop.f32.mrb[0].mxu0
        %v4495 = vpop.f32.mrb[0].mxu0
        %v4496 = vpop.f32.mrb[0].mxu0
        %4497 = vdwg.mxu0
        %v4498 = vmax.f32 %v4493, 0.0
        %s4499 = scalar_lea.vmem %s47, 32
        %v4500 = vld [vmem:[%s4499] sm:$0xf]
        %v4501 = vld [vmem:[%s4499 + $0x4] sm:$0xf]
        %v4502 = vld [vmem:[%s4499 + $0x8] sm:$0xf]
        %v4503 = vld [vmem:[%s4499 + $0xc] sm:$0xf]
        %v4504 = vld [vmem:[%s4499 + $0x10] sm:$0xf]
        %v4505 = vld [vmem:[%s4499 + $0x14] sm:$0xf]
        %v4506 = vld [vmem:[%s4499 + $0x18] sm:$0xf]
        %v4507 = vld [vmem:[%s4499 + $0x1c] sm:$0xf]
        %v4508 = vpack.c.bf16 %v4498, %v4498
        %v4517 = vunpack.c.l.b16 %v4500
        %v4518 = vunpack.c.l.b16 %v4501
        %v4519 = vunpack.c.l.b16 %v4502
        %v4520 = vunpack.c.l.b16 %v4503
        %v4521 = vunpack.c.l.b16 %v4504
        %v4522 = vunpack.c.l.b16 %v4505
        %v4523 = vunpack.c.l.b16 %v4506
        %v4524 = vunpack.c.l.b16 %v4507
        %v4525 = vpack.c.b16 %v4518, %v4517
        %v4526 = vpack.c.b16 %v4520, %v4519
        %v4527 = vpack.c.b16 %v4522, %v4521
        %v4528 = vpack.c.b16 %v4524, %v4523
        %v4534 = vsel %vm1607, %v4508, 0
        %4536 = vmatprep.subr.bf16.mxu0 0
        %4537 = vmatpush1.bf16.msra.mxu0 %v4525
        %4538 = vmatprep.subr.bf16.mxu0 0
        %4539 = vmatpush1.bf16.msra.mxu0 %v4526
        %4540 = vmatprep.subr.bf16.mxu0 0
        %4541 = vmatpush1.bf16.msra.mxu0 %v4527
        %4542 = vmatprep.subr.bf16.mxu0 0
        %4543 = vmatpush1.bf16.msra.mxu0 %v4528
        %4544 = vmatprep.subr.bf16.mxu0 0
        %4545 = vmatpush1.bf16.msra.mxu0 0
        %4546 = vmatprep.subr.bf16.mxu0 0
        %4547 = vmatpush1.bf16.msra.mxu0 0
        %4548 = vmatprep.subr.bf16.mxu0 0
        %4549 = vmatpush1.bf16.msra.mxu0 0
        %4550 = vmatprep.subr.bf16.mxu0 0
        %4551 = vmatpush1.bf16.msra.mxu0 0
        %4552 = vmatprep.subr.bf16.mxu0 0
        %4553 = vmatpush1.bf16.msra.mxu0 0
        %4554 = vmatprep.subr.bf16.mxu0 0
        %4555 = vmatpush1.bf16.msra.mxu0 0
        %4556 = vmatprep.subr.bf16.mxu0 0
        %4557 = vmatpush1.bf16.msra.mxu0 0
        %4558 = vmatprep.subr.bf16.mxu0 0
        %4559 = vmatpush1.bf16.msra.mxu0 0
        %4560 = vmatprep.subr.bf16.mxu0 0
        %4561 = vmatpush1.bf16.msra.mxu0 0
        %4562 = vmatprep.subr.bf16.mxu0 0
        %4563 = vmatpush1.bf16.msra.mxu0 0
        %4564 = vmatprep.subr.bf16.mxu0 0
        %4565 = vmatpush1.bf16.msra.mxu0 0
        %4566 = vmatprep.subr.bf16.mxu0 0
        %4567 = vmatpush1.bf16.msra.mxu0 0
        %4568 = vmatprep.mubr.bf16.mxu0 0
        %4569 = vmatmul.mubr.bf16.gmra.mrb[0].mxu0 %v4534
        %v4570 = vpop.f32.mrb[0].mxu0
        %v4571 = vadd.f32 0.0, %v4570
        %v4572 = vpop.f32.mrb[0].mxu0
        %v4573 = vpop.f32.mrb[0].mxu0
        %v4574 = vpop.f32.mrb[0].mxu0
        %4575 = vdwg.mxu0
        %v4576 = vadd.f32 %v4390, %v4571
        %s4577 = scalar_lea.vmem %s49, 1
        %v4578 = vld [vmem:[%s4577] sm:$0x1]
        %v4580 = vlaneseq
        %v4581 = vshrl.u32 %v4580, 7
        %v4582 = vsub.s32 0, %v4581
        %v4583 = vrot.slane %v4578, %v4582
        %v4585 = vadd.f32 %v4576, %v4583
        %v4586 = vld [vmem:[%s51] sm:$0x1]
        %v4587 = vld [vmem:[%s53] sm:$0x1]
        %v4588 = vsel %vm2925, %v4585, 0.0
        %4589 = vadd.xlane.f32.xlu0 %v4588
        %v4590 = vpop.xlane.xlu0 %4589
        %v4591 = vmul.f32 %v4590, %v2929
        %v4592 = vsub.f32 %v4585, %v4591
        %v4593 = vmul.f32 %v4592, %v4592
        %v4594 = vsel %vm2925, %v4593, 0.0
        %4595 = vadd.xlane.f32.xlu0 %v4594
        %v4596 = vpop.xlane.xlu0 %4595
        %v4597 = vmul.f32 %v4596, %v2936
        %v4598 = vrsqrt.pop %v4597
        %v4599 = vmul.f32 %v4597, %v4598
        %vm4600 = vcmp.eq.f32.partialorder %v4597, inf
        %v4601 = vsel %vm4600, %v4597, %v4599
        %vm4602 = vcmp.eq.f32.partialorder %v4597, 0.0
        %v4603 = vand.u32 %v4597, 2147483648
        %v4604 = vsel %vm4602, %v4603, %v4601
        %v4606 = vlaneseq
        %v4607 = vshrl.u32 %v4606, 7
        %v4608 = vsub.s32 0, %v4607
        %v4609 = vrot.slane %v4586, %v4608
        %v4611 = vmul.f32 %v4609, %v4592
        %v4612 = vadd.f32 %v4604, 1e-06
        %v4613 = vrcp.pop %v4612
        %v4614 = vmul.f32 %v4611, %v4613
        %v4616 = vlaneseq
        %v4617 = vshrl.u32 %v4616, 7
        %v4618 = vsub.s32 0, %v4617
        %v4619 = vrot.slane %v4587, %v4618
        %v4621 = vadd.f32 %v4614, %v4619
        %v4622 = vld [vmem:[%s55] sm:$0xf]
        %v4623 = vld [vmem:[%s55 + $0x4] sm:$0xf]
        %v4624 = vld [vmem:[%s55 + $0x8] sm:$0xf]
        %v4625 = vld [vmem:[%s55 + $0xc] sm:$0xf]
        %v4626 = vpack.c.bf16 %v4621, %v4621
        %v4627 = vld [vmem:[%s57] sm:$0x1f]
        %v4632 = vunpack.c.l.b16 %v4622
        %v4633 = vunpack.c.l.b16 %v4623
        %v4634 = vunpack.c.l.b16 %v4624
        %v4635 = vunpack.c.l.b16 %v4625
        %v4636 = vpack.c.b16 %v4633, %v4632
        %v4637 = vpack.c.b16 %v4635, %v4634
        %v4641 = vsel %vm2986, %v4626, 0
        %4643 = vmatprep.subr.bf16.mxu0 0
        %4644 = vmatpush1.bf16.msra.mxu0 %v4636
        %4645 = vmatprep.subr.bf16.mxu0 0
        %4646 = vmatpush1.bf16.msra.mxu0 %v4637
        %4647 = vmatprep.subr.bf16.mxu0 0
        %4648 = vmatpush1.bf16.msra.mxu0 0
        %4649 = vmatprep.subr.bf16.mxu0 0
        %4650 = vmatpush1.bf16.msra.mxu0 0
        %4651 = vmatprep.subr.bf16.mxu0 0
        %4652 = vmatpush1.bf16.msra.mxu0 0
        %4653 = vmatprep.subr.bf16.mxu0 0
        %4654 = vmatpush1.bf16.msra.mxu0 0
        %4655 = vmatprep.subr.bf16.mxu0 0
        %4656 = vmatpush1.bf16.msra.mxu0 0
        %4657 = vmatprep.subr.bf16.mxu0 0
        %4658 = vmatpush1.bf16.msra.mxu0 0
        %4659 = vmatprep.subr.bf16.mxu0 0
        %4660 = vmatpush1.bf16.msra.mxu0 0
        %4661 = vmatprep.subr.bf16.mxu0 0
        %4662 = vmatpush1.bf16.msra.mxu0 0
        %4663 = vmatprep.subr.bf16.mxu0 0
        %4664 = vmatpush1.bf16.msra.mxu0 0
        %4665 = vmatprep.subr.bf16.mxu0 0
        %4666 = vmatpush1.bf16.msra.mxu0 0
        %4667 = vmatprep.subr.bf16.mxu0 0
        %4668 = vmatpush1.bf16.msra.mxu0 0
        %4669 = vmatprep.subr.bf16.mxu0 0
        %4670 = vmatpush1.bf16.msra.mxu0 0
        %4671 = vmatprep.subr.bf16.mxu0 0
        %4672 = vmatpush1.bf16.msra.mxu0 0
        %4673 = vmatprep.subr.bf16.mxu0 0
        %4674 = vmatpush1.bf16.msra.mxu0 0
        %4675 = vmatprep.mubr.bf16.mxu0 0
        %4676 = vmatmul.mubr.bf16.gmra.mrb[0].mxu0 %v4641
        %v4677 = vpop.f32.mrb[0].mxu0
        %v4678 = vadd.f32 %v4627, %v4677
        %v4679 = vpop.f32.mrb[0].mxu0
        %v4680 = vpop.f32.mrb[0].mxu0
        %v4681 = vpop.f32.mrb[0].mxu0
        %4682 = vdwg.mxu0
        %v4683 = vld [vmem:[%s61] sm:$0x1]
        %v4684 = vld [vmem:[%s59] sm:$0x7]
        %v4686 = vlaneseq
        %v4687 = vshrl.u32 %v4686, 7
        %v4688 = vsub.s32 0, %v4687
        %v4689 = vrot.slane %v4683, %v4688
        %v4691 = vadd.f32 %v4689, %v4684
        %v4692 = vld [vmem:[%s63] sm:$0xff]
        %v4693 = vld [vmem:[%s65] sm:$0xff]
        %vm4694 = vcmask 23552
        %v4696 = vsel %vm4694, %v4693, 0
        %v4699 = vsel %vm3101, %v4691, 0
        %4701 = vmatprep.subr.mxu0 0.0
        %4702 = vmatpush1.msra.mxu0 %v4699
        %4703 = vmatprep.subr.mxu0 0.0
        %4704 = vmatpush1.msra.mxu0 0.0
        %4705 = vmatprep.subr.mxu0 0.0
        %4706 = vmatpush1.msra.mxu0 0.0
        %4707 = vmatprep.subr.mxu0 0.0
        %4708 = vmatpush1.msra.mxu0 0.0
        %4709 = vmatprep.subr.mxu0 0.0
        %4710 = vmatpush1.msra.mxu0 0.0
        %4711 = vmatprep.subr.mxu0 0.0
        %4712 = vmatpush1.msra.mxu0 0.0
        %4713 = vmatprep.subr.mxu0 0.0
        %4714 = vmatpush1.msra.mxu0 0.0
        %4715 = vmatprep.subr.mxu0 0.0
        %4716 = vmatpush1.msra.mxu0 0.0
        %4717 = vmatprep.subr.mxu0 0.0
        %4718 = vmatpush1.msra.mxu0 0.0
        %4719 = vmatprep.subr.mxu0 0.0
        %4720 = vmatpush1.msra.mxu0 0.0
        %4721 = vmatprep.subr.mxu0 0.0
        %4722 = vmatpush1.msra.mxu0 0.0
        %4723 = vmatprep.subr.mxu0 0.0
        %4724 = vmatpush1.msra.mxu0 0.0
        %4725 = vmatprep.subr.mxu0 0.0
        %4726 = vmatpush1.msra.mxu0 0.0
        %4727 = vmatprep.subr.mxu0 0.0
        %4728 = vmatpush1.msra.mxu0 0.0
        %4729 = vmatprep.subr.mxu0 0.0
        %4730 = vmatpush1.msra.mxu0 0.0
        %4731 = vmatprep.subr.mxu0 0.0
        %4732 = vmatpush1.msra.mxu0 0.0
        %4733 = vmatprep.subr.mxu0 0.0
        %4734 = vmatpush1.msra.mxu0 0.0
        %4735 = vmatprep.subr.mxu0 0.0
        %4736 = vmatpush1.msra.mxu0 0.0
        %4737 = vmatprep.subr.mxu0 0.0
        %4738 = vmatpush1.msra.mxu0 0.0
        %4739 = vmatprep.subr.mxu0 0.0
        %4740 = vmatpush1.msra.mxu0 0.0
        %4741 = vmatprep.subr.mxu0 0.0
        %4742 = vmatpush1.msra.mxu0 0.0
        %4743 = vmatprep.subr.mxu0 0.0
        %4744 = vmatpush1.msra.mxu0 0.0
        %4745 = vmatprep.subr.mxu0 0.0
        %4746 = vmatpush1.msra.mxu0 0.0
        %4747 = vmatprep.subr.mxu0 0.0
        %4748 = vmatpush1.msra.mxu0 0.0
        %4749 = vmatprep.subr.mxu0 0.0
        %4750 = vmatpush1.msra.mxu0 0.0
        %4751 = vmatprep.subr.mxu0 0.0
        %4752 = vmatpush1.msra.mxu0 0.0
        %4753 = vmatprep.subr.mxu0 0.0
        %4754 = vmatpush1.msra.mxu0 0.0
        %4755 = vmatprep.subr.mxu0 0.0
        %4756 = vmatpush1.msra.mxu0 0.0
        %4757 = vmatprep.subr.mxu0 0.0
        %4758 = vmatpush1.msra.mxu0 0.0
        %4759 = vmatprep.subr.mxu0 0.0
        %4760 = vmatpush1.msra.mxu0 0.0
        %4761 = vmatprep.subr.mxu0 0.0
        %4762 = vmatpush1.msra.mxu0 0.0
        %4763 = vmatprep.subr.mxu0 0.0
        %4764 = vmatpush1.msra.mxu0 0.0
        %4765 = vmatprep.mubr.f32.mxu0 0.0
        %4766 = vmatmul.mubr.f32.gmra.mrb[0].mxu0 %v4696
        %v4767 = vpop.f32.mrb[0].mxu0
        %v4768 = vadd.f32 0.0, %v4767
        %v4769 = vpop.f32.mrb[0].mxu0
        %4770 = vdwg.mxu0
        %v4772 = vsel %vm3096, %v4692, 0
        %vm4774 = vcmask 1044480
        %v4776 = vsel %vm4774, %v4678, 0
        %4778 = vmatprep.subr.mxu0 0.0
        %4779 = vmatpush1.msra.mxu0 %v4776
        %4780 = vmatprep.subr.mxu0 0.0
        %4781 = vmatpush1.msra.mxu0 0.0
        %4782 = vmatprep.subr.mxu0 0.0
        %4783 = vmatpush1.msra.mxu0 0.0
        %4784 = vmatprep.subr.mxu0 0.0
        %4785 = vmatpush1.msra.mxu0 0.0
        %4786 = vmatprep.subr.mxu0 0.0
        %4787 = vmatpush1.msra.mxu0 0.0
        %4788 = vmatprep.subr.mxu0 0.0
        %4789 = vmatpush1.msra.mxu0 0.0
        %4790 = vmatprep.subr.mxu0 0.0
        %4791 = vmatpush1.msra.mxu0 0.0
        %4792 = vmatprep.subr.mxu0 0.0
        %4793 = vmatpush1.msra.mxu0 0.0
        %4794 = vmatprep.subr.mxu0 0.0
        %4795 = vmatpush1.msra.mxu0 0.0
        %4796 = vmatprep.subr.mxu0 0.0
        %4797 = vmatpush1.msra.mxu0 0.0
        %4798 = vmatprep.subr.mxu0 0.0
        %4799 = vmatpush1.msra.mxu0 0.0
        %4800 = vmatprep.subr.mxu0 0.0
        %4801 = vmatpush1.msra.mxu0 0.0
        %4802 = vmatprep.subr.mxu0 0.0
        %4803 = vmatpush1.msra.mxu0 0.0
        %4804 = vmatprep.subr.mxu0 0.0
        %4805 = vmatpush1.msra.mxu0 0.0
        %4806 = vmatprep.subr.mxu0 0.0
        %4807 = vmatpush1.msra.mxu0 0.0
        %4808 = vmatprep.subr.mxu0 0.0
        %4809 = vmatpush1.msra.mxu0 0.0
        %4810 = vmatprep.subr.mxu0 0.0
        %4811 = vmatpush1.msra.mxu0 0.0
        %4812 = vmatprep.subr.mxu0 0.0
        %4813 = vmatpush1.msra.mxu0 0.0
        %4814 = vmatprep.subr.mxu0 0.0
        %4815 = vmatpush1.msra.mxu0 0.0
        %4816 = vmatprep.subr.mxu0 0.0
        %4817 = vmatpush1.msra.mxu0 0.0
        %4818 = vmatprep.subr.mxu0 0.0
        %4819 = vmatpush1.msra.mxu0 0.0
        %4820 = vmatprep.subr.mxu0 0.0
        %4821 = vmatpush1.msra.mxu0 0.0
        %4822 = vmatprep.subr.mxu0 0.0
        %4823 = vmatpush1.msra.mxu0 0.0
        %4824 = vmatprep.subr.mxu0 0.0
        %4825 = vmatpush1.msra.mxu0 0.0
        %4826 = vmatprep.subr.mxu0 0.0
        %4827 = vmatpush1.msra.mxu0 0.0
        %4828 = vmatprep.subr.mxu0 0.0
        %4829 = vmatpush1.msra.mxu0 0.0
        %4830 = vmatprep.subr.mxu0 0.0
        %4831 = vmatpush1.msra.mxu0 0.0
        %4832 = vmatprep.subr.mxu0 0.0
        %4833 = vmatpush1.msra.mxu0 0.0
        %4834 = vmatprep.subr.mxu0 0.0
        %4835 = vmatpush1.msra.mxu0 0.0
        %4836 = vmatprep.subr.mxu0 0.0
        %4837 = vmatpush1.msra.mxu0 0.0
        %4838 = vmatprep.subr.mxu0 0.0
        %4839 = vmatpush1.msra.mxu0 0.0
        %4840 = vmatprep.subr.mxu0 0.0
        %4841 = vmatpush1.msra.mxu0 0.0
        %4842 = vmatprep.mubr.f32.mxu0 0.0
        %4843 = vmatmul.mubr.f32.gmra.mrb[0].mxu0 %v4772
        %v4844 = vpop.f32.mrb[0].mxu0
        %v4845 = vadd.f32 %v4768, %v4844
        %v4846 = vpop.f32.mrb[0].mxu0
        %4847 = vdwg.mxu0
        %v4848 = vld [vmem:[%s67] sm:$0x1]
        %v4849 = vld [vmem:[%s69] sm:$0x1]
        %v4850 = vsel %vm1520, %v4845, 0.0
        %4851 = vadd.xlane.f32.xlu0 %v4850
        %v4852 = vpop.xlane.xlu0 %4851
        %v4853 = vrcp.pop 16.0
        %v4854 = vmul.f32 %v4852, %v4853
        %v4855 = vsub.f32 %v4845, %v4854
        %v4856 = vmul.f32 %v4855, %v4855
        %v4857 = vsel %vm1520, %v4856, 0.0
        %4858 = vadd.xlane.f32.xlu0 %v4857
        %v4859 = vpop.xlane.xlu0 %4858
        %v4860 = vrcp.pop 15.0
        %v4861 = vmul.f32 %v4859, %v4860
        %v4862 = vrsqrt.pop %v4861
        %v4863 = vmul.f32 %v4861, %v4862
        %vm4864 = vcmp.eq.f32.partialorder %v4861, inf
        %v4865 = vsel %vm4864, %v4861, %v4863
        %vm4866 = vcmp.eq.f32.partialorder %v4861, 0.0
        %v4867 = vand.u32 %v4861, 2147483648
        %v4868 = vsel %vm4866, %v4867, %v4865
        %v4870 = vlaneseq
        %v4871 = vshrl.u32 %v4870, 7
        %v4872 = vsub.s32 0, %v4871
        %v4873 = vrot.slane %v4848, %v4872
        %v4875 = vmul.f32 %v4873, %v4855
        %v4876 = vadd.f32 %v4868, 1e-06
        %v4877 = vrcp.pop %v4876
        %v4878 = vmul.f32 %v4875, %v4877
        %v4880 = vlaneseq
        %v4881 = vshrl.u32 %v4880, 7
        %v4882 = vsub.s32 0, %v4881
        %v4883 = vrot.slane %v4849, %v4882
        %v4885 = vadd.f32 %v4878, %v4883
        %v4886 = vld [vmem:[%s71] sm:$0xf]
        %v4887 = vld [vmem:[%s71 + $0x4] sm:$0xf]
        %v4888 = vpack.c.bf16 %v4885, %v4885
        %v4889 = vld [vmem:[#allocation2] sm:$0x1]
        %v4891 = vlaneseq
        %v4892 = vshrl.u32 %v4891, 7
        %v4893 = vsub.s32 0, %v4892
        %v4894 = vrot.slane %v4889, %v4893
        %v4898 = vunpack.c.l.b16 %v4886
        %v4899 = vunpack.c.l.b16 %v4887
        %v4900 = vpack.c.b16 %v4899, %v4898
        %v4903 = vsel %vm1520, %v4888, 0
        %4905 = vmatprep.subr.bf16.mxu0 0
        %4906 = vmatpush1.bf16.msra.mxu0 %v4900
        %4907 = vmatprep.subr.bf16.mxu0 0
        %4908 = vmatpush1.bf16.msra.mxu0 0
        %4909 = vmatprep.subr.bf16.mxu0 0
        %4910 = vmatpush1.bf16.msra.mxu0 0
        %4911 = vmatprep.subr.bf16.mxu0 0
        %4912 = vmatpush1.bf16.msra.mxu0 0
        %4913 = vmatprep.subr.bf16.mxu0 0
        %4914 = vmatpush1.bf16.msra.mxu0 0
        %4915 = vmatprep.subr.bf16.mxu0 0
        %4916 = vmatpush1.bf16.msra.mxu0 0
        %4917 = vmatprep.subr.bf16.mxu0 0
        %4918 = vmatpush1.bf16.msra.mxu0 0
        %4919 = vmatprep.subr.bf16.mxu0 0
        %4920 = vmatpush1.bf16.msra.mxu0 0
        %4921 = vmatprep.subr.bf16.mxu0 0
        %4922 = vmatpush1.bf16.msra.mxu0 0
        %4923 = vmatprep.subr.bf16.mxu0 0
        %4924 = vmatpush1.bf16.msra.mxu0 0
        %4925 = vmatprep.subr.bf16.mxu0 0
        %4926 = vmatpush1.bf16.msra.mxu0 0
        %4927 = vmatprep.subr.bf16.mxu0 0
        %4928 = vmatpush1.bf16.msra.mxu0 0
        %4929 = vmatprep.subr.bf16.mxu0 0
        %4930 = vmatpush1.bf16.msra.mxu0 0
        %4931 = vmatprep.subr.bf16.mxu0 0
        %4932 = vmatpush1.bf16.msra.mxu0 0
        %4933 = vmatprep.subr.bf16.mxu0 0
        %4934 = vmatpush1.bf16.msra.mxu0 0
        %4935 = vmatprep.subr.bf16.mxu0 0
        %4936 = vmatpush1.bf16.msra.mxu0 0
        %4937 = vmatprep.mubr.bf16.mxu0 0
        %4938 = vmatmul.mubr.bf16.gmra.mrb[0].mxu0 %v4903
        %v4939 = vpop.f32.mrb[0].mxu0
        %v4940 = vadd.f32 %v4894, %v4939
        %v4941 = vpop.f32.mrb[0].mxu0
        %v4942 = vpop.f32.mrb[0].mxu0
        %v4943 = vpop.f32.mrb[0].mxu0
        %4944 = vdwg.mxu0
        %v4945 = vpack.c.bf16 %v4940, %v4940
        %4947 = vrot.lane.b32.xlu0 %v4945, 112
        %v4948 = vpop.permute.xlu0 %4947
        %v4950 = vsel %vm2849, %v4945, 0
        %v4953 = vsel %vm2849, %v4948, 0
        %4955 = vmatprep.subr.bf16.mxu0 0
        %4956 = vmatpush1.bf16.xpose.msra.mxu0 %v4953
        %4957 = vmatprep.subr.bf16.mxu0 0
        %4958 = vmatpush1.bf16.xpose.msra.mxu0 0
        %4959 = vmatprep.subr.bf16.mxu0 0
        %4960 = vmatpush1.bf16.xpose.msra.mxu0 0
        %4961 = vmatprep.subr.bf16.mxu0 0
        %4962 = vmatpush1.bf16.xpose.msra.mxu0 0
        %4963 = vmatprep.subr.bf16.mxu0 0
        %4964 = vmatpush1.bf16.xpose.msra.mxu0 0
        %4965 = vmatprep.subr.bf16.mxu0 0
        %4966 = vmatpush1.bf16.xpose.msra.mxu0 0
        %4967 = vmatprep.subr.bf16.mxu0 0
        %4968 = vmatpush1.bf16.xpose.msra.mxu0 0
        %4969 = vmatprep.subr.bf16.mxu0 0
        %4970 = vmatpush1.bf16.xpose.msra.mxu0 0
        %4971 = vmatprep.subr.bf16.mxu0 0
        %4972 = vmatpush1.bf16.xpose.msra.mxu0 0
        %4973 = vmatprep.subr.bf16.mxu0 0
        %4974 = vmatpush1.bf16.xpose.msra.mxu0 0
        %4975 = vmatprep.subr.bf16.mxu0 0
        %4976 = vmatpush1.bf16.xpose.msra.mxu0 0
        %4977 = vmatprep.subr.bf16.mxu0 0
        %4978 = vmatpush1.bf16.xpose.msra.mxu0 0
        %4979 = vmatprep.subr.bf16.mxu0 0
        %4980 = vmatpush1.bf16.xpose.msra.mxu0 0
        %4981 = vmatprep.subr.bf16.mxu0 0
        %4982 = vmatpush1.bf16.xpose.msra.mxu0 0
        %4983 = vmatprep.subr.bf16.mxu0 0
        %4984 = vmatpush1.bf16.xpose.msra.mxu0 0
        %4985 = vmatprep.subr.bf16.mxu0 0
        %4986 = vmatpush1.bf16.xpose.msra.mxu0 0
        %4987 = vmatprep.mubr.bf16.mxu0 0
        %4988 = vmatmul.mubr.bf16.gmra.mrb[0].mxu0 %v4950
        %v4989 = vpop.f32.mrb[0].mxu0
        %v4990 = vadd.f32 0.0, %v4989
        %v4991 = vpop.f32.mrb[0].mxu0
        %v4992 = vpop.f32.mrb[0].mxu0
        %v4993 = vpop.f32.mrb[0].mxu0
        %4994 = vdwg.mxu0
        %v4995 = vmul.f32 %v4990, 0.35355338
        %v4996 = vsel %vm2849, %v4995, -inf
        %4997 = vmax.xlane.f32.xlu0 %v4996
        %v4998 = vpop.xlane.xlu0 %4997
        %v4999 = vsub.f32 %v4995, %v4998
        %v5000 = vmul.f32 %v4999, 1.442695
        %v5001 = vpow.pop %v5000
        %v5002 = vsel %vm2849, %v5001, 0.0
        %5003 = vadd.xlane.f32.xlu0 %v5002
        %v5004 = vpop.xlane.xlu0 %5003
        %v5005 = vrcp.pop %v5004
        %v5006 = vmul.f32 %v5001, %v5005
        %v5007 = vpack.c.bf16 %v5006, %v5006
        %5008 = vrot.lane.b32.xlu0 %v4945, 96
        %v5009 = vpop.permute.xlu0 %5008
        %v5011 = vsel %vm2849, %v5007, 0
        %vm5013 = vcmask 1043456
        %v5015 = vsel %vm5013, %v5009, 0
        %5017 = vmatprep.subr.bf16.mxu0 0
        %5018 = vmatpush1.bf16.msra.mxu0 %v5015
        %5019 = vmatprep.subr.bf16.mxu0 0
        %5020 = vmatpush1.bf16.msra.mxu0 0
        %5021 = vmatprep.subr.bf16.mxu0 0
        %5022 = vmatpush1.bf16.msra.mxu0 0
        %5023 = vmatprep.subr.bf16.mxu0 0
        %5024 = vmatpush1.bf16.msra.mxu0 0
        %5025 = vmatprep.subr.bf16.mxu0 0
        %5026 = vmatpush1.bf16.msra.mxu0 0
        %5027 = vmatprep.subr.bf16.mxu0 0
        %5028 = vmatpush1.bf16.msra.mxu0 0
        %5029 = vmatprep.subr.bf16.mxu0 0
        %5030 = vmatpush1.bf16.msra.mxu0 0
        %5031 = vmatprep.subr.bf16.mxu0 0
        %5032 = vmatpush1.bf16.msra.mxu0 0
        %5033 = vmatprep.subr.bf16.mxu0 0
        %5034 = vmatpush1.bf16.msra.mxu0 0
        %5035 = vmatprep.subr.bf16.mxu0 0
        %5036 = vmatpush1.bf16.msra.mxu0 0
        %5037 = vmatprep.subr.bf16.mxu0 0
        %5038 = vmatpush1.bf16.msra.mxu0 0
        %5039 = vmatprep.subr.bf16.mxu0 0
        %5040 = vmatpush1.bf16.msra.mxu0 0
        %5041 = vmatprep.subr.bf16.mxu0 0
        %5042 = vmatpush1.bf16.msra.mxu0 0
        %5043 = vmatprep.subr.bf16.mxu0 0
        %5044 = vmatpush1.bf16.msra.mxu0 0
        %5045 = vmatprep.subr.bf16.mxu0 0
        %5046 = vmatpush1.bf16.msra.mxu0 0
        %5047 = vmatprep.subr.bf16.mxu0 0
        %5048 = vmatpush1.bf16.msra.mxu0 0
        %5049 = vmatprep.mubr.bf16.mxu0 0
        %5050 = vmatmul.mubr.bf16.gmra.mrb[0].mxu0 %v5011
        %v5051 = vpop.f32.mrb[0].mxu0
        %v5052 = vadd.f32 0.0, %v5051
        %v5053 = vpop.f32.mrb[0].mxu0
        %v5054 = vpop.f32.mrb[0].mxu0
        %v5055 = vpop.f32.mrb[0].mxu0
        %5056 = vdwg.mxu0
        %5057 = vrot.lane.b32.xlu0 %v4945, 120
        %v5058 = vpop.permute.xlu0 %5057
        %5059 = vrot.lane.b32.xlu0 %v4945, 104
        %v5060 = vpop.permute.xlu0 %5059
        %v5062 = vsel %vm2849, %v5058, 0
        %v5065 = vsel %vm2849, %v5060, 0
        %5067 = vmatprep.subr.bf16.mxu0 0
        %5068 = vmatpush1.bf16.xpose.msra.mxu0 %v5065
        %5069 = vmatprep.subr.bf16.mxu0 0
        %5070 = vmatpush1.bf16.xpose.msra.mxu0 0
        %5071 = vmatprep.subr.bf16.mxu0 0
        %5072 = vmatpush1.bf16.xpose.msra.mxu0 0
        %5073 = vmatprep.subr.bf16.mxu0 0
        %5074 = vmatpush1.bf16.xpose.msra.mxu0 0
        %5075 = vmatprep.subr.bf16.mxu0 0
        %5076 = vmatpush1.bf16.xpose.msra.mxu0 0
        %5077 = vmatprep.subr.bf16.mxu0 0
        %5078 = vmatpush1.bf16.xpose.msra.mxu0 0
        %5079 = vmatprep.subr.bf16.mxu0 0
        %5080 = vmatpush1.bf16.xpose.msra.mxu0 0
        %5081 = vmatprep.subr.bf16.mxu0 0
        %5082 = vmatpush1.bf16.xpose.msra.mxu0 0
        %5083 = vmatprep.subr.bf16.mxu0 0
        %5084 = vmatpush1.bf16.xpose.msra.mxu0 0
        %5085 = vmatprep.subr.bf16.mxu0 0
        %5086 = vmatpush1.bf16.xpose.msra.mxu0 0
        %5087 = vmatprep.subr.bf16.mxu0 0
        %5088 = vmatpush1.bf16.xpose.msra.mxu0 0
        %5089 = vmatprep.subr.bf16.mxu0 0
        %5090 = vmatpush1.bf16.xpose.msra.mxu0 0
        %5091 = vmatprep.subr.bf16.mxu0 0
        %5092 = vmatpush1.bf16.xpose.msra.mxu0 0
        %5093 = vmatprep.subr.bf16.mxu0 0
        %5094 = vmatpush1.bf16.xpose.msra.mxu0 0
        %5095 = vmatprep.subr.bf16.mxu0 0
        %5096 = vmatpush1.bf16.xpose.msra.mxu0 0
        %5097 = vmatprep.subr.bf16.mxu0 0
        %5098 = vmatpush1.bf16.xpose.msra.mxu0 0
        %5099 = vmatprep.mubr.bf16.mxu0 0
        %5100 = vmatmul.mubr.bf16.gmra.mrb[0].mxu0 %v5062
        %v5101 = vpop.f32.mrb[0].mxu0
        %v5102 = vadd.f32 0.0, %v5101
        %v5103 = vpop.f32.mrb[0].mxu0
        %v5104 = vpop.f32.mrb[0].mxu0
        %v5105 = vpop.f32.mrb[0].mxu0
        %5106 = vdwg.mxu0
        %v5107 = vmul.f32 %v5102, 0.35355338
        %v5108 = vsel %vm2849, %v5107, -inf
        %5109 = vmax.xlane.f32.xlu0 %v5108
        %v5110 = vpop.xlane.xlu0 %5109
        %v5111 = vsub.f32 %v5107, %v5110
        %v5112 = vmul.f32 %v5111, 1.442695
        %v5113 = vpow.pop %v5112
        %v5114 = vsel %vm2849, %v5113, 0.0
        %5115 = vadd.xlane.f32.xlu0 %v5114
        %v5116 = vpop.xlane.xlu0 %5115
        %v5117 = vrcp.pop %v5116
        %v5118 = vmul.f32 %v5113, %v5117
        %v5119 = vpack.c.bf16 %v5118, %v5118
        %5120 = vrot.lane.b32.xlu0 %v4945, 88
        %v5121 = vpop.permute.xlu0 %5120
        %v5123 = vsel %vm2849, %v5119, 0
        %v5126 = vsel %vm5013, %v5121, 0
        %5128 = vmatprep.subr.bf16.mxu0 0
        %5129 = vmatpush1.bf16.msra.mxu0 %v5126
        %5130 = vmatprep.subr.bf16.mxu0 0
        %5131 = vmatpush1.bf16.msra.mxu0 0
        %5132 = vmatprep.subr.bf16.mxu0 0
        %5133 = vmatpush1.bf16.msra.mxu0 0
        %5134 = vmatprep.subr.bf16.mxu0 0
        %5135 = vmatpush1.bf16.msra.mxu0 0
        %5136 = vmatprep.subr.bf16.mxu0 0
        %5137 = vmatpush1.bf16.msra.mxu0 0
        %5138 = vmatprep.subr.bf16.mxu0 0
        %5139 = vmatpush1.bf16.msra.mxu0 0
        %5140 = vmatprep.subr.bf16.mxu0 0
        %5141 = vmatpush1.bf16.msra.mxu0 0
        %5142 = vmatprep.subr.bf16.mxu0 0
        %5143 = vmatpush1.bf16.msra.mxu0 0
        %5144 = vmatprep.subr.bf16.mxu0 0
        %5145 = vmatpush1.bf16.msra.mxu0 0
        %5146 = vmatprep.subr.bf16.mxu0 0
        %5147 = vmatpush1.bf16.msra.mxu0 0
        %5148 = vmatprep.subr.bf16.mxu0 0
        %5149 = vmatpush1.bf16.msra.mxu0 0
        %5150 = vmatprep.subr.bf16.mxu0 0
        %5151 = vmatpush1.bf16.msra.mxu0 0
        %5152 = vmatprep.subr.bf16.mxu0 0
        %5153 = vmatpush1.bf16.msra.mxu0 0
        %5154 = vmatprep.subr.bf16.mxu0 0
        %5155 = vmatpush1.bf16.msra.mxu0 0
        %5156 = vmatprep.subr.bf16.mxu0 0
        %5157 = vmatpush1.bf16.msra.mxu0 0
        %5158 = vmatprep.subr.bf16.mxu0 0
        %5159 = vmatpush1.bf16.msra.mxu0 0
        %5160 = vmatprep.mubr.bf16.mxu0 0
        %5161 = vmatmul.mubr.bf16.gmra.mrb[0].mxu0 %v5123
        %v5162 = vpop.f32.mrb[0].mxu0
        %v5163 = vadd.f32 0.0, %v5162
        %v5164 = vpop.f32.mrb[0].mxu0
        %v5165 = vpop.f32.mrb[0].mxu0
        %v5166 = vpop.f32.mrb[0].mxu0
        %5167 = vdwg.mxu0
        %5169 = vrot.lane.b32.xlu0 %v5163, 8
        %v5170 = vpop.permute.xlu0 %5169
        %v5172 = vsel %vm2849, %v5052, %v5170
        %v5173 = vld [vmem:[%s75] sm:$0xf]
        %v5174 = vld [vmem:[%s75 + $0x4] sm:$0xf]
        %v5175 = vpack.c.bf16 %v5172, %v5172
        %v5178 = vunpack.c.l.b16 %v5173
        %v5179 = vunpack.c.l.b16 %v5174
        %v5180 = vpack.c.b16 %v5179, %v5178
        %v5183 = vsel %vm1520, %v5175, 0
        %5185 = vmatprep.subr.bf16.mxu0 0
        %5186 = vmatpush1.bf16.msra.mxu0 %v5180
        %5187 = vmatprep.subr.bf16.mxu0 0
        %5188 = vmatpush1.bf16.msra.mxu0 0
        %5189 = vmatprep.subr.bf16.mxu0 0
        %5190 = vmatpush1.bf16.msra.mxu0 0
        %5191 = vmatprep.subr.bf16.mxu0 0
        %5192 = vmatpush1.bf16.msra.mxu0 0
        %5193 = vmatprep.subr.bf16.mxu0 0
        %5194 = vmatpush1.bf16.msra.mxu0 0
        %5195 = vmatprep.subr.bf16.mxu0 0
        %5196 = vmatpush1.bf16.msra.mxu0 0
        %5197 = vmatprep.subr.bf16.mxu0 0
        %5198 = vmatpush1.bf16.msra.mxu0 0
        %5199 = vmatprep.subr.bf16.mxu0 0
        %5200 = vmatpush1.bf16.msra.mxu0 0
        %5201 = vmatprep.subr.bf16.mxu0 0
        %5202 = vmatpush1.bf16.msra.mxu0 0
        %5203 = vmatprep.subr.bf16.mxu0 0
        %5204 = vmatpush1.bf16.msra.mxu0 0
        %5205 = vmatprep.subr.bf16.mxu0 0
        %5206 = vmatpush1.bf16.msra.mxu0 0
        %5207 = vmatprep.subr.bf16.mxu0 0
        %5208 = vmatpush1.bf16.msra.mxu0 0
        %5209 = vmatprep.subr.bf16.mxu0 0
        %5210 = vmatpush1.bf16.msra.mxu0 0
        %5211 = vmatprep.subr.bf16.mxu0 0
        %5212 = vmatpush1.bf16.msra.mxu0 0
        %5213 = vmatprep.subr.bf16.mxu0 0
        %5214 = vmatpush1.bf16.msra.mxu0 0
        %5215 = vmatprep.subr.bf16.mxu0 0
        %5216 = vmatpush1.bf16.msra.mxu0 0
        %5217 = vmatprep.mubr.bf16.mxu0 0
        %5218 = vmatmul.mubr.bf16.gmra.mrb[0].mxu0 %v5183
        %v5219 = vpop.f32.mrb[0].mxu0
        %v5220 = vadd.f32 0.0, %v5219
        %v5221 = vpop.f32.mrb[0].mxu0
        %v5222 = vpop.f32.mrb[0].mxu0
        %v5223 = vpop.f32.mrb[0].mxu0
        %5224 = vdwg.mxu0
        %v5225 = vadd.f32 %v4845, %v5220
        %v5226 = vld [vmem:[#allocation4] sm:$0x1]
        %v5228 = vlaneseq
        %v5229 = vshrl.u32 %v5228, 7
        %v5230 = vsub.s32 0, %v5229
        %v5231 = vrot.slane %v5226, %v5230
        %v5233 = vadd.f32 %v5225, %v5231
        %v5234 = vld [vmem:[#allocation6] sm:$0x1]
        %v5235 = vld [vmem:[#allocation7] sm:$0x1]
        %v5236 = vsel %vm1520, %v5233, 0.0
        %5237 = vadd.xlane.f32.xlu0 %v5236
        %v5238 = vpop.xlane.xlu0 %5237
        %v5239 = vmul.f32 %v5238, %v4853
        %v5240 = vsub.f32 %v5233, %v5239
        %v5241 = vmul.f32 %v5240, %v5240
        %v5242 = vsel %vm1520, %v5241, 0.0
        %5243 = vadd.xlane.f32.xlu0 %v5242
        %v5244 = vpop.xlane.xlu0 %5243
        %v5245 = vmul.f32 %v5244, %v4860
        %v5246 = vrsqrt.pop %v5245
        %v5247 = vmul.f32 %v5245, %v5246
        %vm5248 = vcmp.eq.f32.partialorder %v5245, inf
        %v5249 = vsel %vm5248, %v5245, %v5247
        %vm5250 = vcmp.eq.f32.partialorder %v5245, 0.0
        %v5251 = vand.u32 %v5245, 2147483648
        %v5252 = vsel %vm5250, %v5251, %v5249
        %v5254 = vlaneseq
        %v5255 = vshrl.u32 %v5254, 7
        %v5256 = vsub.s32 0, %v5255
        %v5257 = vrot.slane %v5234, %v5256
        %v5259 = vmul.f32 %v5257, %v5240
        %v5260 = vadd.f32 %v5252, 1e-06
        %v5261 = vrcp.pop %v5260
        %v5262 = vmul.f32 %v5259, %v5261
        %v5264 = vlaneseq
        %v5265 = vshrl.u32 %v5264, 7
        %v5266 = vsub.s32 0, %v5265
        %v5267 = vrot.slane %v5235, %v5266
        %v5269 = vadd.f32 %v5262, %v5267
        %v5270 = vld [vmem:[%s83] sm:$0xf]
        %v5271 = vld [vmem:[%s83 + $0x4] sm:$0xf]
        %v5272 = vpack.c.bf16 %v5269, %v5269
        %v5273 = vld [vmem:[#allocation9] sm:$0x1]
        %v5275 = vlaneseq
        %v5276 = vshrl.u32 %v5275, 7
        %v5277 = vsub.s32 0, %v5276
        %v5278 = vrot.slane %v5273, %v5277
        %v5282 = vunpack.c.l.b16 %v5270
        %v5283 = vunpack.c.l.b16 %v5271
        %v5284 = vpack.c.b16 %v5283, %v5282
        %v5287 = vsel %vm1520, %v5272, 0
        %5289 = vmatprep.subr.bf16.mxu0 0
        %5290 = vmatpush1.bf16.msra.mxu0 %v5284
        %5291 = vmatprep.subr.bf16.mxu0 0
        %5292 = vmatpush1.bf16.msra.mxu0 0
        %5293 = vmatprep.subr.bf16.mxu0 0
        %5294 = vmatpush1.bf16.msra.mxu0 0
        %5295 = vmatprep.subr.bf16.mxu0 0
        %5296 = vmatpush1.bf16.msra.mxu0 0
        %5297 = vmatprep.subr.bf16.mxu0 0
        %5298 = vmatpush1.bf16.msra.mxu0 0
        %5299 = vmatprep.subr.bf16.mxu0 0
        %5300 = vmatpush1.bf16.msra.mxu0 0
        %5301 = vmatprep.subr.bf16.mxu0 0
        %5302 = vmatpush1.bf16.msra.mxu0 0
        %5303 = vmatprep.subr.bf16.mxu0 0
        %5304 = vmatpush1.bf16.msra.mxu0 0
        %5305 = vmatprep.subr.bf16.mxu0 0
        %5306 = vmatpush1.bf16.msra.mxu0 0
        %5307 = vmatprep.subr.bf16.mxu0 0
        %5308 = vmatpush1.bf16.msra.mxu0 0
        %5309 = vmatprep.subr.bf16.mxu0 0
        %5310 = vmatpush1.bf16.msra.mxu0 0
        %5311 = vmatprep.subr.bf16.mxu0 0
        %5312 = vmatpush1.bf16.msra.mxu0 0
        %5313 = vmatprep.subr.bf16.mxu0 0
        %5314 = vmatpush1.bf16.msra.mxu0 0
        %5315 = vmatprep.subr.bf16.mxu0 0
        %5316 = vmatpush1.bf16.msra.mxu0 0
        %5317 = vmatprep.subr.bf16.mxu0 0
        %5318 = vmatpush1.bf16.msra.mxu0 0
        %5319 = vmatprep.subr.bf16.mxu0 0
        %5320 = vmatpush1.bf16.msra.mxu0 0
        %5321 = vmatprep.mubr.bf16.mxu0 0
        %5322 = vmatmul.mubr.bf16.gmra.mrb[0].mxu0 %v5287
        %v5323 = vpop.f32.mrb[0].mxu0
        %v5324 = vadd.f32 %v5278, %v5323
        %v5325 = vpop.f32.mrb[0].mxu0
        %v5326 = vpop.f32.mrb[0].mxu0
        %v5327 = vpop.f32.mrb[0].mxu0
        %5328 = vdwg.mxu0
        %v5329 = vmax.f32 %v5324, 0.0
        %v5330 = vld [vmem:[%s87] sm:$0xf]
        %v5331 = vld [vmem:[%s87 + $0x4] sm:$0xf]
        %v5332 = vld [vmem:[%s87 + $0x8] sm:$0xf]
        %v5333 = vld [vmem:[%s87 + $0xc] sm:$0xf]
        %v5334 = vpack.c.bf16 %v5329, %v5329
        %v5339 = vunpack.c.l.b16 %v5330
        %v5340 = vunpack.c.l.b16 %v5331
        %v5341 = vunpack.c.l.b16 %v5332
        %v5342 = vunpack.c.l.b16 %v5333
        %v5343 = vpack.c.b16 %v5340, %v5339
        %v5344 = vpack.c.b16 %v5342, %v5341
        %v5348 = vsel %vm2986, %v5334, 0
        %5350 = vmatprep.subr.bf16.mxu0 0
        %5351 = vmatpush1.bf16.msra.mxu0 %v5343
        %5352 = vmatprep.subr.bf16.mxu0 0
        %5353 = vmatpush1.bf16.msra.mxu0 %v5344
        %5354 = vmatprep.subr.bf16.mxu0 0
        %5355 = vmatpush1.bf16.msra.mxu0 0
        %5356 = vmatprep.subr.bf16.mxu0 0
        %5357 = vmatpush1.bf16.msra.mxu0 0
        %5358 = vmatprep.subr.bf16.mxu0 0
        %5359 = vmatpush1.bf16.msra.mxu0 0
        %5360 = vmatprep.subr.bf16.mxu0 0
        %5361 = vmatpush1.bf16.msra.mxu0 0
        %5362 = vmatprep.subr.bf16.mxu0 0
        %5363 = vmatpush1.bf16.msra.mxu0 0
        %5364 = vmatprep.subr.bf16.mxu0 0
        %5365 = vmatpush1.bf16.msra.mxu0 0
        %5366 = vmatprep.subr.bf16.mxu0 0
        %5367 = vmatpush1.bf16.msra.mxu0 0
        %5368 = vmatprep.subr.bf16.mxu0 0
        %5369 = vmatpush1.bf16.msra.mxu0 0
        %5370 = vmatprep.subr.bf16.mxu0 0
        %5371 = vmatpush1.bf16.msra.mxu0 0
        %5372 = vmatprep.subr.bf16.mxu0 0
        %5373 = vmatpush1.bf16.msra.mxu0 0
        %5374 = vmatprep.subr.bf16.mxu0 0
        %5375 = vmatpush1.bf16.msra.mxu0 0
        %5376 = vmatprep.subr.bf16.mxu0 0
        %5377 = vmatpush1.bf16.msra.mxu0 0
        %5378 = vmatprep.subr.bf16.mxu0 0
        %5379 = vmatpush1.bf16.msra.mxu0 0
        %5380 = vmatprep.subr.bf16.mxu0 0
        %5381 = vmatpush1.bf16.msra.mxu0 0
        %5382 = vmatprep.mubr.bf16.mxu0 0
        %5383 = vmatmul.mubr.bf16.gmra.mrb[0].mxu0 %v5348
        %v5384 = vpop.f32.mrb[0].mxu0
        %v5385 = vadd.f32 0.0, %v5384
        %v5386 = vpop.f32.mrb[0].mxu0
        %v5387 = vpop.f32.mrb[0].mxu0
        %v5388 = vpop.f32.mrb[0].mxu0
        %5389 = vdwg.mxu0
        %v5390 = vadd.f32 %v5233, %v5385
        %v5391 = vld [vmem:[#allocation10] sm:$0x1]
        %v5393 = vlaneseq
        %v5394 = vshrl.u32 %v5393, 7
        %v5395 = vsub.s32 0, %v5394
        %v5396 = vrot.slane %v5391, %v5395
        %v5398 = vadd.f32 %v5390, %v5396
        %v5399 = vld [vmem:[%s91] sm:$0xf]
        %v5400 = vld [vmem:[%s91 + $0x4] sm:$0xf]
        %v5401 = vpack.c.bf16 %v5398, %v5398
        %v5402 = vld [vmem:[#allocation12] sm:$0x1]
        %v5404 = vlaneseq
        %v5405 = vshrl.u32 %v5404, 7
        %v5406 = vsub.s32 0, %v5405
        %v5407 = vrot.slane %v5402, %v5406
        %v5411 = vunpack.c.l.b16 %v5399
        %v5412 = vunpack.c.l.b16 %v5400
        %v5413 = vpack.c.b16 %v5412, %v5411
        %v5416 = vsel %vm1520, %v5401, 0
        %5418 = vmatprep.subr.bf16.mxu0 0
        %5419 = vmatpush1.bf16.msra.mxu0 %v5413
        %5420 = vmatprep.subr.bf16.mxu0 0
        %5421 = vmatpush1.bf16.msra.mxu0 0
        %5422 = vmatprep.subr.bf16.mxu0 0
        %5423 = vmatpush1.bf16.msra.mxu0 0
        %5424 = vmatprep.subr.bf16.mxu0 0
        %5425 = vmatpush1.bf16.msra.mxu0 0
        %5426 = vmatprep.subr.bf16.mxu0 0
        %5427 = vmatpush1.bf16.msra.mxu0 0
        %5428 = vmatprep.subr.bf16.mxu0 0
        %5429 = vmatpush1.bf16.msra.mxu0 0
        %5430 = vmatprep.subr.bf16.mxu0 0
        %5431 = vmatpush1.bf16.msra.mxu0 0
        %5432 = vmatprep.subr.bf16.mxu0 0
        %5433 = vmatpush1.bf16.msra.mxu0 0
        %5434 = vmatprep.subr.bf16.mxu0 0
        %5435 = vmatpush1.bf16.msra.mxu0 0
        %5436 = vmatprep.subr.bf16.mxu0 0
        %5437 = vmatpush1.bf16.msra.mxu0 0
        %5438 = vmatprep.subr.bf16.mxu0 0
        %5439 = vmatpush1.bf16.msra.mxu0 0
        %5440 = vmatprep.subr.bf16.mxu0 0
        %5441 = vmatpush1.bf16.msra.mxu0 0
        %5442 = vmatprep.subr.bf16.mxu0 0
        %5443 = vmatpush1.bf16.msra.mxu0 0
        %5444 = vmatprep.subr.bf16.mxu0 0
        %5445 = vmatpush1.bf16.msra.mxu0 0
        %5446 = vmatprep.subr.bf16.mxu0 0
        %5447 = vmatpush1.bf16.msra.mxu0 0
        %5448 = vmatprep.subr.bf16.mxu0 0
        %5449 = vmatpush1.bf16.msra.mxu0 0
        %5450 = vmatprep.mubr.bf16.mxu0 0
        %5451 = vmatmul.mubr.bf16.gmra.mrb[0].mxu0 %v5416
        %v5452 = vpop.f32.mrb[0].mxu0
        %v5453 = vadd.f32 %v5407, %v5452
        %v5454 = vpop.f32.mrb[0].mxu0
        %v5455 = vpop.f32.mrb[0].mxu0
        %v5456 = vpop.f32.mrb[0].mxu0
        %5457 = vdwg.mxu0
        %5458 = vst [vmem:[%s1489] sm:$0xff] %v5453
        %p5459 = scmp.lt.s32.totalorder %s110, 1
        %s5460 = scalar_select %p5459, %s110, 1
        %s5461 = smul.addr %s5460, 8
        %s5462 = scalar_lea.vmem %s95, %s5461
        // Predicated region
        $region237: #{_lambda_.1} parent=207 // pred_check
          %p5463 = pneg %p1120
        $region238: #{_lambda_.1} parent=207 // pred_check_branch
          %5465 = sbr.rel (%p5463) target = $region240
        $region239: #{_lambda_.1} parent=207 // pred_region
          _
        $region240: #{_lambda_.1} parent=207 // pred_fallthru
          _
      $region208: #{_lambda_.1} parent=5 // pred_fallthru
        _
      %p5466 = scmp.le.s32.totalorder 2, %s105
      // Predicated region
      $region241: #{_lambda_.1} parent=5 // pred_check
        %p5467 = pneg %p5466
      $region242: #{_lambda_.1} parent=5 // pred_check_branch
        %5469 = sbr.rel (%p5467) target = $region244
      $region243: #{_lambda_.1} parent=5 // pred_region
        %s5470 = ssub.s32 %s105, 2
        // Predicated region
        $region245: #{_lambda_.1} parent=243 // pred_check
          %p5471 = pneg %p1126
        $region246: #{_lambda_.1} parent=243 // pred_check_branch
          %5473 = sbr.rel (%p5471) target = $region248
        $region247: #{_lambda_.1} parent=243 // pred_region
          %p5474 = scmp.lt.s32.totalorder %s111, 1
          %s5475 = scalar_select %p5474, %s111, 1
          %s5476 = smul.addr %s5475, 8
          %s5477 = scalar_lea.vmem %s95, %s5476
        $region248: #{_lambda_.1} parent=243 // pred_fallthru
          _
      $region244: #{_lambda_.1} parent=5 // pred_fallthru
        _
    $region6: #{_lambda_.1} parent=1 // loop_footer
      %s109 = sadd.s32 1, %s105
    $region7: #{_lambda_.1} parent=1 // loop_footer_branch
      %104 = sbr.rel target = $region3
    $region8: #{_lambda_.1} parent=1 // loop_exit
      _
    %5478 = vsyncpa [#allocation3], 1
    %s5479 = scalar_lea.sflag [#allocation3], 1
    %5480 = vsyncpa %s5479, 1
    %5481 = vsyncpa [#allocation5], 1
    %5482 = vsyncpa [#allocation8], 1
    %5483 = vsyncpa [#allocation11], 1

</llo_original>
